<compile_context>
chip_gen: v5e
topology: v5e:2x2
jax: 0.10.0
libtpu: 0.0.40
codegen_flags: <defaults>
</compile_context>

<pallas_src>
import functools

import jax
import jax.numpy as jnp
from jax.experimental import pallas as pl
from jax.experimental.pallas import tpu as pltpu


# -----------------------------------------------------------------------------
# Fused Pallas kernel (one batch element per grid step)
# -----------------------------------------------------------------------------
def _hidden_encoder_kernel(img_col_ref, msgs_ref, *refs, num_blocks, H, W,
                           channels, num_bits, compute_dtype, last_tanh):
    """Runs the full HiddenEncoder forward for one image, entirely in VMEM.

    img_col_ref: (1, H*W, 27)      im2col of the padded input image (tap-major, K=27)
    msgs_ref:    (1, 1, num_bits)
    refs:        [w_0, shift_0, ..., w_nb, shift_nb, w_ac, shift_ac, w_final, b_final, o_ref]
                 w_i:     (9*Cin_i, channels)  BN-scale-folded conv weights (compute dtype)
                 shift_i: (1, channels)        folded BN shift (f32)
                 w_final: (3, channels), b_final: (3, 1)
    o_ref:       (1, 3, H*W)       flattened NCHW output (lane-dense stores)
    """
    HW = H * W
    cd = compute_dtype
    n_conv = num_blocks + 1                       # conv_bns + after_concat
    conv_ws = [refs[2 * i] for i in range(n_conv)]
    conv_shifts = [refs[2 * i + 1] for i in range(n_conv)]
    wf_ref = refs[2 * n_conv]
    bf_ref = refs[2 * n_conv + 1]
    o_ref = refs[2 * n_conv + 2]

    inv_sqrt2 = 0.7071067811865476

    def conv_bn_gelu(col, w_ref, shift_ref):
        # Single MXU matmul with K = 9*Cin, f32 accumulation; folded-BN shift; exact GELU.
        y = jnp.dot(col, w_ref[...], preferred_element_type=jnp.float32)
        y = y + shift_ref[...]
        return 0.5 * y * (1.0 + jax.lax.erf(y * inv_sqrt2))   # (HW, Cout) f32

    def im2col(x_hwc):
        # x_hwc: (H, W, C) value -> (HW, 9*C) patch matrix with zero 'same' padding.
        C = x_hwc.shape[-1]
        x_hwc = x_hwc.astype(cd)                  # cast once, before any relayout work
        zc = jnp.zeros((H, 1, C), cd)
        xp = jnp.concatenate([zc, x_hwc, zc], axis=1)          # (H, W+2, C)
        zr = jnp.zeros((1, W + 2, C), cd)
        xp = jnp.concatenate([zr, xp, zr], axis=0)             # (H+2, W+2, C)
        # Hoist the 3 dx-shifted slabs; dy slices are cheap leading-axis slices.
        slabs = [xp[:, dx:dx + W, :] for dx in range(3)]       # each (H+2, W, C)
        taps = [slabs[dx][dy:dy + H].reshape(HW, C)
                for dy in range(3) for dx in range(3)]         # tap order t = dy*3 + dx
        return jnp.concatenate(taps, axis=1)                   # (HW, 9*C)

    # ---- conv_bns[0]: input already im2col'd in the wrapper (K = 27) ----
    img_col = img_col_ref[0]                                   # (HW, 27), compute dtype
    x = conv_bn_gelu(img_col, conv_ws[0], conv_shifts[0])      # (HW, channels) f32

    # ---- conv_bns[1:] ----
    for i in range(1, num_blocks):
        x = conv_bn_gelu(im2col(x.reshape(H, W, channels)),
                         conv_ws[i], conv_shifts[i])

    # ---- torch.cat([msgs, encoded_image, imgs], dim=1) -> channel-last concat ----
    msgs_b = jnp.broadcast_to(msgs_ref[0].astype(jnp.float32), (HW, num_bits))
    imgs_hw3 = img_col[:, 4 * 3:5 * 3].astype(jnp.float32)     # center tap == raw image
    cat = jnp.concatenate([msgs_b, x, imgs_hw3], axis=1)       # (HW, num_bits+channels+3)

    # ---- after_concat ConvBNRelu ----
    cc = num_bits + channels + 3
    x = conv_bn_gelu(im2col(cat.reshape(H, W, cc)),
                     conv_ws[num_blocks], conv_shifts[num_blocks])

    # ---- final 1x1 conv, emitted lane-dense as (3, H*W) == flattened NCHW ----
    xt = x.T.astype(cd)                                        # (channels, HW)
    y = jnp.dot(wf_ref[...], xt, preferred_element_type=jnp.float32) + bf_ref[...]
    if last_tanh:
        y = jnp.tanh(y)
    o_ref[...] = y[None].astype(o_ref.dtype)


# -----------------------------------------------------------------------------
# Wrapper: weight folding + first-layer im2col + single pallas_call
# -----------------------------------------------------------------------------
def hidden_encoder_forward(params, imgs_nchw, msgs, last_tanh=True,
                           compute_dtype=jnp.float32, bn_eps=1e-3):
    imgs = jnp.transpose(imgs_nchw, (0, 2, 3, 1)).astype(jnp.float32)   # NCHW -> NHWC
    N, H, W, _ = imgs.shape
    num_bits = msgs.shape[-1]
    num_blocks = len(params["conv_bns"])
    channels = params["conv_bns"][0]["w"].shape[-1]
    cd = compute_dtype

    # First-layer im2col (cheap XLA layout plumbing on the tiny 3-channel image):
    # folds Cin=3 into the tap axis so the kernel's first matmul has K=27.
    xp = jnp.pad(imgs, ((0, 0), (1, 1), (1, 1), (0, 0)))
    taps = [xp[:, dy:dy + H, dx:dx + W, :] for dy in range(3) for dx in range(3)]
    img_col = jnp.concatenate(taps, axis=-1).reshape(N, H * W, 27).astype(cd)

    def fold(blk):
        # Eval-mode BN folded into the conv: w' = w * scale ; shift = scale*(bias-mean)+beta
        scale = blk["gamma"] / jnp.sqrt(blk["var"] + bn_eps)
        cin, cout = blk["w"].shape[2], blk["w"].shape[3]
        wk = (blk["w"].reshape(9 * cin, cout) * scale[None, :]).astype(cd)
        shift = (scale * (blk["bias"] - blk["mean"]) + blk["beta"]).reshape(1, cout)
        return wk, shift.astype(jnp.float32)

    weight_args = []
    for blk in params["conv_bns"]:
        weight_args += list(fold(blk))
    weight_args += list(fold(params["after_concat"]))
    weight_args.append(jnp.transpose(params["final"]["w"]).astype(cd))      # (3, channels)
    weight_args.append(params["final"]["b"].reshape(3, 1).astype(jnp.float32))

    kernel = functools.partial(
        _hidden_encoder_kernel, num_blocks=num_blocks, H=H, W=W, channels=channels,
        num_bits=num_bits, compute_dtype=cd, last_tanh=last_tanh)

    in_specs = [
        pl.BlockSpec((1, H * W, 27), lambda b: (b, 0, 0)),
        pl.BlockSpec((1, 1, num_bits), lambda b: (b, 0, 0)),
    ] + [pl.BlockSpec(a.shape, lambda b: (0, 0)) for a in weight_args]   # all weights are 2D,
    # constant block index -> not re-DMAed per grid step.

    out = pl.pallas_call(
        kernel,
        out_shape=jax.ShapeDtypeStruct((N, 3, H * W), jnp.float32),
        grid=(N,),
        in_specs=in_specs,
        out_specs=pl.BlockSpec((1, 3, H * W), lambda b: (b, 0, 0)),
        compiler_params=pltpu.CompilerParams(dimension_semantics=("parallel",)),
    )(img_col, msgs.reshape(N, 1, num_bits).astype(jnp.float32), *weight_args)

    return out.reshape(N, 3, H, W)        # already NCHW; reshape is free


# -----------------------------------------------------------------------------
# Pure-JAX reference (for correctness check)
# -----------------------------------------------------------------------------
def _ref_conv_bn_gelu(x, w, gamma, beta, mean, var, bias, eps=1e-3):
    y = jax.lax.conv_general_dilated(
        x, w, window_strides=(1, 1), padding="SAME",
        dimension_numbers=("NHWC", "HWIO", "NHWC")) + bias
    y = gamma * (y - mean) / jnp.sqrt(var + eps) + beta
    return 0.5 * y * (1.0 + jax.lax.erf(y * 0.7071067811865476))


def hidden_encoder_reference(params, imgs_nchw, msgs, last_tanh=True):
    imgs = jnp.transpose(imgs_nchw, (0, 2, 3, 1))
    N, H, W, _ = imgs.shape
    x = imgs
    for blk in params["conv_bns"]:
        x = _ref_conv_bn_gelu(x, **blk)
    msgs_exp = jnp.broadcast_to(msgs[:, None, None, :], (N, H, W, msgs.shape[-1]))
    concat = jnp.concatenate([msgs_exp, x, imgs], axis=-1)
    x = _ref_conv_bn_gelu(concat, **params["after_concat"])
    x = jnp.einsum("nhwc,co->nhwo", x, params["final"]["w"]) + params["final"]["b"]
    if last_tanh:
        x = jnp.tanh(x)
    return jnp.transpose(x, (0, 3, 1, 2))


# -----------------------------------------------------------------------------
# Deterministic parameter init (synthetic, not a checkpoint load)
# -----------------------------------------------------------------------------
def _init_convbn(key, cin, cout):
    ks = jax.random.split(key, 6)
    return dict(
        w=0.1 * jax.random.normal(ks[0], (3, 3, cin, cout), jnp.float32),
        bias=0.1 * jax.random.normal(ks[1], (cout,), jnp.float32),
        gamma=1.0 + 0.1 * jax.random.normal(ks[2], (cout,), jnp.float32),
        beta=0.1 * jax.random.normal(ks[3], (cout,), jnp.float32),
        mean=0.1 * jax.random.normal(ks[4], (cout,), jnp.float32),
        var=0.5 + 0.1 * jnp.abs(jax.random.normal(ks[5], (cout,), jnp.float32)),
    )


def init_hidden_encoder(key, num_blocks, num_bits, channels):
    keys = jax.random.split(key, num_blocks + 3)
    conv_bns = [_init_convbn(keys[0], 3, channels)]
    for i in range(num_blocks - 1):
        conv_bns.append(_init_convbn(keys[1 + i], channels, channels))
    after_concat = _init_convbn(keys[num_blocks], channels + 3 + num_bits, channels)
    final = dict(
        w=0.1 * jax.random.normal(keys[num_blocks + 1], (channels, 3), jnp.float32),
        b=0.1 * jax.random.normal(keys[num_blocks + 2], (3,), jnp.float32),
    )
    return dict(conv_bns=conv_bns, after_concat=after_concat, final=final)


# -----------------------------------------------------------------------------
if __name__ == "__main__":
    num_blocks, num_bits, channels = 2, 8, 32
    N, H, W = 2, 16, 16

    key = jax.random.PRNGKey(0)
    k_params, k_imgs, k_msgs = jax.random.split(key, 3)

    params = init_hidden_encoder(k_params, num_blocks, num_bits, channels)
    imgs = jax.random.normal(k_imgs, (N, 3, H, W), jnp.float32)      # NCHW (PyTorch)
    msgs = jax.random.normal(k_msgs, (N, num_bits), jnp.float32)

    ref = jax.block_until_ready(hidden_encoder_reference(params, imgs, msgs, last_tanh=True))

    # f32 path: strict numerical parity with the pure-JAX reference.
    out = jax.block_until_ready(
        hidden_encoder_forward(params, imgs, msgs, last_tanh=True,
                               compute_dtype=jnp.float32))
    assert out.shape == (N, 3, H, W), out.shape
    err_f32 = float(jnp.max(jnp.abs(out - ref)))
    assert err_f32 < 5e-4, err_f32

    # bf16 path: MXU-native matmuls with f32 accumulation (looser tolerance).
    out_bf16 = jax.block_until_ready(
        hidden_encoder_forward(params, imgs, msgs, last_tanh=True,
                               compute_dtype=jnp.bfloat16))
    assert out_bf16.shape == (N, 3, H, W), out_bf16.shape
    err_bf16 = float(jnp.max(jnp.abs(out_bf16 - ref)))
    assert err_bf16 < 8e-2, err_bf16

    print("KERNEL_OK")
</pallas_src>

<mosaic_0001>
module attributes {stable_mosaic.version = 11 : i64} {
  func.func @_hidden_encoder_kernel(%arg0: i32, %arg1: memref<1x256x27xf32, #tpu.memory_space<vmem>>, %arg2: memref<1x1x8xf32, #tpu.memory_space<vmem>>, %arg3: memref<27x32xf32, #tpu.memory_space<vmem>>, %arg4: memref<1x32xf32, #tpu.memory_space<vmem>>, %arg5: memref<288x32xf32, #tpu.memory_space<vmem>>, %arg6: memref<1x32xf32, #tpu.memory_space<vmem>>, %arg7: memref<387x32xf32, #tpu.memory_space<vmem>>, %arg8: memref<1x32xf32, #tpu.memory_space<vmem>>, %arg9: memref<3x32xf32, #tpu.memory_space<vmem>>, %arg10: memref<3x1xf32, #tpu.memory_space<vmem>>, %arg11: memref<1x3x256xf32, #tpu.memory_space<vmem>>) attributes {dimension_semantics = [#tpu.dimension_semantics<parallel>], iteration_bounds = array<i64: 2>, scalar_prefetch = 0 : i64, scratch_operands = 0 : i64, tpu.core_type = #tpu.core_type<tc>, window_params = [{transform_indices = @transform_0, window_bounds = array<i64: 1, 256, 27>}, {transform_indices = @transform_1, window_bounds = array<i64: 1, 1, 8>}, {pipeline_mode = #tpu.pipeline_mode<synchronous>, transform_indices = @transform_2, window_bounds = array<i64: 27, 32>}, {pipeline_mode = #tpu.pipeline_mode<synchronous>, transform_indices = @transform_3, window_bounds = array<i64: 1, 32>}, {pipeline_mode = #tpu.pipeline_mode<synchronous>, transform_indices = @transform_4, window_bounds = array<i64: 288, 32>}, {pipeline_mode = #tpu.pipeline_mode<synchronous>, transform_indices = @transform_5, window_bounds = array<i64: 1, 32>}, {pipeline_mode = #tpu.pipeline_mode<synchronous>, transform_indices = @transform_6, window_bounds = array<i64: 387, 32>}, {pipeline_mode = #tpu.pipeline_mode<synchronous>, transform_indices = @transform_7, window_bounds = array<i64: 1, 32>}, {pipeline_mode = #tpu.pipeline_mode<synchronous>, transform_indices = @transform_8, window_bounds = array<i64: 3, 32>}, {pipeline_mode = #tpu.pipeline_mode<synchronous>, transform_indices = @transform_9, window_bounds = array<i64: 3, 1>}, {transform_indices = @transform_10, window_bounds = array<i64: 1, 3, 256>}]} {
    %c0 = arith.constant 0 : index
    %c0_0 = arith.constant 0 : index
    %c0_1 = arith.constant 0 : index
    %0 = vector.load %arg1[%c0, %c0_0, %c0_1] : memref<1x256x27xf32, #tpu.memory_space<vmem>>, vector<1x256x27xf32>
    %1 = vector.shape_cast %0 : vector<1x256x27xf32> to vector<256x27xf32>
    %c0_2 = arith.constant 0 : index
    %c0_3 = arith.constant 0 : index
    %2 = vector.load %arg3[%c0_2, %c0_3] : memref<27x32xf32, #tpu.memory_space<vmem>>, vector<27x32xf32>
    %cst = arith.constant dense<0.000000e+00> : vector<256x32xf32>
    %3 = tpu.matmul %1, %2, %cst {dimension_numbers = #tpu.dot_dimension_numbers<[1], [0], [0], [1], [0, 0, 1, 1], [], []>} : vector<256x27xf32>, vector<27x32xf32>, vector<256x32xf32> -> vector<256x32xf32>
    %c0_4 = arith.constant 0 : index
    %c0_5 = arith.constant 0 : index
    %4 = vector.load %arg4[%c0_4, %c0_5] : memref<1x32xf32, #tpu.memory_space<vmem>>, vector<1x32xf32>
    %5 = vector.broadcast %4 : vector<1x32xf32> to vector<256x32xf32>
    %6 = arith.addf %3, %5 : vector<256x32xf32>
    %cst_6 = arith.constant 5.000000e-01 : f32
    %7 = vector.broadcast %cst_6 : f32 to vector<256x32xf32>
    %8 = arith.mulf %7, %6 : vector<256x32xf32>
    %cst_7 = arith.constant 0.707106769 : f32
    %9 = vector.broadcast %cst_7 : f32 to vector<256x32xf32>
    %10 = arith.mulf %6, %9 : vector<256x32xf32>
    %11 = math.erf %10 : vector<256x32xf32>
    %cst_8 = arith.constant 1.000000e+00 : f32
    %12 = vector.broadcast %cst_8 : f32 to vector<256x32xf32>
    %13 = arith.addf %12, %11 : vector<256x32xf32>
    %14 = arith.mulf %8, %13 : vector<256x32xf32>
    %15 = vector.shape_cast %14 : vector<256x32xf32> to vector<16x16x32xf32>
    %cst_9 = arith.constant 0.000000e+00 : f32
    %16 = vector.broadcast %cst_9 : f32 to vector<16x1x32xf32>
    %17 = tpu.concatenate %16, %15, %16 in 1 : vector<16x1x32xf32>, vector<16x16x32xf32>, vector<16x1x32xf32> -> vector<16x18x32xf32>
    %cst_10 = arith.constant 0.000000e+00 : f32
    %18 = vector.broadcast %cst_10 : f32 to vector<1x18x32xf32>
    %19 = tpu.concatenate %18, %17, %18 in 0 : vector<1x18x32xf32>, vector<16x18x32xf32>, vector<1x18x32xf32> -> vector<18x18x32xf32>
    %20 = vector.extract_strided_slice %19 {offsets = [0, 0, 0], sizes = [18, 16, 32], strides = [1, 1, 1]} : vector<18x18x32xf32> to vector<18x16x32xf32>
    %21 = vector.extract_strided_slice %19 {offsets = [0, 1, 0], sizes = [18, 16, 32], strides = [1, 1, 1]} : vector<18x18x32xf32> to vector<18x16x32xf32>
    %22 = vector.extract_strided_slice %19 {offsets = [0, 2, 0], sizes = [18, 16, 32], strides = [1, 1, 1]} : vector<18x18x32xf32> to vector<18x16x32xf32>
    %23 = vector.extract_strided_slice %20 {offsets = [0, 0, 0], sizes = [16, 16, 32], strides = [1, 1, 1]} : vector<18x16x32xf32> to vector<16x16x32xf32>
    %24 = vector.shape_cast %23 : vector<16x16x32xf32> to vector<256x32xf32>
    %25 = vector.extract_strided_slice %21 {offsets = [0, 0, 0], sizes = [16, 16, 32], strides = [1, 1, 1]} : vector<18x16x32xf32> to vector<16x16x32xf32>
    %26 = vector.shape_cast %25 : vector<16x16x32xf32> to vector<256x32xf32>
    %27 = vector.extract_strided_slice %22 {offsets = [0, 0, 0], sizes = [16, 16, 32], strides = [1, 1, 1]} : vector<18x16x32xf32> to vector<16x16x32xf32>
    %28 = vector.shape_cast %27 : vector<16x16x32xf32> to vector<256x32xf32>
    %29 = vector.extract_strided_slice %20 {offsets = [1, 0, 0], sizes = [16, 16, 32], strides = [1, 1, 1]} : vector<18x16x32xf32> to vector<16x16x32xf32>
    %30 = vector.shape_cast %29 : vector<16x16x32xf32> to vector<256x32xf32>
    %31 = vector.extract_strided_slice %21 {offsets = [1, 0, 0], sizes = [16, 16, 32], strides = [1, 1, 1]} : vector<18x16x32xf32> to vector<16x16x32xf32>
    %32 = vector.shape_cast %31 : vector<16x16x32xf32> to vector<256x32xf32>
    %33 = vector.extract_strided_slice %22 {offsets = [1, 0, 0], sizes = [16, 16, 32], strides = [1, 1, 1]} : vector<18x16x32xf32> to vector<16x16x32xf32>
    %34 = vector.shape_cast %33 : vector<16x16x32xf32> to vector<256x32xf32>
    %35 = vector.extract_strided_slice %20 {offsets = [2, 0, 0], sizes = [16, 16, 32], strides = [1, 1, 1]} : vector<18x16x32xf32> to vector<16x16x32xf32>
    %36 = vector.shape_cast %35 : vector<16x16x32xf32> to vector<256x32xf32>
    %37 = vector.extract_strided_slice %21 {offsets = [2, 0, 0], sizes = [16, 16, 32], strides = [1, 1, 1]} : vector<18x16x32xf32> to vector<16x16x32xf32>
    %38 = vector.shape_cast %37 : vector<16x16x32xf32> to vector<256x32xf32>
    %39 = vector.extract_strided_slice %22 {offsets = [2, 0, 0], sizes = [16, 16, 32], strides = [1, 1, 1]} : vector<18x16x32xf32> to vector<16x16x32xf32>
    %40 = vector.shape_cast %39 : vector<16x16x32xf32> to vector<256x32xf32>
    %41 = tpu.concatenate %24, %26, %28, %30, %32, %34, %36, %38, %40 in 1 : vector<256x32xf32>, vector<256x32xf32>, vector<256x32xf32>, vector<256x32xf32>, vector<256x32xf32>, vector<256x32xf32>, vector<256x32xf32>, vector<256x32xf32>, vector<256x32xf32> -> vector<256x288xf32>
    %c0_11 = arith.constant 0 : index
    %c0_12 = arith.constant 0 : index
    %42 = vector.load %arg5[%c0_11, %c0_12] : memref<288x32xf32, #tpu.memory_space<vmem>>, vector<288x32xf32>
    %cst_13 = arith.constant dense<0.000000e+00> : vector<256x32xf32>
    %43 = tpu.matmul %41, %42, %cst_13 {dimension_numbers = #tpu.dot_dimension_numbers<[1], [0], [0], [1], [0, 0, 1, 1], [], []>} : vector<256x288xf32>, vector<288x32xf32>, vector<256x32xf32> -> vector<256x32xf32>
    %c0_14 = arith.constant 0 : index
    %c0_15 = arith.constant 0 : index
    %44 = vector.load %arg6[%c0_14, %c0_15] : memref<1x32xf32, #tpu.memory_space<vmem>>, vector<1x32xf32>
    %45 = vector.broadcast %44 : vector<1x32xf32> to vector<256x32xf32>
    %46 = arith.addf %43, %45 : vector<256x32xf32>
    %cst_16 = arith.constant 5.000000e-01 : f32
    %47 = vector.broadcast %cst_16 : f32 to vector<256x32xf32>
    %48 = arith.mulf %47, %46 : vector<256x32xf32>
    %cst_17 = arith.constant 0.707106769 : f32
    %49 = vector.broadcast %cst_17 : f32 to vector<256x32xf32>
    %50 = arith.mulf %46, %49 : vector<256x32xf32>
    %51 = math.erf %50 : vector<256x32xf32>
    %cst_18 = arith.constant 1.000000e+00 : f32
    %52 = vector.broadcast %cst_18 : f32 to vector<256x32xf32>
    %53 = arith.addf %52, %51 : vector<256x32xf32>
    %54 = arith.mulf %48, %53 : vector<256x32xf32>
    %c0_19 = arith.constant 0 : index
    %c0_20 = arith.constant 0 : index
    %c0_21 = arith.constant 0 : index
    %55 = vector.load %arg2[%c0_19, %c0_20, %c0_21] : memref<1x1x8xf32, #tpu.memory_space<vmem>>, vector<1x1x8xf32>
    %56 = vector.shape_cast %55 : vector<1x1x8xf32> to vector<1x8xf32>
    %57 = vector.shape_cast %56 : vector<1x8xf32> to vector<1x8xf32>
    %58 = vector.broadcast %57 : vector<1x8xf32> to vector<256x8xf32>
    %59 = vector.extract_strided_slice %1 {offsets = [0, 12], sizes = [256, 3], strides = [1, 1]} : vector<256x27xf32> to vector<256x3xf32>
    %60 = tpu.concatenate %58, %54, %59 in 1 : vector<256x8xf32>, vector<256x32xf32>, vector<256x3xf32> -> vector<256x43xf32>
    %61 = vector.shape_cast %60 : vector<256x43xf32> to vector<16x16x43xf32>
    %cst_22 = arith.constant 0.000000e+00 : f32
    %62 = vector.broadcast %cst_22 : f32 to vector<16x1x43xf32>
    %63 = tpu.concatenate %62, %61, %62 in 1 : vector<16x1x43xf32>, vector<16x16x43xf32>, vector<16x1x43xf32> -> vector<16x18x43xf32>
    %cst_23 = arith.constant 0.000000e+00 : f32
    %64 = vector.broadcast %cst_23 : f32 to vector<1x18x43xf32>
    %65 = tpu.concatenate %64, %63, %64 in 0 : vector<1x18x43xf32>, vector<16x18x43xf32>, vector<1x18x43xf32> -> vector<18x18x43xf32>
    %66 = vector.extract_strided_slice %65 {offsets = [0, 0, 0], sizes = [18, 16, 43], strides = [1, 1, 1]} : vector<18x18x43xf32> to vector<18x16x43xf32>
    %67 = vector.extract_strided_slice %65 {offsets = [0, 1, 0], sizes = [18, 16, 43], strides = [1, 1, 1]} : vector<18x18x43xf32> to vector<18x16x43xf32>
    %68 = vector.extract_strided_slice %65 {offsets = [0, 2, 0], sizes = [18, 16, 43], strides = [1, 1, 1]} : vector<18x18x43xf32> to vector<18x16x43xf32>
    %69 = vector.extract_strided_slice %66 {offsets = [0, 0, 0], sizes = [16, 16, 43], strides = [1, 1, 1]} : vector<18x16x43xf32> to vector<16x16x43xf32>
    %70 = vector.shape_cast %69 : vector<16x16x43xf32> to vector<256x43xf32>
    %71 = vector.extract_strided_slice %67 {offsets = [0, 0, 0], sizes = [16, 16, 43], strides = [1, 1, 1]} : vector<18x16x43xf32> to vector<16x16x43xf32>
    %72 = vector.shape_cast %71 : vector<16x16x43xf32> to vector<256x43xf32>
    %73 = vector.extract_strided_slice %68 {offsets = [0, 0, 0], sizes = [16, 16, 43], strides = [1, 1, 1]} : vector<18x16x43xf32> to vector<16x16x43xf32>
    %74 = vector.shape_cast %73 : vector<16x16x43xf32> to vector<256x43xf32>
    %75 = vector.extract_strided_slice %66 {offsets = [1, 0, 0], sizes = [16, 16, 43], strides = [1, 1, 1]} : vector<18x16x43xf32> to vector<16x16x43xf32>
    %76 = vector.shape_cast %75 : vector<16x16x43xf32> to vector<256x43xf32>
    %77 = vector.extract_strided_slice %67 {offsets = [1, 0, 0], sizes = [16, 16, 43], strides = [1, 1, 1]} : vector<18x16x43xf32> to vector<16x16x43xf32>
    %78 = vector.shape_cast %77 : vector<16x16x43xf32> to vector<256x43xf32>
    %79 = vector.extract_strided_slice %68 {offsets = [1, 0, 0], sizes = [16, 16, 43], strides = [1, 1, 1]} : vector<18x16x43xf32> to vector<16x16x43xf32>
    %80 = vector.shape_cast %79 : vector<16x16x43xf32> to vector<256x43xf32>
    %81 = vector.extract_strided_slice %66 {offsets = [2, 0, 0], sizes = [16, 16, 43], strides = [1, 1, 1]} : vector<18x16x43xf32> to vector<16x16x43xf32>
    %82 = vector.shape_cast %81 : vector<16x16x43xf32> to vector<256x43xf32>
    %83 = vector.extract_strided_slice %67 {offsets = [2, 0, 0], sizes = [16, 16, 43], strides = [1, 1, 1]} : vector<18x16x43xf32> to vector<16x16x43xf32>
    %84 = vector.shape_cast %83 : vector<16x16x43xf32> to vector<256x43xf32>
    %85 = vector.extract_strided_slice %68 {offsets = [2, 0, 0], sizes = [16, 16, 43], strides = [1, 1, 1]} : vector<18x16x43xf32> to vector<16x16x43xf32>
    %86 = vector.shape_cast %85 : vector<16x16x43xf32> to vector<256x43xf32>
    %87 = tpu.concatenate %70, %72, %74, %76, %78, %80, %82, %84, %86 in 1 : vector<256x43xf32>, vector<256x43xf32>, vector<256x43xf32>, vector<256x43xf32>, vector<256x43xf32>, vector<256x43xf32>, vector<256x43xf32>, vector<256x43xf32>, vector<256x43xf32> -> vector<256x387xf32>
    %c0_24 = arith.constant 0 : index
    %c0_25 = arith.constant 0 : index
    %88 = vector.load %arg7[%c0_24, %c0_25] : memref<387x32xf32, #tpu.memory_space<vmem>>, vector<387x32xf32>
    %cst_26 = arith.constant dense<0.000000e+00> : vector<256x32xf32>
    %89 = tpu.matmul %87, %88, %cst_26 {dimension_numbers = #tpu.dot_dimension_numbers<[1], [0], [0], [1], [0, 0, 1, 1], [], []>} : vector<256x387xf32>, vector<387x32xf32>, vector<256x32xf32> -> vector<256x32xf32>
    %c0_27 = arith.constant 0 : index
    %c0_28 = arith.constant 0 : index
    %90 = vector.load %arg8[%c0_27, %c0_28] : memref<1x32xf32, #tpu.memory_space<vmem>>, vector<1x32xf32>
    %91 = vector.broadcast %90 : vector<1x32xf32> to vector<256x32xf32>
    %92 = arith.addf %89, %91 : vector<256x32xf32>
    %cst_29 = arith.constant 5.000000e-01 : f32
    %93 = vector.broadcast %cst_29 : f32 to vector<256x32xf32>
    %94 = arith.mulf %93, %92 : vector<256x32xf32>
    %cst_30 = arith.constant 0.707106769 : f32
    %95 = vector.broadcast %cst_30 : f32 to vector<256x32xf32>
    %96 = arith.mulf %92, %95 : vector<256x32xf32>
    %97 = math.erf %96 : vector<256x32xf32>
    %cst_31 = arith.constant 1.000000e+00 : f32
    %98 = vector.broadcast %cst_31 : f32 to vector<256x32xf32>
    %99 = arith.addf %98, %97 : vector<256x32xf32>
    %100 = arith.mulf %94, %99 : vector<256x32xf32>
    %101 = tpu.transpose %100, [1, 0] : vector<256x32xf32> -> vector<32x256xf32>
    %c0_32 = arith.constant 0 : index
    %c0_33 = arith.constant 0 : index
    %102 = vector.load %arg9[%c0_32, %c0_33] : memref<3x32xf32, #tpu.memory_space<vmem>>, vector<3x32xf32>
    %cst_34 = arith.constant dense<0.000000e+00> : vector<3x256xf32>
    %103 = tpu.matmul %102, %101, %cst_34 {dimension_numbers = #tpu.dot_dimension_numbers<[1], [0], [0], [1], [0, 0, 1, 1], [], []>} : vector<3x32xf32>, vector<32x256xf32>, vector<3x256xf32> -> vector<3x256xf32>
    %c0_35 = arith.constant 0 : index
    %c0_36 = arith.constant 0 : index
    %104 = vector.load %arg10[%c0_35, %c0_36] : memref<3x1xf32, #tpu.memory_space<vmem>>, vector<3x1xf32>
    %105 = vector.broadcast %104 : vector<3x1xf32> to vector<3x256xf32>
    %106 = arith.addf %103, %105 : vector<3x256xf32>
    %107 = math.tanh %106 : vector<3x256xf32>
    %108 = vector.shape_cast %107 : vector<3x256xf32> to vector<1x3x256xf32>
    %c0_37 = arith.constant 0 : index
    %c0_38 = arith.constant 0 : index
    %c0_39 = arith.constant 0 : index
    %109 = vector.load %arg11[%c0_37, %c0_38, %c0_39] : memref<1x3x256xf32, #tpu.memory_space<vmem>>, vector<1x3x256xf32>
    tpu.vector_store %arg11[%c0_37, %c0_38, %c0_39], %108 {strides = array<i32>} : memref<1x3x256xf32, #tpu.memory_space<vmem>>, vector<1x3x256xf32>,
    return
  }
  func.func @transform_0(%arg0: i32) -> (i32, i32, i32) {
    %c0_i32 = arith.constant 0 : i32
    %c0_i32_0 = arith.constant 0 : i32
    %c0_i32_1 = arith.constant 0 : i32
    return %arg0, %c0_i32, %c0_i32_0 : i32, i32, i32
  }
  func.func @transform_1(%arg0: i32) -> (i32, i32, i32) {
    %c0_i32 = arith.constant 0 : i32
    %c0_i32_0 = arith.constant 0 : i32
    %c0_i32_1 = arith.constant 0 : i32
    return %arg0, %c0_i32, %c0_i32_0 : i32, i32, i32
  }
  func.func @transform_2(%arg0: i32) -> (i32, i32) {
    %c0_i32 = arith.constant 0 : i32
    %c0_i32_0 = arith.constant 0 : i32
    %c0_i32_1 = arith.constant 0 : i32
    return %c0_i32, %c0_i32_0 : i32, i32
  }
  func.func @transform_3(%arg0: i32) -> (i32, i32) {
    %c0_i32 = arith.constant 0 : i32
    %c0_i32_0 = arith.constant 0 : i32
    %c0_i32_1 = arith.constant 0 : i32
    return %c0_i32, %c0_i32_0 : i32, i32
  }
  func.func @transform_4(%arg0: i32) -> (i32, i32) {
    %c0_i32 = arith.constant 0 : i32
    %c0_i32_0 = arith.constant 0 : i32
    %c0_i32_1 = arith.constant 0 : i32
    return %c0_i32, %c0_i32_0 : i32, i32
  }
  func.func @transform_5(%arg0: i32) -> (i32, i32) {
    %c0_i32 = arith.constant 0 : i32
    %c0_i32_0 = arith.constant 0 : i32
    %c0_i32_1 = arith.constant 0 : i32
    return %c0_i32, %c0_i32_0 : i32, i32
  }
  func.func @transform_6(%arg0: i32) -> (i32, i32) {
    %c0_i32 = arith.constant 0 : i32
    %c0_i32_0 = arith.constant 0 : i32
    %c0_i32_1 = arith.constant 0 : i32
    return %c0_i32, %c0_i32_0 : i32, i32
  }
  func.func @transform_7(%arg0: i32) -> (i32, i32) {
    %c0_i32 = arith.constant 0 : i32
    %c0_i32_0 = arith.constant 0 : i32
    %c0_i32_1 = arith.constant 0 : i32
    return %c0_i32, %c0_i32_0 : i32, i32
  }
  func.func @transform_8(%arg0: i32) -> (i32, i32) {
    %c0_i32 = arith.constant 0 : i32
    %c0_i32_0 = arith.constant 0 : i32
    %c0_i32_1 = arith.constant 0 : i32
    return %c0_i32, %c0_i32_0 : i32, i32
  }
  func.func @transform_9(%arg0: i32) -> (i32, i32) {
    %c0_i32 = arith.constant 0 : i32
    %c0_i32_0 = arith.constant 0 : i32
    %c0_i32_1 = arith.constant 0 : i32
    return %c0_i32, %c0_i32_0 : i32, i32
  }
  func.func @transform_10(%arg0: i32) -> (i32, i32, i32) {
    %c0_i32 = arith.constant 0 : i32
    %c0_i32_0 = arith.constant 0 : i32
    %c0_i32_1 = arith.constant 0 : i32
    return %arg0, %c0_i32, %c0_i32_0 : i32, i32, i32
  }
}

</mosaic_0001>

<llo_original>
// kernel: tpu_custom_call.1
$region0: #{tpu_custom_call.1}
  #allocation0 [shape = 'u32[]', space=smem, size = 0x4, offset = 0x4, fixed_abs, tag = 'smem constant byte address 0x4 - core index']
  #allocation1 [shape = 'u32[72,128]{1,0:T(1,128)}', space=vmem, size = 0x9000, scoped, tag = 'internal scratch']
  %s0 = inlined_call_operand.vmem [shape: f32[2,256,27], index: 0, kind: input, shape index: {}]
  %s1 = inlined_call_operand.vmem [shape: f32[2,1,8], index: 1, kind: input, shape index: {}]
  %s2 = inlined_call_operand.vmem [shape: f32[27,32], index: 2, kind: input, shape index: {}]
  %s3 = inlined_call_operand.vmem [shape: f32[1,32], index: 3, kind: input, shape index: {}]
  %s4 = inlined_call_operand.vmem [shape: f32[288,32], index: 4, kind: input, shape index: {}]
  %s5 = inlined_call_operand.vmem [shape: f32[1,32], index: 5, kind: input, shape index: {}]
  %s6 = inlined_call_operand.vmem [shape: f32[387,32], index: 6, kind: input, shape index: {}]
  %s7 = inlined_call_operand.vmem [shape: f32[1,32], index: 7, kind: input, shape index: {}]
  %s8 = inlined_call_operand.vmem [shape: f32[3,32], index: 8, kind: input, shape index: {}]
  %s9 = inlined_call_operand.vmem [shape: f32[3,1], index: 9, kind: input, shape index: {}]
  %s10 = inlined_call_operand.vmem [shape: f32[2,3,256], index: 10, kind: output, shape index: {}]
  %s11 = sld [smem:[#allocation0]]
  $region73: #{tpu_custom_call.1} parent=0
    _
  %s13 = ssub.s32 1, %s11
  %s14 = scalar_select 0, %s13, %s11
  loop: start=0, step=1, limit=4
  $region2: #{tpu_custom_call.1} parent=0 // loop_pre_header
    _
  $region3: #{tpu_custom_call.1} parent=0 // loop_header
    %s16 = sphi 0, %s20
    %p17 = scmp.ge.s32.totalorder %s16, 4
    %s26 = sphi 0, %s28
    %s29 = sphi 0, %s26
    %s30 = sphi 0, %s29
    %s46 = sphi 0, %s30
    %s52 = sphi 0, %s54
    %s55 = sphi 0, %s52
    %s56 = sphi 0, %s55
    %s72 = sphi 0, %s56
    %s76 = sphi 0, %s76
    %s78 = sphi 0, %s76
    %s79 = sphi 0, %s78
    %s93 = sphi 0, %s79
    %s97 = sphi 0, %s97
    %s99 = sphi 0, %s97
    %s100 = sphi 0, %s99
    %s114 = sphi 0, %s100
    %s118 = sphi 0, %s118
    %s120 = sphi 0, %s118
    %s121 = sphi 0, %s120
    %s135 = sphi 0, %s121
    %s139 = sphi 0, %s139
    %s141 = sphi 0, %s139
    %s142 = sphi 0, %s141
    %s156 = sphi 0, %s142
    %s160 = sphi 0, %s160
    %s162 = sphi 0, %s160
    %s163 = sphi 0, %s162
    %s177 = sphi 0, %s163
    %s181 = sphi 0, %s181
    %s183 = sphi 0, %s181
    %s184 = sphi 0, %s183
    %s198 = sphi 0, %s184
    %s202 = sphi 0, %s202
    %s204 = sphi 0, %s202
    %s205 = sphi 0, %s204
    %s219 = sphi 0, %s205
    %s223 = sphi 0, %s223
    %s225 = sphi 0, %s223
    %s226 = sphi 0, %s225
    %s240 = sphi 0, %s226
    %s246 = sphi 0, %s248
    %s249 = sphi 0, %s246
    %s250 = sphi 0, %s249
    %s266 = sphi 0, %s250
  $region4: #{tpu_custom_call.1} parent=0 // loop_header_branch
    %19 = sbr.rel (%p17) target = $region8
  $region5: #{tpu_custom_call.1} parent=0 // loop_body
    %s21 = ssub.s32 %s16, 1
    %s22 = ssub.s32 %s16, 2
    %s23 = sadd.s32 %s16, 1
    %s24 = ssub.s32 %s16, %s23
    %p25 = scmp.eq.s32.totalorder %s24, 0
    %s27 = sadd.s32 %s26, 1
    %s28 = scalar_select %p25, %s26, %s27
    %p31 = pneg %p25
    %p32 = scmp.eq.s32.totalorder %s16, 1
    %p33 = por %p31, %p32
    %p34 = scmp.ne.s32.totalorder %s26, %s29
    %p35 = scmp.eq.s32.totalorder %s16, 0
    %p36 = por %p34, %p35
    %p37 = scmp.ne.s32.totalorder %s26, %s29
    %p38 = scmp.eq.s32.totalorder %s21, 1
    %p39 = por %p37, %p38
    %p40 = scmp.ne.s32.totalorder %s29, %s30
    %p41 = scmp.eq.s32.totalorder %s21, 0
    %p42 = por %p40, %p41
    %p43 = scmp.ne.s32.totalorder %s29, %s30
    %p44 = scmp.eq.s32.totalorder %s22, 1
    %p45 = por %p43, %p44
    %p47 = scmp.ne.s32.totalorder %s30, %s46
    %p48 = scmp.eq.s32.totalorder %s22, 0
    %p49 = por %p47, %p48
    %s50 = ssub.s32 %s16, %s23
    %p51 = scmp.eq.s32.totalorder %s50, 0
    %s53 = sadd.s32 %s52, 1
    %s54 = scalar_select %p51, %s52, %s53
    %p57 = pneg %p51
    %p58 = scmp.eq.s32.totalorder %s16, 1
    %p59 = por %p57, %p58
    %p60 = scmp.ne.s32.totalorder %s52, %s55
    %p61 = scmp.eq.s32.totalorder %s16, 0
    %p62 = por %p60, %p61
    %p63 = scmp.ne.s32.totalorder %s52, %s55
    %p64 = scmp.eq.s32.totalorder %s21, 1
    %p65 = por %p63, %p64
    %p66 = scmp.ne.s32.totalorder %s55, %s56
    %p67 = scmp.eq.s32.totalorder %s21, 0
    %p68 = por %p66, %p67
    %p69 = scmp.ne.s32.totalorder %s55, %s56
    %p70 = scmp.eq.s32.totalorder %s22, 1
    %p71 = por %p69, %p70
    %p73 = scmp.ne.s32.totalorder %s56, %s72
    %p74 = scmp.eq.s32.totalorder %s22, 0
    %p75 = por %p73, %p74
    %s77 = sadd.s32 %s76, 1
    %p80 = scmp.eq.s32.totalorder %s16, 1
    %p81 = scmp.ne.s32.totalorder %s76, %s78
    %p82 = scmp.eq.s32.totalorder %s16, 0
    %p83 = por %p81, %p82
    %p84 = scmp.ne.s32.totalorder %s76, %s78
    %p85 = scmp.eq.s32.totalorder %s21, 1
    %p86 = por %p84, %p85
    %p87 = scmp.ne.s32.totalorder %s78, %s79
    %p88 = scmp.eq.s32.totalorder %s21, 0
    %p89 = por %p87, %p88
    %p90 = scmp.ne.s32.totalorder %s78, %s79
    %p91 = scmp.eq.s32.totalorder %s22, 1
    %p92 = por %p90, %p91
    %p94 = scmp.ne.s32.totalorder %s79, %s93
    %p95 = scmp.eq.s32.totalorder %s22, 0
    %p96 = por %p94, %p95
    %s98 = sadd.s32 %s97, 1
    %p101 = scmp.eq.s32.totalorder %s16, 1
    %p102 = scmp.ne.s32.totalorder %s97, %s99
    %p103 = scmp.eq.s32.totalorder %s16, 0
    %p104 = por %p102, %p103
    %p105 = scmp.ne.s32.totalorder %s97, %s99
    %p106 = scmp.eq.s32.totalorder %s21, 1
    %p107 = por %p105, %p106
    %p108 = scmp.ne.s32.totalorder %s99, %s100
    %p109 = scmp.eq.s32.totalorder %s21, 0
    %p110 = por %p108, %p109
    %p111 = scmp.ne.s32.totalorder %s99, %s100
    %p112 = scmp.eq.s32.totalorder %s22, 1
    %p113 = por %p111, %p112
    %p115 = scmp.ne.s32.totalorder %s100, %s114
    %p116 = scmp.eq.s32.totalorder %s22, 0
    %p117 = por %p115, %p116
    %s119 = sadd.s32 %s118, 1
    %p122 = scmp.eq.s32.totalorder %s16, 1
    %p123 = scmp.ne.s32.totalorder %s118, %s120
    %p124 = scmp.eq.s32.totalorder %s16, 0
    %p125 = por %p123, %p124
    %p126 = scmp.ne.s32.totalorder %s118, %s120
    %p127 = scmp.eq.s32.totalorder %s21, 1
    %p128 = por %p126, %p127
    %p129 = scmp.ne.s32.totalorder %s120, %s121
    %p130 = scmp.eq.s32.totalorder %s21, 0
    %p131 = por %p129, %p130
    %p132 = scmp.ne.s32.totalorder %s120, %s121
    %p133 = scmp.eq.s32.totalorder %s22, 1
    %p134 = por %p132, %p133
    %p136 = scmp.ne.s32.totalorder %s121, %s135
    %p137 = scmp.eq.s32.totalorder %s22, 0
    %p138 = por %p136, %p137
    %s140 = sadd.s32 %s139, 1
    %p143 = scmp.eq.s32.totalorder %s16, 1
    %p144 = scmp.ne.s32.totalorder %s139, %s141
    %p145 = scmp.eq.s32.totalorder %s16, 0
    %p146 = por %p144, %p145
    %p147 = scmp.ne.s32.totalorder %s139, %s141
    %p148 = scmp.eq.s32.totalorder %s21, 1
    %p149 = por %p147, %p148
    %p150 = scmp.ne.s32.totalorder %s141, %s142
    %p151 = scmp.eq.s32.totalorder %s21, 0
    %p152 = por %p150, %p151
    %p153 = scmp.ne.s32.totalorder %s141, %s142
    %p154 = scmp.eq.s32.totalorder %s22, 1
    %p155 = por %p153, %p154
    %p157 = scmp.ne.s32.totalorder %s142, %s156
    %p158 = scmp.eq.s32.totalorder %s22, 0
    %p159 = por %p157, %p158
    %s161 = sadd.s32 %s160, 1
    %p164 = scmp.eq.s32.totalorder %s16, 1
    %p165 = scmp.ne.s32.totalorder %s160, %s162
    %p166 = scmp.eq.s32.totalorder %s16, 0
    %p167 = por %p165, %p166
    %p168 = scmp.ne.s32.totalorder %s160, %s162
    %p169 = scmp.eq.s32.totalorder %s21, 1
    %p170 = por %p168, %p169
    %p171 = scmp.ne.s32.totalorder %s162, %s163
    %p172 = scmp.eq.s32.totalorder %s21, 0
    %p173 = por %p171, %p172
    %p174 = scmp.ne.s32.totalorder %s162, %s163
    %p175 = scmp.eq.s32.totalorder %s22, 1
    %p176 = por %p174, %p175
    %p178 = scmp.ne.s32.totalorder %s163, %s177
    %p179 = scmp.eq.s32.totalorder %s22, 0
    %p180 = por %p178, %p179
    %s182 = sadd.s32 %s181, 1
    %p185 = scmp.eq.s32.totalorder %s16, 1
    %p186 = scmp.ne.s32.totalorder %s181, %s183
    %p187 = scmp.eq.s32.totalorder %s16, 0
    %p188 = por %p186, %p187
    %p189 = scmp.ne.s32.totalorder %s181, %s183
    %p190 = scmp.eq.s32.totalorder %s21, 1
    %p191 = por %p189, %p190
    %p192 = scmp.ne.s32.totalorder %s183, %s184
    %p193 = scmp.eq.s32.totalorder %s21, 0
    %p194 = por %p192, %p193
    %p195 = scmp.ne.s32.totalorder %s183, %s184
    %p196 = scmp.eq.s32.totalorder %s22, 1
    %p197 = por %p195, %p196
    %p199 = scmp.ne.s32.totalorder %s184, %s198
    %p200 = scmp.eq.s32.totalorder %s22, 0
    %p201 = por %p199, %p200
    %s203 = sadd.s32 %s202, 1
    %p206 = scmp.eq.s32.totalorder %s16, 1
    %p207 = scmp.ne.s32.totalorder %s202, %s204
    %p208 = scmp.eq.s32.totalorder %s16, 0
    %p209 = por %p207, %p208
    %p210 = scmp.ne.s32.totalorder %s202, %s204
    %p211 = scmp.eq.s32.totalorder %s21, 1
    %p212 = por %p210, %p211
    %p213 = scmp.ne.s32.totalorder %s204, %s205
    %p214 = scmp.eq.s32.totalorder %s21, 0
    %p215 = por %p213, %p214
    %p216 = scmp.ne.s32.totalorder %s204, %s205
    %p217 = scmp.eq.s32.totalorder %s22, 1
    %p218 = por %p216, %p217
    %p220 = scmp.ne.s32.totalorder %s205, %s219
    %p221 = scmp.eq.s32.totalorder %s22, 0
    %p222 = por %p220, %p221
    %s224 = sadd.s32 %s223, 1
    %p227 = scmp.eq.s32.totalorder %s16, 1
    %p228 = scmp.ne.s32.totalorder %s223, %s225
    %p229 = scmp.eq.s32.totalorder %s16, 0
    %p230 = por %p228, %p229
    %p231 = scmp.ne.s32.totalorder %s223, %s225
    %p232 = scmp.eq.s32.totalorder %s21, 1
    %p233 = por %p231, %p232
    %p234 = scmp.ne.s32.totalorder %s225, %s226
    %p235 = scmp.eq.s32.totalorder %s21, 0
    %p236 = por %p234, %p235
    %p237 = scmp.ne.s32.totalorder %s225, %s226
    %p238 = scmp.eq.s32.totalorder %s22, 1
    %p239 = por %p237, %p238
    %p241 = scmp.ne.s32.totalorder %s226, %s240
    %p242 = scmp.eq.s32.totalorder %s22, 0
    %p243 = por %p241, %p242
    %s244 = ssub.s32 %s16, %s23
    %p245 = scmp.eq.s32.totalorder %s244, 0
    %s247 = sadd.s32 %s246, 1
    %s248 = scalar_select %p245, %s246, %s247
    %p251 = pneg %p245
    %p252 = scmp.eq.s32.totalorder %s16, 1
    %p253 = por %p251, %p252
    %p254 = scmp.ne.s32.totalorder %s246, %s249
    %p255 = scmp.eq.s32.totalorder %s16, 0
    %p256 = por %p254, %p255
    %p257 = scmp.ne.s32.totalorder %s246, %s249
    %p258 = scmp.eq.s32.totalorder %s21, 1
    %p259 = por %p257, %p258
    %p260 = scmp.ne.s32.totalorder %s249, %s250
    %p261 = scmp.eq.s32.totalorder %s21, 0
    %p262 = por %p260, %p261
    %p263 = scmp.ne.s32.totalorder %s249, %s250
    %p264 = scmp.eq.s32.totalorder %s22, 1
    %p265 = por %p263, %p264
    %p267 = scmp.ne.s32.totalorder %s250, %s266
    %p268 = scmp.eq.s32.totalorder %s22, 0
    %p269 = por %p267, %p268
    %p270 = scmp.le.s32.totalorder 1, %s16
    %p271 = scmp.lt.s32.totalorder %s16, 3
    %p272 = pnand %p270, %p271
    %p273 = pneg %p272
    // Predicated region
    $region9: #{tpu_custom_call.1} parent=5 // pred_check
      _
    $region10: #{tpu_custom_call.1} parent=5 // pred_check_branch
      %275 = sbr.rel (%p272) target = $region12
    $region11: #{tpu_custom_call.1} parent=5 // pred_region
      %s276 = ssub.s32 %s16, 1
      // Predicated region
      $region13: #{tpu_custom_call.1} parent=11 // pred_check
        %p277 = pneg %p89
      $region14: #{tpu_custom_call.1} parent=11 // pred_check_branch
        %279 = sbr.rel (%p277) target = $region16
      $region15: #{tpu_custom_call.1} parent=11 // pred_region
        _
      $region16: #{tpu_custom_call.1} parent=11 // pred_fallthru
        _
      // Predicated region
      $region17: #{tpu_custom_call.1} parent=11 // pred_check
        %p280 = pneg %p110
      $region18: #{tpu_custom_call.1} parent=11 // pred_check_branch
        %282 = sbr.rel (%p280) target = $region20
      $region19: #{tpu_custom_call.1} parent=11 // pred_region
        _
      $region20: #{tpu_custom_call.1} parent=11 // pred_fallthru
        _
      // Predicated region
      $region21: #{tpu_custom_call.1} parent=11 // pred_check
        %p283 = pneg %p131
      $region22: #{tpu_custom_call.1} parent=11 // pred_check_branch
        %285 = sbr.rel (%p283) target = $region24
      $region23: #{tpu_custom_call.1} parent=11 // pred_region
        _
      $region24: #{tpu_custom_call.1} parent=11 // pred_fallthru
        _
      // Predicated region
      $region25: #{tpu_custom_call.1} parent=11 // pred_check
        %p286 = pneg %p152
      $region26: #{tpu_custom_call.1} parent=11 // pred_check_branch
        %288 = sbr.rel (%p286) target = $region28
      $region27: #{tpu_custom_call.1} parent=11 // pred_region
        _
      $region28: #{tpu_custom_call.1} parent=11 // pred_fallthru
        _
      // Predicated region
      $region29: #{tpu_custom_call.1} parent=11 // pred_check
        %p289 = pneg %p173
      $region30: #{tpu_custom_call.1} parent=11 // pred_check_branch
        %291 = sbr.rel (%p289) target = $region32
      $region31: #{tpu_custom_call.1} parent=11 // pred_region
        _
      $region32: #{tpu_custom_call.1} parent=11 // pred_fallthru
        _
      // Predicated region
      $region33: #{tpu_custom_call.1} parent=11 // pred_check
        %p292 = pneg %p194
      $region34: #{tpu_custom_call.1} parent=11 // pred_check_branch
        %294 = sbr.rel (%p292) target = $region36
      $region35: #{tpu_custom_call.1} parent=11 // pred_region
        _
      $region36: #{tpu_custom_call.1} parent=11 // pred_fallthru
        _
      // Predicated region
      $region37: #{tpu_custom_call.1} parent=11 // pred_check
        %p295 = pneg %p215
      $region38: #{tpu_custom_call.1} parent=11 // pred_check_branch
        %297 = sbr.rel (%p295) target = $region40
      $region39: #{tpu_custom_call.1} parent=11 // pred_region
        _
      $region40: #{tpu_custom_call.1} parent=11 // pred_fallthru
        _
      // Predicated region
      $region41: #{tpu_custom_call.1} parent=11 // pred_check
        %p298 = pneg %p236
      $region42: #{tpu_custom_call.1} parent=11 // pred_check_branch
        %300 = sbr.rel (%p298) target = $region44
      $region43: #{tpu_custom_call.1} parent=11 // pred_region
        _
      $region44: #{tpu_custom_call.1} parent=11 // pred_fallthru
        _
    $region12: #{tpu_custom_call.1} parent=5 // pred_fallthru
      _
    %p301 = scmp.lt.s32.totalorder %s16, 2
    // Predicated region
    $region45: #{tpu_custom_call.1} parent=5 // pred_check
      %p302 = pneg %p301
    $region46: #{tpu_custom_call.1} parent=5 // pred_check_branch
      %304 = sbr.rel (%p302) target = $region48
    $region47: #{tpu_custom_call.1} parent=5 // pred_region
      // Predicated region
      $region49: #{tpu_custom_call.1} parent=47 // pred_check
        %p305 = pneg %p36
      $region50: #{tpu_custom_call.1} parent=47 // pred_check_branch
        %307 = sbr.rel (%p305) target = $region52
      $region51: #{tpu_custom_call.1} parent=47 // pred_region
        %p308 = scmp.lt.s32.totalorder %s16, 1
        %s309 = scalar_select %p308, %s16, 1
        %s310 = smul.addr %s309, 32
        %s311 = smul.addr %s310, 8
        %s312 = scalar_lea.vmem %s0, %s311
      $region52: #{tpu_custom_call.1} parent=47 // pred_fallthru
        _
      // Predicated region
      $region53: #{tpu_custom_call.1} parent=47 // pred_check
        %p313 = pneg %p62
      $region54: #{tpu_custom_call.1} parent=47 // pred_check_branch
        %315 = sbr.rel (%p313) target = $region56
      $region55: #{tpu_custom_call.1} parent=47 // pred_region
        %p316 = scmp.lt.s32.totalorder %s16, 1
        %s317 = scalar_select %p316, %s16, 1
        %s318 = scalar_lea.vmem %s1, %s317
      $region56: #{tpu_custom_call.1} parent=47 // pred_fallthru
        _
    $region48: #{tpu_custom_call.1} parent=5 // pred_fallthru
      _
    %p319 = scmp.le.s32.totalorder 1, %s16
    %p320 = scmp.lt.s32.totalorder %s16, 3
    %p321 = pnand %p319, %p320
    %p322 = pneg %p321
    // Predicated region
    $region57: #{tpu_custom_call.1} parent=5 // pred_check
      _
    $region58: #{tpu_custom_call.1} parent=5 // pred_check_branch
      %324 = sbr.rel (%p321) target = $region60
    $region59: #{tpu_custom_call.1} parent=5 // pred_region
      %s325 = ssub.s32 %s16, 1
      %p326 = scmp.lt.s32.totalorder %s21, 1
      %s327 = scalar_select %p326, %s21, 1
      %s328 = smul.addr %s327, 32
      %s329 = smul.addr %s328, 8
      %s330 = scalar_lea.vmem %s0, %s329
      %p331 = pneg %p42
      %p332 = pneg %p39
      %p333 = scmp.lt.s32.totalorder %s21, 1
      %s334 = scalar_select %p333, %s21, 1
      %s335 = scalar_lea.vmem %s1, %s334
      %p336 = pneg %p68
      %p337 = pneg %p65
      %p338 = pneg %p89
      %p339 = pneg %p86
      %p340 = pneg %p110
      %p341 = pneg %p107
      %p342 = pneg %p131
      %p343 = pneg %p128
      %p344 = pneg %p152
      %p345 = pneg %p149
      %p346 = pneg %p173
      %p347 = pneg %p170
      %p348 = pneg %p194
      %p349 = pneg %p191
      %p350 = pneg %p215
      %p351 = pneg %p212
      %p352 = pneg %p236
      %p353 = pneg %p233
      %p354 = pneg %p262
      %p355 = pneg %p259
      %p356 = scmp.lt.s32.totalorder %s21, 1
      %s357 = scalar_select %p356, %s21, 1
      %s358 = smul.addr %s357, 2
      %s359 = smul.addr %s358, 4
      %s360 = scalar_lea.vmem %s10, %s359
      %p361 = scmp.lt.s32.totalorder %s21, 1
      %s362 = scalar_select %p361, %s21, 1
      %s363 = smul.addr %s362, 32
      %s364 = smul.addr %s363, 8
      %s365 = scalar_lea.vmem %s0, %s364
      %p366 = scmp.lt.s32.totalorder %s21, 1
      %s367 = scalar_select %p366, %s21, 1
      %s368 = scalar_lea.vmem %s1, %s367
      %p369 = scmp.lt.s32.totalorder %s21, 1
      %s370 = scalar_select %p369, %s21, 1
      %s371 = smul.addr %s370, 2
      %s372 = smul.addr %s371, 4
      %s373 = scalar_lea.vmem %s10, %s372
      %v374 = vld [vmem:[%s365] sm:$0xff]
      %v375 = vld [vmem:[%s365 + $0x8] sm:$0xff]
      %v376 = vld [vmem:[%s365 + $0x10] sm:$0xff]
      %v377 = vld [vmem:[%s365 + $0x18] sm:$0xff]
      %v378 = vld [vmem:[%s365 + $0x20] sm:$0xff]
      %v379 = vld [vmem:[%s365 + $0x28] sm:$0xff]
      %v380 = vld [vmem:[%s365 + $0x30] sm:$0xff]
      %v381 = vld [vmem:[%s365 + $0x38] sm:$0xff]
      %v382 = vld [vmem:[%s365 + $0x40] sm:$0xff]
      %v383 = vld [vmem:[%s365 + $0x48] sm:$0xff]
      %v384 = vld [vmem:[%s365 + $0x50] sm:$0xff]
      %v385 = vld [vmem:[%s365 + $0x58] sm:$0xff]
      %v386 = vld [vmem:[%s365 + $0x60] sm:$0xff]
      %v387 = vld [vmem:[%s365 + $0x68] sm:$0xff]
      %v388 = vld [vmem:[%s365 + $0x70] sm:$0xff]
      %v389 = vld [vmem:[%s365 + $0x78] sm:$0xff]
      %v390 = vld [vmem:[%s365 + $0x80] sm:$0xff]
      %v391 = vld [vmem:[%s365 + $0x88] sm:$0xff]
      %v392 = vld [vmem:[%s365 + $0x90] sm:$0xff]
      %v393 = vld [vmem:[%s365 + $0x98] sm:$0xff]
      %v394 = vld [vmem:[%s365 + $0xa0] sm:$0xff]
      %v395 = vld [vmem:[%s365 + $0xa8] sm:$0xff]
      %v396 = vld [vmem:[%s365 + $0xb0] sm:$0xff]
      %v397 = vld [vmem:[%s365 + $0xb8] sm:$0xff]
      %v398 = vld [vmem:[%s365 + $0xc0] sm:$0xff]
      %v399 = vld [vmem:[%s365 + $0xc8] sm:$0xff]
      %v400 = vld [vmem:[%s365 + $0xd0] sm:$0xff]
      %v401 = vld [vmem:[%s365 + $0xd8] sm:$0xff]
      %v402 = vld [vmem:[%s365 + $0xe0] sm:$0xff]
      %v403 = vld [vmem:[%s365 + $0xe8] sm:$0xff]
      %v404 = vld [vmem:[%s365 + $0xf0] sm:$0xff]
      %v405 = vld [vmem:[%s365 + $0xf8] sm:$0xff]
      %v406 = vld [vmem:[%s2] sm:$0xff]
      %v407 = vld [vmem:[%s2 + $0x8] sm:$0xff]
      %v408 = vld [vmem:[%s2 + $0x10] sm:$0xff]
      %v409 = vld [vmem:[%s2 + $0x18] sm:$0x7]
      %v410 = vld [vmem:[%s3] sm:$0x1]
      %v412 = vperm.slane %v410, 0
      %vm414 = vcmask 220160
      %v416 = vsel %vm414, %v374, 0
      %v419 = vsel %vm414, %v375, 0
      %v422 = vsel %vm414, %v376, 0
      %v425 = vsel %vm414, %v377, 0
      %v428 = vsel %vm414, %v378, 0
      %v431 = vsel %vm414, %v379, 0
      %v434 = vsel %vm414, %v380, 0
      %v437 = vsel %vm414, %v381, 0
      %v440 = vsel %vm414, %v382, 0
      %v443 = vsel %vm414, %v383, 0
      %v446 = vsel %vm414, %v384, 0
      %v449 = vsel %vm414, %v385, 0
      %v452 = vsel %vm414, %v386, 0
      %v455 = vsel %vm414, %v387, 0
      %v458 = vsel %vm414, %v388, 0
      %v461 = vsel %vm414, %v389, 0
      %v464 = vsel %vm414, %v390, 0
      %v467 = vsel %vm414, %v391, 0
      %v470 = vsel %vm414, %v392, 0
      %v473 = vsel %vm414, %v393, 0
      %v476 = vsel %vm414, %v394, 0
      %v479 = vsel %vm414, %v395, 0
      %v482 = vsel %vm414, %v396, 0
      %v485 = vsel %vm414, %v397, 0
      %v488 = vsel %vm414, %v398, 0
      %v491 = vsel %vm414, %v399, 0
      %v494 = vsel %vm414, %v400, 0
      %v497 = vsel %vm414, %v401, 0
      %v500 = vsel %vm414, %v402, 0
      %v503 = vsel %vm414, %v403, 0
      %v506 = vsel %vm414, %v404, 0
      %v509 = vsel %vm414, %v405, 0
      %vm511 = vcmask 1042432
      %v513 = vsel %vm511, %v409, 0
      %515 = vmatpush.msra.mxu0 0.0
      %516 = vmatpush.msra.mxu0 0.0
      %517 = vmatpush.msra.mxu0 0.0
      %518 = vmatpush.msra.mxu0 0.0
      %519 = vmatpush.msra.mxu0 0.0
      %520 = vmatpush.msra.mxu0 0.0
      %521 = vmatpush.msra.mxu0 0.0
      %522 = vmatpush.msra.mxu0 0.0
      %523 = vmatpush.msra.mxu0 0.0
      %524 = vmatpush.msra.mxu0 0.0
      %525 = vmatpush.msra.mxu0 0.0
      %526 = vmatpush.msra.mxu0 0.0
      %527 = vmatpush.msra.mxu0 %v513
      %528 = vmatpush.msra.mxu0 %v408
      %529 = vmatpush.msra.mxu0 %v407
      %530 = vmatpush.msra.mxu0 %v406
      %531 = vmatmul.f32.gmra.mxu0 %v416
      %v532 = vpop.f32.mrf.mxu0
      %v533 = vadd.f32 %v412, %v532
      %534 = vmatmul.f32.gmra.mxu0 %v419
      %v535 = vpop.f32.mrf.mxu0
      %v536 = vadd.f32 %v412, %v535
      %537 = vmatmul.f32.gmra.mxu0 %v422
      %v538 = vpop.f32.mrf.mxu0
      %v539 = vadd.f32 %v412, %v538
      %540 = vmatmul.f32.gmra.mxu0 %v425
      %v541 = vpop.f32.mrf.mxu0
      %v542 = vadd.f32 %v412, %v541
      %543 = vmatmul.f32.gmra.mxu0 %v428
      %v544 = vpop.f32.mrf.mxu0
      %v545 = vadd.f32 %v412, %v544
      %546 = vmatmul.f32.gmra.mxu0 %v431
      %v547 = vpop.f32.mrf.mxu0
      %v548 = vadd.f32 %v412, %v547
      %549 = vmatmul.f32.gmra.mxu0 %v434
      %v550 = vpop.f32.mrf.mxu0
      %v551 = vadd.f32 %v412, %v550
      %552 = vmatmul.f32.gmra.mxu0 %v437
      %v553 = vpop.f32.mrf.mxu0
      %v554 = vadd.f32 %v412, %v553
      %555 = vmatmul.f32.gmra.mxu0 %v440
      %v556 = vpop.f32.mrf.mxu0
      %v557 = vadd.f32 %v412, %v556
      %558 = vmatmul.f32.gmra.mxu0 %v443
      %v559 = vpop.f32.mrf.mxu0
      %v560 = vadd.f32 %v412, %v559
      %561 = vmatmul.f32.gmra.mxu0 %v446
      %v562 = vpop.f32.mrf.mxu0
      %v563 = vadd.f32 %v412, %v562
      %564 = vmatmul.f32.gmra.mxu0 %v449
      %v565 = vpop.f32.mrf.mxu0
      %v566 = vadd.f32 %v412, %v565
      %567 = vmatmul.f32.gmra.mxu0 %v452
      %v568 = vpop.f32.mrf.mxu0
      %v569 = vadd.f32 %v412, %v568
      %570 = vmatmul.f32.gmra.mxu0 %v455
      %v571 = vpop.f32.mrf.mxu0
      %v572 = vadd.f32 %v412, %v571
      %573 = vmatmul.f32.gmra.mxu0 %v458
      %v574 = vpop.f32.mrf.mxu0
      %v575 = vadd.f32 %v412, %v574
      %576 = vmatmul.f32.gmra.mxu0 %v461
      %v577 = vpop.f32.mrf.mxu0
      %v578 = vadd.f32 %v412, %v577
      %579 = vmatmul.f32.gmra.mxu0 %v464
      %v580 = vpop.f32.mrf.mxu0
      %v581 = vadd.f32 %v412, %v580
      %582 = vmatmul.f32.gmra.mxu0 %v467
      %v583 = vpop.f32.mrf.mxu0
      %v584 = vadd.f32 %v412, %v583
      %585 = vmatmul.f32.gmra.mxu0 %v470
      %v586 = vpop.f32.mrf.mxu0
      %v587 = vadd.f32 %v412, %v586
      %588 = vmatmul.f32.gmra.mxu0 %v473
      %v589 = vpop.f32.mrf.mxu0
      %v590 = vadd.f32 %v412, %v589
      %591 = vmatmul.f32.gmra.mxu0 %v476
      %v592 = vpop.f32.mrf.mxu0
      %v593 = vadd.f32 %v412, %v592
      %594 = vmatmul.f32.gmra.mxu0 %v479
      %v595 = vpop.f32.mrf.mxu0
      %v596 = vadd.f32 %v412, %v595
      %597 = vmatmul.f32.gmra.mxu0 %v482
      %v598 = vpop.f32.mrf.mxu0
      %v599 = vadd.f32 %v412, %v598
      %600 = vmatmul.f32.gmra.mxu0 %v485
      %v601 = vpop.f32.mrf.mxu0
      %v602 = vadd.f32 %v412, %v601
      %603 = vmatmul.f32.gmra.mxu0 %v488
      %v604 = vpop.f32.mrf.mxu0
      %v605 = vadd.f32 %v412, %v604
      %606 = vmatmul.f32.gmra.mxu0 %v491
      %v607 = vpop.f32.mrf.mxu0
      %v608 = vadd.f32 %v412, %v607
      %609 = vmatmul.f32.gmra.mxu0 %v494
      %v610 = vpop.f32.mrf.mxu0
      %v611 = vadd.f32 %v412, %v610
      %612 = vmatmul.f32.gmra.mxu0 %v497
      %v613 = vpop.f32.mrf.mxu0
      %v614 = vadd.f32 %v412, %v613
      %615 = vmatmul.f32.gmra.mxu0 %v500
      %v616 = vpop.f32.mrf.mxu0
      %v617 = vadd.f32 %v412, %v616
      %618 = vmatmul.f32.gmra.mxu0 %v503
      %v619 = vpop.f32.mrf.mxu0
      %v620 = vadd.f32 %v412, %v619
      %621 = vmatmul.f32.gmra.mxu0 %v506
      %v622 = vpop.f32.mrf.mxu0
      %v623 = vadd.f32 %v412, %v622
      %624 = vmatmul.f32.gmra.mxu0 %v509
      %v625 = vpop.f32.mrf.mxu0
      %v626 = vadd.f32 %v412, %v625
      %627 = vdwg.mxu0
      %v628 = vmul.f32 %v533, 0.5
      %v629 = vmul.f32 %v536, 0.5
      %v630 = vmul.f32 %v539, 0.5
      %v631 = vmul.f32 %v542, 0.5
      %v632 = vmul.f32 %v545, 0.5
      %v633 = vmul.f32 %v548, 0.5
      %v634 = vmul.f32 %v551, 0.5
      %v635 = vmul.f32 %v554, 0.5
      %v636 = vmul.f32 %v557, 0.5
      %v637 = vmul.f32 %v560, 0.5
      %v638 = vmul.f32 %v563, 0.5
      %v639 = vmul.f32 %v566, 0.5
      %v640 = vmul.f32 %v569, 0.5
      %v641 = vmul.f32 %v572, 0.5
      %v642 = vmul.f32 %v575, 0.5
      %v643 = vmul.f32 %v578, 0.5
      %v644 = vmul.f32 %v581, 0.5
      %v645 = vmul.f32 %v584, 0.5
      %v646 = vmul.f32 %v587, 0.5
      %v647 = vmul.f32 %v590, 0.5
      %v648 = vmul.f32 %v593, 0.5
      %v649 = vmul.f32 %v596, 0.5
      %v650 = vmul.f32 %v599, 0.5
      %v651 = vmul.f32 %v602, 0.5
      %v652 = vmul.f32 %v605, 0.5
      %v653 = vmul.f32 %v608, 0.5
      %v654 = vmul.f32 %v611, 0.5
      %v655 = vmul.f32 %v614, 0.5
      %v656 = vmul.f32 %v617, 0.5
      %v657 = vmul.f32 %v620, 0.5
      %v658 = vmul.f32 %v623, 0.5
      %v659 = vmul.f32 %v626, 0.5
      %v660 = vmul.f32 %v533, 0.70710677
      %v661 = vmul.f32 %v536, 0.70710677
      %v662 = vmul.f32 %v539, 0.70710677
      %v663 = vmul.f32 %v542, 0.70710677
      %v664 = vmul.f32 %v545, 0.70710677
      %v665 = vmul.f32 %v548, 0.70710677
      %v666 = vmul.f32 %v551, 0.70710677
      %v667 = vmul.f32 %v554, 0.70710677
      %v668 = vmul.f32 %v557, 0.70710677
      %v669 = vmul.f32 %v560, 0.70710677
      %v670 = vmul.f32 %v563, 0.70710677
      %v671 = vmul.f32 %v566, 0.70710677
      %v672 = vmul.f32 %v569, 0.70710677
      %v673 = vmul.f32 %v572, 0.70710677
      %v674 = vmul.f32 %v575, 0.70710677
      %v675 = vmul.f32 %v578, 0.70710677
      %v676 = vmul.f32 %v581, 0.70710677
      %v677 = vmul.f32 %v584, 0.70710677
      %v678 = vmul.f32 %v587, 0.70710677
      %v679 = vmul.f32 %v590, 0.70710677
      %v680 = vmul.f32 %v593, 0.70710677
      %v681 = vmul.f32 %v596, 0.70710677
      %v682 = vmul.f32 %v599, 0.70710677
      %v683 = vmul.f32 %v602, 0.70710677
      %v684 = vmul.f32 %v605, 0.70710677
      %v685 = vmul.f32 %v608, 0.70710677
      %v686 = vmul.f32 %v611, 0.70710677
      %v687 = vmul.f32 %v614, 0.70710677
      %v688 = vmul.f32 %v617, 0.70710677
      %v689 = vmul.f32 %v620, 0.70710677
      %v690 = vmul.f32 %v623, 0.70710677
      %v691 = vmul.f32 %v626, 0.70710677
      %v692 = vmul.f32 %v660, %v660
      %v693 = vmin.f32 16.0, %v692
      %v694 = vmul.f32 %v693, 2.1237322e-06
      %v695 = vadd.f32 %v694, 0.00028619796
      %v696 = vmul.f32 %v693, %v695
      %v697 = vadd.f32 %v696, 0.0036580483
      %v698 = vmul.f32 %v693, %v697
      %v699 = vadd.f32 %v698, 0.05243302
      %v700 = vmul.f32 %v693, %v699
      %v701 = vadd.f32 %v700, 0.18741608
      %v702 = vmul.f32 %v693, %v701
      %v703 = vadd.f32 %v702, 1.1283791
      %v704 = vmul.f32 %v660, %v703
      %v705 = vmul.f32 %v693, 3.8918573e-05
      %v706 = vadd.f32 %v705, 0.001143296
      %v707 = vmul.f32 %v693, %v706
      %v708 = vadd.f32 %v707, 0.014752088
      %v709 = vmul.f32 %v693, %v708
      %v710 = vadd.f32 %v709, 0.112945676
      %v711 = vmul.f32 %v693, %v710
      %v712 = vadd.f32 %v711, 0.4994258
      %v713 = vmul.f32 %v693, %v712
      %v714 = vadd.f32 %v713, 1.0
      %v715 = vrcp.pop %v714
      %v716 = vmul.f32 %v714, %v715
      %v717 = vsub.f32 1.0, %v716
      %v718 = vmul.f32 %v715, %v717
      %v719 = vadd.f32 %v715, %v718
      %vm720 = vweird.f32 %v714
      %vm721 = vweird.f32 %v715
      %vm722 = vmor %vm720, %vm721
      %v723 = vsel %vm722, %v715, %v719
      %v724 = vand.u32 2147483647, %v714
      %vm725 = vcmp.eq.f32.partialorder %v724, 8.507059e+37
      %v726 = vand.u32 %v714, 2147483648
      %v727 = vor.u32 1.1754944e-38, %v726
      %v728 = vsel %vm725, %v727, %v723
      %v729 = vmul.f32 %v704, %v728
      %v730 = vmin.f32 %v729, 1.0
      %v731 = vmax.f32 %v730, -1.0
      %v732 = vmul.f32 %v661, %v661
      %v733 = vmin.f32 16.0, %v732
      %v734 = vmul.f32 %v733, 2.1237322e-06
      %v735 = vadd.f32 %v734, 0.00028619796
      %v736 = vmul.f32 %v733, %v735
      %v737 = vadd.f32 %v736, 0.0036580483
      %v738 = vmul.f32 %v733, %v737
      %v739 = vadd.f32 %v738, 0.05243302
      %v740 = vmul.f32 %v733, %v739
      %v741 = vadd.f32 %v740, 0.18741608
      %v742 = vmul.f32 %v733, %v741
      %v743 = vadd.f32 %v742, 1.1283791
      %v744 = vmul.f32 %v661, %v743
      %v745 = vmul.f32 %v733, 3.8918573e-05
      %v746 = vadd.f32 %v745, 0.001143296
      %v747 = vmul.f32 %v733, %v746
      %v748 = vadd.f32 %v747, 0.014752088
      %v749 = vmul.f32 %v733, %v748
      %v750 = vadd.f32 %v749, 0.112945676
      %v751 = vmul.f32 %v733, %v750
      %v752 = vadd.f32 %v751, 0.4994258
      %v753 = vmul.f32 %v733, %v752
      %v754 = vadd.f32 %v753, 1.0
      %v755 = vrcp.pop %v754
      %v756 = vmul.f32 %v754, %v755
      %v757 = vsub.f32 1.0, %v756
      %v758 = vmul.f32 %v755, %v757
      %v759 = vadd.f32 %v755, %v758
      %vm760 = vweird.f32 %v754
      %vm761 = vweird.f32 %v755
      %vm762 = vmor %vm760, %vm761
      %v763 = vsel %vm762, %v755, %v759
      %v764 = vand.u32 2147483647, %v754
      %vm765 = vcmp.eq.f32.partialorder %v764, 8.507059e+37
      %v766 = vand.u32 %v754, 2147483648
      %v767 = vor.u32 1.1754944e-38, %v766
      %v768 = vsel %vm765, %v767, %v763
      %v769 = vmul.f32 %v744, %v768
      %v770 = vmin.f32 %v769, 1.0
      %v771 = vmax.f32 %v770, -1.0
      %v772 = vmul.f32 %v662, %v662
      %v773 = vmin.f32 16.0, %v772
      %v774 = vmul.f32 %v773, 2.1237322e-06
      %v775 = vadd.f32 %v774, 0.00028619796
      %v776 = vmul.f32 %v773, %v775
      %v777 = vadd.f32 %v776, 0.0036580483
      %v778 = vmul.f32 %v773, %v777
      %v779 = vadd.f32 %v778, 0.05243302
      %v780 = vmul.f32 %v773, %v779
      %v781 = vadd.f32 %v780, 0.18741608
      %v782 = vmul.f32 %v773, %v781
      %v783 = vadd.f32 %v782, 1.1283791
      %v784 = vmul.f32 %v662, %v783
      %v785 = vmul.f32 %v773, 3.8918573e-05
      %v786 = vadd.f32 %v785, 0.001143296
      %v787 = vmul.f32 %v773, %v786
      %v788 = vadd.f32 %v787, 0.014752088
      %v789 = vmul.f32 %v773, %v788
      %v790 = vadd.f32 %v789, 0.112945676
      %v791 = vmul.f32 %v773, %v790
      %v792 = vadd.f32 %v791, 0.4994258
      %v793 = vmul.f32 %v773, %v792
      %v794 = vadd.f32 %v793, 1.0
      %v795 = vrcp.pop %v794
      %v796 = vmul.f32 %v794, %v795
      %v797 = vsub.f32 1.0, %v796
      %v798 = vmul.f32 %v795, %v797
      %v799 = vadd.f32 %v795, %v798
      %vm800 = vweird.f32 %v794
      %vm801 = vweird.f32 %v795
      %vm802 = vmor %vm800, %vm801
      %v803 = vsel %vm802, %v795, %v799
      %v804 = vand.u32 2147483647, %v794
      %vm805 = vcmp.eq.f32.partialorder %v804, 8.507059e+37
      %v806 = vand.u32 %v794, 2147483648
      %v807 = vor.u32 1.1754944e-38, %v806
      %v808 = vsel %vm805, %v807, %v803
      %v809 = vmul.f32 %v784, %v808
      %v810 = vmin.f32 %v809, 1.0
      %v811 = vmax.f32 %v810, -1.0
      %v812 = vmul.f32 %v663, %v663
      %v813 = vmin.f32 16.0, %v812
      %v814 = vmul.f32 %v813, 2.1237322e-06
      %v815 = vadd.f32 %v814, 0.00028619796
      %v816 = vmul.f32 %v813, %v815
      %v817 = vadd.f32 %v816, 0.0036580483
      %v818 = vmul.f32 %v813, %v817
      %v819 = vadd.f32 %v818, 0.05243302
      %v820 = vmul.f32 %v813, %v819
      %v821 = vadd.f32 %v820, 0.18741608
      %v822 = vmul.f32 %v813, %v821
      %v823 = vadd.f32 %v822, 1.1283791
      %v824 = vmul.f32 %v663, %v823
      %v825 = vmul.f32 %v813, 3.8918573e-05
      %v826 = vadd.f32 %v825, 0.001143296
      %v827 = vmul.f32 %v813, %v826
      %v828 = vadd.f32 %v827, 0.014752088
      %v829 = vmul.f32 %v813, %v828
      %v830 = vadd.f32 %v829, 0.112945676
      %v831 = vmul.f32 %v813, %v830
      %v832 = vadd.f32 %v831, 0.4994258
      %v833 = vmul.f32 %v813, %v832
      %v834 = vadd.f32 %v833, 1.0
      %v835 = vrcp.pop %v834
      %v836 = vmul.f32 %v834, %v835
      %v837 = vsub.f32 1.0, %v836
      %v838 = vmul.f32 %v835, %v837
      %v839 = vadd.f32 %v835, %v838
      %vm840 = vweird.f32 %v834
      %vm841 = vweird.f32 %v835
      %vm842 = vmor %vm840, %vm841
      %v843 = vsel %vm842, %v835, %v839
      %v844 = vand.u32 2147483647, %v834
      %vm845 = vcmp.eq.f32.partialorder %v844, 8.507059e+37
      %v846 = vand.u32 %v834, 2147483648
      %v847 = vor.u32 1.1754944e-38, %v846
      %v848 = vsel %vm845, %v847, %v843
      %v849 = vmul.f32 %v824, %v848
      %v850 = vmin.f32 %v849, 1.0
      %v851 = vmax.f32 %v850, -1.0
      %v852 = vmul.f32 %v664, %v664
      %v853 = vmin.f32 16.0, %v852
      %v854 = vmul.f32 %v853, 2.1237322e-06
      %v855 = vadd.f32 %v854, 0.00028619796
      %v856 = vmul.f32 %v853, %v855
      %v857 = vadd.f32 %v856, 0.0036580483
      %v858 = vmul.f32 %v853, %v857
      %v859 = vadd.f32 %v858, 0.05243302
      %v860 = vmul.f32 %v853, %v859
      %v861 = vadd.f32 %v860, 0.18741608
      %v862 = vmul.f32 %v853, %v861
      %v863 = vadd.f32 %v862, 1.1283791
      %v864 = vmul.f32 %v664, %v863
      %v865 = vmul.f32 %v853, 3.8918573e-05
      %v866 = vadd.f32 %v865, 0.001143296
      %v867 = vmul.f32 %v853, %v866
      %v868 = vadd.f32 %v867, 0.014752088
      %v869 = vmul.f32 %v853, %v868
      %v870 = vadd.f32 %v869, 0.112945676
      %v871 = vmul.f32 %v853, %v870
      %v872 = vadd.f32 %v871, 0.4994258
      %v873 = vmul.f32 %v853, %v872
      %v874 = vadd.f32 %v873, 1.0
      %v875 = vrcp.pop %v874
      %v876 = vmul.f32 %v874, %v875
      %v877 = vsub.f32 1.0, %v876
      %v878 = vmul.f32 %v875, %v877
      %v879 = vadd.f32 %v875, %v878
      %vm880 = vweird.f32 %v874
      %vm881 = vweird.f32 %v875
      %vm882 = vmor %vm880, %vm881
      %v883 = vsel %vm882, %v875, %v879
      %v884 = vand.u32 2147483647, %v874
      %vm885 = vcmp.eq.f32.partialorder %v884, 8.507059e+37
      %v886 = vand.u32 %v874, 2147483648
      %v887 = vor.u32 1.1754944e-38, %v886
      %v888 = vsel %vm885, %v887, %v883
      %v889 = vmul.f32 %v864, %v888
      %v890 = vmin.f32 %v889, 1.0
      %v891 = vmax.f32 %v890, -1.0
      %v892 = vmul.f32 %v665, %v665
      %v893 = vmin.f32 16.0, %v892
      %v894 = vmul.f32 %v893, 2.1237322e-06
      %v895 = vadd.f32 %v894, 0.00028619796
      %v896 = vmul.f32 %v893, %v895
      %v897 = vadd.f32 %v896, 0.0036580483
      %v898 = vmul.f32 %v893, %v897
      %v899 = vadd.f32 %v898, 0.05243302
      %v900 = vmul.f32 %v893, %v899
      %v901 = vadd.f32 %v900, 0.18741608
      %v902 = vmul.f32 %v893, %v901
      %v903 = vadd.f32 %v902, 1.1283791
      %v904 = vmul.f32 %v665, %v903
      %v905 = vmul.f32 %v893, 3.8918573e-05
      %v906 = vadd.f32 %v905, 0.001143296
      %v907 = vmul.f32 %v893, %v906
      %v908 = vadd.f32 %v907, 0.014752088
      %v909 = vmul.f32 %v893, %v908
      %v910 = vadd.f32 %v909, 0.112945676
      %v911 = vmul.f32 %v893, %v910
      %v912 = vadd.f32 %v911, 0.4994258
      %v913 = vmul.f32 %v893, %v912
      %v914 = vadd.f32 %v913, 1.0
      %v915 = vrcp.pop %v914
      %v916 = vmul.f32 %v914, %v915
      %v917 = vsub.f32 1.0, %v916
      %v918 = vmul.f32 %v915, %v917
      %v919 = vadd.f32 %v915, %v918
      %vm920 = vweird.f32 %v914
      %vm921 = vweird.f32 %v915
      %vm922 = vmor %vm920, %vm921
      %v923 = vsel %vm922, %v915, %v919
      %v924 = vand.u32 2147483647, %v914
      %vm925 = vcmp.eq.f32.partialorder %v924, 8.507059e+37
      %v926 = vand.u32 %v914, 2147483648
      %v927 = vor.u32 1.1754944e-38, %v926
      %v928 = vsel %vm925, %v927, %v923
      %v929 = vmul.f32 %v904, %v928
      %v930 = vmin.f32 %v929, 1.0
      %v931 = vmax.f32 %v930, -1.0
      %v932 = vmul.f32 %v666, %v666
      %v933 = vmin.f32 16.0, %v932
      %v934 = vmul.f32 %v933, 2.1237322e-06
      %v935 = vadd.f32 %v934, 0.00028619796
      %v936 = vmul.f32 %v933, %v935
      %v937 = vadd.f32 %v936, 0.0036580483
      %v938 = vmul.f32 %v933, %v937
      %v939 = vadd.f32 %v938, 0.05243302
      %v940 = vmul.f32 %v933, %v939
      %v941 = vadd.f32 %v940, 0.18741608
      %v942 = vmul.f32 %v933, %v941
      %v943 = vadd.f32 %v942, 1.1283791
      %v944 = vmul.f32 %v666, %v943
      %v945 = vmul.f32 %v933, 3.8918573e-05
      %v946 = vadd.f32 %v945, 0.001143296
      %v947 = vmul.f32 %v933, %v946
      %v948 = vadd.f32 %v947, 0.014752088
      %v949 = vmul.f32 %v933, %v948
      %v950 = vadd.f32 %v949, 0.112945676
      %v951 = vmul.f32 %v933, %v950
      %v952 = vadd.f32 %v951, 0.4994258
      %v953 = vmul.f32 %v933, %v952
      %v954 = vadd.f32 %v953, 1.0
      %v955 = vrcp.pop %v954
      %v956 = vmul.f32 %v954, %v955
      %v957 = vsub.f32 1.0, %v956
      %v958 = vmul.f32 %v955, %v957
      %v959 = vadd.f32 %v955, %v958
      %vm960 = vweird.f32 %v954
      %vm961 = vweird.f32 %v955
      %vm962 = vmor %vm960, %vm961
      %v963 = vsel %vm962, %v955, %v959
      %v964 = vand.u32 2147483647, %v954
      %vm965 = vcmp.eq.f32.partialorder %v964, 8.507059e+37
      %v966 = vand.u32 %v954, 2147483648
      %v967 = vor.u32 1.1754944e-38, %v966
      %v968 = vsel %vm965, %v967, %v963
      %v969 = vmul.f32 %v944, %v968
      %v970 = vmin.f32 %v969, 1.0
      %v971 = vmax.f32 %v970, -1.0
      %v972 = vmul.f32 %v667, %v667
      %v973 = vmin.f32 16.0, %v972
      %v974 = vmul.f32 %v973, 2.1237322e-06
      %v975 = vadd.f32 %v974, 0.00028619796
      %v976 = vmul.f32 %v973, %v975
      %v977 = vadd.f32 %v976, 0.0036580483
      %v978 = vmul.f32 %v973, %v977
      %v979 = vadd.f32 %v978, 0.05243302
      %v980 = vmul.f32 %v973, %v979
      %v981 = vadd.f32 %v980, 0.18741608
      %v982 = vmul.f32 %v973, %v981
      %v983 = vadd.f32 %v982, 1.1283791
      %v984 = vmul.f32 %v667, %v983
      %v985 = vmul.f32 %v973, 3.8918573e-05
      %v986 = vadd.f32 %v985, 0.001143296
      %v987 = vmul.f32 %v973, %v986
      %v988 = vadd.f32 %v987, 0.014752088
      %v989 = vmul.f32 %v973, %v988
      %v990 = vadd.f32 %v989, 0.112945676
      %v991 = vmul.f32 %v973, %v990
      %v992 = vadd.f32 %v991, 0.4994258
      %v993 = vmul.f32 %v973, %v992
      %v994 = vadd.f32 %v993, 1.0
      %v995 = vrcp.pop %v994
      %v996 = vmul.f32 %v994, %v995
      %v997 = vsub.f32 1.0, %v996
      %v998 = vmul.f32 %v995, %v997
      %v999 = vadd.f32 %v995, %v998
      %vm1000 = vweird.f32 %v994
      %vm1001 = vweird.f32 %v995
      %vm1002 = vmor %vm1000, %vm1001
      %v1003 = vsel %vm1002, %v995, %v999
      %v1004 = vand.u32 2147483647, %v994
      %vm1005 = vcmp.eq.f32.partialorder %v1004, 8.507059e+37
      %v1006 = vand.u32 %v994, 2147483648
      %v1007 = vor.u32 1.1754944e-38, %v1006
      %v1008 = vsel %vm1005, %v1007, %v1003
      %v1009 = vmul.f32 %v984, %v1008
      %v1010 = vmin.f32 %v1009, 1.0
      %v1011 = vmax.f32 %v1010, -1.0
      %v1012 = vmul.f32 %v668, %v668
      %v1013 = vmin.f32 16.0, %v1012
      %v1014 = vmul.f32 %v1013, 2.1237322e-06
      %v1015 = vadd.f32 %v1014, 0.00028619796
      %v1016 = vmul.f32 %v1013, %v1015
      %v1017 = vadd.f32 %v1016, 0.0036580483
      %v1018 = vmul.f32 %v1013, %v1017
      %v1019 = vadd.f32 %v1018, 0.05243302
      %v1020 = vmul.f32 %v1013, %v1019
      %v1021 = vadd.f32 %v1020, 0.18741608
      %v1022 = vmul.f32 %v1013, %v1021
      %v1023 = vadd.f32 %v1022, 1.1283791
      %v1024 = vmul.f32 %v668, %v1023
      %v1025 = vmul.f32 %v1013, 3.8918573e-05
      %v1026 = vadd.f32 %v1025, 0.001143296
      %v1027 = vmul.f32 %v1013, %v1026
      %v1028 = vadd.f32 %v1027, 0.014752088
      %v1029 = vmul.f32 %v1013, %v1028
      %v1030 = vadd.f32 %v1029, 0.112945676
      %v1031 = vmul.f32 %v1013, %v1030
      %v1032 = vadd.f32 %v1031, 0.4994258
      %v1033 = vmul.f32 %v1013, %v1032
      %v1034 = vadd.f32 %v1033, 1.0
      %v1035 = vrcp.pop %v1034
      %v1036 = vmul.f32 %v1034, %v1035
      %v1037 = vsub.f32 1.0, %v1036
      %v1038 = vmul.f32 %v1035, %v1037
      %v1039 = vadd.f32 %v1035, %v1038
      %vm1040 = vweird.f32 %v1034
      %vm1041 = vweird.f32 %v1035
      %vm1042 = vmor %vm1040, %vm1041
      %v1043 = vsel %vm1042, %v1035, %v1039
      %v1044 = vand.u32 2147483647, %v1034
      %vm1045 = vcmp.eq.f32.partialorder %v1044, 8.507059e+37
      %v1046 = vand.u32 %v1034, 2147483648
      %v1047 = vor.u32 1.1754944e-38, %v1046
      %v1048 = vsel %vm1045, %v1047, %v1043
      %v1049 = vmul.f32 %v1024, %v1048
      %v1050 = vmin.f32 %v1049, 1.0
      %v1051 = vmax.f32 %v1050, -1.0
      %v1052 = vmul.f32 %v669, %v669
      %v1053 = vmin.f32 16.0, %v1052
      %v1054 = vmul.f32 %v1053, 2.1237322e-06
      %v1055 = vadd.f32 %v1054, 0.00028619796
      %v1056 = vmul.f32 %v1053, %v1055
      %v1057 = vadd.f32 %v1056, 0.0036580483
      %v1058 = vmul.f32 %v1053, %v1057
      %v1059 = vadd.f32 %v1058, 0.05243302
      %v1060 = vmul.f32 %v1053, %v1059
      %v1061 = vadd.f32 %v1060, 0.18741608
      %v1062 = vmul.f32 %v1053, %v1061
      %v1063 = vadd.f32 %v1062, 1.1283791
      %v1064 = vmul.f32 %v669, %v1063
      %v1065 = vmul.f32 %v1053, 3.8918573e-05
      %v1066 = vadd.f32 %v1065, 0.001143296
      %v1067 = vmul.f32 %v1053, %v1066
      %v1068 = vadd.f32 %v1067, 0.014752088
      %v1069 = vmul.f32 %v1053, %v1068
      %v1070 = vadd.f32 %v1069, 0.112945676
      %v1071 = vmul.f32 %v1053, %v1070
      %v1072 = vadd.f32 %v1071, 0.4994258
      %v1073 = vmul.f32 %v1053, %v1072
      %v1074 = vadd.f32 %v1073, 1.0
      %v1075 = vrcp.pop %v1074
      %v1076 = vmul.f32 %v1074, %v1075
      %v1077 = vsub.f32 1.0, %v1076
      %v1078 = vmul.f32 %v1075, %v1077
      %v1079 = vadd.f32 %v1075, %v1078
      %vm1080 = vweird.f32 %v1074
      %vm1081 = vweird.f32 %v1075
      %vm1082 = vmor %vm1080, %vm1081
      %v1083 = vsel %vm1082, %v1075, %v1079
      %v1084 = vand.u32 2147483647, %v1074
      %vm1085 = vcmp.eq.f32.partialorder %v1084, 8.507059e+37
      %v1086 = vand.u32 %v1074, 2147483648
      %v1087 = vor.u32 1.1754944e-38, %v1086
      %v1088 = vsel %vm1085, %v1087, %v1083
      %v1089 = vmul.f32 %v1064, %v1088
      %v1090 = vmin.f32 %v1089, 1.0
      %v1091 = vmax.f32 %v1090, -1.0
      %v1092 = vmul.f32 %v670, %v670
      %v1093 = vmin.f32 16.0, %v1092
      %v1094 = vmul.f32 %v1093, 2.1237322e-06
      %v1095 = vadd.f32 %v1094, 0.00028619796
      %v1096 = vmul.f32 %v1093, %v1095
      %v1097 = vadd.f32 %v1096, 0.0036580483
      %v1098 = vmul.f32 %v1093, %v1097
      %v1099 = vadd.f32 %v1098, 0.05243302
      %v1100 = vmul.f32 %v1093, %v1099
      %v1101 = vadd.f32 %v1100, 0.18741608
      %v1102 = vmul.f32 %v1093, %v1101
      %v1103 = vadd.f32 %v1102, 1.1283791
      %v1104 = vmul.f32 %v670, %v1103
      %v1105 = vmul.f32 %v1093, 3.8918573e-05
      %v1106 = vadd.f32 %v1105, 0.001143296
      %v1107 = vmul.f32 %v1093, %v1106
      %v1108 = vadd.f32 %v1107, 0.014752088
      %v1109 = vmul.f32 %v1093, %v1108
      %v1110 = vadd.f32 %v1109, 0.112945676
      %v1111 = vmul.f32 %v1093, %v1110
      %v1112 = vadd.f32 %v1111, 0.4994258
      %v1113 = vmul.f32 %v1093, %v1112
      %v1114 = vadd.f32 %v1113, 1.0
      %v1115 = vrcp.pop %v1114
      %v1116 = vmul.f32 %v1114, %v1115
      %v1117 = vsub.f32 1.0, %v1116
      %v1118 = vmul.f32 %v1115, %v1117
      %v1119 = vadd.f32 %v1115, %v1118
      %vm1120 = vweird.f32 %v1114
      %vm1121 = vweird.f32 %v1115
      %vm1122 = vmor %vm1120, %vm1121
      %v1123 = vsel %vm1122, %v1115, %v1119
      %v1124 = vand.u32 2147483647, %v1114
      %vm1125 = vcmp.eq.f32.partialorder %v1124, 8.507059e+37
      %v1126 = vand.u32 %v1114, 2147483648
      %v1127 = vor.u32 1.1754944e-38, %v1126
      %v1128 = vsel %vm1125, %v1127, %v1123
      %v1129 = vmul.f32 %v1104, %v1128
      %v1130 = vmin.f32 %v1129, 1.0
      %v1131 = vmax.f32 %v1130, -1.0
      %v1132 = vmul.f32 %v671, %v671
      %v1133 = vmin.f32 16.0, %v1132
      %v1134 = vmul.f32 %v1133, 2.1237322e-06
      %v1135 = vadd.f32 %v1134, 0.00028619796
      %v1136 = vmul.f32 %v1133, %v1135
      %v1137 = vadd.f32 %v1136, 0.0036580483
      %v1138 = vmul.f32 %v1133, %v1137
      %v1139 = vadd.f32 %v1138, 0.05243302
      %v1140 = vmul.f32 %v1133, %v1139
      %v1141 = vadd.f32 %v1140, 0.18741608
      %v1142 = vmul.f32 %v1133, %v1141
      %v1143 = vadd.f32 %v1142, 1.1283791
      %v1144 = vmul.f32 %v671, %v1143
      %v1145 = vmul.f32 %v1133, 3.8918573e-05
      %v1146 = vadd.f32 %v1145, 0.001143296
      %v1147 = vmul.f32 %v1133, %v1146
      %v1148 = vadd.f32 %v1147, 0.014752088
      %v1149 = vmul.f32 %v1133, %v1148
      %v1150 = vadd.f32 %v1149, 0.112945676
      %v1151 = vmul.f32 %v1133, %v1150
      %v1152 = vadd.f32 %v1151, 0.4994258
      %v1153 = vmul.f32 %v1133, %v1152
      %v1154 = vadd.f32 %v1153, 1.0
      %v1155 = vrcp.pop %v1154
      %v1156 = vmul.f32 %v1154, %v1155
      %v1157 = vsub.f32 1.0, %v1156
      %v1158 = vmul.f32 %v1155, %v1157
      %v1159 = vadd.f32 %v1155, %v1158
      %vm1160 = vweird.f32 %v1154
      %vm1161 = vweird.f32 %v1155
      %vm1162 = vmor %vm1160, %vm1161
      %v1163 = vsel %vm1162, %v1155, %v1159
      %v1164 = vand.u32 2147483647, %v1154
      %vm1165 = vcmp.eq.f32.partialorder %v1164, 8.507059e+37
      %v1166 = vand.u32 %v1154, 2147483648
      %v1167 = vor.u32 1.1754944e-38, %v1166
      %v1168 = vsel %vm1165, %v1167, %v1163
      %v1169 = vmul.f32 %v1144, %v1168
      %v1170 = vmin.f32 %v1169, 1.0
      %v1171 = vmax.f32 %v1170, -1.0
      %v1172 = vmul.f32 %v672, %v672
      %v1173 = vmin.f32 16.0, %v1172
      %v1174 = vmul.f32 %v1173, 2.1237322e-06
      %v1175 = vadd.f32 %v1174, 0.00028619796
      %v1176 = vmul.f32 %v1173, %v1175
      %v1177 = vadd.f32 %v1176, 0.0036580483
      %v1178 = vmul.f32 %v1173, %v1177
      %v1179 = vadd.f32 %v1178, 0.05243302
      %v1180 = vmul.f32 %v1173, %v1179
      %v1181 = vadd.f32 %v1180, 0.18741608
      %v1182 = vmul.f32 %v1173, %v1181
      %v1183 = vadd.f32 %v1182, 1.1283791
      %v1184 = vmul.f32 %v672, %v1183
      %v1185 = vmul.f32 %v1173, 3.8918573e-05
      %v1186 = vadd.f32 %v1185, 0.001143296
      %v1187 = vmul.f32 %v1173, %v1186
      %v1188 = vadd.f32 %v1187, 0.014752088
      %v1189 = vmul.f32 %v1173, %v1188
      %v1190 = vadd.f32 %v1189, 0.112945676
      %v1191 = vmul.f32 %v1173, %v1190
      %v1192 = vadd.f32 %v1191, 0.4994258
      %v1193 = vmul.f32 %v1173, %v1192
      %v1194 = vadd.f32 %v1193, 1.0
      %v1195 = vrcp.pop %v1194
      %v1196 = vmul.f32 %v1194, %v1195
      %v1197 = vsub.f32 1.0, %v1196
      %v1198 = vmul.f32 %v1195, %v1197
      %v1199 = vadd.f32 %v1195, %v1198
      %vm1200 = vweird.f32 %v1194
      %vm1201 = vweird.f32 %v1195
      %vm1202 = vmor %vm1200, %vm1201
      %v1203 = vsel %vm1202, %v1195, %v1199
      %v1204 = vand.u32 2147483647, %v1194
      %vm1205 = vcmp.eq.f32.partialorder %v1204, 8.507059e+37
      %v1206 = vand.u32 %v1194, 2147483648
      %v1207 = vor.u32 1.1754944e-38, %v1206
      %v1208 = vsel %vm1205, %v1207, %v1203
      %v1209 = vmul.f32 %v1184, %v1208
      %v1210 = vmin.f32 %v1209, 1.0
      %v1211 = vmax.f32 %v1210, -1.0
      %v1212 = vmul.f32 %v673, %v673
      %v1213 = vmin.f32 16.0, %v1212
      %v1214 = vmul.f32 %v1213, 2.1237322e-06
      %v1215 = vadd.f32 %v1214, 0.00028619796
      %v1216 = vmul.f32 %v1213, %v1215
      %v1217 = vadd.f32 %v1216, 0.0036580483
      %v1218 = vmul.f32 %v1213, %v1217
      %v1219 = vadd.f32 %v1218, 0.05243302
      %v1220 = vmul.f32 %v1213, %v1219
      %v1221 = vadd.f32 %v1220, 0.18741608
      %v1222 = vmul.f32 %v1213, %v1221
      %v1223 = vadd.f32 %v1222, 1.1283791
      %v1224 = vmul.f32 %v673, %v1223
      %v1225 = vmul.f32 %v1213, 3.8918573e-05
      %v1226 = vadd.f32 %v1225, 0.001143296
      %v1227 = vmul.f32 %v1213, %v1226
      %v1228 = vadd.f32 %v1227, 0.014752088
      %v1229 = vmul.f32 %v1213, %v1228
      %v1230 = vadd.f32 %v1229, 0.112945676
      %v1231 = vmul.f32 %v1213, %v1230
      %v1232 = vadd.f32 %v1231, 0.4994258
      %v1233 = vmul.f32 %v1213, %v1232
      %v1234 = vadd.f32 %v1233, 1.0
      %v1235 = vrcp.pop %v1234
      %v1236 = vmul.f32 %v1234, %v1235
      %v1237 = vsub.f32 1.0, %v1236
      %v1238 = vmul.f32 %v1235, %v1237
      %v1239 = vadd.f32 %v1235, %v1238
      %vm1240 = vweird.f32 %v1234
      %vm1241 = vweird.f32 %v1235
      %vm1242 = vmor %vm1240, %vm1241
      %v1243 = vsel %vm1242, %v1235, %v1239
      %v1244 = vand.u32 2147483647, %v1234
      %vm1245 = vcmp.eq.f32.partialorder %v1244, 8.507059e+37
      %v1246 = vand.u32 %v1234, 2147483648
      %v1247 = vor.u32 1.1754944e-38, %v1246
      %v1248 = vsel %vm1245, %v1247, %v1243
      %v1249 = vmul.f32 %v1224, %v1248
      %v1250 = vmin.f32 %v1249, 1.0
      %v1251 = vmax.f32 %v1250, -1.0
      %v1252 = vmul.f32 %v674, %v674
      %v1253 = vmin.f32 16.0, %v1252
      %v1254 = vmul.f32 %v1253, 2.1237322e-06
      %v1255 = vadd.f32 %v1254, 0.00028619796
      %v1256 = vmul.f32 %v1253, %v1255
      %v1257 = vadd.f32 %v1256, 0.0036580483
      %v1258 = vmul.f32 %v1253, %v1257
      %v1259 = vadd.f32 %v1258, 0.05243302
      %v1260 = vmul.f32 %v1253, %v1259
      %v1261 = vadd.f32 %v1260, 0.18741608
      %v1262 = vmul.f32 %v1253, %v1261
      %v1263 = vadd.f32 %v1262, 1.1283791
      %v1264 = vmul.f32 %v674, %v1263
      %v1265 = vmul.f32 %v1253, 3.8918573e-05
      %v1266 = vadd.f32 %v1265, 0.001143296
      %v1267 = vmul.f32 %v1253, %v1266
      %v1268 = vadd.f32 %v1267, 0.014752088
      %v1269 = vmul.f32 %v1253, %v1268
      %v1270 = vadd.f32 %v1269, 0.112945676
      %v1271 = vmul.f32 %v1253, %v1270
      %v1272 = vadd.f32 %v1271, 0.4994258
      %v1273 = vmul.f32 %v1253, %v1272
      %v1274 = vadd.f32 %v1273, 1.0
      %v1275 = vrcp.pop %v1274
      %v1276 = vmul.f32 %v1274, %v1275
      %v1277 = vsub.f32 1.0, %v1276
      %v1278 = vmul.f32 %v1275, %v1277
      %v1279 = vadd.f32 %v1275, %v1278
      %vm1280 = vweird.f32 %v1274
      %vm1281 = vweird.f32 %v1275
      %vm1282 = vmor %vm1280, %vm1281
      %v1283 = vsel %vm1282, %v1275, %v1279
      %v1284 = vand.u32 2147483647, %v1274
      %vm1285 = vcmp.eq.f32.partialorder %v1284, 8.507059e+37
      %v1286 = vand.u32 %v1274, 2147483648
      %v1287 = vor.u32 1.1754944e-38, %v1286
      %v1288 = vsel %vm1285, %v1287, %v1283
      %v1289 = vmul.f32 %v1264, %v1288
      %v1290 = vmin.f32 %v1289, 1.0
      %v1291 = vmax.f32 %v1290, -1.0
      %v1292 = vmul.f32 %v675, %v675
      %v1293 = vmin.f32 16.0, %v1292
      %v1294 = vmul.f32 %v1293, 2.1237322e-06
      %v1295 = vadd.f32 %v1294, 0.00028619796
      %v1296 = vmul.f32 %v1293, %v1295
      %v1297 = vadd.f32 %v1296, 0.0036580483
      %v1298 = vmul.f32 %v1293, %v1297
      %v1299 = vadd.f32 %v1298, 0.05243302
      %v1300 = vmul.f32 %v1293, %v1299
      %v1301 = vadd.f32 %v1300, 0.18741608
      %v1302 = vmul.f32 %v1293, %v1301
      %v1303 = vadd.f32 %v1302, 1.1283791
      %v1304 = vmul.f32 %v675, %v1303
      %v1305 = vmul.f32 %v1293, 3.8918573e-05
      %v1306 = vadd.f32 %v1305, 0.001143296
      %v1307 = vmul.f32 %v1293, %v1306
      %v1308 = vadd.f32 %v1307, 0.014752088
      %v1309 = vmul.f32 %v1293, %v1308
      %v1310 = vadd.f32 %v1309, 0.112945676
      %v1311 = vmul.f32 %v1293, %v1310
      %v1312 = vadd.f32 %v1311, 0.4994258
      %v1313 = vmul.f32 %v1293, %v1312
      %v1314 = vadd.f32 %v1313, 1.0
      %v1315 = vrcp.pop %v1314
      %v1316 = vmul.f32 %v1314, %v1315
      %v1317 = vsub.f32 1.0, %v1316
      %v1318 = vmul.f32 %v1315, %v1317
      %v1319 = vadd.f32 %v1315, %v1318
      %vm1320 = vweird.f32 %v1314
      %vm1321 = vweird.f32 %v1315
      %vm1322 = vmor %vm1320, %vm1321
      %v1323 = vsel %vm1322, %v1315, %v1319
      %v1324 = vand.u32 2147483647, %v1314
      %vm1325 = vcmp.eq.f32.partialorder %v1324, 8.507059e+37
      %v1326 = vand.u32 %v1314, 2147483648
      %v1327 = vor.u32 1.1754944e-38, %v1326
      %v1328 = vsel %vm1325, %v1327, %v1323
      %v1329 = vmul.f32 %v1304, %v1328
      %v1330 = vmin.f32 %v1329, 1.0
      %v1331 = vmax.f32 %v1330, -1.0
      %v1332 = vmul.f32 %v676, %v676
      %v1333 = vmin.f32 16.0, %v1332
      %v1334 = vmul.f32 %v1333, 2.1237322e-06
      %v1335 = vadd.f32 %v1334, 0.00028619796
      %v1336 = vmul.f32 %v1333, %v1335
      %v1337 = vadd.f32 %v1336, 0.0036580483
      %v1338 = vmul.f32 %v1333, %v1337
      %v1339 = vadd.f32 %v1338, 0.05243302
      %v1340 = vmul.f32 %v1333, %v1339
      %v1341 = vadd.f32 %v1340, 0.18741608
      %v1342 = vmul.f32 %v1333, %v1341
      %v1343 = vadd.f32 %v1342, 1.1283791
      %v1344 = vmul.f32 %v676, %v1343
      %v1345 = vmul.f32 %v1333, 3.8918573e-05
      %v1346 = vadd.f32 %v1345, 0.001143296
      %v1347 = vmul.f32 %v1333, %v1346
      %v1348 = vadd.f32 %v1347, 0.014752088
      %v1349 = vmul.f32 %v1333, %v1348
      %v1350 = vadd.f32 %v1349, 0.112945676
      %v1351 = vmul.f32 %v1333, %v1350
      %v1352 = vadd.f32 %v1351, 0.4994258
      %v1353 = vmul.f32 %v1333, %v1352
      %v1354 = vadd.f32 %v1353, 1.0
      %v1355 = vrcp.pop %v1354
      %v1356 = vmul.f32 %v1354, %v1355
      %v1357 = vsub.f32 1.0, %v1356
      %v1358 = vmul.f32 %v1355, %v1357
      %v1359 = vadd.f32 %v1355, %v1358
      %vm1360 = vweird.f32 %v1354
      %vm1361 = vweird.f32 %v1355
      %vm1362 = vmor %vm1360, %vm1361
      %v1363 = vsel %vm1362, %v1355, %v1359
      %v1364 = vand.u32 2147483647, %v1354
      %vm1365 = vcmp.eq.f32.partialorder %v1364, 8.507059e+37
      %v1366 = vand.u32 %v1354, 2147483648
      %v1367 = vor.u32 1.1754944e-38, %v1366
      %v1368 = vsel %vm1365, %v1367, %v1363
      %v1369 = vmul.f32 %v1344, %v1368
      %v1370 = vmin.f32 %v1369, 1.0
      %v1371 = vmax.f32 %v1370, -1.0
      %v1372 = vmul.f32 %v677, %v677
      %v1373 = vmin.f32 16.0, %v1372
      %v1374 = vmul.f32 %v1373, 2.1237322e-06
      %v1375 = vadd.f32 %v1374, 0.00028619796
      %v1376 = vmul.f32 %v1373, %v1375
      %v1377 = vadd.f32 %v1376, 0.0036580483
      %v1378 = vmul.f32 %v1373, %v1377
      %v1379 = vadd.f32 %v1378, 0.05243302
      %v1380 = vmul.f32 %v1373, %v1379
      %v1381 = vadd.f32 %v1380, 0.18741608
      %v1382 = vmul.f32 %v1373, %v1381
      %v1383 = vadd.f32 %v1382, 1.1283791
      %v1384 = vmul.f32 %v677, %v1383
      %v1385 = vmul.f32 %v1373, 3.8918573e-05
      %v1386 = vadd.f32 %v1385, 0.001143296
      %v1387 = vmul.f32 %v1373, %v1386
      %v1388 = vadd.f32 %v1387, 0.014752088
      %v1389 = vmul.f32 %v1373, %v1388
      %v1390 = vadd.f32 %v1389, 0.112945676
      %v1391 = vmul.f32 %v1373, %v1390
      %v1392 = vadd.f32 %v1391, 0.4994258
      %v1393 = vmul.f32 %v1373, %v1392
      %v1394 = vadd.f32 %v1393, 1.0
      %v1395 = vrcp.pop %v1394
      %v1396 = vmul.f32 %v1394, %v1395
      %v1397 = vsub.f32 1.0, %v1396
      %v1398 = vmul.f32 %v1395, %v1397
      %v1399 = vadd.f32 %v1395, %v1398
      %vm1400 = vweird.f32 %v1394
      %vm1401 = vweird.f32 %v1395
      %vm1402 = vmor %vm1400, %vm1401
      %v1403 = vsel %vm1402, %v1395, %v1399
      %v1404 = vand.u32 2147483647, %v1394
      %vm1405 = vcmp.eq.f32.partialorder %v1404, 8.507059e+37
      %v1406 = vand.u32 %v1394, 2147483648
      %v1407 = vor.u32 1.1754944e-38, %v1406
      %v1408 = vsel %vm1405, %v1407, %v1403
      %v1409 = vmul.f32 %v1384, %v1408
      %v1410 = vmin.f32 %v1409, 1.0
      %v1411 = vmax.f32 %v1410, -1.0
      %v1412 = vmul.f32 %v678, %v678
      %v1413 = vmin.f32 16.0, %v1412
      %v1414 = vmul.f32 %v1413, 2.1237322e-06
      %v1415 = vadd.f32 %v1414, 0.00028619796
      %v1416 = vmul.f32 %v1413, %v1415
      %v1417 = vadd.f32 %v1416, 0.0036580483
      %v1418 = vmul.f32 %v1413, %v1417
      %v1419 = vadd.f32 %v1418, 0.05243302
      %v1420 = vmul.f32 %v1413, %v1419
      %v1421 = vadd.f32 %v1420, 0.18741608
      %v1422 = vmul.f32 %v1413, %v1421
      %v1423 = vadd.f32 %v1422, 1.1283791
      %v1424 = vmul.f32 %v678, %v1423
      %v1425 = vmul.f32 %v1413, 3.8918573e-05
      %v1426 = vadd.f32 %v1425, 0.001143296
      %v1427 = vmul.f32 %v1413, %v1426
      %v1428 = vadd.f32 %v1427, 0.014752088
      %v1429 = vmul.f32 %v1413, %v1428
      %v1430 = vadd.f32 %v1429, 0.112945676
      %v1431 = vmul.f32 %v1413, %v1430
      %v1432 = vadd.f32 %v1431, 0.4994258
      %v1433 = vmul.f32 %v1413, %v1432
      %v1434 = vadd.f32 %v1433, 1.0
      %v1435 = vrcp.pop %v1434
      %v1436 = vmul.f32 %v1434, %v1435
      %v1437 = vsub.f32 1.0, %v1436
      %v1438 = vmul.f32 %v1435, %v1437
      %v1439 = vadd.f32 %v1435, %v1438
      %vm1440 = vweird.f32 %v1434
      %vm1441 = vweird.f32 %v1435
      %vm1442 = vmor %vm1440, %vm1441
      %v1443 = vsel %vm1442, %v1435, %v1439
      %v1444 = vand.u32 2147483647, %v1434
      %vm1445 = vcmp.eq.f32.partialorder %v1444, 8.507059e+37
      %v1446 = vand.u32 %v1434, 2147483648
      %v1447 = vor.u32 1.1754944e-38, %v1446
      %v1448 = vsel %vm1445, %v1447, %v1443
      %v1449 = vmul.f32 %v1424, %v1448
      %v1450 = vmin.f32 %v1449, 1.0
      %v1451 = vmax.f32 %v1450, -1.0
      %v1452 = vmul.f32 %v679, %v679
      %v1453 = vmin.f32 16.0, %v1452
      %v1454 = vmul.f32 %v1453, 2.1237322e-06
      %v1455 = vadd.f32 %v1454, 0.00028619796
      %v1456 = vmul.f32 %v1453, %v1455
      %v1457 = vadd.f32 %v1456, 0.0036580483
      %v1458 = vmul.f32 %v1453, %v1457
      %v1459 = vadd.f32 %v1458, 0.05243302
      %v1460 = vmul.f32 %v1453, %v1459
      %v1461 = vadd.f32 %v1460, 0.18741608
      %v1462 = vmul.f32 %v1453, %v1461
      %v1463 = vadd.f32 %v1462, 1.1283791
      %v1464 = vmul.f32 %v679, %v1463
      %v1465 = vmul.f32 %v1453, 3.8918573e-05
      %v1466 = vadd.f32 %v1465, 0.001143296
      %v1467 = vmul.f32 %v1453, %v1466
      %v1468 = vadd.f32 %v1467, 0.014752088
      %v1469 = vmul.f32 %v1453, %v1468
      %v1470 = vadd.f32 %v1469, 0.112945676
      %v1471 = vmul.f32 %v1453, %v1470
      %v1472 = vadd.f32 %v1471, 0.4994258
      %v1473 = vmul.f32 %v1453, %v1472
      %v1474 = vadd.f32 %v1473, 1.0
      %v1475 = vrcp.pop %v1474
      %v1476 = vmul.f32 %v1474, %v1475
      %v1477 = vsub.f32 1.0, %v1476
      %v1478 = vmul.f32 %v1475, %v1477
      %v1479 = vadd.f32 %v1475, %v1478
      %vm1480 = vweird.f32 %v1474
      %vm1481 = vweird.f32 %v1475
      %vm1482 = vmor %vm1480, %vm1481
      %v1483 = vsel %vm1482, %v1475, %v1479
      %v1484 = vand.u32 2147483647, %v1474
      %vm1485 = vcmp.eq.f32.partialorder %v1484, 8.507059e+37
      %v1486 = vand.u32 %v1474, 2147483648
      %v1487 = vor.u32 1.1754944e-38, %v1486
      %v1488 = vsel %vm1485, %v1487, %v1483
      %v1489 = vmul.f32 %v1464, %v1488
      %v1490 = vmin.f32 %v1489, 1.0
      %v1491 = vmax.f32 %v1490, -1.0
      %v1492 = vmul.f32 %v680, %v680
      %v1493 = vmin.f32 16.0, %v1492
      %v1494 = vmul.f32 %v1493, 2.1237322e-06
      %v1495 = vadd.f32 %v1494, 0.00028619796
      %v1496 = vmul.f32 %v1493, %v1495
      %v1497 = vadd.f32 %v1496, 0.0036580483
      %v1498 = vmul.f32 %v1493, %v1497
      %v1499 = vadd.f32 %v1498, 0.05243302
      %v1500 = vmul.f32 %v1493, %v1499
      %v1501 = vadd.f32 %v1500, 0.18741608
      %v1502 = vmul.f32 %v1493, %v1501
      %v1503 = vadd.f32 %v1502, 1.1283791
      %v1504 = vmul.f32 %v680, %v1503
      %v1505 = vmul.f32 %v1493, 3.8918573e-05
      %v1506 = vadd.f32 %v1505, 0.001143296
      %v1507 = vmul.f32 %v1493, %v1506
      %v1508 = vadd.f32 %v1507, 0.014752088
      %v1509 = vmul.f32 %v1493, %v1508
      %v1510 = vadd.f32 %v1509, 0.112945676
      %v1511 = vmul.f32 %v1493, %v1510
      %v1512 = vadd.f32 %v1511, 0.4994258
      %v1513 = vmul.f32 %v1493, %v1512
      %v1514 = vadd.f32 %v1513, 1.0
      %v1515 = vrcp.pop %v1514
      %v1516 = vmul.f32 %v1514, %v1515
      %v1517 = vsub.f32 1.0, %v1516
      %v1518 = vmul.f32 %v1515, %v1517
      %v1519 = vadd.f32 %v1515, %v1518
      %vm1520 = vweird.f32 %v1514
      %vm1521 = vweird.f32 %v1515
      %vm1522 = vmor %vm1520, %vm1521
      %v1523 = vsel %vm1522, %v1515, %v1519
      %v1524 = vand.u32 2147483647, %v1514
      %vm1525 = vcmp.eq.f32.partialorder %v1524, 8.507059e+37
      %v1526 = vand.u32 %v1514, 2147483648
      %v1527 = vor.u32 1.1754944e-38, %v1526
      %v1528 = vsel %vm1525, %v1527, %v1523
      %v1529 = vmul.f32 %v1504, %v1528
      %v1530 = vmin.f32 %v1529, 1.0
      %v1531 = vmax.f32 %v1530, -1.0
      %v1532 = vmul.f32 %v681, %v681
      %v1533 = vmin.f32 16.0, %v1532
      %v1534 = vmul.f32 %v1533, 2.1237322e-06
      %v1535 = vadd.f32 %v1534, 0.00028619796
      %v1536 = vmul.f32 %v1533, %v1535
      %v1537 = vadd.f32 %v1536, 0.0036580483
      %v1538 = vmul.f32 %v1533, %v1537
      %v1539 = vadd.f32 %v1538, 0.05243302
      %v1540 = vmul.f32 %v1533, %v1539
      %v1541 = vadd.f32 %v1540, 0.18741608
      %v1542 = vmul.f32 %v1533, %v1541
      %v1543 = vadd.f32 %v1542, 1.1283791
      %v1544 = vmul.f32 %v681, %v1543
      %v1545 = vmul.f32 %v1533, 3.8918573e-05
      %v1546 = vadd.f32 %v1545, 0.001143296
      %v1547 = vmul.f32 %v1533, %v1546
      %v1548 = vadd.f32 %v1547, 0.014752088
      %v1549 = vmul.f32 %v1533, %v1548
      %v1550 = vadd.f32 %v1549, 0.112945676
      %v1551 = vmul.f32 %v1533, %v1550
      %v1552 = vadd.f32 %v1551, 0.4994258
      %v1553 = vmul.f32 %v1533, %v1552
      %v1554 = vadd.f32 %v1553, 1.0
      %v1555 = vrcp.pop %v1554
      %v1556 = vmul.f32 %v1554, %v1555
      %v1557 = vsub.f32 1.0, %v1556
      %v1558 = vmul.f32 %v1555, %v1557
      %v1559 = vadd.f32 %v1555, %v1558
      %vm1560 = vweird.f32 %v1554
      %vm1561 = vweird.f32 %v1555
      %vm1562 = vmor %vm1560, %vm1561
      %v1563 = vsel %vm1562, %v1555, %v1559
      %v1564 = vand.u32 2147483647, %v1554
      %vm1565 = vcmp.eq.f32.partialorder %v1564, 8.507059e+37
      %v1566 = vand.u32 %v1554, 2147483648
      %v1567 = vor.u32 1.1754944e-38, %v1566
      %v1568 = vsel %vm1565, %v1567, %v1563
      %v1569 = vmul.f32 %v1544, %v1568
      %v1570 = vmin.f32 %v1569, 1.0
      %v1571 = vmax.f32 %v1570, -1.0
      %v1572 = vmul.f32 %v682, %v682
      %v1573 = vmin.f32 16.0, %v1572
      %v1574 = vmul.f32 %v1573, 2.1237322e-06
      %v1575 = vadd.f32 %v1574, 0.00028619796
      %v1576 = vmul.f32 %v1573, %v1575
      %v1577 = vadd.f32 %v1576, 0.0036580483
      %v1578 = vmul.f32 %v1573, %v1577
      %v1579 = vadd.f32 %v1578, 0.05243302
      %v1580 = vmul.f32 %v1573, %v1579
      %v1581 = vadd.f32 %v1580, 0.18741608
      %v1582 = vmul.f32 %v1573, %v1581
      %v1583 = vadd.f32 %v1582, 1.1283791
      %v1584 = vmul.f32 %v682, %v1583
      %v1585 = vmul.f32 %v1573, 3.8918573e-05
      %v1586 = vadd.f32 %v1585, 0.001143296
      %v1587 = vmul.f32 %v1573, %v1586
      %v1588 = vadd.f32 %v1587, 0.014752088
      %v1589 = vmul.f32 %v1573, %v1588
      %v1590 = vadd.f32 %v1589, 0.112945676
      %v1591 = vmul.f32 %v1573, %v1590
      %v1592 = vadd.f32 %v1591, 0.4994258
      %v1593 = vmul.f32 %v1573, %v1592
      %v1594 = vadd.f32 %v1593, 1.0
      %v1595 = vrcp.pop %v1594
      %v1596 = vmul.f32 %v1594, %v1595
      %v1597 = vsub.f32 1.0, %v1596
      %v1598 = vmul.f32 %v1595, %v1597
      %v1599 = vadd.f32 %v1595, %v1598
      %vm1600 = vweird.f32 %v1594
      %vm1601 = vweird.f32 %v1595
      %vm1602 = vmor %vm1600, %vm1601
      %v1603 = vsel %vm1602, %v1595, %v1599
      %v1604 = vand.u32 2147483647, %v1594
      %vm1605 = vcmp.eq.f32.partialorder %v1604, 8.507059e+37
      %v1606 = vand.u32 %v1594, 2147483648
      %v1607 = vor.u32 1.1754944e-38, %v1606
      %v1608 = vsel %vm1605, %v1607, %v1603
      %v1609 = vmul.f32 %v1584, %v1608
      %v1610 = vmin.f32 %v1609, 1.0
      %v1611 = vmax.f32 %v1610, -1.0
      %v1612 = vmul.f32 %v683, %v683
      %v1613 = vmin.f32 16.0, %v1612
      %v1614 = vmul.f32 %v1613, 2.1237322e-06
      %v1615 = vadd.f32 %v1614, 0.00028619796
      %v1616 = vmul.f32 %v1613, %v1615
      %v1617 = vadd.f32 %v1616, 0.0036580483
      %v1618 = vmul.f32 %v1613, %v1617
      %v1619 = vadd.f32 %v1618, 0.05243302
      %v1620 = vmul.f32 %v1613, %v1619
      %v1621 = vadd.f32 %v1620, 0.18741608
      %v1622 = vmul.f32 %v1613, %v1621
      %v1623 = vadd.f32 %v1622, 1.1283791
      %v1624 = vmul.f32 %v683, %v1623
      %v1625 = vmul.f32 %v1613, 3.8918573e-05
      %v1626 = vadd.f32 %v1625, 0.001143296
      %v1627 = vmul.f32 %v1613, %v1626
      %v1628 = vadd.f32 %v1627, 0.014752088
      %v1629 = vmul.f32 %v1613, %v1628
      %v1630 = vadd.f32 %v1629, 0.112945676
      %v1631 = vmul.f32 %v1613, %v1630
      %v1632 = vadd.f32 %v1631, 0.4994258
      %v1633 = vmul.f32 %v1613, %v1632
      %v1634 = vadd.f32 %v1633, 1.0
      %v1635 = vrcp.pop %v1634
      %v1636 = vmul.f32 %v1634, %v1635
      %v1637 = vsub.f32 1.0, %v1636
      %v1638 = vmul.f32 %v1635, %v1637
      %v1639 = vadd.f32 %v1635, %v1638
      %vm1640 = vweird.f32 %v1634
      %vm1641 = vweird.f32 %v1635
      %vm1642 = vmor %vm1640, %vm1641
      %v1643 = vsel %vm1642, %v1635, %v1639
      %v1644 = vand.u32 2147483647, %v1634
      %vm1645 = vcmp.eq.f32.partialorder %v1644, 8.507059e+37
      %v1646 = vand.u32 %v1634, 2147483648
      %v1647 = vor.u32 1.1754944e-38, %v1646
      %v1648 = vsel %vm1645, %v1647, %v1643
      %v1649 = vmul.f32 %v1624, %v1648
      %v1650 = vmin.f32 %v1649, 1.0
      %v1651 = vmax.f32 %v1650, -1.0
      %v1652 = vmul.f32 %v684, %v684
      %v1653 = vmin.f32 16.0, %v1652
      %v1654 = vmul.f32 %v1653, 2.1237322e-06
      %v1655 = vadd.f32 %v1654, 0.00028619796
      %v1656 = vmul.f32 %v1653, %v1655
      %v1657 = vadd.f32 %v1656, 0.0036580483
      %v1658 = vmul.f32 %v1653, %v1657
      %v1659 = vadd.f32 %v1658, 0.05243302
      %v1660 = vmul.f32 %v1653, %v1659
      %v1661 = vadd.f32 %v1660, 0.18741608
      %v1662 = vmul.f32 %v1653, %v1661
      %v1663 = vadd.f32 %v1662, 1.1283791
      %v1664 = vmul.f32 %v684, %v1663
      %v1665 = vmul.f32 %v1653, 3.8918573e-05
      %v1666 = vadd.f32 %v1665, 0.001143296
      %v1667 = vmul.f32 %v1653, %v1666
      %v1668 = vadd.f32 %v1667, 0.014752088
      %v1669 = vmul.f32 %v1653, %v1668
      %v1670 = vadd.f32 %v1669, 0.112945676
      %v1671 = vmul.f32 %v1653, %v1670
      %v1672 = vadd.f32 %v1671, 0.4994258
      %v1673 = vmul.f32 %v1653, %v1672
      %v1674 = vadd.f32 %v1673, 1.0
      %v1675 = vrcp.pop %v1674
      %v1676 = vmul.f32 %v1674, %v1675
      %v1677 = vsub.f32 1.0, %v1676
      %v1678 = vmul.f32 %v1675, %v1677
      %v1679 = vadd.f32 %v1675, %v1678
      %vm1680 = vweird.f32 %v1674
      %vm1681 = vweird.f32 %v1675
      %vm1682 = vmor %vm1680, %vm1681
      %v1683 = vsel %vm1682, %v1675, %v1679
      %v1684 = vand.u32 2147483647, %v1674
      %vm1685 = vcmp.eq.f32.partialorder %v1684, 8.507059e+37
      %v1686 = vand.u32 %v1674, 2147483648
      %v1687 = vor.u32 1.1754944e-38, %v1686
      %v1688 = vsel %vm1685, %v1687, %v1683
      %v1689 = vmul.f32 %v1664, %v1688
      %v1690 = vmin.f32 %v1689, 1.0
      %v1691 = vmax.f32 %v1690, -1.0
      %v1692 = vmul.f32 %v685, %v685
      %v1693 = vmin.f32 16.0, %v1692
      %v1694 = vmul.f32 %v1693, 2.1237322e-06
      %v1695 = vadd.f32 %v1694, 0.00028619796
      %v1696 = vmul.f32 %v1693, %v1695
      %v1697 = vadd.f32 %v1696, 0.0036580483
      %v1698 = vmul.f32 %v1693, %v1697
      %v1699 = vadd.f32 %v1698, 0.05243302
      %v1700 = vmul.f32 %v1693, %v1699
      %v1701 = vadd.f32 %v1700, 0.18741608
      %v1702 = vmul.f32 %v1693, %v1701
      %v1703 = vadd.f32 %v1702, 1.1283791
      %v1704 = vmul.f32 %v685, %v1703
      %v1705 = vmul.f32 %v1693, 3.8918573e-05
      %v1706 = vadd.f32 %v1705, 0.001143296
      %v1707 = vmul.f32 %v1693, %v1706
      %v1708 = vadd.f32 %v1707, 0.014752088
      %v1709 = vmul.f32 %v1693, %v1708
      %v1710 = vadd.f32 %v1709, 0.112945676
      %v1711 = vmul.f32 %v1693, %v1710
      %v1712 = vadd.f32 %v1711, 0.4994258
      %v1713 = vmul.f32 %v1693, %v1712
      %v1714 = vadd.f32 %v1713, 1.0
      %v1715 = vrcp.pop %v1714
      %v1716 = vmul.f32 %v1714, %v1715
      %v1717 = vsub.f32 1.0, %v1716
      %v1718 = vmul.f32 %v1715, %v1717
      %v1719 = vadd.f32 %v1715, %v1718
      %vm1720 = vweird.f32 %v1714
      %vm1721 = vweird.f32 %v1715
      %vm1722 = vmor %vm1720, %vm1721
      %v1723 = vsel %vm1722, %v1715, %v1719
      %v1724 = vand.u32 2147483647, %v1714
      %vm1725 = vcmp.eq.f32.partialorder %v1724, 8.507059e+37
      %v1726 = vand.u32 %v1714, 2147483648
      %v1727 = vor.u32 1.1754944e-38, %v1726
      %v1728 = vsel %vm1725, %v1727, %v1723
      %v1729 = vmul.f32 %v1704, %v1728
      %v1730 = vmin.f32 %v1729, 1.0
      %v1731 = vmax.f32 %v1730, -1.0
      %v1732 = vmul.f32 %v686, %v686
      %v1733 = vmin.f32 16.0, %v1732
      %v1734 = vmul.f32 %v1733, 2.1237322e-06
      %v1735 = vadd.f32 %v1734, 0.00028619796
      %v1736 = vmul.f32 %v1733, %v1735
      %v1737 = vadd.f32 %v1736, 0.0036580483
      %v1738 = vmul.f32 %v1733, %v1737
      %v1739 = vadd.f32 %v1738, 0.05243302
      %v1740 = vmul.f32 %v1733, %v1739
      %v1741 = vadd.f32 %v1740, 0.18741608
      %v1742 = vmul.f32 %v1733, %v1741
      %v1743 = vadd.f32 %v1742, 1.1283791
      %v1744 = vmul.f32 %v686, %v1743
      %v1745 = vmul.f32 %v1733, 3.8918573e-05
      %v1746 = vadd.f32 %v1745, 0.001143296
      %v1747 = vmul.f32 %v1733, %v1746
      %v1748 = vadd.f32 %v1747, 0.014752088
      %v1749 = vmul.f32 %v1733, %v1748
      %v1750 = vadd.f32 %v1749, 0.112945676
      %v1751 = vmul.f32 %v1733, %v1750
      %v1752 = vadd.f32 %v1751, 0.4994258
      %v1753 = vmul.f32 %v1733, %v1752
      %v1754 = vadd.f32 %v1753, 1.0
      %v1755 = vrcp.pop %v1754
      %v1756 = vmul.f32 %v1754, %v1755
      %v1757 = vsub.f32 1.0, %v1756
      %v1758 = vmul.f32 %v1755, %v1757
      %v1759 = vadd.f32 %v1755, %v1758
      %vm1760 = vweird.f32 %v1754
      %vm1761 = vweird.f32 %v1755
      %vm1762 = vmor %vm1760, %vm1761
      %v1763 = vsel %vm1762, %v1755, %v1759
      %v1764 = vand.u32 2147483647, %v1754
      %vm1765 = vcmp.eq.f32.partialorder %v1764, 8.507059e+37
      %v1766 = vand.u32 %v1754, 2147483648
      %v1767 = vor.u32 1.1754944e-38, %v1766
      %v1768 = vsel %vm1765, %v1767, %v1763
      %v1769 = vmul.f32 %v1744, %v1768
      %v1770 = vmin.f32 %v1769, 1.0
      %v1771 = vmax.f32 %v1770, -1.0
      %v1772 = vmul.f32 %v687, %v687
      %v1773 = vmin.f32 16.0, %v1772
      %v1774 = vmul.f32 %v1773, 2.1237322e-06
      %v1775 = vadd.f32 %v1774, 0.00028619796
      %v1776 = vmul.f32 %v1773, %v1775
      %v1777 = vadd.f32 %v1776, 0.0036580483
      %v1778 = vmul.f32 %v1773, %v1777
      %v1779 = vadd.f32 %v1778, 0.05243302
      %v1780 = vmul.f32 %v1773, %v1779
      %v1781 = vadd.f32 %v1780, 0.18741608
      %v1782 = vmul.f32 %v1773, %v1781
      %v1783 = vadd.f32 %v1782, 1.1283791
      %v1784 = vmul.f32 %v687, %v1783
      %v1785 = vmul.f32 %v1773, 3.8918573e-05
      %v1786 = vadd.f32 %v1785, 0.001143296
      %v1787 = vmul.f32 %v1773, %v1786
      %v1788 = vadd.f32 %v1787, 0.014752088
      %v1789 = vmul.f32 %v1773, %v1788
      %v1790 = vadd.f32 %v1789, 0.112945676
      %v1791 = vmul.f32 %v1773, %v1790
      %v1792 = vadd.f32 %v1791, 0.4994258
      %v1793 = vmul.f32 %v1773, %v1792
      %v1794 = vadd.f32 %v1793, 1.0
      %v1795 = vrcp.pop %v1794
      %v1796 = vmul.f32 %v1794, %v1795
      %v1797 = vsub.f32 1.0, %v1796
      %v1798 = vmul.f32 %v1795, %v1797
      %v1799 = vadd.f32 %v1795, %v1798
      %vm1800 = vweird.f32 %v1794
      %vm1801 = vweird.f32 %v1795
      %vm1802 = vmor %vm1800, %vm1801
      %v1803 = vsel %vm1802, %v1795, %v1799
      %v1804 = vand.u32 2147483647, %v1794
      %vm1805 = vcmp.eq.f32.partialorder %v1804, 8.507059e+37
      %v1806 = vand.u32 %v1794, 2147483648
      %v1807 = vor.u32 1.1754944e-38, %v1806
      %v1808 = vsel %vm1805, %v1807, %v1803
      %v1809 = vmul.f32 %v1784, %v1808
      %v1810 = vmin.f32 %v1809, 1.0
      %v1811 = vmax.f32 %v1810, -1.0
      %v1812 = vmul.f32 %v688, %v688
      %v1813 = vmin.f32 16.0, %v1812
      %v1814 = vmul.f32 %v1813, 2.1237322e-06
      %v1815 = vadd.f32 %v1814, 0.00028619796
      %v1816 = vmul.f32 %v1813, %v1815
      %v1817 = vadd.f32 %v1816, 0.0036580483
      %v1818 = vmul.f32 %v1813, %v1817
      %v1819 = vadd.f32 %v1818, 0.05243302
      %v1820 = vmul.f32 %v1813, %v1819
      %v1821 = vadd.f32 %v1820, 0.18741608
      %v1822 = vmul.f32 %v1813, %v1821
      %v1823 = vadd.f32 %v1822, 1.1283791
      %v1824 = vmul.f32 %v688, %v1823
      %v1825 = vmul.f32 %v1813, 3.8918573e-05
      %v1826 = vadd.f32 %v1825, 0.001143296
      %v1827 = vmul.f32 %v1813, %v1826
      %v1828 = vadd.f32 %v1827, 0.014752088
      %v1829 = vmul.f32 %v1813, %v1828
      %v1830 = vadd.f32 %v1829, 0.112945676
      %v1831 = vmul.f32 %v1813, %v1830
      %v1832 = vadd.f32 %v1831, 0.4994258
      %v1833 = vmul.f32 %v1813, %v1832
      %v1834 = vadd.f32 %v1833, 1.0
      %v1835 = vrcp.pop %v1834
      %v1836 = vmul.f32 %v1834, %v1835
      %v1837 = vsub.f32 1.0, %v1836
      %v1838 = vmul.f32 %v1835, %v1837
      %v1839 = vadd.f32 %v1835, %v1838
      %vm1840 = vweird.f32 %v1834
      %vm1841 = vweird.f32 %v1835
      %vm1842 = vmor %vm1840, %vm1841
      %v1843 = vsel %vm1842, %v1835, %v1839
      %v1844 = vand.u32 2147483647, %v1834
      %vm1845 = vcmp.eq.f32.partialorder %v1844, 8.507059e+37
      %v1846 = vand.u32 %v1834, 2147483648
      %v1847 = vor.u32 1.1754944e-38, %v1846
      %v1848 = vsel %vm1845, %v1847, %v1843
      %v1849 = vmul.f32 %v1824, %v1848
      %v1850 = vmin.f32 %v1849, 1.0
      %v1851 = vmax.f32 %v1850, -1.0
      %v1852 = vmul.f32 %v689, %v689
      %v1853 = vmin.f32 16.0, %v1852
      %v1854 = vmul.f32 %v1853, 2.1237322e-06
      %v1855 = vadd.f32 %v1854, 0.00028619796
      %v1856 = vmul.f32 %v1853, %v1855
      %v1857 = vadd.f32 %v1856, 0.0036580483
      %v1858 = vmul.f32 %v1853, %v1857
      %v1859 = vadd.f32 %v1858, 0.05243302
      %v1860 = vmul.f32 %v1853, %v1859
      %v1861 = vadd.f32 %v1860, 0.18741608
      %v1862 = vmul.f32 %v1853, %v1861
      %v1863 = vadd.f32 %v1862, 1.1283791
      %v1864 = vmul.f32 %v689, %v1863
      %v1865 = vmul.f32 %v1853, 3.8918573e-05
      %v1866 = vadd.f32 %v1865, 0.001143296
      %v1867 = vmul.f32 %v1853, %v1866
      %v1868 = vadd.f32 %v1867, 0.014752088
      %v1869 = vmul.f32 %v1853, %v1868
      %v1870 = vadd.f32 %v1869, 0.112945676
      %v1871 = vmul.f32 %v1853, %v1870
      %v1872 = vadd.f32 %v1871, 0.4994258
      %v1873 = vmul.f32 %v1853, %v1872
      %v1874 = vadd.f32 %v1873, 1.0
      %v1875 = vrcp.pop %v1874
      %v1876 = vmul.f32 %v1874, %v1875
      %v1877 = vsub.f32 1.0, %v1876
      %v1878 = vmul.f32 %v1875, %v1877
      %v1879 = vadd.f32 %v1875, %v1878
      %vm1880 = vweird.f32 %v1874
      %vm1881 = vweird.f32 %v1875
      %vm1882 = vmor %vm1880, %vm1881
      %v1883 = vsel %vm1882, %v1875, %v1879
      %v1884 = vand.u32 2147483647, %v1874
      %vm1885 = vcmp.eq.f32.partialorder %v1884, 8.507059e+37
      %v1886 = vand.u32 %v1874, 2147483648
      %v1887 = vor.u32 1.1754944e-38, %v1886
      %v1888 = vsel %vm1885, %v1887, %v1883
      %v1889 = vmul.f32 %v1864, %v1888
      %v1890 = vmin.f32 %v1889, 1.0
      %v1891 = vmax.f32 %v1890, -1.0
      %v1892 = vmul.f32 %v690, %v690
      %v1893 = vmin.f32 16.0, %v1892
      %v1894 = vmul.f32 %v1893, 2.1237322e-06
      %v1895 = vadd.f32 %v1894, 0.00028619796
      %v1896 = vmul.f32 %v1893, %v1895
      %v1897 = vadd.f32 %v1896, 0.0036580483
      %v1898 = vmul.f32 %v1893, %v1897
      %v1899 = vadd.f32 %v1898, 0.05243302
      %v1900 = vmul.f32 %v1893, %v1899
      %v1901 = vadd.f32 %v1900, 0.18741608
      %v1902 = vmul.f32 %v1893, %v1901
      %v1903 = vadd.f32 %v1902, 1.1283791
      %v1904 = vmul.f32 %v690, %v1903
      %v1905 = vmul.f32 %v1893, 3.8918573e-05
      %v1906 = vadd.f32 %v1905, 0.001143296
      %v1907 = vmul.f32 %v1893, %v1906
      %v1908 = vadd.f32 %v1907, 0.014752088
      %v1909 = vmul.f32 %v1893, %v1908
      %v1910 = vadd.f32 %v1909, 0.112945676
      %v1911 = vmul.f32 %v1893, %v1910
      %v1912 = vadd.f32 %v1911, 0.4994258
      %v1913 = vmul.f32 %v1893, %v1912
      %v1914 = vadd.f32 %v1913, 1.0
      %v1915 = vrcp.pop %v1914
      %v1916 = vmul.f32 %v1914, %v1915
      %v1917 = vsub.f32 1.0, %v1916
      %v1918 = vmul.f32 %v1915, %v1917
      %v1919 = vadd.f32 %v1915, %v1918
      %vm1920 = vweird.f32 %v1914
      %vm1921 = vweird.f32 %v1915
      %vm1922 = vmor %vm1920, %vm1921
      %v1923 = vsel %vm1922, %v1915, %v1919
      %v1924 = vand.u32 2147483647, %v1914
      %vm1925 = vcmp.eq.f32.partialorder %v1924, 8.507059e+37
      %v1926 = vand.u32 %v1914, 2147483648
      %v1927 = vor.u32 1.1754944e-38, %v1926
      %v1928 = vsel %vm1925, %v1927, %v1923
      %v1929 = vmul.f32 %v1904, %v1928
      %v1930 = vmin.f32 %v1929, 1.0
      %v1931 = vmax.f32 %v1930, -1.0
      %v1932 = vmul.f32 %v691, %v691
      %v1933 = vmin.f32 16.0, %v1932
      %v1934 = vmul.f32 %v1933, 2.1237322e-06
      %v1935 = vadd.f32 %v1934, 0.00028619796
      %v1936 = vmul.f32 %v1933, %v1935
      %v1937 = vadd.f32 %v1936, 0.0036580483
      %v1938 = vmul.f32 %v1933, %v1937
      %v1939 = vadd.f32 %v1938, 0.05243302
      %v1940 = vmul.f32 %v1933, %v1939
      %v1941 = vadd.f32 %v1940, 0.18741608
      %v1942 = vmul.f32 %v1933, %v1941
      %v1943 = vadd.f32 %v1942, 1.1283791
      %v1944 = vmul.f32 %v691, %v1943
      %v1945 = vmul.f32 %v1933, 3.8918573e-05
      %v1946 = vadd.f32 %v1945, 0.001143296
      %v1947 = vmul.f32 %v1933, %v1946
      %v1948 = vadd.f32 %v1947, 0.014752088
      %v1949 = vmul.f32 %v1933, %v1948
      %v1950 = vadd.f32 %v1949, 0.112945676
      %v1951 = vmul.f32 %v1933, %v1950
      %v1952 = vadd.f32 %v1951, 0.4994258
      %v1953 = vmul.f32 %v1933, %v1952
      %v1954 = vadd.f32 %v1953, 1.0
      %v1955 = vrcp.pop %v1954
      %v1956 = vmul.f32 %v1954, %v1955
      %v1957 = vsub.f32 1.0, %v1956
      %v1958 = vmul.f32 %v1955, %v1957
      %v1959 = vadd.f32 %v1955, %v1958
      %vm1960 = vweird.f32 %v1954
      %vm1961 = vweird.f32 %v1955
      %vm1962 = vmor %vm1960, %vm1961
      %v1963 = vsel %vm1962, %v1955, %v1959
      %v1964 = vand.u32 2147483647, %v1954
      %vm1965 = vcmp.eq.f32.partialorder %v1964, 8.507059e+37
      %v1966 = vand.u32 %v1954, 2147483648
      %v1967 = vor.u32 1.1754944e-38, %v1966
      %v1968 = vsel %vm1965, %v1967, %v1963
      %v1969 = vmul.f32 %v1944, %v1968
      %v1970 = vmin.f32 %v1969, 1.0
      %v1971 = vmax.f32 %v1970, -1.0
      %v1972 = vadd.f32 %v731, 1.0
      %v1973 = vadd.f32 %v771, 1.0
      %v1974 = vadd.f32 %v811, 1.0
      %v1975 = vadd.f32 %v851, 1.0
      %v1976 = vadd.f32 %v891, 1.0
      %v1977 = vadd.f32 %v931, 1.0
      %v1978 = vadd.f32 %v971, 1.0
      %v1979 = vadd.f32 %v1011, 1.0
      %v1980 = vadd.f32 %v1051, 1.0
      %v1981 = vadd.f32 %v1091, 1.0
      %v1982 = vadd.f32 %v1131, 1.0
      %v1983 = vadd.f32 %v1171, 1.0
      %v1984 = vadd.f32 %v1211, 1.0
      %v1985 = vadd.f32 %v1251, 1.0
      %v1986 = vadd.f32 %v1291, 1.0
      %v1987 = vadd.f32 %v1331, 1.0
      %v1988 = vadd.f32 %v1371, 1.0
      %v1989 = vadd.f32 %v1411, 1.0
      %v1990 = vadd.f32 %v1451, 1.0
      %v1991 = vadd.f32 %v1491, 1.0
      %v1992 = vadd.f32 %v1531, 1.0
      %v1993 = vadd.f32 %v1571, 1.0
      %v1994 = vadd.f32 %v1611, 1.0
      %v1995 = vadd.f32 %v1651, 1.0
      %v1996 = vadd.f32 %v1691, 1.0
      %v1997 = vadd.f32 %v1731, 1.0
      %v1998 = vadd.f32 %v1771, 1.0
      %v1999 = vadd.f32 %v1811, 1.0
      %v2000 = vadd.f32 %v1851, 1.0
      %v2001 = vadd.f32 %v1891, 1.0
      %v2002 = vadd.f32 %v1931, 1.0
      %v2003 = vadd.f32 %v1971, 1.0
      %v2004 = vmul.f32 %v628, %v1972
      %v2005 = vmul.f32 %v629, %v1973
      %v2006 = vmul.f32 %v630, %v1974
      %v2007 = vmul.f32 %v631, %v1975
      %v2008 = vmul.f32 %v632, %v1976
      %v2009 = vmul.f32 %v633, %v1977
      %v2010 = vmul.f32 %v634, %v1978
      %v2011 = vmul.f32 %v635, %v1979
      %v2012 = vmul.f32 %v636, %v1980
      %v2013 = vmul.f32 %v637, %v1981
      %v2014 = vmul.f32 %v638, %v1982
      %v2015 = vmul.f32 %v639, %v1983
      %v2016 = vmul.f32 %v640, %v1984
      %v2017 = vmul.f32 %v641, %v1985
      %v2018 = vmul.f32 %v642, %v1986
      %v2019 = vmul.f32 %v643, %v1987
      %v2020 = vmul.f32 %v644, %v1988
      %v2021 = vmul.f32 %v645, %v1989
      %v2022 = vmul.f32 %v646, %v1990
      %v2023 = vmul.f32 %v647, %v1991
      %v2024 = vmul.f32 %v648, %v1992
      %v2025 = vmul.f32 %v649, %v1993
      %v2026 = vmul.f32 %v650, %v1994
      %v2027 = vmul.f32 %v651, %v1995
      %v2028 = vmul.f32 %v652, %v1996
      %v2029 = vmul.f32 %v653, %v1997
      %v2030 = vmul.f32 %v654, %v1998
      %v2031 = vmul.f32 %v655, %v1999
      %v2032 = vmul.f32 %v656, %v2000
      %v2033 = vmul.f32 %v657, %v2001
      %v2034 = vmul.f32 %v658, %v2002
      %v2035 = vmul.f32 %v659, %v2003
      %vm2068 = vcmask 1040384
      %v2069 = vrot.slane %v2004, 7
      %v2070 = vrot.slane %v2005, 7
      %v2071 = vsel %vm2068, %v2069, %v2070
      %v2072 = vrot.slane %v2006, 7
      %v2073 = vrot.slane %v2007, 7
      %v2074 = vsel %vm2068, %v2072, %v2073
      %v2075 = vrot.slane %v2008, 7
      %v2076 = vrot.slane %v2009, 7
      %v2077 = vsel %vm2068, %v2075, %v2076
      %v2078 = vrot.slane %v2010, 7
      %v2079 = vrot.slane %v2011, 7
      %v2080 = vsel %vm2068, %v2078, %v2079
      %v2081 = vrot.slane %v2012, 7
      %v2082 = vrot.slane %v2013, 7
      %v2083 = vsel %vm2068, %v2081, %v2082
      %v2084 = vrot.slane %v2014, 7
      %v2085 = vrot.slane %v2015, 7
      %v2086 = vsel %vm2068, %v2084, %v2085
      %v2087 = vrot.slane %v2016, 7
      %v2088 = vrot.slane %v2017, 7
      %v2089 = vsel %vm2068, %v2087, %v2088
      %v2090 = vrot.slane %v2018, 7
      %v2091 = vrot.slane %v2019, 7
      %v2092 = vsel %vm2068, %v2090, %v2091
      %v2093 = vrot.slane %v2020, 7
      %v2094 = vrot.slane %v2021, 7
      %v2095 = vsel %vm2068, %v2093, %v2094
      %v2096 = vrot.slane %v2022, 7
      %v2097 = vrot.slane %v2023, 7
      %v2098 = vsel %vm2068, %v2096, %v2097
      %v2099 = vrot.slane %v2024, 7
      %v2100 = vrot.slane %v2025, 7
      %v2101 = vsel %vm2068, %v2099, %v2100
      %v2102 = vrot.slane %v2026, 7
      %v2103 = vrot.slane %v2027, 7
      %v2104 = vsel %vm2068, %v2102, %v2103
      %v2105 = vrot.slane %v2028, 7
      %v2106 = vrot.slane %v2029, 7
      %v2107 = vsel %vm2068, %v2105, %v2106
      %v2108 = vrot.slane %v2030, 7
      %v2109 = vrot.slane %v2031, 7
      %v2110 = vsel %vm2068, %v2108, %v2109
      %v2111 = vrot.slane %v2032, 7
      %v2112 = vrot.slane %v2033, 7
      %v2113 = vsel %vm2068, %v2111, %v2112
      %v2114 = vrot.slane %v2034, 7
      %v2115 = vrot.slane %v2035, 7
      %v2116 = vsel %vm2068, %v2114, %v2115
      %v2164 = vsel %vm2068, 0.0, %v2069
      %v2165 = vsel %vm2068, 0.0, %v2072
      %v2166 = vsel %vm2068, 0.0, %v2075
      %v2167 = vsel %vm2068, 0.0, %v2078
      %v2168 = vsel %vm2068, 0.0, %v2081
      %v2169 = vsel %vm2068, 0.0, %v2084
      %v2170 = vsel %vm2068, 0.0, %v2087
      %v2171 = vsel %vm2068, 0.0, %v2090
      %v2172 = vsel %vm2068, 0.0, %v2093
      %v2173 = vsel %vm2068, 0.0, %v2096
      %v2174 = vsel %vm2068, 0.0, %v2099
      %v2175 = vsel %vm2068, 0.0, %v2102
      %v2176 = vsel %vm2068, 0.0, %v2105
      %v2177 = vsel %vm2068, 0.0, %v2108
      %v2178 = vsel %vm2068, 0.0, %v2111
      %v2179 = vsel %vm2068, 0.0, %v2114
      %v2180 = vsel %vm2068, %v2070, 0.0
      %v2181 = vsel %vm2068, %v2073, 0.0
      %v2182 = vsel %vm2068, %v2076, 0.0
      %v2183 = vsel %vm2068, %v2079, 0.0
      %v2184 = vsel %vm2068, %v2082, 0.0
      %v2185 = vsel %vm2068, %v2085, 0.0
      %v2186 = vsel %vm2068, %v2088, 0.0
      %v2187 = vsel %vm2068, %v2091, 0.0
      %v2188 = vsel %vm2068, %v2094, 0.0
      %v2189 = vsel %vm2068, %v2097, 0.0
      %v2190 = vsel %vm2068, %v2100, 0.0
      %v2191 = vsel %vm2068, %v2103, 0.0
      %v2192 = vsel %vm2068, %v2106, 0.0
      %v2193 = vsel %vm2068, %v2109, 0.0
      %v2194 = vsel %vm2068, %v2112, 0.0
      %v2195 = vsel %vm2068, %v2115, 0.0
      %vm2227 = vcmask 1046528
      %v2228 = vrot.slane 0.0, 1
      %v2229 = vsel %vm2227, %v2228, %v2228
      %v2230 = vrot.slane %v2164, 1
      %v2231 = vrot.slane %v2071, 1
      %v2232 = vsel %vm2227, %v2230, %v2231
      %v2233 = vrot.slane %v2180, 1
      %v2234 = vsel %vm2227, %v2231, %v2233
      %v2235 = vrot.slane %v2165, 1
      %v2236 = vrot.slane %v2074, 1
      %v2237 = vsel %vm2227, %v2235, %v2236
      %v2238 = vrot.slane %v2181, 1
      %v2239 = vsel %vm2227, %v2236, %v2238
      %v2240 = vrot.slane %v2166, 1
      %v2241 = vrot.slane %v2077, 1
      %v2242 = vsel %vm2227, %v2240, %v2241
      %v2243 = vrot.slane %v2182, 1
      %v2244 = vsel %vm2227, %v2241, %v2243
      %v2245 = vrot.slane %v2167, 1
      %v2246 = vrot.slane %v2080, 1
      %v2247 = vsel %vm2227, %v2245, %v2246
      %v2248 = vrot.slane %v2183, 1
      %v2249 = vsel %vm2227, %v2246, %v2248
      %v2250 = vrot.slane %v2168, 1
      %v2251 = vrot.slane %v2083, 1
      %v2252 = vsel %vm2227, %v2250, %v2251
      %v2253 = vrot.slane %v2184, 1
      %v2254 = vsel %vm2227, %v2251, %v2253
      %v2255 = vrot.slane %v2169, 1
      %v2256 = vrot.slane %v2086, 1
      %v2257 = vsel %vm2227, %v2255, %v2256
      %v2258 = vrot.slane %v2185, 1
      %v2259 = vsel %vm2227, %v2256, %v2258
      %v2260 = vrot.slane %v2170, 1
      %v2261 = vrot.slane %v2089, 1
      %v2262 = vsel %vm2227, %v2260, %v2261
      %v2263 = vrot.slane %v2186, 1
      %v2264 = vsel %vm2227, %v2261, %v2263
      %v2265 = vrot.slane %v2171, 1
      %v2266 = vrot.slane %v2092, 1
      %v2267 = vsel %vm2227, %v2265, %v2266
      %v2268 = vrot.slane %v2187, 1
      %v2269 = vsel %vm2227, %v2266, %v2268
      %v2270 = vrot.slane %v2172, 1
      %v2271 = vrot.slane %v2095, 1
      %v2272 = vsel %vm2227, %v2270, %v2271
      %v2273 = vrot.slane %v2188, 1
      %v2274 = vsel %vm2227, %v2271, %v2273
      %v2275 = vrot.slane %v2173, 1
      %v2276 = vrot.slane %v2098, 1
      %v2277 = vsel %vm2227, %v2275, %v2276
      %v2278 = vrot.slane %v2189, 1
      %v2279 = vsel %vm2227, %v2276, %v2278
      %v2280 = vrot.slane %v2174, 1
      %v2281 = vrot.slane %v2101, 1
      %v2282 = vsel %vm2227, %v2280, %v2281
      %v2283 = vrot.slane %v2190, 1
      %v2284 = vsel %vm2227, %v2281, %v2283
      %v2285 = vrot.slane %v2175, 1
      %v2286 = vrot.slane %v2104, 1
      %v2287 = vsel %vm2227, %v2285, %v2286
      %v2288 = vrot.slane %v2191, 1
      %v2289 = vsel %vm2227, %v2286, %v2288
      %v2290 = vrot.slane %v2176, 1
      %v2291 = vrot.slane %v2107, 1
      %v2292 = vsel %vm2227, %v2290, %v2291
      %v2293 = vrot.slane %v2192, 1
      %v2294 = vsel %vm2227, %v2291, %v2293
      %v2295 = vrot.slane %v2177, 1
      %v2296 = vrot.slane %v2110, 1
      %v2297 = vsel %vm2227, %v2295, %v2296
      %v2298 = vrot.slane %v2193, 1
      %v2299 = vsel %vm2227, %v2296, %v2298
      %v2300 = vrot.slane %v2178, 1
      %v2301 = vrot.slane %v2113, 1
      %v2302 = vsel %vm2227, %v2300, %v2301
      %v2303 = vrot.slane %v2194, 1
      %v2304 = vsel %vm2227, %v2301, %v2303
      %vm2305 = vcmask 1045504
      %v2306 = vrot.slane 0.0, 2
      %v2307 = vsel %vm2305, %v2306, %v2306
      %v2308 = vrot.slane %v2164, 2
      %v2309 = vrot.slane %v2071, 2
      %v2310 = vsel %vm2305, %v2308, %v2309
      %v2311 = vrot.slane %v2180, 2
      %v2312 = vsel %vm2305, %v2309, %v2311
      %v2313 = vrot.slane %v2165, 2
      %v2314 = vrot.slane %v2074, 2
      %v2315 = vsel %vm2305, %v2313, %v2314
      %v2316 = vrot.slane %v2181, 2
      %v2317 = vsel %vm2305, %v2314, %v2316
      %v2318 = vrot.slane %v2166, 2
      %v2319 = vrot.slane %v2077, 2
      %v2320 = vsel %vm2305, %v2318, %v2319
      %v2321 = vrot.slane %v2182, 2
      %v2322 = vsel %vm2305, %v2319, %v2321
      %v2323 = vrot.slane %v2167, 2
      %v2324 = vrot.slane %v2080, 2
      %v2325 = vsel %vm2305, %v2323, %v2324
      %v2326 = vrot.slane %v2183, 2
      %v2327 = vsel %vm2305, %v2324, %v2326
      %v2328 = vrot.slane %v2168, 2
      %v2329 = vrot.slane %v2083, 2
      %v2330 = vsel %vm2305, %v2328, %v2329
      %v2331 = vrot.slane %v2184, 2
      %v2332 = vsel %vm2305, %v2329, %v2331
      %v2333 = vrot.slane %v2169, 2
      %v2334 = vrot.slane %v2086, 2
      %v2335 = vsel %vm2305, %v2333, %v2334
      %v2336 = vrot.slane %v2185, 2
      %v2337 = vsel %vm2305, %v2334, %v2336
      %v2338 = vrot.slane %v2170, 2
      %v2339 = vrot.slane %v2089, 2
      %v2340 = vsel %vm2305, %v2338, %v2339
      %v2341 = vrot.slane %v2186, 2
      %v2342 = vsel %vm2305, %v2339, %v2341
      %v2343 = vrot.slane %v2171, 2
      %v2344 = vrot.slane %v2092, 2
      %v2345 = vsel %vm2305, %v2343, %v2344
      %v2346 = vrot.slane %v2187, 2
      %v2347 = vsel %vm2305, %v2344, %v2346
      %v2348 = vrot.slane %v2172, 2
      %v2349 = vrot.slane %v2095, 2
      %v2350 = vsel %vm2305, %v2348, %v2349
      %v2351 = vrot.slane %v2188, 2
      %v2352 = vsel %vm2305, %v2349, %v2351
      %v2353 = vrot.slane %v2173, 2
      %v2354 = vrot.slane %v2098, 2
      %v2355 = vsel %vm2305, %v2353, %v2354
      %v2356 = vrot.slane %v2189, 2
      %v2357 = vsel %vm2305, %v2354, %v2356
      %v2358 = vrot.slane %v2174, 2
      %v2359 = vrot.slane %v2101, 2
      %v2360 = vsel %vm2305, %v2358, %v2359
      %v2361 = vrot.slane %v2190, 2
      %v2362 = vsel %vm2305, %v2359, %v2361
      %v2363 = vrot.slane %v2175, 2
      %v2364 = vrot.slane %v2104, 2
      %v2365 = vsel %vm2305, %v2363, %v2364
      %v2366 = vrot.slane %v2191, 2
      %v2367 = vsel %vm2305, %v2364, %v2366
      %v2368 = vrot.slane %v2176, 2
      %v2369 = vrot.slane %v2107, 2
      %v2370 = vsel %vm2305, %v2368, %v2369
      %v2371 = vrot.slane %v2192, 2
      %v2372 = vsel %vm2305, %v2369, %v2371
      %v2373 = vrot.slane %v2177, 2
      %v2374 = vrot.slane %v2110, 2
      %v2375 = vsel %vm2305, %v2373, %v2374
      %v2376 = vrot.slane %v2193, 2
      %v2377 = vsel %vm2305, %v2374, %v2376
      %v2378 = vrot.slane %v2178, 2
      %v2379 = vrot.slane %v2113, 2
      %v2380 = vsel %vm2305, %v2378, %v2379
      %v2381 = vrot.slane %v2194, 2
      %v2382 = vsel %vm2305, %v2379, %v2381
      %v2385 = vrot.slane %v2179, 1
      %v2386 = vrot.slane %v2116, 1
      %v2387 = vsel %vm2227, %v2385, %v2386
      %v2388 = vrot.slane %v2195, 1
      %v2389 = vsel %vm2227, %v2386, %v2388
      %v2422 = vrot.slane %v2179, 2
      %v2423 = vrot.slane %v2116, 2
      %v2424 = vsel %vm2305, %v2422, %v2423
      %v2425 = vrot.slane %v2195, 2
      %v2426 = vsel %vm2305, %v2423, %v2425
      %2427 = vrot.lane.b32.xlu0 %v2229, 32
      %v2428 = vpop.permute.xlu0 %2427
      %2429 = vrot.lane.b32.xlu0 %v2232, 32
      %v2430 = vpop.permute.xlu0 %2429
      %2431 = vrot.lane.b32.xlu0 %v2234, 32
      %v2432 = vpop.permute.xlu0 %2431
      %2433 = vrot.lane.b32.xlu0 %v2237, 32
      %v2434 = vpop.permute.xlu0 %2433
      %2435 = vrot.lane.b32.xlu0 %v2239, 32
      %v2436 = vpop.permute.xlu0 %2435
      %2437 = vrot.lane.b32.xlu0 %v2242, 32
      %v2438 = vpop.permute.xlu0 %2437
      %2439 = vrot.lane.b32.xlu0 %v2244, 32
      %v2440 = vpop.permute.xlu0 %2439
      %2441 = vrot.lane.b32.xlu0 %v2247, 32
      %v2442 = vpop.permute.xlu0 %2441
      %2443 = vrot.lane.b32.xlu0 %v2249, 32
      %v2444 = vpop.permute.xlu0 %2443
      %2445 = vrot.lane.b32.xlu0 %v2252, 32
      %v2446 = vpop.permute.xlu0 %2445
      %2447 = vrot.lane.b32.xlu0 %v2254, 32
      %v2448 = vpop.permute.xlu0 %2447
      %2449 = vrot.lane.b32.xlu0 %v2257, 32
      %v2450 = vpop.permute.xlu0 %2449
      %2451 = vrot.lane.b32.xlu0 %v2259, 32
      %v2452 = vpop.permute.xlu0 %2451
      %2453 = vrot.lane.b32.xlu0 %v2262, 32
      %v2454 = vpop.permute.xlu0 %2453
      %2455 = vrot.lane.b32.xlu0 %v2264, 32
      %v2456 = vpop.permute.xlu0 %2455
      %2457 = vrot.lane.b32.xlu0 %v2267, 32
      %v2458 = vpop.permute.xlu0 %2457
      %2459 = vrot.lane.b32.xlu0 %v2269, 32
      %v2460 = vpop.permute.xlu0 %2459
      %2461 = vrot.lane.b32.xlu0 %v2272, 32
      %v2462 = vpop.permute.xlu0 %2461
      %2463 = vrot.lane.b32.xlu0 %v2274, 32
      %v2464 = vpop.permute.xlu0 %2463
      %2465 = vrot.lane.b32.xlu0 %v2277, 32
      %v2466 = vpop.permute.xlu0 %2465
      %2467 = vrot.lane.b32.xlu0 %v2279, 32
      %v2468 = vpop.permute.xlu0 %2467
      %2469 = vrot.lane.b32.xlu0 %v2282, 32
      %v2470 = vpop.permute.xlu0 %2469
      %2471 = vrot.lane.b32.xlu0 %v2284, 32
      %v2472 = vpop.permute.xlu0 %2471
      %2473 = vrot.lane.b32.xlu0 %v2287, 32
      %v2474 = vpop.permute.xlu0 %2473
      %2475 = vrot.lane.b32.xlu0 %v2289, 32
      %v2476 = vpop.permute.xlu0 %2475
      %2477 = vrot.lane.b32.xlu0 %v2292, 32
      %v2478 = vpop.permute.xlu0 %2477
      %2479 = vrot.lane.b32.xlu0 %v2294, 32
      %v2480 = vpop.permute.xlu0 %2479
      %2481 = vrot.lane.b32.xlu0 %v2297, 32
      %v2482 = vpop.permute.xlu0 %2481
      %2483 = vrot.lane.b32.xlu0 %v2299, 32
      %v2484 = vpop.permute.xlu0 %2483
      %2485 = vrot.lane.b32.xlu0 %v2302, 32
      %v2486 = vpop.permute.xlu0 %2485
      %2487 = vrot.lane.b32.xlu0 %v2304, 32
      %v2488 = vpop.permute.xlu0 %2487
      %2520 = vrot.lane.b32.xlu0 %v2307, 64
      %v2521 = vpop.permute.xlu0 %2520
      %2522 = vrot.lane.b32.xlu0 %v2310, 64
      %v2523 = vpop.permute.xlu0 %2522
      %2524 = vrot.lane.b32.xlu0 %v2312, 64
      %v2525 = vpop.permute.xlu0 %2524
      %2526 = vrot.lane.b32.xlu0 %v2315, 64
      %v2527 = vpop.permute.xlu0 %2526
      %2528 = vrot.lane.b32.xlu0 %v2317, 64
      %v2529 = vpop.permute.xlu0 %2528
      %2530 = vrot.lane.b32.xlu0 %v2320, 64
      %v2531 = vpop.permute.xlu0 %2530
      %2532 = vrot.lane.b32.xlu0 %v2322, 64
      %v2533 = vpop.permute.xlu0 %2532
      %2534 = vrot.lane.b32.xlu0 %v2325, 64
      %v2535 = vpop.permute.xlu0 %2534
      %2536 = vrot.lane.b32.xlu0 %v2327, 64
      %v2537 = vpop.permute.xlu0 %2536
      %2538 = vrot.lane.b32.xlu0 %v2330, 64
      %v2539 = vpop.permute.xlu0 %2538
      %2540 = vrot.lane.b32.xlu0 %v2332, 64
      %v2541 = vpop.permute.xlu0 %2540
      %2542 = vrot.lane.b32.xlu0 %v2335, 64
      %v2543 = vpop.permute.xlu0 %2542
      %2544 = vrot.lane.b32.xlu0 %v2337, 64
      %v2545 = vpop.permute.xlu0 %2544
      %2546 = vrot.lane.b32.xlu0 %v2340, 64
      %v2547 = vpop.permute.xlu0 %2546
      %2548 = vrot.lane.b32.xlu0 %v2342, 64
      %v2549 = vpop.permute.xlu0 %2548
      %2550 = vrot.lane.b32.xlu0 %v2345, 64
      %v2551 = vpop.permute.xlu0 %2550
      %2552 = vrot.lane.b32.xlu0 %v2347, 64
      %v2553 = vpop.permute.xlu0 %2552
      %2554 = vrot.lane.b32.xlu0 %v2350, 64
      %v2555 = vpop.permute.xlu0 %2554
      %2556 = vrot.lane.b32.xlu0 %v2352, 64
      %v2557 = vpop.permute.xlu0 %2556
      %2558 = vrot.lane.b32.xlu0 %v2355, 64
      %v2559 = vpop.permute.xlu0 %2558
      %2560 = vrot.lane.b32.xlu0 %v2357, 64
      %v2561 = vpop.permute.xlu0 %2560
      %2562 = vrot.lane.b32.xlu0 %v2360, 64
      %v2563 = vpop.permute.xlu0 %2562
      %2564 = vrot.lane.b32.xlu0 %v2362, 64
      %v2565 = vpop.permute.xlu0 %2564
      %2566 = vrot.lane.b32.xlu0 %v2365, 64
      %v2567 = vpop.permute.xlu0 %2566
      %2568 = vrot.lane.b32.xlu0 %v2367, 64
      %v2569 = vpop.permute.xlu0 %2568
      %2570 = vrot.lane.b32.xlu0 %v2370, 64
      %v2571 = vpop.permute.xlu0 %2570
      %2572 = vrot.lane.b32.xlu0 %v2372, 64
      %v2573 = vpop.permute.xlu0 %2572
      %2574 = vrot.lane.b32.xlu0 %v2375, 64
      %v2575 = vpop.permute.xlu0 %2574
      %2576 = vrot.lane.b32.xlu0 %v2377, 64
      %v2577 = vpop.permute.xlu0 %2576
      %2578 = vrot.lane.b32.xlu0 %v2380, 64
      %v2579 = vpop.permute.xlu0 %2578
      %2580 = vrot.lane.b32.xlu0 %v2382, 64
      %v2581 = vpop.permute.xlu0 %2580
      %2613 = vrot.lane.b32.xlu0 %v2164, 96
      %v2614 = vpop.permute.xlu0 %2613
      %2615 = vrot.lane.b32.xlu0 %v2071, 96
      %v2616 = vpop.permute.xlu0 %2615
      %2617 = vrot.lane.b32.xlu0 %v2165, 96
      %v2618 = vpop.permute.xlu0 %2617
      %2619 = vrot.lane.b32.xlu0 %v2074, 96
      %v2620 = vpop.permute.xlu0 %2619
      %2621 = vrot.lane.b32.xlu0 %v2166, 96
      %v2622 = vpop.permute.xlu0 %2621
      %2623 = vrot.lane.b32.xlu0 %v2077, 96
      %v2624 = vpop.permute.xlu0 %2623
      %2625 = vrot.lane.b32.xlu0 %v2167, 96
      %v2626 = vpop.permute.xlu0 %2625
      %2627 = vrot.lane.b32.xlu0 %v2080, 96
      %v2628 = vpop.permute.xlu0 %2627
      %2629 = vrot.lane.b32.xlu0 %v2168, 96
      %v2630 = vpop.permute.xlu0 %2629
      %2631 = vrot.lane.b32.xlu0 %v2083, 96
      %v2632 = vpop.permute.xlu0 %2631
      %2633 = vrot.lane.b32.xlu0 %v2169, 96
      %v2634 = vpop.permute.xlu0 %2633
      %2635 = vrot.lane.b32.xlu0 %v2086, 96
      %v2636 = vpop.permute.xlu0 %2635
      %2637 = vrot.lane.b32.xlu0 %v2170, 96
      %v2638 = vpop.permute.xlu0 %2637
      %2639 = vrot.lane.b32.xlu0 %v2089, 96
      %v2640 = vpop.permute.xlu0 %2639
      %2641 = vrot.lane.b32.xlu0 %v2171, 96
      %v2642 = vpop.permute.xlu0 %2641
      %2643 = vrot.lane.b32.xlu0 %v2092, 96
      %v2644 = vpop.permute.xlu0 %2643
      %2645 = vrot.lane.b32.xlu0 %v2172, 96
      %v2646 = vpop.permute.xlu0 %2645
      %2647 = vrot.lane.b32.xlu0 %v2095, 96
      %v2648 = vpop.permute.xlu0 %2647
      %2649 = vrot.lane.b32.xlu0 %v2173, 96
      %v2650 = vpop.permute.xlu0 %2649
      %2651 = vrot.lane.b32.xlu0 %v2098, 96
      %v2652 = vpop.permute.xlu0 %2651
      %2653 = vrot.lane.b32.xlu0 %v2174, 96
      %v2654 = vpop.permute.xlu0 %2653
      %2655 = vrot.lane.b32.xlu0 %v2101, 96
      %v2656 = vpop.permute.xlu0 %2655
      %2657 = vrot.lane.b32.xlu0 %v2175, 96
      %v2658 = vpop.permute.xlu0 %2657
      %2659 = vrot.lane.b32.xlu0 %v2104, 96
      %v2660 = vpop.permute.xlu0 %2659
      %2661 = vrot.lane.b32.xlu0 %v2176, 96
      %v2662 = vpop.permute.xlu0 %2661
      %2663 = vrot.lane.b32.xlu0 %v2107, 96
      %v2664 = vpop.permute.xlu0 %2663
      %2665 = vrot.lane.b32.xlu0 %v2177, 96
      %v2666 = vpop.permute.xlu0 %2665
      %2667 = vrot.lane.b32.xlu0 %v2110, 96
      %v2668 = vpop.permute.xlu0 %2667
      %2669 = vrot.lane.b32.xlu0 %v2178, 96
      %v2670 = vpop.permute.xlu0 %2669
      %2671 = vrot.lane.b32.xlu0 %v2113, 96
      %v2672 = vpop.permute.xlu0 %2671
      %2673 = vrot.lane.b32.xlu0 %v2179, 96
      %v2674 = vpop.permute.xlu0 %2673
      %2675 = vrot.lane.b32.xlu0 %v2116, 96
      %v2676 = vpop.permute.xlu0 %2675
      %2709 = vrot.lane.b32.xlu0 %v2310, 32
      %v2710 = vpop.permute.xlu0 %2709
      %2711 = vrot.lane.b32.xlu0 %v2312, 32
      %v2712 = vpop.permute.xlu0 %2711
      %2713 = vrot.lane.b32.xlu0 %v2315, 32
      %v2714 = vpop.permute.xlu0 %2713
      %2715 = vrot.lane.b32.xlu0 %v2317, 32
      %v2716 = vpop.permute.xlu0 %2715
      %2717 = vrot.lane.b32.xlu0 %v2320, 32
      %v2718 = vpop.permute.xlu0 %2717
      %2719 = vrot.lane.b32.xlu0 %v2322, 32
      %v2720 = vpop.permute.xlu0 %2719
      %2721 = vrot.lane.b32.xlu0 %v2325, 32
      %v2722 = vpop.permute.xlu0 %2721
      %2723 = vrot.lane.b32.xlu0 %v2327, 32
      %v2724 = vpop.permute.xlu0 %2723
      %2725 = vrot.lane.b32.xlu0 %v2330, 32
      %v2726 = vpop.permute.xlu0 %2725
      %2727 = vrot.lane.b32.xlu0 %v2332, 32
      %v2728 = vpop.permute.xlu0 %2727
      %2729 = vrot.lane.b32.xlu0 %v2335, 32
      %v2730 = vpop.permute.xlu0 %2729
      %2731 = vrot.lane.b32.xlu0 %v2337, 32
      %v2732 = vpop.permute.xlu0 %2731
      %2733 = vrot.lane.b32.xlu0 %v2340, 32
      %v2734 = vpop.permute.xlu0 %2733
      %2735 = vrot.lane.b32.xlu0 %v2342, 32
      %v2736 = vpop.permute.xlu0 %2735
      %2737 = vrot.lane.b32.xlu0 %v2345, 32
      %v2738 = vpop.permute.xlu0 %2737
      %2739 = vrot.lane.b32.xlu0 %v2347, 32
      %v2740 = vpop.permute.xlu0 %2739
      %2741 = vrot.lane.b32.xlu0 %v2350, 32
      %v2742 = vpop.permute.xlu0 %2741
      %2743 = vrot.lane.b32.xlu0 %v2352, 32
      %v2744 = vpop.permute.xlu0 %2743
      %2745 = vrot.lane.b32.xlu0 %v2355, 32
      %v2746 = vpop.permute.xlu0 %2745
      %2747 = vrot.lane.b32.xlu0 %v2357, 32
      %v2748 = vpop.permute.xlu0 %2747
      %2749 = vrot.lane.b32.xlu0 %v2360, 32
      %v2750 = vpop.permute.xlu0 %2749
      %2751 = vrot.lane.b32.xlu0 %v2362, 32
      %v2752 = vpop.permute.xlu0 %2751
      %2753 = vrot.lane.b32.xlu0 %v2365, 32
      %v2754 = vpop.permute.xlu0 %2753
      %2755 = vrot.lane.b32.xlu0 %v2367, 32
      %v2756 = vpop.permute.xlu0 %2755
      %2757 = vrot.lane.b32.xlu0 %v2370, 32
      %v2758 = vpop.permute.xlu0 %2757
      %2759 = vrot.lane.b32.xlu0 %v2372, 32
      %v2760 = vpop.permute.xlu0 %2759
      %2761 = vrot.lane.b32.xlu0 %v2375, 32
      %v2762 = vpop.permute.xlu0 %2761
      %2763 = vrot.lane.b32.xlu0 %v2377, 32
      %v2764 = vpop.permute.xlu0 %2763
      %2765 = vrot.lane.b32.xlu0 %v2380, 32
      %v2766 = vpop.permute.xlu0 %2765
      %2767 = vrot.lane.b32.xlu0 %v2382, 32
      %v2768 = vpop.permute.xlu0 %2767
      %2769 = vrot.lane.b32.xlu0 %v2424, 32
      %v2770 = vpop.permute.xlu0 %2769
      %2771 = vrot.lane.b32.xlu0 %v2426, 32
      %v2772 = vpop.permute.xlu0 %2771
      %2805 = vrot.lane.b32.xlu0 %v2165, 64
      %v2806 = vpop.permute.xlu0 %2805
      %2807 = vrot.lane.b32.xlu0 %v2074, 64
      %v2808 = vpop.permute.xlu0 %2807
      %2809 = vrot.lane.b32.xlu0 %v2166, 64
      %v2810 = vpop.permute.xlu0 %2809
      %2811 = vrot.lane.b32.xlu0 %v2077, 64
      %v2812 = vpop.permute.xlu0 %2811
      %2813 = vrot.lane.b32.xlu0 %v2167, 64
      %v2814 = vpop.permute.xlu0 %2813
      %2815 = vrot.lane.b32.xlu0 %v2080, 64
      %v2816 = vpop.permute.xlu0 %2815
      %2817 = vrot.lane.b32.xlu0 %v2168, 64
      %v2818 = vpop.permute.xlu0 %2817
      %2819 = vrot.lane.b32.xlu0 %v2083, 64
      %v2820 = vpop.permute.xlu0 %2819
      %2821 = vrot.lane.b32.xlu0 %v2169, 64
      %v2822 = vpop.permute.xlu0 %2821
      %2823 = vrot.lane.b32.xlu0 %v2086, 64
      %v2824 = vpop.permute.xlu0 %2823
      %2825 = vrot.lane.b32.xlu0 %v2170, 64
      %v2826 = vpop.permute.xlu0 %2825
      %2827 = vrot.lane.b32.xlu0 %v2089, 64
      %v2828 = vpop.permute.xlu0 %2827
      %2829 = vrot.lane.b32.xlu0 %v2171, 64
      %v2830 = vpop.permute.xlu0 %2829
      %2831 = vrot.lane.b32.xlu0 %v2092, 64
      %v2832 = vpop.permute.xlu0 %2831
      %2833 = vrot.lane.b32.xlu0 %v2172, 64
      %v2834 = vpop.permute.xlu0 %2833
      %2835 = vrot.lane.b32.xlu0 %v2095, 64
      %v2836 = vpop.permute.xlu0 %2835
      %2837 = vrot.lane.b32.xlu0 %v2173, 64
      %v2838 = vpop.permute.xlu0 %2837
      %2839 = vrot.lane.b32.xlu0 %v2098, 64
      %v2840 = vpop.permute.xlu0 %2839
      %2841 = vrot.lane.b32.xlu0 %v2174, 64
      %v2842 = vpop.permute.xlu0 %2841
      %2843 = vrot.lane.b32.xlu0 %v2101, 64
      %v2844 = vpop.permute.xlu0 %2843
      %2845 = vrot.lane.b32.xlu0 %v2175, 64
      %v2846 = vpop.permute.xlu0 %2845
      %2847 = vrot.lane.b32.xlu0 %v2104, 64
      %v2848 = vpop.permute.xlu0 %2847
      %2849 = vrot.lane.b32.xlu0 %v2176, 64
      %v2850 = vpop.permute.xlu0 %2849
      %2851 = vrot.lane.b32.xlu0 %v2107, 64
      %v2852 = vpop.permute.xlu0 %2851
      %2853 = vrot.lane.b32.xlu0 %v2177, 64
      %v2854 = vpop.permute.xlu0 %2853
      %2855 = vrot.lane.b32.xlu0 %v2110, 64
      %v2856 = vpop.permute.xlu0 %2855
      %2857 = vrot.lane.b32.xlu0 %v2178, 64
      %v2858 = vpop.permute.xlu0 %2857
      %2859 = vrot.lane.b32.xlu0 %v2113, 64
      %v2860 = vpop.permute.xlu0 %2859
      %2861 = vrot.lane.b32.xlu0 %v2179, 64
      %v2862 = vpop.permute.xlu0 %2861
      %2863 = vrot.lane.b32.xlu0 %v2116, 64
      %v2864 = vpop.permute.xlu0 %2863
      %2865 = vrot.lane.b32.xlu0 0.0, 64
      %v2866 = vpop.permute.xlu0 %2865
      %2898 = vrot.lane.b32.xlu0 %v2237, 96
      %v2899 = vpop.permute.xlu0 %2898
      %2900 = vrot.lane.b32.xlu0 %v2239, 96
      %v2901 = vpop.permute.xlu0 %2900
      %2902 = vrot.lane.b32.xlu0 %v2242, 96
      %v2903 = vpop.permute.xlu0 %2902
      %2904 = vrot.lane.b32.xlu0 %v2244, 96
      %v2905 = vpop.permute.xlu0 %2904
      %2906 = vrot.lane.b32.xlu0 %v2247, 96
      %v2907 = vpop.permute.xlu0 %2906
      %2908 = vrot.lane.b32.xlu0 %v2249, 96
      %v2909 = vpop.permute.xlu0 %2908
      %2910 = vrot.lane.b32.xlu0 %v2252, 96
      %v2911 = vpop.permute.xlu0 %2910
      %2912 = vrot.lane.b32.xlu0 %v2254, 96
      %v2913 = vpop.permute.xlu0 %2912
      %2914 = vrot.lane.b32.xlu0 %v2257, 96
      %v2915 = vpop.permute.xlu0 %2914
      %2916 = vrot.lane.b32.xlu0 %v2259, 96
      %v2917 = vpop.permute.xlu0 %2916
      %2918 = vrot.lane.b32.xlu0 %v2262, 96
      %v2919 = vpop.permute.xlu0 %2918
      %2920 = vrot.lane.b32.xlu0 %v2264, 96
      %v2921 = vpop.permute.xlu0 %2920
      %2922 = vrot.lane.b32.xlu0 %v2267, 96
      %v2923 = vpop.permute.xlu0 %2922
      %2924 = vrot.lane.b32.xlu0 %v2269, 96
      %v2925 = vpop.permute.xlu0 %2924
      %2926 = vrot.lane.b32.xlu0 %v2272, 96
      %v2927 = vpop.permute.xlu0 %2926
      %2928 = vrot.lane.b32.xlu0 %v2274, 96
      %v2929 = vpop.permute.xlu0 %2928
      %2930 = vrot.lane.b32.xlu0 %v2277, 96
      %v2931 = vpop.permute.xlu0 %2930
      %2932 = vrot.lane.b32.xlu0 %v2279, 96
      %v2933 = vpop.permute.xlu0 %2932
      %2934 = vrot.lane.b32.xlu0 %v2282, 96
      %v2935 = vpop.permute.xlu0 %2934
      %2936 = vrot.lane.b32.xlu0 %v2284, 96
      %v2937 = vpop.permute.xlu0 %2936
      %2938 = vrot.lane.b32.xlu0 %v2287, 96
      %v2939 = vpop.permute.xlu0 %2938
      %2940 = vrot.lane.b32.xlu0 %v2289, 96
      %v2941 = vpop.permute.xlu0 %2940
      %2942 = vrot.lane.b32.xlu0 %v2292, 96
      %v2943 = vpop.permute.xlu0 %2942
      %2944 = vrot.lane.b32.xlu0 %v2294, 96
      %v2945 = vpop.permute.xlu0 %2944
      %2946 = vrot.lane.b32.xlu0 %v2297, 96
      %v2947 = vpop.permute.xlu0 %2946
      %2948 = vrot.lane.b32.xlu0 %v2299, 96
      %v2949 = vpop.permute.xlu0 %2948
      %2950 = vrot.lane.b32.xlu0 %v2302, 96
      %v2951 = vpop.permute.xlu0 %2950
      %2952 = vrot.lane.b32.xlu0 %v2304, 96
      %v2953 = vpop.permute.xlu0 %2952
      %2954 = vrot.lane.b32.xlu0 %v2387, 96
      %v2955 = vpop.permute.xlu0 %2954
      %2956 = vrot.lane.b32.xlu0 %v2389, 96
      %v2957 = vpop.permute.xlu0 %2956
      %2958 = vrot.lane.b32.xlu0 %v2229, 96
      %v2959 = vpop.permute.xlu0 %2958
      %vm2991 = vcmask 261120
      %v2992 = vsel %vm2991, 0.0, %v2428
      %v2993 = vsel %vm2991, %v2164, %v2430
      %v2994 = vsel %vm2991, %v2071, %v2432
      %v2995 = vsel %vm2991, %v2165, %v2434
      %v2996 = vsel %vm2991, %v2074, %v2436
      %v2997 = vsel %vm2991, %v2166, %v2438
      %v2998 = vsel %vm2991, %v2077, %v2440
      %v2999 = vsel %vm2991, %v2167, %v2442
      %v3000 = vsel %vm2991, %v2080, %v2444
      %v3001 = vsel %vm2991, %v2168, %v2446
      %v3002 = vsel %vm2991, %v2083, %v2448
      %v3003 = vsel %vm2991, %v2169, %v2450
      %v3004 = vsel %vm2991, %v2086, %v2452
      %v3005 = vsel %vm2991, %v2170, %v2454
      %v3006 = vsel %vm2991, %v2089, %v2456
      %v3007 = vsel %vm2991, %v2171, %v2458
      %v3008 = vsel %vm2991, %v2092, %v2460
      %v3009 = vsel %vm2991, %v2172, %v2462
      %v3010 = vsel %vm2991, %v2095, %v2464
      %v3011 = vsel %vm2991, %v2173, %v2466
      %v3012 = vsel %vm2991, %v2098, %v2468
      %v3013 = vsel %vm2991, %v2174, %v2470
      %v3014 = vsel %vm2991, %v2101, %v2472
      %v3015 = vsel %vm2991, %v2175, %v2474
      %v3016 = vsel %vm2991, %v2104, %v2476
      %v3017 = vsel %vm2991, %v2176, %v2478
      %v3018 = vsel %vm2991, %v2107, %v2480
      %v3019 = vsel %vm2991, %v2177, %v2482
      %v3020 = vsel %vm2991, %v2110, %v2484
      %v3021 = vsel %vm2991, %v2178, %v2486
      %v3022 = vsel %vm2991, %v2113, %v2488
      %vm3023 = vcmask 523264
      %v3024 = vsel %vm3023, %v2992, %v2521
      %v3025 = vsel %vm3023, %v2993, %v2523
      %v3026 = vsel %vm3023, %v2994, %v2525
      %v3027 = vsel %vm3023, %v2995, %v2527
      %v3028 = vsel %vm3023, %v2996, %v2529
      %v3029 = vsel %vm3023, %v2997, %v2531
      %v3030 = vsel %vm3023, %v2998, %v2533
      %v3031 = vsel %vm3023, %v2999, %v2535
      %v3032 = vsel %vm3023, %v3000, %v2537
      %v3033 = vsel %vm3023, %v3001, %v2539
      %v3034 = vsel %vm3023, %v3002, %v2541
      %v3035 = vsel %vm3023, %v3003, %v2543
      %v3036 = vsel %vm3023, %v3004, %v2545
      %v3037 = vsel %vm3023, %v3005, %v2547
      %v3038 = vsel %vm3023, %v3006, %v2549
      %v3039 = vsel %vm3023, %v3007, %v2551
      %v3040 = vsel %vm3023, %v3008, %v2553
      %v3041 = vsel %vm3023, %v3009, %v2555
      %v3042 = vsel %vm3023, %v3010, %v2557
      %v3043 = vsel %vm3023, %v3011, %v2559
      %v3044 = vsel %vm3023, %v3012, %v2561
      %v3045 = vsel %vm3023, %v3013, %v2563
      %v3046 = vsel %vm3023, %v3014, %v2565
      %v3047 = vsel %vm3023, %v3015, %v2567
      %v3048 = vsel %vm3023, %v3016, %v2569
      %v3049 = vsel %vm3023, %v3017, %v2571
      %v3050 = vsel %vm3023, %v3018, %v2573
      %v3051 = vsel %vm3023, %v3019, %v2575
      %v3052 = vsel %vm3023, %v3020, %v2577
      %v3053 = vsel %vm3023, %v3021, %v2579
      %v3054 = vsel %vm3023, %v3022, %v2581
      %vm3055 = vcmask 785408
      %v3056 = vsel %vm3055, %v3024, %v2614
      %v3057 = vsel %vm3055, %v3024, %v2616
      %v3058 = vsel %vm3055, %v3025, %v2618
      %v3059 = vsel %vm3055, %v3026, %v2620
      %v3060 = vsel %vm3055, %v3027, %v2622
      %v3061 = vsel %vm3055, %v3028, %v2624
      %v3062 = vsel %vm3055, %v3029, %v2626
      %v3063 = vsel %vm3055, %v3030, %v2628
      %v3064 = vsel %vm3055, %v3031, %v2630
      %v3065 = vsel %vm3055, %v3032, %v2632
      %v3066 = vsel %vm3055, %v3033, %v2634
      %v3067 = vsel %vm3055, %v3034, %v2636
      %v3068 = vsel %vm3055, %v3035, %v2638
      %v3069 = vsel %vm3055, %v3036, %v2640
      %v3070 = vsel %vm3055, %v3037, %v2642
      %v3071 = vsel %vm3055, %v3038, %v2644
      %v3072 = vsel %vm3055, %v3039, %v2646
      %v3073 = vsel %vm3055, %v3040, %v2648
      %v3074 = vsel %vm3055, %v3041, %v2650
      %v3075 = vsel %vm3055, %v3042, %v2652
      %v3076 = vsel %vm3055, %v3043, %v2654
      %v3077 = vsel %vm3055, %v3044, %v2656
      %v3078 = vsel %vm3055, %v3045, %v2658
      %v3079 = vsel %vm3055, %v3046, %v2660
      %v3080 = vsel %vm3055, %v3047, %v2662
      %v3081 = vsel %vm3055, %v3048, %v2664
      %v3082 = vsel %vm3055, %v3049, %v2666
      %v3083 = vsel %vm3055, %v3050, %v2668
      %v3084 = vsel %vm3055, %v3051, %v2670
      %v3085 = vsel %vm3055, %v3052, %v2672
      %v3086 = vsel %vm3055, %v3053, %v2674
      %v3087 = vsel %vm3055, %v3054, %v2676
      %v3088 = vsel %vm2991, %v2232, %v2710
      %v3089 = vsel %vm2991, %v2234, %v2712
      %v3090 = vsel %vm2991, %v2237, %v2714
      %v3091 = vsel %vm2991, %v2239, %v2716
      %v3092 = vsel %vm2991, %v2242, %v2718
      %v3093 = vsel %vm2991, %v2244, %v2720
      %v3094 = vsel %vm2991, %v2247, %v2722
      %v3095 = vsel %vm2991, %v2249, %v2724
      %v3096 = vsel %vm2991, %v2252, %v2726
      %v3097 = vsel %vm2991, %v2254, %v2728
      %v3098 = vsel %vm2991, %v2257, %v2730
      %v3099 = vsel %vm2991, %v2259, %v2732
      %v3100 = vsel %vm2991, %v2262, %v2734
      %v3101 = vsel %vm2991, %v2264, %v2736
      %v3102 = vsel %vm2991, %v2267, %v2738
      %v3103 = vsel %vm2991, %v2269, %v2740
      %v3104 = vsel %vm2991, %v2272, %v2742
      %v3105 = vsel %vm2991, %v2274, %v2744
      %v3106 = vsel %vm2991, %v2277, %v2746
      %v3107 = vsel %vm2991, %v2279, %v2748
      %v3108 = vsel %vm2991, %v2282, %v2750
      %v3109 = vsel %vm2991, %v2284, %v2752
      %v3110 = vsel %vm2991, %v2287, %v2754
      %v3111 = vsel %vm2991, %v2289, %v2756
      %v3112 = vsel %vm2991, %v2292, %v2758
      %v3113 = vsel %vm2991, %v2294, %v2760
      %v3114 = vsel %vm2991, %v2297, %v2762
      %v3115 = vsel %vm2991, %v2299, %v2764
      %v3116 = vsel %vm2991, %v2302, %v2766
      %v3117 = vsel %vm2991, %v2304, %v2768
      %v3118 = vsel %vm2991, %v2387, %v2770
      %v3119 = vsel %vm2991, %v2389, %v2772
      %v3120 = vsel %vm3023, %v3088, %v2806
      %v3121 = vsel %vm3023, %v3089, %v2808
      %v3122 = vsel %vm3023, %v3090, %v2810
      %v3123 = vsel %vm3023, %v3091, %v2812
      %v3124 = vsel %vm3023, %v3092, %v2814
      %v3125 = vsel %vm3023, %v3093, %v2816
      %v3126 = vsel %vm3023, %v3094, %v2818
      %v3127 = vsel %vm3023, %v3095, %v2820
      %v3128 = vsel %vm3023, %v3096, %v2822
      %v3129 = vsel %vm3023, %v3097, %v2824
      %v3130 = vsel %vm3023, %v3098, %v2826
      %v3131 = vsel %vm3023, %v3099, %v2828
      %v3132 = vsel %vm3023, %v3100, %v2830
      %v3133 = vsel %vm3023, %v3101, %v2832
      %v3134 = vsel %vm3023, %v3102, %v2834
      %v3135 = vsel %vm3023, %v3103, %v2836
      %v3136 = vsel %vm3023, %v3104, %v2838
      %v3137 = vsel %vm3023, %v3105, %v2840
      %v3138 = vsel %vm3023, %v3106, %v2842
      %v3139 = vsel %vm3023, %v3107, %v2844
      %v3140 = vsel %vm3023, %v3108, %v2846
      %v3141 = vsel %vm3023, %v3109, %v2848
      %v3142 = vsel %vm3023, %v3110, %v2850
      %v3143 = vsel %vm3023, %v3111, %v2852
      %v3144 = vsel %vm3023, %v3112, %v2854
      %v3145 = vsel %vm3023, %v3113, %v2856
      %v3146 = vsel %vm3023, %v3114, %v2858
      %v3147 = vsel %vm3023, %v3115, %v2860
      %v3148 = vsel %vm3023, %v3116, %v2862
      %v3149 = vsel %vm3023, %v3117, %v2864
      %v3150 = vsel %vm3023, %v3118, %v2866
      %v3151 = vsel %vm3023, %v3119, %v2866
      %v3152 = vsel %vm3055, %v3120, %v2899
      %v3153 = vsel %vm3055, %v3121, %v2901
      %v3154 = vsel %vm3055, %v3122, %v2903
      %v3155 = vsel %vm3055, %v3123, %v2905
      %v3156 = vsel %vm3055, %v3124, %v2907
      %v3157 = vsel %vm3055, %v3125, %v2909
      %v3158 = vsel %vm3055, %v3126, %v2911
      %v3159 = vsel %vm3055, %v3127, %v2913
      %v3160 = vsel %vm3055, %v3128, %v2915
      %v3161 = vsel %vm3055, %v3129, %v2917
      %v3162 = vsel %vm3055, %v3130, %v2919
      %v3163 = vsel %vm3055, %v3131, %v2921
      %v3164 = vsel %vm3055, %v3132, %v2923
      %v3165 = vsel %vm3055, %v3133, %v2925
      %v3166 = vsel %vm3055, %v3134, %v2927
      %v3167 = vsel %vm3055, %v3135, %v2929
      %v3168 = vsel %vm3055, %v3136, %v2931
      %v3169 = vsel %vm3055, %v3137, %v2933
      %v3170 = vsel %vm3055, %v3138, %v2935
      %v3171 = vsel %vm3055, %v3139, %v2937
      %v3172 = vsel %vm3055, %v3140, %v2939
      %v3173 = vsel %vm3055, %v3141, %v2941
      %v3174 = vsel %vm3055, %v3142, %v2943
      %v3175 = vsel %vm3055, %v3143, %v2945
      %v3176 = vsel %vm3055, %v3144, %v2947
      %v3177 = vsel %vm3055, %v3145, %v2949
      %v3178 = vsel %vm3055, %v3146, %v2951
      %v3179 = vsel %vm3055, %v3147, %v2953
      %v3180 = vsel %vm3055, %v3148, %v2955
      %v3181 = vsel %vm3055, %v3149, %v2957
      %v3182 = vsel %vm3055, %v3150, %v2959
      %v3183 = vsel %vm3055, %v3151, %v2959
      %v3184 = vld [vmem:[%s4] sm:$0xff]
      %v3185 = vld [vmem:[%s4 + $0x8] sm:$0xff]
      %v3186 = vld [vmem:[%s4 + $0x10] sm:$0xff]
      %v3187 = vld [vmem:[%s4 + $0x18] sm:$0xff]
      %v3188 = vld [vmem:[%s4 + $0x20] sm:$0xff]
      %v3189 = vld [vmem:[%s4 + $0x28] sm:$0xff]
      %v3190 = vld [vmem:[%s4 + $0x30] sm:$0xff]
      %v3191 = vld [vmem:[%s4 + $0x38] sm:$0xff]
      %v3192 = vld [vmem:[%s4 + $0x40] sm:$0xff]
      %v3193 = vld [vmem:[%s4 + $0x48] sm:$0xff]
      %v3194 = vld [vmem:[%s4 + $0x50] sm:$0xff]
      %v3195 = vld [vmem:[%s4 + $0x58] sm:$0xff]
      %v3196 = vld [vmem:[%s4 + $0x60] sm:$0xff]
      %v3197 = vld [vmem:[%s4 + $0x68] sm:$0xff]
      %v3198 = vld [vmem:[%s4 + $0x70] sm:$0xff]
      %v3199 = vld [vmem:[%s4 + $0x78] sm:$0xff]
      %v3200 = vld [vmem:[%s4 + $0x80] sm:$0xff]
      %v3201 = vld [vmem:[%s4 + $0x88] sm:$0xff]
      %v3202 = vld [vmem:[%s4 + $0x90] sm:$0xff]
      %v3203 = vld [vmem:[%s4 + $0x98] sm:$0xff]
      %v3204 = vld [vmem:[%s4 + $0xa0] sm:$0xff]
      %v3205 = vld [vmem:[%s4 + $0xa8] sm:$0xff]
      %v3206 = vld [vmem:[%s4 + $0xb0] sm:$0xff]
      %v3207 = vld [vmem:[%s4 + $0xb8] sm:$0xff]
      %v3208 = vld [vmem:[%s4 + $0xc0] sm:$0xff]
      %v3209 = vld [vmem:[%s4 + $0xc8] sm:$0xff]
      %v3210 = vld [vmem:[%s4 + $0xd0] sm:$0xff]
      %v3211 = vld [vmem:[%s4 + $0xd8] sm:$0xff]
      %v3212 = vld [vmem:[%s4 + $0xe0] sm:$0xff]
      %v3213 = vld [vmem:[%s4 + $0xe8] sm:$0xff]
      %v3214 = vld [vmem:[%s4 + $0xf0] sm:$0xff]
      %v3215 = vld [vmem:[%s4 + $0xf8] sm:$0xff]
      %v3216 = vld [vmem:[%s4 + $0x100] sm:$0xff]
      %v3217 = vld [vmem:[%s4 + $0x108] sm:$0xff]
      %v3218 = vld [vmem:[%s4 + $0x110] sm:$0xff]
      %v3219 = vld [vmem:[%s4 + $0x118] sm:$0xff]
      %v3220 = vld [vmem:[%s5] sm:$0x1]
      %v3222 = vperm.slane %v3220, 0
      %v3224 = vsel %vm2991, %v2315, 0
      %v3226 = vsel %vm2991, %v2317, 0
      %v3228 = vsel %vm2991, %v2320, 0
      %v3230 = vsel %vm2991, %v2322, 0
      %v3232 = vsel %vm2991, %v2325, 0
      %v3234 = vsel %vm2991, %v2327, 0
      %v3236 = vsel %vm2991, %v2330, 0
      %v3238 = vsel %vm2991, %v2332, 0
      %v3240 = vsel %vm2991, %v2335, 0
      %v3242 = vsel %vm2991, %v2337, 0
      %v3244 = vsel %vm2991, %v2340, 0
      %v3246 = vsel %vm2991, %v2342, 0
      %v3248 = vsel %vm2991, %v2345, 0
      %v3250 = vsel %vm2991, %v2347, 0
      %v3252 = vsel %vm2991, %v2350, 0
      %v3254 = vsel %vm2991, %v2352, 0
      %v3256 = vsel %vm2991, %v2355, 0
      %v3258 = vsel %vm2991, %v2357, 0
      %v3260 = vsel %vm2991, %v2360, 0
      %v3262 = vsel %vm2991, %v2362, 0
      %v3264 = vsel %vm2991, %v2365, 0
      %v3266 = vsel %vm2991, %v2367, 0
      %v3268 = vsel %vm2991, %v2370, 0
      %v3270 = vsel %vm2991, %v2372, 0
      %v3272 = vsel %vm2991, %v2375, 0
      %v3274 = vsel %vm2991, %v2377, 0
      %v3276 = vsel %vm2991, %v2380, 0
      %v3278 = vsel %vm2991, %v2382, 0
      %v3280 = vsel %vm2991, %v2424, 0
      %v3282 = vsel %vm2991, %v2426, 0
      %v3284 = vsel %vm2991, %v2307, 0
      %3286 = vmatpush.msra.mxu0 %v3199
      %3287 = vmatpush.msra.mxu0 %v3198
      %3288 = vmatpush.msra.mxu0 %v3197
      %3289 = vmatpush.msra.mxu0 %v3196
      %3290 = vmatpush.msra.mxu0 %v3195
      %3291 = vmatpush.msra.mxu0 %v3194
      %3292 = vmatpush.msra.mxu0 %v3193
      %3293 = vmatpush.msra.mxu0 %v3192
      %3294 = vmatpush.msra.mxu0 %v3191
      %3295 = vmatpush.msra.mxu0 %v3190
      %3296 = vmatpush.msra.mxu0 %v3189
      %3297 = vmatpush.msra.mxu0 %v3188
      %3298 = vmatpush.msra.mxu0 %v3187
      %3299 = vmatpush.msra.mxu0 %v3186
      %3300 = vmatpush.msra.mxu0 %v3185
      %3301 = vmatpush.msra.mxu0 %v3184
      %3302 = vmatmul.f32.gmra.mxu0 %v3056
      %v3303 = vpop.f32.mrf.mxu0
      %v3304 = vadd.f32 %v3222, %v3303
      %3305 = vmatmul.f32.gmra.mxu0 %v3057
      %v3306 = vpop.f32.mrf.mxu0
      %v3307 = vadd.f32 %v3222, %v3306
      %3308 = vmatmul.f32.gmra.mxu0 %v3058
      %v3309 = vpop.f32.mrf.mxu0
      %v3310 = vadd.f32 %v3222, %v3309
      %3311 = vmatmul.f32.gmra.mxu0 %v3059
      %v3312 = vpop.f32.mrf.mxu0
      %v3313 = vadd.f32 %v3222, %v3312
      %3314 = vmatmul.f32.gmra.mxu0 %v3060
      %v3315 = vpop.f32.mrf.mxu0
      %v3316 = vadd.f32 %v3222, %v3315
      %3317 = vmatmul.f32.gmra.mxu0 %v3061
      %v3318 = vpop.f32.mrf.mxu0
      %v3319 = vadd.f32 %v3222, %v3318
      %3320 = vmatmul.f32.gmra.mxu0 %v3062
      %v3321 = vpop.f32.mrf.mxu0
      %v3322 = vadd.f32 %v3222, %v3321
      %3323 = vmatmul.f32.gmra.mxu0 %v3063
      %v3324 = vpop.f32.mrf.mxu0
      %v3325 = vadd.f32 %v3222, %v3324
      %3326 = vmatmul.f32.gmra.mxu0 %v3064
      %v3327 = vpop.f32.mrf.mxu0
      %v3328 = vadd.f32 %v3222, %v3327
      %3329 = vmatmul.f32.gmra.mxu0 %v3065
      %v3330 = vpop.f32.mrf.mxu0
      %v3331 = vadd.f32 %v3222, %v3330
      %3332 = vmatmul.f32.gmra.mxu0 %v3066
      %v3333 = vpop.f32.mrf.mxu0
      %v3334 = vadd.f32 %v3222, %v3333
      %3335 = vmatmul.f32.gmra.mxu0 %v3067
      %v3336 = vpop.f32.mrf.mxu0
      %v3337 = vadd.f32 %v3222, %v3336
      %3338 = vmatmul.f32.gmra.mxu0 %v3068
      %v3339 = vpop.f32.mrf.mxu0
      %v3340 = vadd.f32 %v3222, %v3339
      %3341 = vmatmul.f32.gmra.mxu0 %v3069
      %v3342 = vpop.f32.mrf.mxu0
      %v3343 = vadd.f32 %v3222, %v3342
      %3344 = vmatmul.f32.gmra.mxu0 %v3070
      %v3345 = vpop.f32.mrf.mxu0
      %v3346 = vadd.f32 %v3222, %v3345
      %3347 = vmatmul.f32.gmra.mxu0 %v3071
      %v3348 = vpop.f32.mrf.mxu0
      %v3349 = vadd.f32 %v3222, %v3348
      %3350 = vmatmul.f32.gmra.mxu0 %v3072
      %v3351 = vpop.f32.mrf.mxu0
      %v3352 = vadd.f32 %v3222, %v3351
      %3353 = vmatmul.f32.gmra.mxu0 %v3073
      %v3354 = vpop.f32.mrf.mxu0
      %v3355 = vadd.f32 %v3222, %v3354
      %3356 = vmatmul.f32.gmra.mxu0 %v3074
      %v3357 = vpop.f32.mrf.mxu0
      %v3358 = vadd.f32 %v3222, %v3357
      %3359 = vmatmul.f32.gmra.mxu0 %v3075
      %v3360 = vpop.f32.mrf.mxu0
      %v3361 = vadd.f32 %v3222, %v3360
      %3362 = vmatmul.f32.gmra.mxu0 %v3076
      %v3363 = vpop.f32.mrf.mxu0
      %v3364 = vadd.f32 %v3222, %v3363
      %3365 = vmatmul.f32.gmra.mxu0 %v3077
      %v3366 = vpop.f32.mrf.mxu0
      %v3367 = vadd.f32 %v3222, %v3366
      %3368 = vmatmul.f32.gmra.mxu0 %v3078
      %v3369 = vpop.f32.mrf.mxu0
      %v3370 = vadd.f32 %v3222, %v3369
      %3371 = vmatmul.f32.gmra.mxu0 %v3079
      %v3372 = vpop.f32.mrf.mxu0
      %v3373 = vadd.f32 %v3222, %v3372
      %3374 = vmatmul.f32.gmra.mxu0 %v3080
      %v3375 = vpop.f32.mrf.mxu0
      %v3376 = vadd.f32 %v3222, %v3375
      %3377 = vmatmul.f32.gmra.mxu0 %v3081
      %v3378 = vpop.f32.mrf.mxu0
      %v3379 = vadd.f32 %v3222, %v3378
      %3380 = vmatmul.f32.gmra.mxu0 %v3082
      %v3381 = vpop.f32.mrf.mxu0
      %v3382 = vadd.f32 %v3222, %v3381
      %3383 = vmatmul.f32.gmra.mxu0 %v3083
      %v3384 = vpop.f32.mrf.mxu0
      %v3385 = vadd.f32 %v3222, %v3384
      %3386 = vmatmul.f32.gmra.mxu0 %v3084
      %v3387 = vpop.f32.mrf.mxu0
      %v3388 = vadd.f32 %v3222, %v3387
      %3389 = vmatmul.f32.gmra.mxu0 %v3085
      %v3390 = vpop.f32.mrf.mxu0
      %v3391 = vadd.f32 %v3222, %v3390
      %3392 = vmatmul.f32.gmra.mxu0 %v3086
      %v3393 = vpop.f32.mrf.mxu0
      %v3394 = vadd.f32 %v3222, %v3393
      %3395 = vmatmul.f32.gmra.mxu0 %v3087
      %v3396 = vpop.f32.mrf.mxu0
      %v3397 = vadd.f32 %v3222, %v3396
      %3398 = vdwg.mxu0
      %3399 = vmatpush.msra.mxu0 %v3215
      %3400 = vmatpush.msra.mxu0 %v3214
      %3401 = vmatpush.msra.mxu0 %v3213
      %3402 = vmatpush.msra.mxu0 %v3212
      %3403 = vmatpush.msra.mxu0 %v3211
      %3404 = vmatpush.msra.mxu0 %v3210
      %3405 = vmatpush.msra.mxu0 %v3209
      %3406 = vmatpush.msra.mxu0 %v3208
      %3407 = vmatpush.msra.mxu0 %v3207
      %3408 = vmatpush.msra.mxu0 %v3206
      %3409 = vmatpush.msra.mxu0 %v3205
      %3410 = vmatpush.msra.mxu0 %v3204
      %3411 = vmatpush.msra.mxu0 %v3203
      %3412 = vmatpush.msra.mxu0 %v3202
      %3413 = vmatpush.msra.mxu0 %v3201
      %3414 = vmatpush.msra.mxu0 %v3200
      %3415 = vmatmul.f32.gmra.mxu0 %v3152
      %v3416 = vpop.f32.mrf.mxu0
      %v3417 = vadd.f32 %v3304, %v3416
      %3418 = vmatmul.f32.gmra.mxu0 %v3153
      %v3419 = vpop.f32.mrf.mxu0
      %v3420 = vadd.f32 %v3307, %v3419
      %3421 = vmatmul.f32.gmra.mxu0 %v3154
      %v3422 = vpop.f32.mrf.mxu0
      %v3423 = vadd.f32 %v3310, %v3422
      %3424 = vmatmul.f32.gmra.mxu0 %v3155
      %v3425 = vpop.f32.mrf.mxu0
      %v3426 = vadd.f32 %v3313, %v3425
      %3427 = vmatmul.f32.gmra.mxu0 %v3156
      %v3428 = vpop.f32.mrf.mxu0
      %v3429 = vadd.f32 %v3316, %v3428
      %3430 = vmatmul.f32.gmra.mxu0 %v3157
      %v3431 = vpop.f32.mrf.mxu0
      %v3432 = vadd.f32 %v3319, %v3431
      %3433 = vmatmul.f32.gmra.mxu0 %v3158
      %v3434 = vpop.f32.mrf.mxu0
      %v3435 = vadd.f32 %v3322, %v3434
      %3436 = vmatmul.f32.gmra.mxu0 %v3159
      %v3437 = vpop.f32.mrf.mxu0
      %v3438 = vadd.f32 %v3325, %v3437
      %3439 = vmatmul.f32.gmra.mxu0 %v3160
      %v3440 = vpop.f32.mrf.mxu0
      %v3441 = vadd.f32 %v3328, %v3440
      %3442 = vmatmul.f32.gmra.mxu0 %v3161
      %v3443 = vpop.f32.mrf.mxu0
      %v3444 = vadd.f32 %v3331, %v3443
      %3445 = vmatmul.f32.gmra.mxu0 %v3162
      %v3446 = vpop.f32.mrf.mxu0
      %v3447 = vadd.f32 %v3334, %v3446
      %3448 = vmatmul.f32.gmra.mxu0 %v3163
      %v3449 = vpop.f32.mrf.mxu0
      %v3450 = vadd.f32 %v3337, %v3449
      %3451 = vmatmul.f32.gmra.mxu0 %v3164
      %v3452 = vpop.f32.mrf.mxu0
      %v3453 = vadd.f32 %v3340, %v3452
      %3454 = vmatmul.f32.gmra.mxu0 %v3165
      %v3455 = vpop.f32.mrf.mxu0
      %v3456 = vadd.f32 %v3343, %v3455
      %3457 = vmatmul.f32.gmra.mxu0 %v3166
      %v3458 = vpop.f32.mrf.mxu0
      %v3459 = vadd.f32 %v3346, %v3458
      %3460 = vmatmul.f32.gmra.mxu0 %v3167
      %v3461 = vpop.f32.mrf.mxu0
      %v3462 = vadd.f32 %v3349, %v3461
      %3463 = vmatmul.f32.gmra.mxu0 %v3168
      %v3464 = vpop.f32.mrf.mxu0
      %v3465 = vadd.f32 %v3352, %v3464
      %3466 = vmatmul.f32.gmra.mxu0 %v3169
      %v3467 = vpop.f32.mrf.mxu0
      %v3468 = vadd.f32 %v3355, %v3467
      %3469 = vmatmul.f32.gmra.mxu0 %v3170
      %v3470 = vpop.f32.mrf.mxu0
      %v3471 = vadd.f32 %v3358, %v3470
      %3472 = vmatmul.f32.gmra.mxu0 %v3171
      %v3473 = vpop.f32.mrf.mxu0
      %v3474 = vadd.f32 %v3361, %v3473
      %3475 = vmatmul.f32.gmra.mxu0 %v3172
      %v3476 = vpop.f32.mrf.mxu0
      %v3477 = vadd.f32 %v3364, %v3476
      %3478 = vmatmul.f32.gmra.mxu0 %v3173
      %v3479 = vpop.f32.mrf.mxu0
      %v3480 = vadd.f32 %v3367, %v3479
      %3481 = vmatmul.f32.gmra.mxu0 %v3174
      %v3482 = vpop.f32.mrf.mxu0
      %v3483 = vadd.f32 %v3370, %v3482
      %3484 = vmatmul.f32.gmra.mxu0 %v3175
      %v3485 = vpop.f32.mrf.mxu0
      %v3486 = vadd.f32 %v3373, %v3485
      %3487 = vmatmul.f32.gmra.mxu0 %v3176
      %v3488 = vpop.f32.mrf.mxu0
      %v3489 = vadd.f32 %v3376, %v3488
      %3490 = vmatmul.f32.gmra.mxu0 %v3177
      %v3491 = vpop.f32.mrf.mxu0
      %v3492 = vadd.f32 %v3379, %v3491
      %3493 = vmatmul.f32.gmra.mxu0 %v3178
      %v3494 = vpop.f32.mrf.mxu0
      %v3495 = vadd.f32 %v3382, %v3494
      %3496 = vmatmul.f32.gmra.mxu0 %v3179
      %v3497 = vpop.f32.mrf.mxu0
      %v3498 = vadd.f32 %v3385, %v3497
      %3499 = vmatmul.f32.gmra.mxu0 %v3180
      %v3500 = vpop.f32.mrf.mxu0
      %v3501 = vadd.f32 %v3388, %v3500
      %3502 = vmatmul.f32.gmra.mxu0 %v3181
      %v3503 = vpop.f32.mrf.mxu0
      %v3504 = vadd.f32 %v3391, %v3503
      %3505 = vmatmul.f32.gmra.mxu0 %v3182
      %v3506 = vpop.f32.mrf.mxu0
      %v3507 = vadd.f32 %v3394, %v3506
      %3508 = vmatmul.f32.gmra.mxu0 %v3183
      %v3509 = vpop.f32.mrf.mxu0
      %v3510 = vadd.f32 %v3397, %v3509
      %3511 = vdwg.mxu0
      %3512 = vmatpush.msra.mxu0 0.0
      %3513 = vmatpush.msra.mxu0 0.0
      %3514 = vmatpush.msra.mxu0 0.0
      %3515 = vmatpush.msra.mxu0 0.0
      %3516 = vmatpush.msra.mxu0 0.0
      %3517 = vmatpush.msra.mxu0 0.0
      %3518 = vmatpush.msra.mxu0 0.0
      %3519 = vmatpush.msra.mxu0 0.0
      %3520 = vmatpush.msra.mxu0 0.0
      %3521 = vmatpush.msra.mxu0 0.0
      %3522 = vmatpush.msra.mxu0 0.0
      %3523 = vmatpush.msra.mxu0 0.0
      %3524 = vmatpush.msra.mxu0 %v3219
      %3525 = vmatpush.msra.mxu0 %v3218
      %3526 = vmatpush.msra.mxu0 %v3217
      %3527 = vmatpush.msra.mxu0 %v3216
      %3528 = vmatmul.f32.gmra.mxu0 %v3224
      %v3529 = vpop.f32.mrf.mxu0
      %v3530 = vadd.f32 %v3417, %v3529
      %3531 = vmatmul.f32.gmra.mxu0 %v3226
      %v3532 = vpop.f32.mrf.mxu0
      %v3533 = vadd.f32 %v3420, %v3532
      %3534 = vmatmul.f32.gmra.mxu0 %v3228
      %v3535 = vpop.f32.mrf.mxu0
      %v3536 = vadd.f32 %v3423, %v3535
      %3537 = vmatmul.f32.gmra.mxu0 %v3230
      %v3538 = vpop.f32.mrf.mxu0
      %v3539 = vadd.f32 %v3426, %v3538
      %3540 = vmatmul.f32.gmra.mxu0 %v3232
      %v3541 = vpop.f32.mrf.mxu0
      %v3542 = vadd.f32 %v3429, %v3541
      %3543 = vmatmul.f32.gmra.mxu0 %v3234
      %v3544 = vpop.f32.mrf.mxu0
      %v3545 = vadd.f32 %v3432, %v3544
      %3546 = vmatmul.f32.gmra.mxu0 %v3236
      %v3547 = vpop.f32.mrf.mxu0
      %v3548 = vadd.f32 %v3435, %v3547
      %3549 = vmatmul.f32.gmra.mxu0 %v3238
      %v3550 = vpop.f32.mrf.mxu0
      %v3551 = vadd.f32 %v3438, %v3550
      %3552 = vmatmul.f32.gmra.mxu0 %v3240
      %v3553 = vpop.f32.mrf.mxu0
      %v3554 = vadd.f32 %v3441, %v3553
      %3555 = vmatmul.f32.gmra.mxu0 %v3242
      %v3556 = vpop.f32.mrf.mxu0
      %v3557 = vadd.f32 %v3444, %v3556
      %3558 = vmatmul.f32.gmra.mxu0 %v3244
      %v3559 = vpop.f32.mrf.mxu0
      %v3560 = vadd.f32 %v3447, %v3559
      %3561 = vmatmul.f32.gmra.mxu0 %v3246
      %v3562 = vpop.f32.mrf.mxu0
      %v3563 = vadd.f32 %v3450, %v3562
      %3564 = vmatmul.f32.gmra.mxu0 %v3248
      %v3565 = vpop.f32.mrf.mxu0
      %v3566 = vadd.f32 %v3453, %v3565
      %3567 = vmatmul.f32.gmra.mxu0 %v3250
      %v3568 = vpop.f32.mrf.mxu0
      %v3569 = vadd.f32 %v3456, %v3568
      %3570 = vmatmul.f32.gmra.mxu0 %v3252
      %v3571 = vpop.f32.mrf.mxu0
      %v3572 = vadd.f32 %v3459, %v3571
      %3573 = vmatmul.f32.gmra.mxu0 %v3254
      %v3574 = vpop.f32.mrf.mxu0
      %v3575 = vadd.f32 %v3462, %v3574
      %3576 = vmatmul.f32.gmra.mxu0 %v3256
      %v3577 = vpop.f32.mrf.mxu0
      %v3578 = vadd.f32 %v3465, %v3577
      %3579 = vmatmul.f32.gmra.mxu0 %v3258
      %v3580 = vpop.f32.mrf.mxu0
      %v3581 = vadd.f32 %v3468, %v3580
      %3582 = vmatmul.f32.gmra.mxu0 %v3260
      %v3583 = vpop.f32.mrf.mxu0
      %v3584 = vadd.f32 %v3471, %v3583
      %3585 = vmatmul.f32.gmra.mxu0 %v3262
      %v3586 = vpop.f32.mrf.mxu0
      %v3587 = vadd.f32 %v3474, %v3586
      %3588 = vmatmul.f32.gmra.mxu0 %v3264
      %v3589 = vpop.f32.mrf.mxu0
      %v3590 = vadd.f32 %v3477, %v3589
      %3591 = vmatmul.f32.gmra.mxu0 %v3266
      %v3592 = vpop.f32.mrf.mxu0
      %v3593 = vadd.f32 %v3480, %v3592
      %3594 = vmatmul.f32.gmra.mxu0 %v3268
      %v3595 = vpop.f32.mrf.mxu0
      %v3596 = vadd.f32 %v3483, %v3595
      %3597 = vmatmul.f32.gmra.mxu0 %v3270
      %v3598 = vpop.f32.mrf.mxu0
      %v3599 = vadd.f32 %v3486, %v3598
      %3600 = vmatmul.f32.gmra.mxu0 %v3272
      %v3601 = vpop.f32.mrf.mxu0
      %v3602 = vadd.f32 %v3489, %v3601
      %3603 = vmatmul.f32.gmra.mxu0 %v3274
      %v3604 = vpop.f32.mrf.mxu0
      %v3605 = vadd.f32 %v3492, %v3604
      %3606 = vmatmul.f32.gmra.mxu0 %v3276
      %v3607 = vpop.f32.mrf.mxu0
      %v3608 = vadd.f32 %v3495, %v3607
      %3609 = vmatmul.f32.gmra.mxu0 %v3278
      %v3610 = vpop.f32.mrf.mxu0
      %v3611 = vadd.f32 %v3498, %v3610
      %3612 = vmatmul.f32.gmra.mxu0 %v3280
      %v3613 = vpop.f32.mrf.mxu0
      %v3614 = vadd.f32 %v3501, %v3613
      %3615 = vmatmul.f32.gmra.mxu0 %v3282
      %v3616 = vpop.f32.mrf.mxu0
      %v3617 = vadd.f32 %v3504, %v3616
      %3618 = vmatmul.f32.gmra.mxu0 %v3284
      %v3619 = vpop.f32.mrf.mxu0
      %v3620 = vadd.f32 %v3507, %v3619
      %3621 = vmatmul.f32.gmra.mxu0 %v3284
      %v3622 = vpop.f32.mrf.mxu0
      %v3623 = vadd.f32 %v3510, %v3622
      %3624 = vdwg.mxu0
      %v3625 = vmul.f32 %v3530, 0.5
      %v3626 = vmul.f32 %v3533, 0.5
      %v3627 = vmul.f32 %v3536, 0.5
      %v3628 = vmul.f32 %v3539, 0.5
      %v3629 = vmul.f32 %v3542, 0.5
      %v3630 = vmul.f32 %v3545, 0.5
      %v3631 = vmul.f32 %v3548, 0.5
      %v3632 = vmul.f32 %v3551, 0.5
      %v3633 = vmul.f32 %v3554, 0.5
      %v3634 = vmul.f32 %v3557, 0.5
      %v3635 = vmul.f32 %v3560, 0.5
      %v3636 = vmul.f32 %v3563, 0.5
      %v3637 = vmul.f32 %v3566, 0.5
      %v3638 = vmul.f32 %v3569, 0.5
      %v3639 = vmul.f32 %v3572, 0.5
      %v3640 = vmul.f32 %v3575, 0.5
      %v3641 = vmul.f32 %v3578, 0.5
      %v3642 = vmul.f32 %v3581, 0.5
      %v3643 = vmul.f32 %v3584, 0.5
      %v3644 = vmul.f32 %v3587, 0.5
      %v3645 = vmul.f32 %v3590, 0.5
      %v3646 = vmul.f32 %v3593, 0.5
      %v3647 = vmul.f32 %v3596, 0.5
      %v3648 = vmul.f32 %v3599, 0.5
      %v3649 = vmul.f32 %v3602, 0.5
      %v3650 = vmul.f32 %v3605, 0.5
      %v3651 = vmul.f32 %v3608, 0.5
      %v3652 = vmul.f32 %v3611, 0.5
      %v3653 = vmul.f32 %v3614, 0.5
      %v3654 = vmul.f32 %v3617, 0.5
      %v3655 = vmul.f32 %v3620, 0.5
      %v3656 = vmul.f32 %v3623, 0.5
      %v3657 = vmul.f32 %v3530, 0.70710677
      %v3658 = vmul.f32 %v3533, 0.70710677
      %v3659 = vmul.f32 %v3536, 0.70710677
      %v3660 = vmul.f32 %v3539, 0.70710677
      %v3661 = vmul.f32 %v3542, 0.70710677
      %v3662 = vmul.f32 %v3545, 0.70710677
      %v3663 = vmul.f32 %v3548, 0.70710677
      %v3664 = vmul.f32 %v3551, 0.70710677
      %v3665 = vmul.f32 %v3554, 0.70710677
      %v3666 = vmul.f32 %v3557, 0.70710677
      %v3667 = vmul.f32 %v3560, 0.70710677
      %v3668 = vmul.f32 %v3563, 0.70710677
      %v3669 = vmul.f32 %v3566, 0.70710677
      %v3670 = vmul.f32 %v3569, 0.70710677
      %v3671 = vmul.f32 %v3572, 0.70710677
      %v3672 = vmul.f32 %v3575, 0.70710677
      %v3673 = vmul.f32 %v3578, 0.70710677
      %v3674 = vmul.f32 %v3581, 0.70710677
      %v3675 = vmul.f32 %v3584, 0.70710677
      %v3676 = vmul.f32 %v3587, 0.70710677
      %v3677 = vmul.f32 %v3590, 0.70710677
      %v3678 = vmul.f32 %v3593, 0.70710677
      %v3679 = vmul.f32 %v3596, 0.70710677
      %v3680 = vmul.f32 %v3599, 0.70710677
      %v3681 = vmul.f32 %v3602, 0.70710677
      %v3682 = vmul.f32 %v3605, 0.70710677
      %v3683 = vmul.f32 %v3608, 0.70710677
      %v3684 = vmul.f32 %v3611, 0.70710677
      %v3685 = vmul.f32 %v3614, 0.70710677
      %v3686 = vmul.f32 %v3617, 0.70710677
      %v3687 = vmul.f32 %v3620, 0.70710677
      %v3688 = vmul.f32 %v3623, 0.70710677
      %v3689 = vmul.f32 %v3657, %v3657
      %v3690 = vmin.f32 16.0, %v3689
      %v3691 = vmul.f32 %v3690, 2.1237322e-06
      %v3692 = vadd.f32 %v3691, 0.00028619796
      %v3693 = vmul.f32 %v3690, %v3692
      %v3694 = vadd.f32 %v3693, 0.0036580483
      %v3695 = vmul.f32 %v3690, %v3694
      %v3696 = vadd.f32 %v3695, 0.05243302
      %v3697 = vmul.f32 %v3690, %v3696
      %v3698 = vadd.f32 %v3697, 0.18741608
      %v3699 = vmul.f32 %v3690, %v3698
      %v3700 = vadd.f32 %v3699, 1.1283791
      %v3701 = vmul.f32 %v3657, %v3700
      %v3702 = vmul.f32 %v3690, 3.8918573e-05
      %v3703 = vadd.f32 %v3702, 0.001143296
      %v3704 = vmul.f32 %v3690, %v3703
      %v3705 = vadd.f32 %v3704, 0.014752088
      %v3706 = vmul.f32 %v3690, %v3705
      %v3707 = vadd.f32 %v3706, 0.112945676
      %v3708 = vmul.f32 %v3690, %v3707
      %v3709 = vadd.f32 %v3708, 0.4994258
      %v3710 = vmul.f32 %v3690, %v3709
      %v3711 = vadd.f32 %v3710, 1.0
      %v3712 = vrcp.pop %v3711
      %v3713 = vmul.f32 %v3711, %v3712
      %v3714 = vsub.f32 1.0, %v3713
      %v3715 = vmul.f32 %v3712, %v3714
      %v3716 = vadd.f32 %v3712, %v3715
      %vm3717 = vweird.f32 %v3711
      %vm3718 = vweird.f32 %v3712
      %vm3719 = vmor %vm3717, %vm3718
      %v3720 = vsel %vm3719, %v3712, %v3716
      %v3721 = vand.u32 2147483647, %v3711
      %vm3722 = vcmp.eq.f32.partialorder %v3721, 8.507059e+37
      %v3723 = vand.u32 %v3711, 2147483648
      %v3724 = vor.u32 1.1754944e-38, %v3723
      %v3725 = vsel %vm3722, %v3724, %v3720
      %v3726 = vmul.f32 %v3701, %v3725
      %v3727 = vmin.f32 %v3726, 1.0
      %v3728 = vmax.f32 %v3727, -1.0
      %v3729 = vmul.f32 %v3658, %v3658
      %v3730 = vmin.f32 16.0, %v3729
      %v3731 = vmul.f32 %v3730, 2.1237322e-06
      %v3732 = vadd.f32 %v3731, 0.00028619796
      %v3733 = vmul.f32 %v3730, %v3732
      %v3734 = vadd.f32 %v3733, 0.0036580483
      %v3735 = vmul.f32 %v3730, %v3734
      %v3736 = vadd.f32 %v3735, 0.05243302
      %v3737 = vmul.f32 %v3730, %v3736
      %v3738 = vadd.f32 %v3737, 0.18741608
      %v3739 = vmul.f32 %v3730, %v3738
      %v3740 = vadd.f32 %v3739, 1.1283791
      %v3741 = vmul.f32 %v3658, %v3740
      %v3742 = vmul.f32 %v3730, 3.8918573e-05
      %v3743 = vadd.f32 %v3742, 0.001143296
      %v3744 = vmul.f32 %v3730, %v3743
      %v3745 = vadd.f32 %v3744, 0.014752088
      %v3746 = vmul.f32 %v3730, %v3745
      %v3747 = vadd.f32 %v3746, 0.112945676
      %v3748 = vmul.f32 %v3730, %v3747
      %v3749 = vadd.f32 %v3748, 0.4994258
      %v3750 = vmul.f32 %v3730, %v3749
      %v3751 = vadd.f32 %v3750, 1.0
      %v3752 = vrcp.pop %v3751
      %v3753 = vmul.f32 %v3751, %v3752
      %v3754 = vsub.f32 1.0, %v3753
      %v3755 = vmul.f32 %v3752, %v3754
      %v3756 = vadd.f32 %v3752, %v3755
      %vm3757 = vweird.f32 %v3751
      %vm3758 = vweird.f32 %v3752
      %vm3759 = vmor %vm3757, %vm3758
      %v3760 = vsel %vm3759, %v3752, %v3756
      %v3761 = vand.u32 2147483647, %v3751
      %vm3762 = vcmp.eq.f32.partialorder %v3761, 8.507059e+37
      %v3763 = vand.u32 %v3751, 2147483648
      %v3764 = vor.u32 1.1754944e-38, %v3763
      %v3765 = vsel %vm3762, %v3764, %v3760
      %v3766 = vmul.f32 %v3741, %v3765
      %v3767 = vmin.f32 %v3766, 1.0
      %v3768 = vmax.f32 %v3767, -1.0
      %v3769 = vmul.f32 %v3659, %v3659
      %v3770 = vmin.f32 16.0, %v3769
      %v3771 = vmul.f32 %v3770, 2.1237322e-06
      %v3772 = vadd.f32 %v3771, 0.00028619796
      %v3773 = vmul.f32 %v3770, %v3772
      %v3774 = vadd.f32 %v3773, 0.0036580483
      %v3775 = vmul.f32 %v3770, %v3774
      %v3776 = vadd.f32 %v3775, 0.05243302
      %v3777 = vmul.f32 %v3770, %v3776
      %v3778 = vadd.f32 %v3777, 0.18741608
      %v3779 = vmul.f32 %v3770, %v3778
      %v3780 = vadd.f32 %v3779, 1.1283791
      %v3781 = vmul.f32 %v3659, %v3780
      %v3782 = vmul.f32 %v3770, 3.8918573e-05
      %v3783 = vadd.f32 %v3782, 0.001143296
      %v3784 = vmul.f32 %v3770, %v3783
      %v3785 = vadd.f32 %v3784, 0.014752088
      %v3786 = vmul.f32 %v3770, %v3785
      %v3787 = vadd.f32 %v3786, 0.112945676
      %v3788 = vmul.f32 %v3770, %v3787
      %v3789 = vadd.f32 %v3788, 0.4994258
      %v3790 = vmul.f32 %v3770, %v3789
      %v3791 = vadd.f32 %v3790, 1.0
      %v3792 = vrcp.pop %v3791
      %v3793 = vmul.f32 %v3791, %v3792
      %v3794 = vsub.f32 1.0, %v3793
      %v3795 = vmul.f32 %v3792, %v3794
      %v3796 = vadd.f32 %v3792, %v3795
      %vm3797 = vweird.f32 %v3791
      %vm3798 = vweird.f32 %v3792
      %vm3799 = vmor %vm3797, %vm3798
      %v3800 = vsel %vm3799, %v3792, %v3796
      %v3801 = vand.u32 2147483647, %v3791
      %vm3802 = vcmp.eq.f32.partialorder %v3801, 8.507059e+37
      %v3803 = vand.u32 %v3791, 2147483648
      %v3804 = vor.u32 1.1754944e-38, %v3803
      %v3805 = vsel %vm3802, %v3804, %v3800
      %v3806 = vmul.f32 %v3781, %v3805
      %v3807 = vmin.f32 %v3806, 1.0
      %v3808 = vmax.f32 %v3807, -1.0
      %v3809 = vmul.f32 %v3660, %v3660
      %v3810 = vmin.f32 16.0, %v3809
      %v3811 = vmul.f32 %v3810, 2.1237322e-06
      %v3812 = vadd.f32 %v3811, 0.00028619796
      %v3813 = vmul.f32 %v3810, %v3812
      %v3814 = vadd.f32 %v3813, 0.0036580483
      %v3815 = vmul.f32 %v3810, %v3814
      %v3816 = vadd.f32 %v3815, 0.05243302
      %v3817 = vmul.f32 %v3810, %v3816
      %v3818 = vadd.f32 %v3817, 0.18741608
      %v3819 = vmul.f32 %v3810, %v3818
      %v3820 = vadd.f32 %v3819, 1.1283791
      %v3821 = vmul.f32 %v3660, %v3820
      %v3822 = vmul.f32 %v3810, 3.8918573e-05
      %v3823 = vadd.f32 %v3822, 0.001143296
      %v3824 = vmul.f32 %v3810, %v3823
      %v3825 = vadd.f32 %v3824, 0.014752088
      %v3826 = vmul.f32 %v3810, %v3825
      %v3827 = vadd.f32 %v3826, 0.112945676
      %v3828 = vmul.f32 %v3810, %v3827
      %v3829 = vadd.f32 %v3828, 0.4994258
      %v3830 = vmul.f32 %v3810, %v3829
      %v3831 = vadd.f32 %v3830, 1.0
      %v3832 = vrcp.pop %v3831
      %v3833 = vmul.f32 %v3831, %v3832
      %v3834 = vsub.f32 1.0, %v3833
      %v3835 = vmul.f32 %v3832, %v3834
      %v3836 = vadd.f32 %v3832, %v3835
      %vm3837 = vweird.f32 %v3831
      %vm3838 = vweird.f32 %v3832
      %vm3839 = vmor %vm3837, %vm3838
      %v3840 = vsel %vm3839, %v3832, %v3836
      %v3841 = vand.u32 2147483647, %v3831
      %vm3842 = vcmp.eq.f32.partialorder %v3841, 8.507059e+37
      %v3843 = vand.u32 %v3831, 2147483648
      %v3844 = vor.u32 1.1754944e-38, %v3843
      %v3845 = vsel %vm3842, %v3844, %v3840
      %v3846 = vmul.f32 %v3821, %v3845
      %v3847 = vmin.f32 %v3846, 1.0
      %v3848 = vmax.f32 %v3847, -1.0
      %v3849 = vmul.f32 %v3661, %v3661
      %v3850 = vmin.f32 16.0, %v3849
      %v3851 = vmul.f32 %v3850, 2.1237322e-06
      %v3852 = vadd.f32 %v3851, 0.00028619796
      %v3853 = vmul.f32 %v3850, %v3852
      %v3854 = vadd.f32 %v3853, 0.0036580483
      %v3855 = vmul.f32 %v3850, %v3854
      %v3856 = vadd.f32 %v3855, 0.05243302
      %v3857 = vmul.f32 %v3850, %v3856
      %v3858 = vadd.f32 %v3857, 0.18741608
      %v3859 = vmul.f32 %v3850, %v3858
      %v3860 = vadd.f32 %v3859, 1.1283791
      %v3861 = vmul.f32 %v3661, %v3860
      %v3862 = vmul.f32 %v3850, 3.8918573e-05
      %v3863 = vadd.f32 %v3862, 0.001143296
      %v3864 = vmul.f32 %v3850, %v3863
      %v3865 = vadd.f32 %v3864, 0.014752088
      %v3866 = vmul.f32 %v3850, %v3865
      %v3867 = vadd.f32 %v3866, 0.112945676
      %v3868 = vmul.f32 %v3850, %v3867
      %v3869 = vadd.f32 %v3868, 0.4994258
      %v3870 = vmul.f32 %v3850, %v3869
      %v3871 = vadd.f32 %v3870, 1.0
      %v3872 = vrcp.pop %v3871
      %v3873 = vmul.f32 %v3871, %v3872
      %v3874 = vsub.f32 1.0, %v3873
      %v3875 = vmul.f32 %v3872, %v3874
      %v3876 = vadd.f32 %v3872, %v3875
      %vm3877 = vweird.f32 %v3871
      %vm3878 = vweird.f32 %v3872
      %vm3879 = vmor %vm3877, %vm3878
      %v3880 = vsel %vm3879, %v3872, %v3876
      %v3881 = vand.u32 2147483647, %v3871
      %vm3882 = vcmp.eq.f32.partialorder %v3881, 8.507059e+37
      %v3883 = vand.u32 %v3871, 2147483648
      %v3884 = vor.u32 1.1754944e-38, %v3883
      %v3885 = vsel %vm3882, %v3884, %v3880
      %v3886 = vmul.f32 %v3861, %v3885
      %v3887 = vmin.f32 %v3886, 1.0
      %v3888 = vmax.f32 %v3887, -1.0
      %v3889 = vmul.f32 %v3662, %v3662
      %v3890 = vmin.f32 16.0, %v3889
      %v3891 = vmul.f32 %v3890, 2.1237322e-06
      %v3892 = vadd.f32 %v3891, 0.00028619796
      %v3893 = vmul.f32 %v3890, %v3892
      %v3894 = vadd.f32 %v3893, 0.0036580483
      %v3895 = vmul.f32 %v3890, %v3894
      %v3896 = vadd.f32 %v3895, 0.05243302
      %v3897 = vmul.f32 %v3890, %v3896
      %v3898 = vadd.f32 %v3897, 0.18741608
      %v3899 = vmul.f32 %v3890, %v3898
      %v3900 = vadd.f32 %v3899, 1.1283791
      %v3901 = vmul.f32 %v3662, %v3900
      %v3902 = vmul.f32 %v3890, 3.8918573e-05
      %v3903 = vadd.f32 %v3902, 0.001143296
      %v3904 = vmul.f32 %v3890, %v3903
      %v3905 = vadd.f32 %v3904, 0.014752088
      %v3906 = vmul.f32 %v3890, %v3905
      %v3907 = vadd.f32 %v3906, 0.112945676
      %v3908 = vmul.f32 %v3890, %v3907
      %v3909 = vadd.f32 %v3908, 0.4994258
      %v3910 = vmul.f32 %v3890, %v3909
      %v3911 = vadd.f32 %v3910, 1.0
      %v3912 = vrcp.pop %v3911
      %v3913 = vmul.f32 %v3911, %v3912
      %v3914 = vsub.f32 1.0, %v3913
      %v3915 = vmul.f32 %v3912, %v3914
      %v3916 = vadd.f32 %v3912, %v3915
      %vm3917 = vweird.f32 %v3911
      %vm3918 = vweird.f32 %v3912
      %vm3919 = vmor %vm3917, %vm3918
      %v3920 = vsel %vm3919, %v3912, %v3916
      %v3921 = vand.u32 2147483647, %v3911
      %vm3922 = vcmp.eq.f32.partialorder %v3921, 8.507059e+37
      %v3923 = vand.u32 %v3911, 2147483648
      %v3924 = vor.u32 1.1754944e-38, %v3923
      %v3925 = vsel %vm3922, %v3924, %v3920
      %v3926 = vmul.f32 %v3901, %v3925
      %v3927 = vmin.f32 %v3926, 1.0
      %v3928 = vmax.f32 %v3927, -1.0
      %v3929 = vmul.f32 %v3663, %v3663
      %v3930 = vmin.f32 16.0, %v3929
      %v3931 = vmul.f32 %v3930, 2.1237322e-06
      %v3932 = vadd.f32 %v3931, 0.00028619796
      %v3933 = vmul.f32 %v3930, %v3932
      %v3934 = vadd.f32 %v3933, 0.0036580483
      %v3935 = vmul.f32 %v3930, %v3934
      %v3936 = vadd.f32 %v3935, 0.05243302
      %v3937 = vmul.f32 %v3930, %v3936
      %v3938 = vadd.f32 %v3937, 0.18741608
      %v3939 = vmul.f32 %v3930, %v3938
      %v3940 = vadd.f32 %v3939, 1.1283791
      %v3941 = vmul.f32 %v3663, %v3940
      %v3942 = vmul.f32 %v3930, 3.8918573e-05
      %v3943 = vadd.f32 %v3942, 0.001143296
      %v3944 = vmul.f32 %v3930, %v3943
      %v3945 = vadd.f32 %v3944, 0.014752088
      %v3946 = vmul.f32 %v3930, %v3945
      %v3947 = vadd.f32 %v3946, 0.112945676
      %v3948 = vmul.f32 %v3930, %v3947
      %v3949 = vadd.f32 %v3948, 0.4994258
      %v3950 = vmul.f32 %v3930, %v3949
      %v3951 = vadd.f32 %v3950, 1.0
      %v3952 = vrcp.pop %v3951
      %v3953 = vmul.f32 %v3951, %v3952
      %v3954 = vsub.f32 1.0, %v3953
      %v3955 = vmul.f32 %v3952, %v3954
      %v3956 = vadd.f32 %v3952, %v3955
      %vm3957 = vweird.f32 %v3951
      %vm3958 = vweird.f32 %v3952
      %vm3959 = vmor %vm3957, %vm3958
      %v3960 = vsel %vm3959, %v3952, %v3956
      %v3961 = vand.u32 2147483647, %v3951
      %vm3962 = vcmp.eq.f32.partialorder %v3961, 8.507059e+37
      %v3963 = vand.u32 %v3951, 2147483648
      %v3964 = vor.u32 1.1754944e-38, %v3963
      %v3965 = vsel %vm3962, %v3964, %v3960
      %v3966 = vmul.f32 %v3941, %v3965
      %v3967 = vmin.f32 %v3966, 1.0
      %v3968 = vmax.f32 %v3967, -1.0
      %v3969 = vmul.f32 %v3664, %v3664
      %v3970 = vmin.f32 16.0, %v3969
      %v3971 = vmul.f32 %v3970, 2.1237322e-06
      %v3972 = vadd.f32 %v3971, 0.00028619796
      %v3973 = vmul.f32 %v3970, %v3972
      %v3974 = vadd.f32 %v3973, 0.0036580483
      %v3975 = vmul.f32 %v3970, %v3974
      %v3976 = vadd.f32 %v3975, 0.05243302
      %v3977 = vmul.f32 %v3970, %v3976
      %v3978 = vadd.f32 %v3977, 0.18741608
      %v3979 = vmul.f32 %v3970, %v3978
      %v3980 = vadd.f32 %v3979, 1.1283791
      %v3981 = vmul.f32 %v3664, %v3980
      %v3982 = vmul.f32 %v3970, 3.8918573e-05
      %v3983 = vadd.f32 %v3982, 0.001143296
      %v3984 = vmul.f32 %v3970, %v3983
      %v3985 = vadd.f32 %v3984, 0.014752088
      %v3986 = vmul.f32 %v3970, %v3985
      %v3987 = vadd.f32 %v3986, 0.112945676
      %v3988 = vmul.f32 %v3970, %v3987
      %v3989 = vadd.f32 %v3988, 0.4994258
      %v3990 = vmul.f32 %v3970, %v3989
      %v3991 = vadd.f32 %v3990, 1.0
      %v3992 = vrcp.pop %v3991
      %v3993 = vmul.f32 %v3991, %v3992
      %v3994 = vsub.f32 1.0, %v3993
      %v3995 = vmul.f32 %v3992, %v3994
      %v3996 = vadd.f32 %v3992, %v3995
      %vm3997 = vweird.f32 %v3991
      %vm3998 = vweird.f32 %v3992
      %vm3999 = vmor %vm3997, %vm3998
      %v4000 = vsel %vm3999, %v3992, %v3996
      %v4001 = vand.u32 2147483647, %v3991
      %vm4002 = vcmp.eq.f32.partialorder %v4001, 8.507059e+37
      %v4003 = vand.u32 %v3991, 2147483648
      %v4004 = vor.u32 1.1754944e-38, %v4003
      %v4005 = vsel %vm4002, %v4004, %v4000
      %v4006 = vmul.f32 %v3981, %v4005
      %v4007 = vmin.f32 %v4006, 1.0
      %v4008 = vmax.f32 %v4007, -1.0
      %v4009 = vmul.f32 %v3665, %v3665
      %v4010 = vmin.f32 16.0, %v4009
      %v4011 = vmul.f32 %v4010, 2.1237322e-06
      %v4012 = vadd.f32 %v4011, 0.00028619796
      %v4013 = vmul.f32 %v4010, %v4012
      %v4014 = vadd.f32 %v4013, 0.0036580483
      %v4015 = vmul.f32 %v4010, %v4014
      %v4016 = vadd.f32 %v4015, 0.05243302
      %v4017 = vmul.f32 %v4010, %v4016
      %v4018 = vadd.f32 %v4017, 0.18741608
      %v4019 = vmul.f32 %v4010, %v4018
      %v4020 = vadd.f32 %v4019, 1.1283791
      %v4021 = vmul.f32 %v3665, %v4020
      %v4022 = vmul.f32 %v4010, 3.8918573e-05
      %v4023 = vadd.f32 %v4022, 0.001143296
      %v4024 = vmul.f32 %v4010, %v4023
      %v4025 = vadd.f32 %v4024, 0.014752088
      %v4026 = vmul.f32 %v4010, %v4025
      %v4027 = vadd.f32 %v4026, 0.112945676
      %v4028 = vmul.f32 %v4010, %v4027
      %v4029 = vadd.f32 %v4028, 0.4994258
      %v4030 = vmul.f32 %v4010, %v4029
      %v4031 = vadd.f32 %v4030, 1.0
      %v4032 = vrcp.pop %v4031
      %v4033 = vmul.f32 %v4031, %v4032
      %v4034 = vsub.f32 1.0, %v4033
      %v4035 = vmul.f32 %v4032, %v4034
      %v4036 = vadd.f32 %v4032, %v4035
      %vm4037 = vweird.f32 %v4031
      %vm4038 = vweird.f32 %v4032
      %vm4039 = vmor %vm4037, %vm4038
      %v4040 = vsel %vm4039, %v4032, %v4036
      %v4041 = vand.u32 2147483647, %v4031
      %vm4042 = vcmp.eq.f32.partialorder %v4041, 8.507059e+37
      %v4043 = vand.u32 %v4031, 2147483648
      %v4044 = vor.u32 1.1754944e-38, %v4043
      %v4045 = vsel %vm4042, %v4044, %v4040
      %v4046 = vmul.f32 %v4021, %v4045
      %v4047 = vmin.f32 %v4046, 1.0
      %v4048 = vmax.f32 %v4047, -1.0
      %v4049 = vmul.f32 %v3666, %v3666
      %v4050 = vmin.f32 16.0, %v4049
      %v4051 = vmul.f32 %v4050, 2.1237322e-06
      %v4052 = vadd.f32 %v4051, 0.00028619796
      %v4053 = vmul.f32 %v4050, %v4052
      %v4054 = vadd.f32 %v4053, 0.0036580483
      %v4055 = vmul.f32 %v4050, %v4054
      %v4056 = vadd.f32 %v4055, 0.05243302
      %v4057 = vmul.f32 %v4050, %v4056
      %v4058 = vadd.f32 %v4057, 0.18741608
      %v4059 = vmul.f32 %v4050, %v4058
      %v4060 = vadd.f32 %v4059, 1.1283791
      %v4061 = vmul.f32 %v3666, %v4060
      %v4062 = vmul.f32 %v4050, 3.8918573e-05
      %v4063 = vadd.f32 %v4062, 0.001143296
      %v4064 = vmul.f32 %v4050, %v4063
      %v4065 = vadd.f32 %v4064, 0.014752088
      %v4066 = vmul.f32 %v4050, %v4065
      %v4067 = vadd.f32 %v4066, 0.112945676
      %v4068 = vmul.f32 %v4050, %v4067
      %v4069 = vadd.f32 %v4068, 0.4994258
      %v4070 = vmul.f32 %v4050, %v4069
      %v4071 = vadd.f32 %v4070, 1.0
      %v4072 = vrcp.pop %v4071
      %v4073 = vmul.f32 %v4071, %v4072
      %v4074 = vsub.f32 1.0, %v4073
      %v4075 = vmul.f32 %v4072, %v4074
      %v4076 = vadd.f32 %v4072, %v4075
      %vm4077 = vweird.f32 %v4071
      %vm4078 = vweird.f32 %v4072
      %vm4079 = vmor %vm4077, %vm4078
      %v4080 = vsel %vm4079, %v4072, %v4076
      %v4081 = vand.u32 2147483647, %v4071
      %vm4082 = vcmp.eq.f32.partialorder %v4081, 8.507059e+37
      %v4083 = vand.u32 %v4071, 2147483648
      %v4084 = vor.u32 1.1754944e-38, %v4083
      %v4085 = vsel %vm4082, %v4084, %v4080
      %v4086 = vmul.f32 %v4061, %v4085
      %v4087 = vmin.f32 %v4086, 1.0
      %v4088 = vmax.f32 %v4087, -1.0
      %v4089 = vmul.f32 %v3667, %v3667
      %v4090 = vmin.f32 16.0, %v4089
      %v4091 = vmul.f32 %v4090, 2.1237322e-06
      %v4092 = vadd.f32 %v4091, 0.00028619796
      %v4093 = vmul.f32 %v4090, %v4092
      %v4094 = vadd.f32 %v4093, 0.0036580483
      %v4095 = vmul.f32 %v4090, %v4094
      %v4096 = vadd.f32 %v4095, 0.05243302
      %v4097 = vmul.f32 %v4090, %v4096
      %v4098 = vadd.f32 %v4097, 0.18741608
      %v4099 = vmul.f32 %v4090, %v4098
      %v4100 = vadd.f32 %v4099, 1.1283791
      %v4101 = vmul.f32 %v3667, %v4100
      %v4102 = vmul.f32 %v4090, 3.8918573e-05
      %v4103 = vadd.f32 %v4102, 0.001143296
      %v4104 = vmul.f32 %v4090, %v4103
      %v4105 = vadd.f32 %v4104, 0.014752088
      %v4106 = vmul.f32 %v4090, %v4105
      %v4107 = vadd.f32 %v4106, 0.112945676
      %v4108 = vmul.f32 %v4090, %v4107
      %v4109 = vadd.f32 %v4108, 0.4994258
      %v4110 = vmul.f32 %v4090, %v4109
      %v4111 = vadd.f32 %v4110, 1.0
      %v4112 = vrcp.pop %v4111
      %v4113 = vmul.f32 %v4111, %v4112
      %v4114 = vsub.f32 1.0, %v4113
      %v4115 = vmul.f32 %v4112, %v4114
      %v4116 = vadd.f32 %v4112, %v4115
      %vm4117 = vweird.f32 %v4111
      %vm4118 = vweird.f32 %v4112
      %vm4119 = vmor %vm4117, %vm4118
      %v4120 = vsel %vm4119, %v4112, %v4116
      %v4121 = vand.u32 2147483647, %v4111
      %vm4122 = vcmp.eq.f32.partialorder %v4121, 8.507059e+37
      %v4123 = vand.u32 %v4111, 2147483648
      %v4124 = vor.u32 1.1754944e-38, %v4123
      %v4125 = vsel %vm4122, %v4124, %v4120
      %v4126 = vmul.f32 %v4101, %v4125
      %v4127 = vmin.f32 %v4126, 1.0
      %v4128 = vmax.f32 %v4127, -1.0
      %v4129 = vmul.f32 %v3668, %v3668
      %v4130 = vmin.f32 16.0, %v4129
      %v4131 = vmul.f32 %v4130, 2.1237322e-06
      %v4132 = vadd.f32 %v4131, 0.00028619796
      %v4133 = vmul.f32 %v4130, %v4132
      %v4134 = vadd.f32 %v4133, 0.0036580483
      %v4135 = vmul.f32 %v4130, %v4134
      %v4136 = vadd.f32 %v4135, 0.05243302
      %v4137 = vmul.f32 %v4130, %v4136
      %v4138 = vadd.f32 %v4137, 0.18741608
      %v4139 = vmul.f32 %v4130, %v4138
      %v4140 = vadd.f32 %v4139, 1.1283791
      %v4141 = vmul.f32 %v3668, %v4140
      %v4142 = vmul.f32 %v4130, 3.8918573e-05
      %v4143 = vadd.f32 %v4142, 0.001143296
      %v4144 = vmul.f32 %v4130, %v4143
      %v4145 = vadd.f32 %v4144, 0.014752088
      %v4146 = vmul.f32 %v4130, %v4145
      %v4147 = vadd.f32 %v4146, 0.112945676
      %v4148 = vmul.f32 %v4130, %v4147
      %v4149 = vadd.f32 %v4148, 0.4994258
      %v4150 = vmul.f32 %v4130, %v4149
      %v4151 = vadd.f32 %v4150, 1.0
      %v4152 = vrcp.pop %v4151
      %v4153 = vmul.f32 %v4151, %v4152
      %v4154 = vsub.f32 1.0, %v4153
      %v4155 = vmul.f32 %v4152, %v4154
      %v4156 = vadd.f32 %v4152, %v4155
      %vm4157 = vweird.f32 %v4151
      %vm4158 = vweird.f32 %v4152
      %vm4159 = vmor %vm4157, %vm4158
      %v4160 = vsel %vm4159, %v4152, %v4156
      %v4161 = vand.u32 2147483647, %v4151
      %vm4162 = vcmp.eq.f32.partialorder %v4161, 8.507059e+37
      %v4163 = vand.u32 %v4151, 2147483648
      %v4164 = vor.u32 1.1754944e-38, %v4163
      %v4165 = vsel %vm4162, %v4164, %v4160
      %v4166 = vmul.f32 %v4141, %v4165
      %v4167 = vmin.f32 %v4166, 1.0
      %v4168 = vmax.f32 %v4167, -1.0
      %v4169 = vmul.f32 %v3669, %v3669
      %v4170 = vmin.f32 16.0, %v4169
      %v4171 = vmul.f32 %v4170, 2.1237322e-06
      %v4172 = vadd.f32 %v4171, 0.00028619796
      %v4173 = vmul.f32 %v4170, %v4172
      %v4174 = vadd.f32 %v4173, 0.0036580483
      %v4175 = vmul.f32 %v4170, %v4174
      %v4176 = vadd.f32 %v4175, 0.05243302
      %v4177 = vmul.f32 %v4170, %v4176
      %v4178 = vadd.f32 %v4177, 0.18741608
      %v4179 = vmul.f32 %v4170, %v4178
      %v4180 = vadd.f32 %v4179, 1.1283791
      %v4181 = vmul.f32 %v3669, %v4180
      %v4182 = vmul.f32 %v4170, 3.8918573e-05
      %v4183 = vadd.f32 %v4182, 0.001143296
      %v4184 = vmul.f32 %v4170, %v4183
      %v4185 = vadd.f32 %v4184, 0.014752088
      %v4186 = vmul.f32 %v4170, %v4185
      %v4187 = vadd.f32 %v4186, 0.112945676
      %v4188 = vmul.f32 %v4170, %v4187
      %v4189 = vadd.f32 %v4188, 0.4994258
      %v4190 = vmul.f32 %v4170, %v4189
      %v4191 = vadd.f32 %v4190, 1.0
      %v4192 = vrcp.pop %v4191
      %v4193 = vmul.f32 %v4191, %v4192
      %v4194 = vsub.f32 1.0, %v4193
      %v4195 = vmul.f32 %v4192, %v4194
      %v4196 = vadd.f32 %v4192, %v4195
      %vm4197 = vweird.f32 %v4191
      %vm4198 = vweird.f32 %v4192
      %vm4199 = vmor %vm4197, %vm4198
      %v4200 = vsel %vm4199, %v4192, %v4196
      %v4201 = vand.u32 2147483647, %v4191
      %vm4202 = vcmp.eq.f32.partialorder %v4201, 8.507059e+37
      %v4203 = vand.u32 %v4191, 2147483648
      %v4204 = vor.u32 1.1754944e-38, %v4203
      %v4205 = vsel %vm4202, %v4204, %v4200
      %v4206 = vmul.f32 %v4181, %v4205
      %v4207 = vmin.f32 %v4206, 1.0
      %v4208 = vmax.f32 %v4207, -1.0
      %v4209 = vmul.f32 %v3670, %v3670
      %v4210 = vmin.f32 16.0, %v4209
      %v4211 = vmul.f32 %v4210, 2.1237322e-06
      %v4212 = vadd.f32 %v4211, 0.00028619796
      %v4213 = vmul.f32 %v4210, %v4212
      %v4214 = vadd.f32 %v4213, 0.0036580483
      %v4215 = vmul.f32 %v4210, %v4214
      %v4216 = vadd.f32 %v4215, 0.05243302
      %v4217 = vmul.f32 %v4210, %v4216
      %v4218 = vadd.f32 %v4217, 0.18741608
      %v4219 = vmul.f32 %v4210, %v4218
      %v4220 = vadd.f32 %v4219, 1.1283791
      %v4221 = vmul.f32 %v3670, %v4220
      %v4222 = vmul.f32 %v4210, 3.8918573e-05
      %v4223 = vadd.f32 %v4222, 0.001143296
      %v4224 = vmul.f32 %v4210, %v4223
      %v4225 = vadd.f32 %v4224, 0.014752088
      %v4226 = vmul.f32 %v4210, %v4225
      %v4227 = vadd.f32 %v4226, 0.112945676
      %v4228 = vmul.f32 %v4210, %v4227
      %v4229 = vadd.f32 %v4228, 0.4994258
      %v4230 = vmul.f32 %v4210, %v4229
      %v4231 = vadd.f32 %v4230, 1.0
      %v4232 = vrcp.pop %v4231
      %v4233 = vmul.f32 %v4231, %v4232
      %v4234 = vsub.f32 1.0, %v4233
      %v4235 = vmul.f32 %v4232, %v4234
      %v4236 = vadd.f32 %v4232, %v4235
      %vm4237 = vweird.f32 %v4231
      %vm4238 = vweird.f32 %v4232
      %vm4239 = vmor %vm4237, %vm4238
      %v4240 = vsel %vm4239, %v4232, %v4236
      %v4241 = vand.u32 2147483647, %v4231
      %vm4242 = vcmp.eq.f32.partialorder %v4241, 8.507059e+37
      %v4243 = vand.u32 %v4231, 2147483648
      %v4244 = vor.u32 1.1754944e-38, %v4243
      %v4245 = vsel %vm4242, %v4244, %v4240
      %v4246 = vmul.f32 %v4221, %v4245
      %v4247 = vmin.f32 %v4246, 1.0
      %v4248 = vmax.f32 %v4247, -1.0
      %v4249 = vmul.f32 %v3671, %v3671
      %v4250 = vmin.f32 16.0, %v4249
      %v4251 = vmul.f32 %v4250, 2.1237322e-06
      %v4252 = vadd.f32 %v4251, 0.00028619796
      %v4253 = vmul.f32 %v4250, %v4252
      %v4254 = vadd.f32 %v4253, 0.0036580483
      %v4255 = vmul.f32 %v4250, %v4254
      %v4256 = vadd.f32 %v4255, 0.05243302
      %v4257 = vmul.f32 %v4250, %v4256
      %v4258 = vadd.f32 %v4257, 0.18741608
      %v4259 = vmul.f32 %v4250, %v4258
      %v4260 = vadd.f32 %v4259, 1.1283791
      %v4261 = vmul.f32 %v3671, %v4260
      %v4262 = vmul.f32 %v4250, 3.8918573e-05
      %v4263 = vadd.f32 %v4262, 0.001143296
      %v4264 = vmul.f32 %v4250, %v4263
      %v4265 = vadd.f32 %v4264, 0.014752088
      %v4266 = vmul.f32 %v4250, %v4265
      %v4267 = vadd.f32 %v4266, 0.112945676
      %v4268 = vmul.f32 %v4250, %v4267
      %v4269 = vadd.f32 %v4268, 0.4994258
      %v4270 = vmul.f32 %v4250, %v4269
      %v4271 = vadd.f32 %v4270, 1.0
      %v4272 = vrcp.pop %v4271
      %v4273 = vmul.f32 %v4271, %v4272
      %v4274 = vsub.f32 1.0, %v4273
      %v4275 = vmul.f32 %v4272, %v4274
      %v4276 = vadd.f32 %v4272, %v4275
      %vm4277 = vweird.f32 %v4271
      %vm4278 = vweird.f32 %v4272
      %vm4279 = vmor %vm4277, %vm4278
      %v4280 = vsel %vm4279, %v4272, %v4276
      %v4281 = vand.u32 2147483647, %v4271
      %vm4282 = vcmp.eq.f32.partialorder %v4281, 8.507059e+37
      %v4283 = vand.u32 %v4271, 2147483648
      %v4284 = vor.u32 1.1754944e-38, %v4283
      %v4285 = vsel %vm4282, %v4284, %v4280
      %v4286 = vmul.f32 %v4261, %v4285
      %v4287 = vmin.f32 %v4286, 1.0
      %v4288 = vmax.f32 %v4287, -1.0
      %v4289 = vmul.f32 %v3672, %v3672
      %v4290 = vmin.f32 16.0, %v4289
      %v4291 = vmul.f32 %v4290, 2.1237322e-06
      %v4292 = vadd.f32 %v4291, 0.00028619796
      %v4293 = vmul.f32 %v4290, %v4292
      %v4294 = vadd.f32 %v4293, 0.0036580483
      %v4295 = vmul.f32 %v4290, %v4294
      %v4296 = vadd.f32 %v4295, 0.05243302
      %v4297 = vmul.f32 %v4290, %v4296
      %v4298 = vadd.f32 %v4297, 0.18741608
      %v4299 = vmul.f32 %v4290, %v4298
      %v4300 = vadd.f32 %v4299, 1.1283791
      %v4301 = vmul.f32 %v3672, %v4300
      %v4302 = vmul.f32 %v4290, 3.8918573e-05
      %v4303 = vadd.f32 %v4302, 0.001143296
      %v4304 = vmul.f32 %v4290, %v4303
      %v4305 = vadd.f32 %v4304, 0.014752088
      %v4306 = vmul.f32 %v4290, %v4305
      %v4307 = vadd.f32 %v4306, 0.112945676
      %v4308 = vmul.f32 %v4290, %v4307
      %v4309 = vadd.f32 %v4308, 0.4994258
      %v4310 = vmul.f32 %v4290, %v4309
      %v4311 = vadd.f32 %v4310, 1.0
      %v4312 = vrcp.pop %v4311
      %v4313 = vmul.f32 %v4311, %v4312
      %v4314 = vsub.f32 1.0, %v4313
      %v4315 = vmul.f32 %v4312, %v4314
      %v4316 = vadd.f32 %v4312, %v4315
      %vm4317 = vweird.f32 %v4311
      %vm4318 = vweird.f32 %v4312
      %vm4319 = vmor %vm4317, %vm4318
      %v4320 = vsel %vm4319, %v4312, %v4316
      %v4321 = vand.u32 2147483647, %v4311
      %vm4322 = vcmp.eq.f32.partialorder %v4321, 8.507059e+37
      %v4323 = vand.u32 %v4311, 2147483648
      %v4324 = vor.u32 1.1754944e-38, %v4323
      %v4325 = vsel %vm4322, %v4324, %v4320
      %v4326 = vmul.f32 %v4301, %v4325
      %v4327 = vmin.f32 %v4326, 1.0
      %v4328 = vmax.f32 %v4327, -1.0
      %v4329 = vmul.f32 %v3673, %v3673
      %v4330 = vmin.f32 16.0, %v4329
      %v4331 = vmul.f32 %v4330, 2.1237322e-06
      %v4332 = vadd.f32 %v4331, 0.00028619796
      %v4333 = vmul.f32 %v4330, %v4332
      %v4334 = vadd.f32 %v4333, 0.0036580483
      %v4335 = vmul.f32 %v4330, %v4334
      %v4336 = vadd.f32 %v4335, 0.05243302
      %v4337 = vmul.f32 %v4330, %v4336
      %v4338 = vadd.f32 %v4337, 0.18741608
      %v4339 = vmul.f32 %v4330, %v4338
      %v4340 = vadd.f32 %v4339, 1.1283791
      %v4341 = vmul.f32 %v3673, %v4340
      %v4342 = vmul.f32 %v4330, 3.8918573e-05
      %v4343 = vadd.f32 %v4342, 0.001143296
      %v4344 = vmul.f32 %v4330, %v4343
      %v4345 = vadd.f32 %v4344, 0.014752088
      %v4346 = vmul.f32 %v4330, %v4345
      %v4347 = vadd.f32 %v4346, 0.112945676
      %v4348 = vmul.f32 %v4330, %v4347
      %v4349 = vadd.f32 %v4348, 0.4994258
      %v4350 = vmul.f32 %v4330, %v4349
      %v4351 = vadd.f32 %v4350, 1.0
      %v4352 = vrcp.pop %v4351
      %v4353 = vmul.f32 %v4351, %v4352
      %v4354 = vsub.f32 1.0, %v4353
      %v4355 = vmul.f32 %v4352, %v4354
      %v4356 = vadd.f32 %v4352, %v4355
      %vm4357 = vweird.f32 %v4351
      %vm4358 = vweird.f32 %v4352
      %vm4359 = vmor %vm4357, %vm4358
      %v4360 = vsel %vm4359, %v4352, %v4356
      %v4361 = vand.u32 2147483647, %v4351
      %vm4362 = vcmp.eq.f32.partialorder %v4361, 8.507059e+37
      %v4363 = vand.u32 %v4351, 2147483648
      %v4364 = vor.u32 1.1754944e-38, %v4363
      %v4365 = vsel %vm4362, %v4364, %v4360
      %v4366 = vmul.f32 %v4341, %v4365
      %v4367 = vmin.f32 %v4366, 1.0
      %v4368 = vmax.f32 %v4367, -1.0
      %v4369 = vmul.f32 %v3674, %v3674
      %v4370 = vmin.f32 16.0, %v4369
      %v4371 = vmul.f32 %v4370, 2.1237322e-06
      %v4372 = vadd.f32 %v4371, 0.00028619796
      %v4373 = vmul.f32 %v4370, %v4372
      %v4374 = vadd.f32 %v4373, 0.0036580483
      %v4375 = vmul.f32 %v4370, %v4374
      %v4376 = vadd.f32 %v4375, 0.05243302
      %v4377 = vmul.f32 %v4370, %v4376
      %v4378 = vadd.f32 %v4377, 0.18741608
      %v4379 = vmul.f32 %v4370, %v4378
      %v4380 = vadd.f32 %v4379, 1.1283791
      %v4381 = vmul.f32 %v3674, %v4380
      %v4382 = vmul.f32 %v4370, 3.8918573e-05
      %v4383 = vadd.f32 %v4382, 0.001143296
      %v4384 = vmul.f32 %v4370, %v4383
      %v4385 = vadd.f32 %v4384, 0.014752088
      %v4386 = vmul.f32 %v4370, %v4385
      %v4387 = vadd.f32 %v4386, 0.112945676
      %v4388 = vmul.f32 %v4370, %v4387
      %v4389 = vadd.f32 %v4388, 0.4994258
      %v4390 = vmul.f32 %v4370, %v4389
      %v4391 = vadd.f32 %v4390, 1.0
      %v4392 = vrcp.pop %v4391
      %v4393 = vmul.f32 %v4391, %v4392
      %v4394 = vsub.f32 1.0, %v4393
      %v4395 = vmul.f32 %v4392, %v4394
      %v4396 = vadd.f32 %v4392, %v4395
      %vm4397 = vweird.f32 %v4391
      %vm4398 = vweird.f32 %v4392
      %vm4399 = vmor %vm4397, %vm4398
      %v4400 = vsel %vm4399, %v4392, %v4396
      %v4401 = vand.u32 2147483647, %v4391
      %vm4402 = vcmp.eq.f32.partialorder %v4401, 8.507059e+37
      %v4403 = vand.u32 %v4391, 2147483648
      %v4404 = vor.u32 1.1754944e-38, %v4403
      %v4405 = vsel %vm4402, %v4404, %v4400
      %v4406 = vmul.f32 %v4381, %v4405
      %v4407 = vmin.f32 %v4406, 1.0
      %v4408 = vmax.f32 %v4407, -1.0
      %v4409 = vmul.f32 %v3675, %v3675
      %v4410 = vmin.f32 16.0, %v4409
      %v4411 = vmul.f32 %v4410, 2.1237322e-06
      %v4412 = vadd.f32 %v4411, 0.00028619796
      %v4413 = vmul.f32 %v4410, %v4412
      %v4414 = vadd.f32 %v4413, 0.0036580483
      %v4415 = vmul.f32 %v4410, %v4414
      %v4416 = vadd.f32 %v4415, 0.05243302
      %v4417 = vmul.f32 %v4410, %v4416
      %v4418 = vadd.f32 %v4417, 0.18741608
      %v4419 = vmul.f32 %v4410, %v4418
      %v4420 = vadd.f32 %v4419, 1.1283791
      %v4421 = vmul.f32 %v3675, %v4420
      %v4422 = vmul.f32 %v4410, 3.8918573e-05
      %v4423 = vadd.f32 %v4422, 0.001143296
      %v4424 = vmul.f32 %v4410, %v4423
      %v4425 = vadd.f32 %v4424, 0.014752088
      %v4426 = vmul.f32 %v4410, %v4425
      %v4427 = vadd.f32 %v4426, 0.112945676
      %v4428 = vmul.f32 %v4410, %v4427
      %v4429 = vadd.f32 %v4428, 0.4994258
      %v4430 = vmul.f32 %v4410, %v4429
      %v4431 = vadd.f32 %v4430, 1.0
      %v4432 = vrcp.pop %v4431
      %v4433 = vmul.f32 %v4431, %v4432
      %v4434 = vsub.f32 1.0, %v4433
      %v4435 = vmul.f32 %v4432, %v4434
      %v4436 = vadd.f32 %v4432, %v4435
      %vm4437 = vweird.f32 %v4431
      %vm4438 = vweird.f32 %v4432
      %vm4439 = vmor %vm4437, %vm4438
      %v4440 = vsel %vm4439, %v4432, %v4436
      %v4441 = vand.u32 2147483647, %v4431
      %vm4442 = vcmp.eq.f32.partialorder %v4441, 8.507059e+37
      %v4443 = vand.u32 %v4431, 2147483648
      %v4444 = vor.u32 1.1754944e-38, %v4443
      %v4445 = vsel %vm4442, %v4444, %v4440
      %v4446 = vmul.f32 %v4421, %v4445
      %v4447 = vmin.f32 %v4446, 1.0
      %v4448 = vmax.f32 %v4447, -1.0
      %v4449 = vmul.f32 %v3676, %v3676
      %v4450 = vmin.f32 16.0, %v4449
      %v4451 = vmul.f32 %v4450, 2.1237322e-06
      %v4452 = vadd.f32 %v4451, 0.00028619796
      %v4453 = vmul.f32 %v4450, %v4452
      %v4454 = vadd.f32 %v4453, 0.0036580483
      %v4455 = vmul.f32 %v4450, %v4454
      %v4456 = vadd.f32 %v4455, 0.05243302
      %v4457 = vmul.f32 %v4450, %v4456
      %v4458 = vadd.f32 %v4457, 0.18741608
      %v4459 = vmul.f32 %v4450, %v4458
      %v4460 = vadd.f32 %v4459, 1.1283791
      %v4461 = vmul.f32 %v3676, %v4460
      %v4462 = vmul.f32 %v4450, 3.8918573e-05
      %v4463 = vadd.f32 %v4462, 0.001143296
      %v4464 = vmul.f32 %v4450, %v4463
      %v4465 = vadd.f32 %v4464, 0.014752088
      %v4466 = vmul.f32 %v4450, %v4465
      %v4467 = vadd.f32 %v4466, 0.112945676
      %v4468 = vmul.f32 %v4450, %v4467
      %v4469 = vadd.f32 %v4468, 0.4994258
      %v4470 = vmul.f32 %v4450, %v4469
      %v4471 = vadd.f32 %v4470, 1.0
      %v4472 = vrcp.pop %v4471
      %v4473 = vmul.f32 %v4471, %v4472
      %v4474 = vsub.f32 1.0, %v4473
      %v4475 = vmul.f32 %v4472, %v4474
      %v4476 = vadd.f32 %v4472, %v4475
      %vm4477 = vweird.f32 %v4471
      %vm4478 = vweird.f32 %v4472
      %vm4479 = vmor %vm4477, %vm4478
      %v4480 = vsel %vm4479, %v4472, %v4476
      %v4481 = vand.u32 2147483647, %v4471
      %vm4482 = vcmp.eq.f32.partialorder %v4481, 8.507059e+37
      %v4483 = vand.u32 %v4471, 2147483648
      %v4484 = vor.u32 1.1754944e-38, %v4483
      %v4485 = vsel %vm4482, %v4484, %v4480
      %v4486 = vmul.f32 %v4461, %v4485
      %v4487 = vmin.f32 %v4486, 1.0
      %v4488 = vmax.f32 %v4487, -1.0
      %v4489 = vmul.f32 %v3677, %v3677
      %v4490 = vmin.f32 16.0, %v4489
      %v4491 = vmul.f32 %v4490, 2.1237322e-06
      %v4492 = vadd.f32 %v4491, 0.00028619796
      %v4493 = vmul.f32 %v4490, %v4492
      %v4494 = vadd.f32 %v4493, 0.0036580483
      %v4495 = vmul.f32 %v4490, %v4494
      %v4496 = vadd.f32 %v4495, 0.05243302
      %v4497 = vmul.f32 %v4490, %v4496
      %v4498 = vadd.f32 %v4497, 0.18741608
      %v4499 = vmul.f32 %v4490, %v4498
      %v4500 = vadd.f32 %v4499, 1.1283791
      %v4501 = vmul.f32 %v3677, %v4500
      %v4502 = vmul.f32 %v4490, 3.8918573e-05
      %v4503 = vadd.f32 %v4502, 0.001143296
      %v4504 = vmul.f32 %v4490, %v4503
      %v4505 = vadd.f32 %v4504, 0.014752088
      %v4506 = vmul.f32 %v4490, %v4505
      %v4507 = vadd.f32 %v4506, 0.112945676
      %v4508 = vmul.f32 %v4490, %v4507
      %v4509 = vadd.f32 %v4508, 0.4994258
      %v4510 = vmul.f32 %v4490, %v4509
      %v4511 = vadd.f32 %v4510, 1.0
      %v4512 = vrcp.pop %v4511
      %v4513 = vmul.f32 %v4511, %v4512
      %v4514 = vsub.f32 1.0, %v4513
      %v4515 = vmul.f32 %v4512, %v4514
      %v4516 = vadd.f32 %v4512, %v4515
      %vm4517 = vweird.f32 %v4511
      %vm4518 = vweird.f32 %v4512
      %vm4519 = vmor %vm4517, %vm4518
      %v4520 = vsel %vm4519, %v4512, %v4516
      %v4521 = vand.u32 2147483647, %v4511
      %vm4522 = vcmp.eq.f32.partialorder %v4521, 8.507059e+37
      %v4523 = vand.u32 %v4511, 2147483648
      %v4524 = vor.u32 1.1754944e-38, %v4523
      %v4525 = vsel %vm4522, %v4524, %v4520
      %v4526 = vmul.f32 %v4501, %v4525
      %v4527 = vmin.f32 %v4526, 1.0
      %v4528 = vmax.f32 %v4527, -1.0
      %v4529 = vmul.f32 %v3678, %v3678
      %v4530 = vmin.f32 16.0, %v4529
      %v4531 = vmul.f32 %v4530, 2.1237322e-06
      %v4532 = vadd.f32 %v4531, 0.00028619796
      %v4533 = vmul.f32 %v4530, %v4532
      %v4534 = vadd.f32 %v4533, 0.0036580483
      %v4535 = vmul.f32 %v4530, %v4534
      %v4536 = vadd.f32 %v4535, 0.05243302
      %v4537 = vmul.f32 %v4530, %v4536
      %v4538 = vadd.f32 %v4537, 0.18741608
      %v4539 = vmul.f32 %v4530, %v4538
      %v4540 = vadd.f32 %v4539, 1.1283791
      %v4541 = vmul.f32 %v3678, %v4540
      %v4542 = vmul.f32 %v4530, 3.8918573e-05
      %v4543 = vadd.f32 %v4542, 0.001143296
      %v4544 = vmul.f32 %v4530, %v4543
      %v4545 = vadd.f32 %v4544, 0.014752088
      %v4546 = vmul.f32 %v4530, %v4545
      %v4547 = vadd.f32 %v4546, 0.112945676
      %v4548 = vmul.f32 %v4530, %v4547
      %v4549 = vadd.f32 %v4548, 0.4994258
      %v4550 = vmul.f32 %v4530, %v4549
      %v4551 = vadd.f32 %v4550, 1.0
      %v4552 = vrcp.pop %v4551
      %v4553 = vmul.f32 %v4551, %v4552
      %v4554 = vsub.f32 1.0, %v4553
      %v4555 = vmul.f32 %v4552, %v4554
      %v4556 = vadd.f32 %v4552, %v4555
      %vm4557 = vweird.f32 %v4551
      %vm4558 = vweird.f32 %v4552
      %vm4559 = vmor %vm4557, %vm4558
      %v4560 = vsel %vm4559, %v4552, %v4556
      %v4561 = vand.u32 2147483647, %v4551
      %vm4562 = vcmp.eq.f32.partialorder %v4561, 8.507059e+37
      %v4563 = vand.u32 %v4551, 2147483648
      %v4564 = vor.u32 1.1754944e-38, %v4563
      %v4565 = vsel %vm4562, %v4564, %v4560
      %v4566 = vmul.f32 %v4541, %v4565
      %v4567 = vmin.f32 %v4566, 1.0
      %v4568 = vmax.f32 %v4567, -1.0
      %v4569 = vmul.f32 %v3679, %v3679
      %v4570 = vmin.f32 16.0, %v4569
      %v4571 = vmul.f32 %v4570, 2.1237322e-06
      %v4572 = vadd.f32 %v4571, 0.00028619796
      %v4573 = vmul.f32 %v4570, %v4572
      %v4574 = vadd.f32 %v4573, 0.0036580483
      %v4575 = vmul.f32 %v4570, %v4574
      %v4576 = vadd.f32 %v4575, 0.05243302
      %v4577 = vmul.f32 %v4570, %v4576
      %v4578 = vadd.f32 %v4577, 0.18741608
      %v4579 = vmul.f32 %v4570, %v4578
      %v4580 = vadd.f32 %v4579, 1.1283791
      %v4581 = vmul.f32 %v3679, %v4580
      %v4582 = vmul.f32 %v4570, 3.8918573e-05
      %v4583 = vadd.f32 %v4582, 0.001143296
      %v4584 = vmul.f32 %v4570, %v4583
      %v4585 = vadd.f32 %v4584, 0.014752088
      %v4586 = vmul.f32 %v4570, %v4585
      %v4587 = vadd.f32 %v4586, 0.112945676
      %v4588 = vmul.f32 %v4570, %v4587
      %v4589 = vadd.f32 %v4588, 0.4994258
      %v4590 = vmul.f32 %v4570, %v4589
      %v4591 = vadd.f32 %v4590, 1.0
      %v4592 = vrcp.pop %v4591
      %v4593 = vmul.f32 %v4591, %v4592
      %v4594 = vsub.f32 1.0, %v4593
      %v4595 = vmul.f32 %v4592, %v4594
      %v4596 = vadd.f32 %v4592, %v4595
      %vm4597 = vweird.f32 %v4591
      %vm4598 = vweird.f32 %v4592
      %vm4599 = vmor %vm4597, %vm4598
      %v4600 = vsel %vm4599, %v4592, %v4596
      %v4601 = vand.u32 2147483647, %v4591
      %vm4602 = vcmp.eq.f32.partialorder %v4601, 8.507059e+37
      %v4603 = vand.u32 %v4591, 2147483648
      %v4604 = vor.u32 1.1754944e-38, %v4603
      %v4605 = vsel %vm4602, %v4604, %v4600
      %v4606 = vmul.f32 %v4581, %v4605
      %v4607 = vmin.f32 %v4606, 1.0
      %v4608 = vmax.f32 %v4607, -1.0
      %v4609 = vmul.f32 %v3680, %v3680
      %v4610 = vmin.f32 16.0, %v4609
      %v4611 = vmul.f32 %v4610, 2.1237322e-06
      %v4612 = vadd.f32 %v4611, 0.00028619796
      %v4613 = vmul.f32 %v4610, %v4612
      %v4614 = vadd.f32 %v4613, 0.0036580483
      %v4615 = vmul.f32 %v4610, %v4614
      %v4616 = vadd.f32 %v4615, 0.05243302
      %v4617 = vmul.f32 %v4610, %v4616
      %v4618 = vadd.f32 %v4617, 0.18741608
      %v4619 = vmul.f32 %v4610, %v4618
      %v4620 = vadd.f32 %v4619, 1.1283791
      %v4621 = vmul.f32 %v3680, %v4620
      %v4622 = vmul.f32 %v4610, 3.8918573e-05
      %v4623 = vadd.f32 %v4622, 0.001143296
      %v4624 = vmul.f32 %v4610, %v4623
      %v4625 = vadd.f32 %v4624, 0.014752088
      %v4626 = vmul.f32 %v4610, %v4625
      %v4627 = vadd.f32 %v4626, 0.112945676
      %v4628 = vmul.f32 %v4610, %v4627
      %v4629 = vadd.f32 %v4628, 0.4994258
      %v4630 = vmul.f32 %v4610, %v4629
      %v4631 = vadd.f32 %v4630, 1.0
      %v4632 = vrcp.pop %v4631
      %v4633 = vmul.f32 %v4631, %v4632
      %v4634 = vsub.f32 1.0, %v4633
      %v4635 = vmul.f32 %v4632, %v4634
      %v4636 = vadd.f32 %v4632, %v4635
      %vm4637 = vweird.f32 %v4631
      %vm4638 = vweird.f32 %v4632
      %vm4639 = vmor %vm4637, %vm4638
      %v4640 = vsel %vm4639, %v4632, %v4636
      %v4641 = vand.u32 2147483647, %v4631
      %vm4642 = vcmp.eq.f32.partialorder %v4641, 8.507059e+37
      %v4643 = vand.u32 %v4631, 2147483648
      %v4644 = vor.u32 1.1754944e-38, %v4643
      %v4645 = vsel %vm4642, %v4644, %v4640
      %v4646 = vmul.f32 %v4621, %v4645
      %v4647 = vmin.f32 %v4646, 1.0
      %v4648 = vmax.f32 %v4647, -1.0
      %v4649 = vmul.f32 %v3681, %v3681
      %v4650 = vmin.f32 16.0, %v4649
      %v4651 = vmul.f32 %v4650, 2.1237322e-06
      %v4652 = vadd.f32 %v4651, 0.00028619796
      %v4653 = vmul.f32 %v4650, %v4652
      %v4654 = vadd.f32 %v4653, 0.0036580483
      %v4655 = vmul.f32 %v4650, %v4654
      %v4656 = vadd.f32 %v4655, 0.05243302
      %v4657 = vmul.f32 %v4650, %v4656
      %v4658 = vadd.f32 %v4657, 0.18741608
      %v4659 = vmul.f32 %v4650, %v4658
      %v4660 = vadd.f32 %v4659, 1.1283791
      %v4661 = vmul.f32 %v3681, %v4660
      %v4662 = vmul.f32 %v4650, 3.8918573e-05
      %v4663 = vadd.f32 %v4662, 0.001143296
      %v4664 = vmul.f32 %v4650, %v4663
      %v4665 = vadd.f32 %v4664, 0.014752088
      %v4666 = vmul.f32 %v4650, %v4665
      %v4667 = vadd.f32 %v4666, 0.112945676
      %v4668 = vmul.f32 %v4650, %v4667
      %v4669 = vadd.f32 %v4668, 0.4994258
      %v4670 = vmul.f32 %v4650, %v4669
      %v4671 = vadd.f32 %v4670, 1.0
      %v4672 = vrcp.pop %v4671
      %v4673 = vmul.f32 %v4671, %v4672
      %v4674 = vsub.f32 1.0, %v4673
      %v4675 = vmul.f32 %v4672, %v4674
      %v4676 = vadd.f32 %v4672, %v4675
      %vm4677 = vweird.f32 %v4671
      %vm4678 = vweird.f32 %v4672
      %vm4679 = vmor %vm4677, %vm4678
      %v4680 = vsel %vm4679, %v4672, %v4676
      %v4681 = vand.u32 2147483647, %v4671
      %vm4682 = vcmp.eq.f32.partialorder %v4681, 8.507059e+37
      %v4683 = vand.u32 %v4671, 2147483648
      %v4684 = vor.u32 1.1754944e-38, %v4683
      %v4685 = vsel %vm4682, %v4684, %v4680
      %v4686 = vmul.f32 %v4661, %v4685
      %v4687 = vmin.f32 %v4686, 1.0
      %v4688 = vmax.f32 %v4687, -1.0
      %v4689 = vmul.f32 %v3682, %v3682
      %v4690 = vmin.f32 16.0, %v4689
      %v4691 = vmul.f32 %v4690, 2.1237322e-06
      %v4692 = vadd.f32 %v4691, 0.00028619796
      %v4693 = vmul.f32 %v4690, %v4692
      %v4694 = vadd.f32 %v4693, 0.0036580483
      %v4695 = vmul.f32 %v4690, %v4694
      %v4696 = vadd.f32 %v4695, 0.05243302
      %v4697 = vmul.f32 %v4690, %v4696
      %v4698 = vadd.f32 %v4697, 0.18741608
      %v4699 = vmul.f32 %v4690, %v4698
      %v4700 = vadd.f32 %v4699, 1.1283791
      %v4701 = vmul.f32 %v3682, %v4700
      %v4702 = vmul.f32 %v4690, 3.8918573e-05
      %v4703 = vadd.f32 %v4702, 0.001143296
      %v4704 = vmul.f32 %v4690, %v4703
      %v4705 = vadd.f32 %v4704, 0.014752088
      %v4706 = vmul.f32 %v4690, %v4705
      %v4707 = vadd.f32 %v4706, 0.112945676
      %v4708 = vmul.f32 %v4690, %v4707
      %v4709 = vadd.f32 %v4708, 0.4994258
      %v4710 = vmul.f32 %v4690, %v4709
      %v4711 = vadd.f32 %v4710, 1.0
      %v4712 = vrcp.pop %v4711
      %v4713 = vmul.f32 %v4711, %v4712
      %v4714 = vsub.f32 1.0, %v4713
      %v4715 = vmul.f32 %v4712, %v4714
      %v4716 = vadd.f32 %v4712, %v4715
      %vm4717 = vweird.f32 %v4711
      %vm4718 = vweird.f32 %v4712
      %vm4719 = vmor %vm4717, %vm4718
      %v4720 = vsel %vm4719, %v4712, %v4716
      %v4721 = vand.u32 2147483647, %v4711
      %vm4722 = vcmp.eq.f32.partialorder %v4721, 8.507059e+37
      %v4723 = vand.u32 %v4711, 2147483648
      %v4724 = vor.u32 1.1754944e-38, %v4723
      %v4725 = vsel %vm4722, %v4724, %v4720
      %v4726 = vmul.f32 %v4701, %v4725
      %v4727 = vmin.f32 %v4726, 1.0
      %v4728 = vmax.f32 %v4727, -1.0
      %v4729 = vmul.f32 %v3683, %v3683
      %v4730 = vmin.f32 16.0, %v4729
      %v4731 = vmul.f32 %v4730, 2.1237322e-06
      %v4732 = vadd.f32 %v4731, 0.00028619796
      %v4733 = vmul.f32 %v4730, %v4732
      %v4734 = vadd.f32 %v4733, 0.0036580483
      %v4735 = vmul.f32 %v4730, %v4734
      %v4736 = vadd.f32 %v4735, 0.05243302
      %v4737 = vmul.f32 %v4730, %v4736
      %v4738 = vadd.f32 %v4737, 0.18741608
      %v4739 = vmul.f32 %v4730, %v4738
      %v4740 = vadd.f32 %v4739, 1.1283791
      %v4741 = vmul.f32 %v3683, %v4740
      %v4742 = vmul.f32 %v4730, 3.8918573e-05
      %v4743 = vadd.f32 %v4742, 0.001143296
      %v4744 = vmul.f32 %v4730, %v4743
      %v4745 = vadd.f32 %v4744, 0.014752088
      %v4746 = vmul.f32 %v4730, %v4745
      %v4747 = vadd.f32 %v4746, 0.112945676
      %v4748 = vmul.f32 %v4730, %v4747
      %v4749 = vadd.f32 %v4748, 0.4994258
      %v4750 = vmul.f32 %v4730, %v4749
      %v4751 = vadd.f32 %v4750, 1.0
      %v4752 = vrcp.pop %v4751
      %v4753 = vmul.f32 %v4751, %v4752
      %v4754 = vsub.f32 1.0, %v4753
      %v4755 = vmul.f32 %v4752, %v4754
      %v4756 = vadd.f32 %v4752, %v4755
      %vm4757 = vweird.f32 %v4751
      %vm4758 = vweird.f32 %v4752
      %vm4759 = vmor %vm4757, %vm4758
      %v4760 = vsel %vm4759, %v4752, %v4756
      %v4761 = vand.u32 2147483647, %v4751
      %vm4762 = vcmp.eq.f32.partialorder %v4761, 8.507059e+37
      %v4763 = vand.u32 %v4751, 2147483648
      %v4764 = vor.u32 1.1754944e-38, %v4763
      %v4765 = vsel %vm4762, %v4764, %v4760
      %v4766 = vmul.f32 %v4741, %v4765
      %v4767 = vmin.f32 %v4766, 1.0
      %v4768 = vmax.f32 %v4767, -1.0
      %v4769 = vmul.f32 %v3684, %v3684
      %v4770 = vmin.f32 16.0, %v4769
      %v4771 = vmul.f32 %v4770, 2.1237322e-06
      %v4772 = vadd.f32 %v4771, 0.00028619796
      %v4773 = vmul.f32 %v4770, %v4772
      %v4774 = vadd.f32 %v4773, 0.0036580483
      %v4775 = vmul.f32 %v4770, %v4774
      %v4776 = vadd.f32 %v4775, 0.05243302
      %v4777 = vmul.f32 %v4770, %v4776
      %v4778 = vadd.f32 %v4777, 0.18741608
      %v4779 = vmul.f32 %v4770, %v4778
      %v4780 = vadd.f32 %v4779, 1.1283791
      %v4781 = vmul.f32 %v3684, %v4780
      %v4782 = vmul.f32 %v4770, 3.8918573e-05
      %v4783 = vadd.f32 %v4782, 0.001143296
      %v4784 = vmul.f32 %v4770, %v4783
      %v4785 = vadd.f32 %v4784, 0.014752088
      %v4786 = vmul.f32 %v4770, %v4785
      %v4787 = vadd.f32 %v4786, 0.112945676
      %v4788 = vmul.f32 %v4770, %v4787
      %v4789 = vadd.f32 %v4788, 0.4994258
      %v4790 = vmul.f32 %v4770, %v4789
      %v4791 = vadd.f32 %v4790, 1.0
      %v4792 = vrcp.pop %v4791
      %v4793 = vmul.f32 %v4791, %v4792
      %v4794 = vsub.f32 1.0, %v4793
      %v4795 = vmul.f32 %v4792, %v4794
      %v4796 = vadd.f32 %v4792, %v4795
      %vm4797 = vweird.f32 %v4791
      %vm4798 = vweird.f32 %v4792
      %vm4799 = vmor %vm4797, %vm4798
      %v4800 = vsel %vm4799, %v4792, %v4796
      %v4801 = vand.u32 2147483647, %v4791
      %vm4802 = vcmp.eq.f32.partialorder %v4801, 8.507059e+37
      %v4803 = vand.u32 %v4791, 2147483648
      %v4804 = vor.u32 1.1754944e-38, %v4803
      %v4805 = vsel %vm4802, %v4804, %v4800
      %v4806 = vmul.f32 %v4781, %v4805
      %v4807 = vmin.f32 %v4806, 1.0
      %v4808 = vmax.f32 %v4807, -1.0
      %v4809 = vmul.f32 %v3685, %v3685
      %v4810 = vmin.f32 16.0, %v4809
      %v4811 = vmul.f32 %v4810, 2.1237322e-06
      %v4812 = vadd.f32 %v4811, 0.00028619796
      %v4813 = vmul.f32 %v4810, %v4812
      %v4814 = vadd.f32 %v4813, 0.0036580483
      %v4815 = vmul.f32 %v4810, %v4814
      %v4816 = vadd.f32 %v4815, 0.05243302
      %v4817 = vmul.f32 %v4810, %v4816
      %v4818 = vadd.f32 %v4817, 0.18741608
      %v4819 = vmul.f32 %v4810, %v4818
      %v4820 = vadd.f32 %v4819, 1.1283791
      %v4821 = vmul.f32 %v3685, %v4820
      %v4822 = vmul.f32 %v4810, 3.8918573e-05
      %v4823 = vadd.f32 %v4822, 0.001143296
      %v4824 = vmul.f32 %v4810, %v4823
      %v4825 = vadd.f32 %v4824, 0.014752088
      %v4826 = vmul.f32 %v4810, %v4825
      %v4827 = vadd.f32 %v4826, 0.112945676
      %v4828 = vmul.f32 %v4810, %v4827
      %v4829 = vadd.f32 %v4828, 0.4994258
      %v4830 = vmul.f32 %v4810, %v4829
      %v4831 = vadd.f32 %v4830, 1.0
      %v4832 = vrcp.pop %v4831
      %v4833 = vmul.f32 %v4831, %v4832
      %v4834 = vsub.f32 1.0, %v4833
      %v4835 = vmul.f32 %v4832, %v4834
      %v4836 = vadd.f32 %v4832, %v4835
      %vm4837 = vweird.f32 %v4831
      %vm4838 = vweird.f32 %v4832
      %vm4839 = vmor %vm4837, %vm4838
      %v4840 = vsel %vm4839, %v4832, %v4836
      %v4841 = vand.u32 2147483647, %v4831
      %vm4842 = vcmp.eq.f32.partialorder %v4841, 8.507059e+37
      %v4843 = vand.u32 %v4831, 2147483648
      %v4844 = vor.u32 1.1754944e-38, %v4843
      %v4845 = vsel %vm4842, %v4844, %v4840
      %v4846 = vmul.f32 %v4821, %v4845
      %v4847 = vmin.f32 %v4846, 1.0
      %v4848 = vmax.f32 %v4847, -1.0
      %v4849 = vmul.f32 %v3686, %v3686
      %v4850 = vmin.f32 16.0, %v4849
      %v4851 = vmul.f32 %v4850, 2.1237322e-06
      %v4852 = vadd.f32 %v4851, 0.00028619796
      %v4853 = vmul.f32 %v4850, %v4852
      %v4854 = vadd.f32 %v4853, 0.0036580483
      %v4855 = vmul.f32 %v4850, %v4854
      %v4856 = vadd.f32 %v4855, 0.05243302
      %v4857 = vmul.f32 %v4850, %v4856
      %v4858 = vadd.f32 %v4857, 0.18741608
      %v4859 = vmul.f32 %v4850, %v4858
      %v4860 = vadd.f32 %v4859, 1.1283791
      %v4861 = vmul.f32 %v3686, %v4860
      %v4862 = vmul.f32 %v4850, 3.8918573e-05
      %v4863 = vadd.f32 %v4862, 0.001143296
      %v4864 = vmul.f32 %v4850, %v4863
      %v4865 = vadd.f32 %v4864, 0.014752088
      %v4866 = vmul.f32 %v4850, %v4865
      %v4867 = vadd.f32 %v4866, 0.112945676
      %v4868 = vmul.f32 %v4850, %v4867
      %v4869 = vadd.f32 %v4868, 0.4994258
      %v4870 = vmul.f32 %v4850, %v4869
      %v4871 = vadd.f32 %v4870, 1.0
      %v4872 = vrcp.pop %v4871
      %v4873 = vmul.f32 %v4871, %v4872
      %v4874 = vsub.f32 1.0, %v4873
      %v4875 = vmul.f32 %v4872, %v4874
      %v4876 = vadd.f32 %v4872, %v4875
      %vm4877 = vweird.f32 %v4871
      %vm4878 = vweird.f32 %v4872
      %vm4879 = vmor %vm4877, %vm4878
      %v4880 = vsel %vm4879, %v4872, %v4876
      %v4881 = vand.u32 2147483647, %v4871
      %vm4882 = vcmp.eq.f32.partialorder %v4881, 8.507059e+37
      %v4883 = vand.u32 %v4871, 2147483648
      %v4884 = vor.u32 1.1754944e-38, %v4883
      %v4885 = vsel %vm4882, %v4884, %v4880
      %v4886 = vmul.f32 %v4861, %v4885
      %v4887 = vmin.f32 %v4886, 1.0
      %v4888 = vmax.f32 %v4887, -1.0
      %v4889 = vmul.f32 %v3687, %v3687
      %v4890 = vmin.f32 16.0, %v4889
      %v4891 = vmul.f32 %v4890, 2.1237322e-06
      %v4892 = vadd.f32 %v4891, 0.00028619796
      %v4893 = vmul.f32 %v4890, %v4892
      %v4894 = vadd.f32 %v4893, 0.0036580483
      %v4895 = vmul.f32 %v4890, %v4894
      %v4896 = vadd.f32 %v4895, 0.05243302
      %v4897 = vmul.f32 %v4890, %v4896
      %v4898 = vadd.f32 %v4897, 0.18741608
      %v4899 = vmul.f32 %v4890, %v4898
      %v4900 = vadd.f32 %v4899, 1.1283791
      %v4901 = vmul.f32 %v3687, %v4900
      %v4902 = vmul.f32 %v4890, 3.8918573e-05
      %v4903 = vadd.f32 %v4902, 0.001143296
      %v4904 = vmul.f32 %v4890, %v4903
      %v4905 = vadd.f32 %v4904, 0.014752088
      %v4906 = vmul.f32 %v4890, %v4905
      %v4907 = vadd.f32 %v4906, 0.112945676
      %v4908 = vmul.f32 %v4890, %v4907
      %v4909 = vadd.f32 %v4908, 0.4994258
      %v4910 = vmul.f32 %v4890, %v4909
      %v4911 = vadd.f32 %v4910, 1.0
      %v4912 = vrcp.pop %v4911
      %v4913 = vmul.f32 %v4911, %v4912
      %v4914 = vsub.f32 1.0, %v4913
      %v4915 = vmul.f32 %v4912, %v4914
      %v4916 = vadd.f32 %v4912, %v4915
      %vm4917 = vweird.f32 %v4911
      %vm4918 = vweird.f32 %v4912
      %vm4919 = vmor %vm4917, %vm4918
      %v4920 = vsel %vm4919, %v4912, %v4916
      %v4921 = vand.u32 2147483647, %v4911
      %vm4922 = vcmp.eq.f32.partialorder %v4921, 8.507059e+37
      %v4923 = vand.u32 %v4911, 2147483648
      %v4924 = vor.u32 1.1754944e-38, %v4923
      %v4925 = vsel %vm4922, %v4924, %v4920
      %v4926 = vmul.f32 %v4901, %v4925
      %v4927 = vmin.f32 %v4926, 1.0
      %v4928 = vmax.f32 %v4927, -1.0
      %v4929 = vmul.f32 %v3688, %v3688
      %v4930 = vmin.f32 16.0, %v4929
      %v4931 = vmul.f32 %v4930, 2.1237322e-06
      %v4932 = vadd.f32 %v4931, 0.00028619796
      %v4933 = vmul.f32 %v4930, %v4932
      %v4934 = vadd.f32 %v4933, 0.0036580483
      %v4935 = vmul.f32 %v4930, %v4934
      %v4936 = vadd.f32 %v4935, 0.05243302
      %v4937 = vmul.f32 %v4930, %v4936
      %v4938 = vadd.f32 %v4937, 0.18741608
      %v4939 = vmul.f32 %v4930, %v4938
      %v4940 = vadd.f32 %v4939, 1.1283791
      %v4941 = vmul.f32 %v3688, %v4940
      %v4942 = vmul.f32 %v4930, 3.8918573e-05
      %v4943 = vadd.f32 %v4942, 0.001143296
      %v4944 = vmul.f32 %v4930, %v4943
      %v4945 = vadd.f32 %v4944, 0.014752088
      %v4946 = vmul.f32 %v4930, %v4945
      %v4947 = vadd.f32 %v4946, 0.112945676
      %v4948 = vmul.f32 %v4930, %v4947
      %v4949 = vadd.f32 %v4948, 0.4994258
      %v4950 = vmul.f32 %v4930, %v4949
      %v4951 = vadd.f32 %v4950, 1.0
      %v4952 = vrcp.pop %v4951
      %v4953 = vmul.f32 %v4951, %v4952
      %v4954 = vsub.f32 1.0, %v4953
      %v4955 = vmul.f32 %v4952, %v4954
      %v4956 = vadd.f32 %v4952, %v4955
      %vm4957 = vweird.f32 %v4951
      %vm4958 = vweird.f32 %v4952
      %vm4959 = vmor %vm4957, %vm4958
      %v4960 = vsel %vm4959, %v4952, %v4956
      %v4961 = vand.u32 2147483647, %v4951
      %vm4962 = vcmp.eq.f32.partialorder %v4961, 8.507059e+37
      %v4963 = vand.u32 %v4951, 2147483648
      %v4964 = vor.u32 1.1754944e-38, %v4963
      %v4965 = vsel %vm4962, %v4964, %v4960
      %v4966 = vmul.f32 %v4941, %v4965
      %v4967 = vmin.f32 %v4966, 1.0
      %v4968 = vmax.f32 %v4967, -1.0
      %v4969 = vadd.f32 %v3728, 1.0
      %v4970 = vadd.f32 %v3768, 1.0
      %v4971 = vadd.f32 %v3808, 1.0
      %v4972 = vadd.f32 %v3848, 1.0
      %v4973 = vadd.f32 %v3888, 1.0
      %v4974 = vadd.f32 %v3928, 1.0
      %v4975 = vadd.f32 %v3968, 1.0
      %v4976 = vadd.f32 %v4008, 1.0
      %v4977 = vadd.f32 %v4048, 1.0
      %v4978 = vadd.f32 %v4088, 1.0
      %v4979 = vadd.f32 %v4128, 1.0
      %v4980 = vadd.f32 %v4168, 1.0
      %v4981 = vadd.f32 %v4208, 1.0
      %v4982 = vadd.f32 %v4248, 1.0
      %v4983 = vadd.f32 %v4288, 1.0
      %v4984 = vadd.f32 %v4328, 1.0
      %v4985 = vadd.f32 %v4368, 1.0
      %v4986 = vadd.f32 %v4408, 1.0
      %v4987 = vadd.f32 %v4448, 1.0
      %v4988 = vadd.f32 %v4488, 1.0
      %v4989 = vadd.f32 %v4528, 1.0
      %v4990 = vadd.f32 %v4568, 1.0
      %v4991 = vadd.f32 %v4608, 1.0
      %v4992 = vadd.f32 %v4648, 1.0
      %v4993 = vadd.f32 %v4688, 1.0
      %v4994 = vadd.f32 %v4728, 1.0
      %v4995 = vadd.f32 %v4768, 1.0
      %v4996 = vadd.f32 %v4808, 1.0
      %v4997 = vadd.f32 %v4848, 1.0
      %v4998 = vadd.f32 %v4888, 1.0
      %v4999 = vadd.f32 %v4928, 1.0
      %v5000 = vadd.f32 %v4968, 1.0
      %v5001 = vmul.f32 %v3625, %v4969
      %v5002 = vmul.f32 %v3626, %v4970
      %v5003 = vmul.f32 %v3627, %v4971
      %v5004 = vmul.f32 %v3628, %v4972
      %v5005 = vmul.f32 %v3629, %v4973
      %v5006 = vmul.f32 %v3630, %v4974
      %v5007 = vmul.f32 %v3631, %v4975
      %v5008 = vmul.f32 %v3632, %v4976
      %v5009 = vmul.f32 %v3633, %v4977
      %v5010 = vmul.f32 %v3634, %v4978
      %v5011 = vmul.f32 %v3635, %v4979
      %v5012 = vmul.f32 %v3636, %v4980
      %v5013 = vmul.f32 %v3637, %v4981
      %v5014 = vmul.f32 %v3638, %v4982
      %v5015 = vmul.f32 %v3639, %v4983
      %v5016 = vmul.f32 %v3640, %v4984
      %v5017 = vmul.f32 %v3641, %v4985
      %v5018 = vmul.f32 %v3642, %v4986
      %v5019 = vmul.f32 %v3643, %v4987
      %v5020 = vmul.f32 %v3644, %v4988
      %v5021 = vmul.f32 %v3645, %v4989
      %v5022 = vmul.f32 %v3646, %v4990
      %v5023 = vmul.f32 %v3647, %v4991
      %v5024 = vmul.f32 %v3648, %v4992
      %v5025 = vmul.f32 %v3649, %v4993
      %v5026 = vmul.f32 %v3650, %v4994
      %v5027 = vmul.f32 %v3651, %v4995
      %v5028 = vmul.f32 %v3652, %v4996
      %v5029 = vmul.f32 %v3653, %v4997
      %v5030 = vmul.f32 %v3654, %v4998
      %v5031 = vmul.f32 %v3655, %v4999
      %v5032 = vmul.f32 %v3656, %v5000
      %v5033 = vld [vmem:[%s368] sm:$0x1]
      %v5035 = vperm.slane %v5033, 0
      %5069 = vrot.lane.b32.xlu0 %v5001, 8
      %v5070 = vpop.permute.xlu0 %5069
      %5071 = vrot.lane.b32.xlu0 %v5002, 8
      %v5072 = vpop.permute.xlu0 %5071
      %5073 = vrot.lane.b32.xlu0 %v5003, 8
      %v5074 = vpop.permute.xlu0 %5073
      %5075 = vrot.lane.b32.xlu0 %v5004, 8
      %v5076 = vpop.permute.xlu0 %5075
      %5077 = vrot.lane.b32.xlu0 %v5005, 8
      %v5078 = vpop.permute.xlu0 %5077
      %5079 = vrot.lane.b32.xlu0 %v5006, 8
      %v5080 = vpop.permute.xlu0 %5079
      %5081 = vrot.lane.b32.xlu0 %v5007, 8
      %v5082 = vpop.permute.xlu0 %5081
      %5083 = vrot.lane.b32.xlu0 %v5008, 8
      %v5084 = vpop.permute.xlu0 %5083
      %5085 = vrot.lane.b32.xlu0 %v5009, 8
      %v5086 = vpop.permute.xlu0 %5085
      %5087 = vrot.lane.b32.xlu0 %v5010, 8
      %v5088 = vpop.permute.xlu0 %5087
      %5089 = vrot.lane.b32.xlu0 %v5011, 8
      %v5090 = vpop.permute.xlu0 %5089
      %5091 = vrot.lane.b32.xlu0 %v5012, 8
      %v5092 = vpop.permute.xlu0 %5091
      %5093 = vrot.lane.b32.xlu0 %v5013, 8
      %v5094 = vpop.permute.xlu0 %5093
      %5095 = vrot.lane.b32.xlu0 %v5014, 8
      %v5096 = vpop.permute.xlu0 %5095
      %5097 = vrot.lane.b32.xlu0 %v5015, 8
      %v5098 = vpop.permute.xlu0 %5097
      %5099 = vrot.lane.b32.xlu0 %v5016, 8
      %v5100 = vpop.permute.xlu0 %5099
      %5101 = vrot.lane.b32.xlu0 %v5017, 8
      %v5102 = vpop.permute.xlu0 %5101
      %5103 = vrot.lane.b32.xlu0 %v5018, 8
      %v5104 = vpop.permute.xlu0 %5103
      %5105 = vrot.lane.b32.xlu0 %v5019, 8
      %v5106 = vpop.permute.xlu0 %5105
      %5107 = vrot.lane.b32.xlu0 %v5020, 8
      %v5108 = vpop.permute.xlu0 %5107
      %5109 = vrot.lane.b32.xlu0 %v5021, 8
      %v5110 = vpop.permute.xlu0 %5109
      %5111 = vrot.lane.b32.xlu0 %v5022, 8
      %v5112 = vpop.permute.xlu0 %5111
      %5113 = vrot.lane.b32.xlu0 %v5023, 8
      %v5114 = vpop.permute.xlu0 %5113
      %5115 = vrot.lane.b32.xlu0 %v5024, 8
      %v5116 = vpop.permute.xlu0 %5115
      %5117 = vrot.lane.b32.xlu0 %v5025, 8
      %v5118 = vpop.permute.xlu0 %5117
      %5119 = vrot.lane.b32.xlu0 %v5026, 8
      %v5120 = vpop.permute.xlu0 %5119
      %5121 = vrot.lane.b32.xlu0 %v5027, 8
      %v5122 = vpop.permute.xlu0 %5121
      %5123 = vrot.lane.b32.xlu0 %v5028, 8
      %v5124 = vpop.permute.xlu0 %5123
      %5125 = vrot.lane.b32.xlu0 %v5029, 8
      %v5126 = vpop.permute.xlu0 %5125
      %5127 = vrot.lane.b32.xlu0 %v5030, 8
      %v5128 = vpop.permute.xlu0 %5127
      %5129 = vrot.lane.b32.xlu0 %v5031, 8
      %v5130 = vpop.permute.xlu0 %5129
      %5131 = vrot.lane.b32.xlu0 %v5032, 8
      %v5132 = vpop.permute.xlu0 %5131
      %5165 = vrot.lane.b32.xlu0 %v374, 28
      %v5166 = vpop.permute.xlu0 %5165
      %5167 = vrot.lane.b32.xlu0 %v375, 28
      %v5168 = vpop.permute.xlu0 %5167
      %5169 = vrot.lane.b32.xlu0 %v376, 28
      %v5170 = vpop.permute.xlu0 %5169
      %5171 = vrot.lane.b32.xlu0 %v377, 28
      %v5172 = vpop.permute.xlu0 %5171
      %5173 = vrot.lane.b32.xlu0 %v378, 28
      %v5174 = vpop.permute.xlu0 %5173
      %5175 = vrot.lane.b32.xlu0 %v379, 28
      %v5176 = vpop.permute.xlu0 %5175
      %5177 = vrot.lane.b32.xlu0 %v380, 28
      %v5178 = vpop.permute.xlu0 %5177
      %5179 = vrot.lane.b32.xlu0 %v381, 28
      %v5180 = vpop.permute.xlu0 %5179
      %5181 = vrot.lane.b32.xlu0 %v382, 28
      %v5182 = vpop.permute.xlu0 %5181
      %5183 = vrot.lane.b32.xlu0 %v383, 28
      %v5184 = vpop.permute.xlu0 %5183
      %5185 = vrot.lane.b32.xlu0 %v384, 28
      %v5186 = vpop.permute.xlu0 %5185
      %5187 = vrot.lane.b32.xlu0 %v385, 28
      %v5188 = vpop.permute.xlu0 %5187
      %5189 = vrot.lane.b32.xlu0 %v386, 28
      %v5190 = vpop.permute.xlu0 %5189
      %5191 = vrot.lane.b32.xlu0 %v387, 28
      %v5192 = vpop.permute.xlu0 %5191
      %5193 = vrot.lane.b32.xlu0 %v388, 28
      %v5194 = vpop.permute.xlu0 %5193
      %5195 = vrot.lane.b32.xlu0 %v389, 28
      %v5196 = vpop.permute.xlu0 %5195
      %5197 = vrot.lane.b32.xlu0 %v390, 28
      %v5198 = vpop.permute.xlu0 %5197
      %5199 = vrot.lane.b32.xlu0 %v391, 28
      %v5200 = vpop.permute.xlu0 %5199
      %5201 = vrot.lane.b32.xlu0 %v392, 28
      %v5202 = vpop.permute.xlu0 %5201
      %5203 = vrot.lane.b32.xlu0 %v393, 28
      %v5204 = vpop.permute.xlu0 %5203
      %5205 = vrot.lane.b32.xlu0 %v394, 28
      %v5206 = vpop.permute.xlu0 %5205
      %5207 = vrot.lane.b32.xlu0 %v395, 28
      %v5208 = vpop.permute.xlu0 %5207
      %5209 = vrot.lane.b32.xlu0 %v396, 28
      %v5210 = vpop.permute.xlu0 %5209
      %5211 = vrot.lane.b32.xlu0 %v397, 28
      %v5212 = vpop.permute.xlu0 %5211
      %5213 = vrot.lane.b32.xlu0 %v398, 28
      %v5214 = vpop.permute.xlu0 %5213
      %5215 = vrot.lane.b32.xlu0 %v399, 28
      %v5216 = vpop.permute.xlu0 %5215
      %5217 = vrot.lane.b32.xlu0 %v400, 28
      %v5218 = vpop.permute.xlu0 %5217
      %5219 = vrot.lane.b32.xlu0 %v401, 28
      %v5220 = vpop.permute.xlu0 %5219
      %5221 = vrot.lane.b32.xlu0 %v402, 28
      %v5222 = vpop.permute.xlu0 %5221
      %5223 = vrot.lane.b32.xlu0 %v403, 28
      %v5224 = vpop.permute.xlu0 %5223
      %5225 = vrot.lane.b32.xlu0 %v404, 28
      %v5226 = vpop.permute.xlu0 %5225
      %5227 = vrot.lane.b32.xlu0 %v405, 28
      %v5228 = vpop.permute.xlu0 %5227
      %vm5261 = vcmask 64512
      %v5262 = vsel %vm5261, %v5035, %v5070
      %v5263 = vsel %vm5261, %v5035, %v5072
      %v5264 = vsel %vm5261, %v5035, %v5074
      %v5265 = vsel %vm5261, %v5035, %v5076
      %v5266 = vsel %vm5261, %v5035, %v5078
      %v5267 = vsel %vm5261, %v5035, %v5080
      %v5268 = vsel %vm5261, %v5035, %v5082
      %v5269 = vsel %vm5261, %v5035, %v5084
      %v5270 = vsel %vm5261, %v5035, %v5086
      %v5271 = vsel %vm5261, %v5035, %v5088
      %v5272 = vsel %vm5261, %v5035, %v5090
      %v5273 = vsel %vm5261, %v5035, %v5092
      %v5274 = vsel %vm5261, %v5035, %v5094
      %v5275 = vsel %vm5261, %v5035, %v5096
      %v5276 = vsel %vm5261, %v5035, %v5098
      %v5277 = vsel %vm5261, %v5035, %v5100
      %v5278 = vsel %vm5261, %v5035, %v5102
      %v5279 = vsel %vm5261, %v5035, %v5104
      %v5280 = vsel %vm5261, %v5035, %v5106
      %v5281 = vsel %vm5261, %v5035, %v5108
      %v5282 = vsel %vm5261, %v5035, %v5110
      %v5283 = vsel %vm5261, %v5035, %v5112
      %v5284 = vsel %vm5261, %v5035, %v5114
      %v5285 = vsel %vm5261, %v5035, %v5116
      %v5286 = vsel %vm5261, %v5035, %v5118
      %v5287 = vsel %vm5261, %v5035, %v5120
      %v5288 = vsel %vm5261, %v5035, %v5122
      %v5289 = vsel %vm5261, %v5035, %v5124
      %v5290 = vsel %vm5261, %v5035, %v5126
      %v5291 = vsel %vm5261, %v5035, %v5128
      %v5292 = vsel %vm5261, %v5035, %v5130
      %v5293 = vsel %vm5261, %v5035, %v5132
      %vm5294 = vcmask 326656
      %v5295 = vsel %vm5294, %v5262, %v5166
      %v5296 = vsel %vm5294, %v5263, %v5168
      %v5297 = vsel %vm5294, %v5264, %v5170
      %v5298 = vsel %vm5294, %v5265, %v5172
      %v5299 = vsel %vm5294, %v5266, %v5174
      %v5300 = vsel %vm5294, %v5267, %v5176
      %v5301 = vsel %vm5294, %v5268, %v5178
      %v5302 = vsel %vm5294, %v5269, %v5180
      %v5303 = vsel %vm5294, %v5270, %v5182
      %v5304 = vsel %vm5294, %v5271, %v5184
      %v5305 = vsel %vm5294, %v5272, %v5186
      %v5306 = vsel %vm5294, %v5273, %v5188
      %v5307 = vsel %vm5294, %v5274, %v5190
      %v5308 = vsel %vm5294, %v5275, %v5192
      %v5309 = vsel %vm5294, %v5276, %v5194
      %v5310 = vsel %vm5294, %v5277, %v5196
      %v5311 = vsel %vm5294, %v5278, %v5198
      %v5312 = vsel %vm5294, %v5279, %v5200
      %v5313 = vsel %vm5294, %v5280, %v5202
      %v5314 = vsel %vm5294, %v5281, %v5204
      %v5315 = vsel %vm5294, %v5282, %v5206
      %v5316 = vsel %vm5294, %v5283, %v5208
      %v5317 = vsel %vm5294, %v5284, %v5210
      %v5318 = vsel %vm5294, %v5285, %v5212
      %v5319 = vsel %vm5294, %v5286, %v5214
      %v5320 = vsel %vm5294, %v5287, %v5216
      %v5321 = vsel %vm5294, %v5288, %v5218
      %v5322 = vsel %vm5294, %v5289, %v5220
      %v5323 = vsel %vm5294, %v5290, %v5222
      %v5324 = vsel %vm5294, %v5291, %v5224
      %v5325 = vsel %vm5294, %v5292, %v5226
      %v5326 = vsel %vm5294, %v5293, %v5228
      %v5359 = vrot.slane %v5295, 7
      %v5360 = vrot.slane %v5296, 7
      %v5361 = vsel %vm2068, %v5359, %v5360
      %v5362 = vrot.slane %v5297, 7
      %v5363 = vrot.slane %v5298, 7
      %v5364 = vsel %vm2068, %v5362, %v5363
      %v5365 = vrot.slane %v5299, 7
      %v5366 = vrot.slane %v5300, 7
      %v5367 = vsel %vm2068, %v5365, %v5366
      %v5368 = vrot.slane %v5301, 7
      %v5369 = vrot.slane %v5302, 7
      %v5370 = vsel %vm2068, %v5368, %v5369
      %v5371 = vrot.slane %v5303, 7
      %v5372 = vrot.slane %v5304, 7
      %v5373 = vsel %vm2068, %v5371, %v5372
      %v5374 = vrot.slane %v5305, 7
      %v5375 = vrot.slane %v5306, 7
      %v5376 = vsel %vm2068, %v5374, %v5375
      %v5377 = vrot.slane %v5307, 7
      %v5378 = vrot.slane %v5308, 7
      %v5379 = vsel %vm2068, %v5377, %v5378
      %v5380 = vrot.slane %v5309, 7
      %v5381 = vrot.slane %v5310, 7
      %v5382 = vsel %vm2068, %v5380, %v5381
      %v5383 = vrot.slane %v5311, 7
      %v5384 = vrot.slane %v5312, 7
      %v5385 = vsel %vm2068, %v5383, %v5384
      %v5386 = vrot.slane %v5313, 7
      %v5387 = vrot.slane %v5314, 7
      %v5388 = vsel %vm2068, %v5386, %v5387
      %v5389 = vrot.slane %v5315, 7
      %v5390 = vrot.slane %v5316, 7
      %v5391 = vsel %vm2068, %v5389, %v5390
      %v5392 = vrot.slane %v5317, 7
      %v5393 = vrot.slane %v5318, 7
      %v5394 = vsel %vm2068, %v5392, %v5393
      %v5395 = vrot.slane %v5319, 7
      %v5396 = vrot.slane %v5320, 7
      %v5397 = vsel %vm2068, %v5395, %v5396
      %v5398 = vrot.slane %v5321, 7
      %v5399 = vrot.slane %v5322, 7
      %v5400 = vsel %vm2068, %v5398, %v5399
      %v5401 = vrot.slane %v5323, 7
      %v5402 = vrot.slane %v5324, 7
      %v5403 = vsel %vm2068, %v5401, %v5402
      %v5404 = vrot.slane %v5325, 7
      %v5405 = vrot.slane %v5326, 7
      %v5406 = vsel %vm2068, %v5404, %v5405
      %v5454 = vsel %vm2068, 0.0, %v5359
      %v5455 = vsel %vm2068, 0.0, %v5362
      %v5456 = vsel %vm2068, 0.0, %v5365
      %v5457 = vsel %vm2068, 0.0, %v5368
      %v5458 = vsel %vm2068, 0.0, %v5371
      %v5459 = vsel %vm2068, 0.0, %v5374
      %v5460 = vsel %vm2068, 0.0, %v5377
      %v5461 = vsel %vm2068, 0.0, %v5380
      %v5462 = vsel %vm2068, 0.0, %v5383
      %v5463 = vsel %vm2068, 0.0, %v5386
      %v5464 = vsel %vm2068, 0.0, %v5389
      %v5465 = vsel %vm2068, 0.0, %v5392
      %v5466 = vsel %vm2068, 0.0, %v5395
      %v5467 = vsel %vm2068, 0.0, %v5398
      %v5468 = vsel %vm2068, 0.0, %v5401
      %v5469 = vsel %vm2068, 0.0, %v5404
      %v5470 = vsel %vm2068, %v5360, 0.0
      %v5471 = vsel %vm2068, %v5363, 0.0
      %v5472 = vsel %vm2068, %v5366, 0.0
      %v5473 = vsel %vm2068, %v5369, 0.0
      %v5474 = vsel %vm2068, %v5372, 0.0
      %v5475 = vsel %vm2068, %v5375, 0.0
      %v5476 = vsel %vm2068, %v5378, 0.0
      %v5477 = vsel %vm2068, %v5381, 0.0
      %v5478 = vsel %vm2068, %v5384, 0.0
      %v5479 = vsel %vm2068, %v5387, 0.0
      %v5480 = vsel %vm2068, %v5390, 0.0
      %v5481 = vsel %vm2068, %v5393, 0.0
      %v5482 = vsel %vm2068, %v5396, 0.0
      %v5483 = vsel %vm2068, %v5399, 0.0
      %v5484 = vsel %vm2068, %v5402, 0.0
      %v5485 = vsel %vm2068, %v5405, 0.0
      %v5516 = vrot.slane %v5454, 1
      %v5517 = vrot.slane %v5361, 1
      %v5518 = vsel %vm2227, %v5516, %v5517
      %v5519 = vrot.slane %v5470, 1
      %v5520 = vsel %vm2227, %v5517, %v5519
      %v5521 = vrot.slane %v5455, 1
      %v5522 = vrot.slane %v5364, 1
      %v5523 = vsel %vm2227, %v5521, %v5522
      %v5524 = vrot.slane %v5471, 1
      %v5525 = vsel %vm2227, %v5522, %v5524
      %v5526 = vrot.slane %v5456, 1
      %v5527 = vrot.slane %v5367, 1
      %v5528 = vsel %vm2227, %v5526, %v5527
      %v5529 = vrot.slane %v5472, 1
      %v5530 = vsel %vm2227, %v5527, %v5529
      %v5531 = vrot.slane %v5457, 1
      %v5532 = vrot.slane %v5370, 1
      %v5533 = vsel %vm2227, %v5531, %v5532
      %v5534 = vrot.slane %v5473, 1
      %v5535 = vsel %vm2227, %v5532, %v5534
      %v5536 = vrot.slane %v5458, 1
      %v5537 = vrot.slane %v5373, 1
      %v5538 = vsel %vm2227, %v5536, %v5537
      %v5539 = vrot.slane %v5474, 1
      %v5540 = vsel %vm2227, %v5537, %v5539
      %v5541 = vrot.slane %v5459, 1
      %v5542 = vrot.slane %v5376, 1
      %v5543 = vsel %vm2227, %v5541, %v5542
      %v5544 = vrot.slane %v5475, 1
      %v5545 = vsel %vm2227, %v5542, %v5544
      %v5546 = vrot.slane %v5460, 1
      %v5547 = vrot.slane %v5379, 1
      %v5548 = vsel %vm2227, %v5546, %v5547
      %v5549 = vrot.slane %v5476, 1
      %v5550 = vsel %vm2227, %v5547, %v5549
      %v5551 = vrot.slane %v5461, 1
      %v5552 = vrot.slane %v5382, 1
      %v5553 = vsel %vm2227, %v5551, %v5552
      %v5554 = vrot.slane %v5477, 1
      %v5555 = vsel %vm2227, %v5552, %v5554
      %v5556 = vrot.slane %v5462, 1
      %v5557 = vrot.slane %v5385, 1
      %v5558 = vsel %vm2227, %v5556, %v5557
      %v5559 = vrot.slane %v5478, 1
      %v5560 = vsel %vm2227, %v5557, %v5559
      %v5561 = vrot.slane %v5463, 1
      %v5562 = vrot.slane %v5388, 1
      %v5563 = vsel %vm2227, %v5561, %v5562
      %v5564 = vrot.slane %v5479, 1
      %v5565 = vsel %vm2227, %v5562, %v5564
      %v5566 = vrot.slane %v5464, 1
      %v5567 = vrot.slane %v5391, 1
      %v5568 = vsel %vm2227, %v5566, %v5567
      %v5569 = vrot.slane %v5480, 1
      %v5570 = vsel %vm2227, %v5567, %v5569
      %v5571 = vrot.slane %v5465, 1
      %v5572 = vrot.slane %v5394, 1
      %v5573 = vsel %vm2227, %v5571, %v5572
      %v5574 = vrot.slane %v5481, 1
      %v5575 = vsel %vm2227, %v5572, %v5574
      %v5576 = vrot.slane %v5466, 1
      %v5577 = vrot.slane %v5397, 1
      %v5578 = vsel %vm2227, %v5576, %v5577
      %v5579 = vrot.slane %v5482, 1
      %v5580 = vsel %vm2227, %v5577, %v5579
      %v5581 = vrot.slane %v5467, 1
      %v5582 = vrot.slane %v5400, 1
      %v5583 = vsel %vm2227, %v5581, %v5582
      %v5584 = vrot.slane %v5483, 1
      %v5585 = vsel %vm2227, %v5582, %v5584
      %v5586 = vrot.slane %v5468, 1
      %v5587 = vrot.slane %v5403, 1
      %v5588 = vsel %vm2227, %v5586, %v5587
      %v5589 = vrot.slane %v5484, 1
      %v5590 = vsel %vm2227, %v5587, %v5589
      %v5591 = vrot.slane %v5454, 2
      %v5592 = vrot.slane %v5361, 2
      %v5593 = vsel %vm2305, %v5591, %v5592
      %v5594 = vrot.slane %v5470, 2
      %v5595 = vsel %vm2305, %v5592, %v5594
      %v5596 = vrot.slane %v5455, 2
      %v5597 = vrot.slane %v5364, 2
      %v5598 = vsel %vm2305, %v5596, %v5597
      %v5599 = vrot.slane %v5471, 2
      %v5600 = vsel %vm2305, %v5597, %v5599
      %v5601 = vrot.slane %v5456, 2
      %v5602 = vrot.slane %v5367, 2
      %v5603 = vsel %vm2305, %v5601, %v5602
      %v5604 = vrot.slane %v5472, 2
      %v5605 = vsel %vm2305, %v5602, %v5604
      %v5606 = vrot.slane %v5457, 2
      %v5607 = vrot.slane %v5370, 2
      %v5608 = vsel %vm2305, %v5606, %v5607
      %v5609 = vrot.slane %v5473, 2
      %v5610 = vsel %vm2305, %v5607, %v5609
      %v5611 = vrot.slane %v5458, 2
      %v5612 = vrot.slane %v5373, 2
      %v5613 = vsel %vm2305, %v5611, %v5612
      %v5614 = vrot.slane %v5474, 2
      %v5615 = vsel %vm2305, %v5612, %v5614
      %v5616 = vrot.slane %v5459, 2
      %v5617 = vrot.slane %v5376, 2
      %v5618 = vsel %vm2305, %v5616, %v5617
      %v5619 = vrot.slane %v5475, 2
      %v5620 = vsel %vm2305, %v5617, %v5619
      %v5621 = vrot.slane %v5460, 2
      %v5622 = vrot.slane %v5379, 2
      %v5623 = vsel %vm2305, %v5621, %v5622
      %v5624 = vrot.slane %v5476, 2
      %v5625 = vsel %vm2305, %v5622, %v5624
      %v5626 = vrot.slane %v5461, 2
      %v5627 = vrot.slane %v5382, 2
      %v5628 = vsel %vm2305, %v5626, %v5627
      %v5629 = vrot.slane %v5477, 2
      %v5630 = vsel %vm2305, %v5627, %v5629
      %v5631 = vrot.slane %v5462, 2
      %v5632 = vrot.slane %v5385, 2
      %v5633 = vsel %vm2305, %v5631, %v5632
      %v5634 = vrot.slane %v5478, 2
      %v5635 = vsel %vm2305, %v5632, %v5634
      %v5636 = vrot.slane %v5463, 2
      %v5637 = vrot.slane %v5388, 2
      %v5638 = vsel %vm2305, %v5636, %v5637
      %v5639 = vrot.slane %v5479, 2
      %v5640 = vsel %vm2305, %v5637, %v5639
      %v5641 = vrot.slane %v5464, 2
      %v5642 = vrot.slane %v5391, 2
      %v5643 = vsel %vm2305, %v5641, %v5642
      %v5644 = vrot.slane %v5480, 2
      %v5645 = vsel %vm2305, %v5642, %v5644
      %v5646 = vrot.slane %v5465, 2
      %v5647 = vrot.slane %v5394, 2
      %v5648 = vsel %vm2305, %v5646, %v5647
      %v5649 = vrot.slane %v5481, 2
      %v5650 = vsel %vm2305, %v5647, %v5649
      %v5651 = vrot.slane %v5466, 2
      %v5652 = vrot.slane %v5397, 2
      %v5653 = vsel %vm2305, %v5651, %v5652
      %v5654 = vrot.slane %v5482, 2
      %v5655 = vsel %vm2305, %v5652, %v5654
      %v5656 = vrot.slane %v5467, 2
      %v5657 = vrot.slane %v5400, 2
      %v5658 = vsel %vm2305, %v5656, %v5657
      %v5659 = vrot.slane %v5483, 2
      %v5660 = vsel %vm2305, %v5657, %v5659
      %v5661 = vrot.slane %v5468, 2
      %v5662 = vrot.slane %v5403, 2
      %v5663 = vsel %vm2305, %v5661, %v5662
      %v5664 = vrot.slane %v5484, 2
      %v5665 = vsel %vm2305, %v5662, %v5664
      %v5668 = vrot.slane %v5469, 1
      %v5669 = vrot.slane %v5406, 1
      %v5670 = vsel %vm2227, %v5668, %v5669
      %v5671 = vrot.slane %v5485, 1
      %v5672 = vsel %vm2227, %v5669, %v5671
      %v5673 = vrot.slane %v5469, 2
      %v5674 = vrot.slane %v5406, 2
      %v5675 = vsel %vm2305, %v5673, %v5674
      %v5676 = vrot.slane %v5485, 2
      %v5677 = vsel %vm2305, %v5674, %v5676
      %5678 = vrot.lane.b32.xlu0 %v2229, 43
      %v5679 = vpop.permute.xlu0 %5678
      %5680 = vrot.lane.b32.xlu0 %v5518, 43
      %v5681 = vpop.permute.xlu0 %5680
      %5682 = vrot.lane.b32.xlu0 %v5520, 43
      %v5683 = vpop.permute.xlu0 %5682
      %5684 = vrot.lane.b32.xlu0 %v5523, 43
      %v5685 = vpop.permute.xlu0 %5684
      %5686 = vrot.lane.b32.xlu0 %v5525, 43
      %v5687 = vpop.permute.xlu0 %5686
      %5688 = vrot.lane.b32.xlu0 %v5528, 43
      %v5689 = vpop.permute.xlu0 %5688
      %5690 = vrot.lane.b32.xlu0 %v5530, 43
      %v5691 = vpop.permute.xlu0 %5690
      %5692 = vrot.lane.b32.xlu0 %v5533, 43
      %v5693 = vpop.permute.xlu0 %5692
      %5694 = vrot.lane.b32.xlu0 %v5535, 43
      %v5695 = vpop.permute.xlu0 %5694
      %5696 = vrot.lane.b32.xlu0 %v5538, 43
      %v5697 = vpop.permute.xlu0 %5696
      %5698 = vrot.lane.b32.xlu0 %v5540, 43
      %v5699 = vpop.permute.xlu0 %5698
      %5700 = vrot.lane.b32.xlu0 %v5543, 43
      %v5701 = vpop.permute.xlu0 %5700
      %5702 = vrot.lane.b32.xlu0 %v5545, 43
      %v5703 = vpop.permute.xlu0 %5702
      %5704 = vrot.lane.b32.xlu0 %v5548, 43
      %v5705 = vpop.permute.xlu0 %5704
      %5706 = vrot.lane.b32.xlu0 %v5550, 43
      %v5707 = vpop.permute.xlu0 %5706
      %5708 = vrot.lane.b32.xlu0 %v5553, 43
      %v5709 = vpop.permute.xlu0 %5708
      %5710 = vrot.lane.b32.xlu0 %v5555, 43
      %v5711 = vpop.permute.xlu0 %5710
      %5712 = vrot.lane.b32.xlu0 %v5558, 43
      %v5713 = vpop.permute.xlu0 %5712
      %5714 = vrot.lane.b32.xlu0 %v5560, 43
      %v5715 = vpop.permute.xlu0 %5714
      %5716 = vrot.lane.b32.xlu0 %v5563, 43
      %v5717 = vpop.permute.xlu0 %5716
      %5718 = vrot.lane.b32.xlu0 %v5565, 43
      %v5719 = vpop.permute.xlu0 %5718
      %5720 = vrot.lane.b32.xlu0 %v5568, 43
      %v5721 = vpop.permute.xlu0 %5720
      %5722 = vrot.lane.b32.xlu0 %v5570, 43
      %v5723 = vpop.permute.xlu0 %5722
      %5724 = vrot.lane.b32.xlu0 %v5573, 43
      %v5725 = vpop.permute.xlu0 %5724
      %5726 = vrot.lane.b32.xlu0 %v5575, 43
      %v5727 = vpop.permute.xlu0 %5726
      %5728 = vrot.lane.b32.xlu0 %v5578, 43
      %v5729 = vpop.permute.xlu0 %5728
      %5730 = vrot.lane.b32.xlu0 %v5580, 43
      %v5731 = vpop.permute.xlu0 %5730
      %5732 = vrot.lane.b32.xlu0 %v5583, 43
      %v5733 = vpop.permute.xlu0 %5732
      %5734 = vrot.lane.b32.xlu0 %v5585, 43
      %v5735 = vpop.permute.xlu0 %5734
      %5736 = vrot.lane.b32.xlu0 %v5588, 43
      %v5737 = vpop.permute.xlu0 %5736
      %5738 = vrot.lane.b32.xlu0 %v5590, 43
      %v5739 = vpop.permute.xlu0 %5738
      %5771 = vrot.lane.b32.xlu0 %v2307, 86
      %v5772 = vpop.permute.xlu0 %5771
      %5773 = vrot.lane.b32.xlu0 %v5593, 86
      %v5774 = vpop.permute.xlu0 %5773
      %5775 = vrot.lane.b32.xlu0 %v5595, 86
      %v5776 = vpop.permute.xlu0 %5775
      %5777 = vrot.lane.b32.xlu0 %v5598, 86
      %v5778 = vpop.permute.xlu0 %5777
      %5779 = vrot.lane.b32.xlu0 %v5600, 86
      %v5780 = vpop.permute.xlu0 %5779
      %5781 = vrot.lane.b32.xlu0 %v5603, 86
      %v5782 = vpop.permute.xlu0 %5781
      %5783 = vrot.lane.b32.xlu0 %v5605, 86
      %v5784 = vpop.permute.xlu0 %5783
      %5785 = vrot.lane.b32.xlu0 %v5608, 86
      %v5786 = vpop.permute.xlu0 %5785
      %5787 = vrot.lane.b32.xlu0 %v5610, 86
      %v5788 = vpop.permute.xlu0 %5787
      %5789 = vrot.lane.b32.xlu0 %v5613, 86
      %v5790 = vpop.permute.xlu0 %5789
      %5791 = vrot.lane.b32.xlu0 %v5615, 86
      %v5792 = vpop.permute.xlu0 %5791
      %5793 = vrot.lane.b32.xlu0 %v5618, 86
      %v5794 = vpop.permute.xlu0 %5793
      %5795 = vrot.lane.b32.xlu0 %v5620, 86
      %v5796 = vpop.permute.xlu0 %5795
      %5797 = vrot.lane.b32.xlu0 %v5623, 86
      %v5798 = vpop.permute.xlu0 %5797
      %5799 = vrot.lane.b32.xlu0 %v5625, 86
      %v5800 = vpop.permute.xlu0 %5799
      %5801 = vrot.lane.b32.xlu0 %v5628, 86
      %v5802 = vpop.permute.xlu0 %5801
      %5803 = vrot.lane.b32.xlu0 %v5630, 86
      %v5804 = vpop.permute.xlu0 %5803
      %5805 = vrot.lane.b32.xlu0 %v5633, 86
      %v5806 = vpop.permute.xlu0 %5805
      %5807 = vrot.lane.b32.xlu0 %v5635, 86
      %v5808 = vpop.permute.xlu0 %5807
      %5809 = vrot.lane.b32.xlu0 %v5638, 86
      %v5810 = vpop.permute.xlu0 %5809
      %5811 = vrot.lane.b32.xlu0 %v5640, 86
      %v5812 = vpop.permute.xlu0 %5811
      %5813 = vrot.lane.b32.xlu0 %v5643, 86
      %v5814 = vpop.permute.xlu0 %5813
      %5815 = vrot.lane.b32.xlu0 %v5645, 86
      %v5816 = vpop.permute.xlu0 %5815
      %5817 = vrot.lane.b32.xlu0 %v5648, 86
      %v5818 = vpop.permute.xlu0 %5817
      %5819 = vrot.lane.b32.xlu0 %v5650, 86
      %v5820 = vpop.permute.xlu0 %5819
      %5821 = vrot.lane.b32.xlu0 %v5653, 86
      %v5822 = vpop.permute.xlu0 %5821
      %5823 = vrot.lane.b32.xlu0 %v5655, 86
      %v5824 = vpop.permute.xlu0 %5823
      %5825 = vrot.lane.b32.xlu0 %v5658, 86
      %v5826 = vpop.permute.xlu0 %5825
      %5827 = vrot.lane.b32.xlu0 %v5660, 86
      %v5828 = vpop.permute.xlu0 %5827
      %5829 = vrot.lane.b32.xlu0 %v5663, 86
      %v5830 = vpop.permute.xlu0 %5829
      %5831 = vrot.lane.b32.xlu0 %v5665, 86
      %v5832 = vpop.permute.xlu0 %5831
      %5864 = vrot.lane.b32.xlu0 %v5454, 1
      %v5865 = vpop.permute.xlu0 %5864
      %5866 = vrot.lane.b32.xlu0 %v5361, 1
      %v5867 = vpop.permute.xlu0 %5866
      %5868 = vrot.lane.b32.xlu0 %v5455, 1
      %v5869 = vpop.permute.xlu0 %5868
      %5870 = vrot.lane.b32.xlu0 %v5364, 1
      %v5871 = vpop.permute.xlu0 %5870
      %5872 = vrot.lane.b32.xlu0 %v5456, 1
      %v5873 = vpop.permute.xlu0 %5872
      %5874 = vrot.lane.b32.xlu0 %v5367, 1
      %v5875 = vpop.permute.xlu0 %5874
      %5876 = vrot.lane.b32.xlu0 %v5457, 1
      %v5877 = vpop.permute.xlu0 %5876
      %5878 = vrot.lane.b32.xlu0 %v5370, 1
      %v5879 = vpop.permute.xlu0 %5878
      %5880 = vrot.lane.b32.xlu0 %v5458, 1
      %v5881 = vpop.permute.xlu0 %5880
      %5882 = vrot.lane.b32.xlu0 %v5373, 1
      %v5883 = vpop.permute.xlu0 %5882
      %5884 = vrot.lane.b32.xlu0 %v5459, 1
      %v5885 = vpop.permute.xlu0 %5884
      %5886 = vrot.lane.b32.xlu0 %v5376, 1
      %v5887 = vpop.permute.xlu0 %5886
      %5888 = vrot.lane.b32.xlu0 %v5460, 1
      %v5889 = vpop.permute.xlu0 %5888
      %5890 = vrot.lane.b32.xlu0 %v5379, 1
      %v5891 = vpop.permute.xlu0 %5890
      %5892 = vrot.lane.b32.xlu0 %v5461, 1
      %v5893 = vpop.permute.xlu0 %5892
      %5894 = vrot.lane.b32.xlu0 %v5382, 1
      %v5895 = vpop.permute.xlu0 %5894
      %5896 = vrot.lane.b32.xlu0 %v5462, 1
      %v5897 = vpop.permute.xlu0 %5896
      %5898 = vrot.lane.b32.xlu0 %v5385, 1
      %v5899 = vpop.permute.xlu0 %5898
      %5900 = vrot.lane.b32.xlu0 %v5463, 1
      %v5901 = vpop.permute.xlu0 %5900
      %5902 = vrot.lane.b32.xlu0 %v5388, 1
      %v5903 = vpop.permute.xlu0 %5902
      %5904 = vrot.lane.b32.xlu0 %v5464, 1
      %v5905 = vpop.permute.xlu0 %5904
      %5906 = vrot.lane.b32.xlu0 %v5391, 1
      %v5907 = vpop.permute.xlu0 %5906
      %5908 = vrot.lane.b32.xlu0 %v5465, 1
      %v5909 = vpop.permute.xlu0 %5908
      %5910 = vrot.lane.b32.xlu0 %v5394, 1
      %v5911 = vpop.permute.xlu0 %5910
      %5912 = vrot.lane.b32.xlu0 %v5466, 1
      %v5913 = vpop.permute.xlu0 %5912
      %5914 = vrot.lane.b32.xlu0 %v5397, 1
      %v5915 = vpop.permute.xlu0 %5914
      %5916 = vrot.lane.b32.xlu0 %v5467, 1
      %v5917 = vpop.permute.xlu0 %5916
      %5918 = vrot.lane.b32.xlu0 %v5400, 1
      %v5919 = vpop.permute.xlu0 %5918
      %5920 = vrot.lane.b32.xlu0 %v5468, 1
      %v5921 = vpop.permute.xlu0 %5920
      %5922 = vrot.lane.b32.xlu0 %v5403, 1
      %v5923 = vpop.permute.xlu0 %5922
      %5924 = vrot.lane.b32.xlu0 %v5469, 1
      %v5925 = vpop.permute.xlu0 %5924
      %5926 = vrot.lane.b32.xlu0 %v5406, 1
      %v5927 = vpop.permute.xlu0 %5926
      %5960 = vrot.lane.b32.xlu0 %v5518, 44
      %v5961 = vpop.permute.xlu0 %5960
      %5962 = vrot.lane.b32.xlu0 %v5520, 44
      %v5963 = vpop.permute.xlu0 %5962
      %5964 = vrot.lane.b32.xlu0 %v5523, 44
      %v5965 = vpop.permute.xlu0 %5964
      %5966 = vrot.lane.b32.xlu0 %v5525, 44
      %v5967 = vpop.permute.xlu0 %5966
      %5968 = vrot.lane.b32.xlu0 %v5528, 44
      %v5969 = vpop.permute.xlu0 %5968
      %5970 = vrot.lane.b32.xlu0 %v5530, 44
      %v5971 = vpop.permute.xlu0 %5970
      %5972 = vrot.lane.b32.xlu0 %v5533, 44
      %v5973 = vpop.permute.xlu0 %5972
      %5974 = vrot.lane.b32.xlu0 %v5535, 44
      %v5975 = vpop.permute.xlu0 %5974
      %5976 = vrot.lane.b32.xlu0 %v5538, 44
      %v5977 = vpop.permute.xlu0 %5976
      %5978 = vrot.lane.b32.xlu0 %v5540, 44
      %v5979 = vpop.permute.xlu0 %5978
      %5980 = vrot.lane.b32.xlu0 %v5543, 44
      %v5981 = vpop.permute.xlu0 %5980
      %5982 = vrot.lane.b32.xlu0 %v5545, 44
      %v5983 = vpop.permute.xlu0 %5982
      %5984 = vrot.lane.b32.xlu0 %v5548, 44
      %v5985 = vpop.permute.xlu0 %5984
      %5986 = vrot.lane.b32.xlu0 %v5550, 44
      %v5987 = vpop.permute.xlu0 %5986
      %5988 = vrot.lane.b32.xlu0 %v5553, 44
      %v5989 = vpop.permute.xlu0 %5988
      %5990 = vrot.lane.b32.xlu0 %v5555, 44
      %v5991 = vpop.permute.xlu0 %5990
      %5992 = vrot.lane.b32.xlu0 %v5558, 44
      %v5993 = vpop.permute.xlu0 %5992
      %5994 = vrot.lane.b32.xlu0 %v5560, 44
      %v5995 = vpop.permute.xlu0 %5994
      %5996 = vrot.lane.b32.xlu0 %v5563, 44
      %v5997 = vpop.permute.xlu0 %5996
      %5998 = vrot.lane.b32.xlu0 %v5565, 44
      %v5999 = vpop.permute.xlu0 %5998
      %6000 = vrot.lane.b32.xlu0 %v5568, 44
      %v6001 = vpop.permute.xlu0 %6000
      %6002 = vrot.lane.b32.xlu0 %v5570, 44
      %v6003 = vpop.permute.xlu0 %6002
      %6004 = vrot.lane.b32.xlu0 %v5573, 44
      %v6005 = vpop.permute.xlu0 %6004
      %6006 = vrot.lane.b32.xlu0 %v5575, 44
      %v6007 = vpop.permute.xlu0 %6006
      %6008 = vrot.lane.b32.xlu0 %v5578, 44
      %v6009 = vpop.permute.xlu0 %6008
      %6010 = vrot.lane.b32.xlu0 %v5580, 44
      %v6011 = vpop.permute.xlu0 %6010
      %6012 = vrot.lane.b32.xlu0 %v5583, 44
      %v6013 = vpop.permute.xlu0 %6012
      %6014 = vrot.lane.b32.xlu0 %v5585, 44
      %v6015 = vpop.permute.xlu0 %6014
      %6016 = vrot.lane.b32.xlu0 %v5588, 44
      %v6017 = vpop.permute.xlu0 %6016
      %6018 = vrot.lane.b32.xlu0 %v5590, 44
      %v6019 = vpop.permute.xlu0 %6018
      %6020 = vrot.lane.b32.xlu0 %v5670, 44
      %v6021 = vpop.permute.xlu0 %6020
      %6022 = vrot.lane.b32.xlu0 %v5672, 44
      %v6023 = vpop.permute.xlu0 %6022
      %6056 = vrot.lane.b32.xlu0 %v5593, 87
      %v6057 = vpop.permute.xlu0 %6056
      %6058 = vrot.lane.b32.xlu0 %v5595, 87
      %v6059 = vpop.permute.xlu0 %6058
      %6060 = vrot.lane.b32.xlu0 %v5598, 87
      %v6061 = vpop.permute.xlu0 %6060
      %6062 = vrot.lane.b32.xlu0 %v5600, 87
      %v6063 = vpop.permute.xlu0 %6062
      %6064 = vrot.lane.b32.xlu0 %v5603, 87
      %v6065 = vpop.permute.xlu0 %6064
      %6066 = vrot.lane.b32.xlu0 %v5605, 87
      %v6067 = vpop.permute.xlu0 %6066
      %6068 = vrot.lane.b32.xlu0 %v5608, 87
      %v6069 = vpop.permute.xlu0 %6068
      %6070 = vrot.lane.b32.xlu0 %v5610, 87
      %v6071 = vpop.permute.xlu0 %6070
      %6072 = vrot.lane.b32.xlu0 %v5613, 87
      %v6073 = vpop.permute.xlu0 %6072
      %6074 = vrot.lane.b32.xlu0 %v5615, 87
      %v6075 = vpop.permute.xlu0 %6074
      %6076 = vrot.lane.b32.xlu0 %v5618, 87
      %v6077 = vpop.permute.xlu0 %6076
      %6078 = vrot.lane.b32.xlu0 %v5620, 87
      %v6079 = vpop.permute.xlu0 %6078
      %6080 = vrot.lane.b32.xlu0 %v5623, 87
      %v6081 = vpop.permute.xlu0 %6080
      %6082 = vrot.lane.b32.xlu0 %v5625, 87
      %v6083 = vpop.permute.xlu0 %6082
      %6084 = vrot.lane.b32.xlu0 %v5628, 87
      %v6085 = vpop.permute.xlu0 %6084
      %6086 = vrot.lane.b32.xlu0 %v5630, 87
      %v6087 = vpop.permute.xlu0 %6086
      %6088 = vrot.lane.b32.xlu0 %v5633, 87
      %v6089 = vpop.permute.xlu0 %6088
      %6090 = vrot.lane.b32.xlu0 %v5635, 87
      %v6091 = vpop.permute.xlu0 %6090
      %6092 = vrot.lane.b32.xlu0 %v5638, 87
      %v6093 = vpop.permute.xlu0 %6092
      %6094 = vrot.lane.b32.xlu0 %v5640, 87
      %v6095 = vpop.permute.xlu0 %6094
      %6096 = vrot.lane.b32.xlu0 %v5643, 87
      %v6097 = vpop.permute.xlu0 %6096
      %6098 = vrot.lane.b32.xlu0 %v5645, 87
      %v6099 = vpop.permute.xlu0 %6098
      %6100 = vrot.lane.b32.xlu0 %v5648, 87
      %v6101 = vpop.permute.xlu0 %6100
      %6102 = vrot.lane.b32.xlu0 %v5650, 87
      %v6103 = vpop.permute.xlu0 %6102
      %6104 = vrot.lane.b32.xlu0 %v5653, 87
      %v6105 = vpop.permute.xlu0 %6104
      %6106 = vrot.lane.b32.xlu0 %v5655, 87
      %v6107 = vpop.permute.xlu0 %6106
      %6108 = vrot.lane.b32.xlu0 %v5658, 87
      %v6109 = vpop.permute.xlu0 %6108
      %6110 = vrot.lane.b32.xlu0 %v5660, 87
      %v6111 = vpop.permute.xlu0 %6110
      %6112 = vrot.lane.b32.xlu0 %v5663, 87
      %v6113 = vpop.permute.xlu0 %6112
      %6114 = vrot.lane.b32.xlu0 %v5665, 87
      %v6115 = vpop.permute.xlu0 %6114
      %6116 = vrot.lane.b32.xlu0 %v5675, 87
      %v6117 = vpop.permute.xlu0 %6116
      %6118 = vrot.lane.b32.xlu0 %v5677, 87
      %v6119 = vpop.permute.xlu0 %6118
      %6152 = vrot.lane.b32.xlu0 %v5455, 2
      %v6153 = vpop.permute.xlu0 %6152
      %6154 = vrot.lane.b32.xlu0 %v5364, 2
      %v6155 = vpop.permute.xlu0 %6154
      %6156 = vrot.lane.b32.xlu0 %v5456, 2
      %v6157 = vpop.permute.xlu0 %6156
      %6158 = vrot.lane.b32.xlu0 %v5367, 2
      %v6159 = vpop.permute.xlu0 %6158
      %6160 = vrot.lane.b32.xlu0 %v5457, 2
      %v6161 = vpop.permute.xlu0 %6160
      %6162 = vrot.lane.b32.xlu0 %v5370, 2
      %v6163 = vpop.permute.xlu0 %6162
      %6164 = vrot.lane.b32.xlu0 %v5458, 2
      %v6165 = vpop.permute.xlu0 %6164
      %6166 = vrot.lane.b32.xlu0 %v5373, 2
      %v6167 = vpop.permute.xlu0 %6166
      %6168 = vrot.lane.b32.xlu0 %v5459, 2
      %v6169 = vpop.permute.xlu0 %6168
      %6170 = vrot.lane.b32.xlu0 %v5376, 2
      %v6171 = vpop.permute.xlu0 %6170
      %6172 = vrot.lane.b32.xlu0 %v5460, 2
      %v6173 = vpop.permute.xlu0 %6172
      %6174 = vrot.lane.b32.xlu0 %v5379, 2
      %v6175 = vpop.permute.xlu0 %6174
      %6176 = vrot.lane.b32.xlu0 %v5461, 2
      %v6177 = vpop.permute.xlu0 %6176
      %6178 = vrot.lane.b32.xlu0 %v5382, 2
      %v6179 = vpop.permute.xlu0 %6178
      %6180 = vrot.lane.b32.xlu0 %v5462, 2
      %v6181 = vpop.permute.xlu0 %6180
      %6182 = vrot.lane.b32.xlu0 %v5385, 2
      %v6183 = vpop.permute.xlu0 %6182
      %6184 = vrot.lane.b32.xlu0 %v5463, 2
      %v6185 = vpop.permute.xlu0 %6184
      %6186 = vrot.lane.b32.xlu0 %v5388, 2
      %v6187 = vpop.permute.xlu0 %6186
      %6188 = vrot.lane.b32.xlu0 %v5464, 2
      %v6189 = vpop.permute.xlu0 %6188
      %6190 = vrot.lane.b32.xlu0 %v5391, 2
      %v6191 = vpop.permute.xlu0 %6190
      %6192 = vrot.lane.b32.xlu0 %v5465, 2
      %v6193 = vpop.permute.xlu0 %6192
      %6194 = vrot.lane.b32.xlu0 %v5394, 2
      %v6195 = vpop.permute.xlu0 %6194
      %6196 = vrot.lane.b32.xlu0 %v5466, 2
      %v6197 = vpop.permute.xlu0 %6196
      %6198 = vrot.lane.b32.xlu0 %v5397, 2
      %v6199 = vpop.permute.xlu0 %6198
      %6200 = vrot.lane.b32.xlu0 %v5467, 2
      %v6201 = vpop.permute.xlu0 %6200
      %6202 = vrot.lane.b32.xlu0 %v5400, 2
      %v6203 = vpop.permute.xlu0 %6202
      %6204 = vrot.lane.b32.xlu0 %v5468, 2
      %v6205 = vpop.permute.xlu0 %6204
      %6206 = vrot.lane.b32.xlu0 %v5403, 2
      %v6207 = vpop.permute.xlu0 %6206
      %6208 = vrot.lane.b32.xlu0 %v5469, 2
      %v6209 = vpop.permute.xlu0 %6208
      %6210 = vrot.lane.b32.xlu0 %v5406, 2
      %v6211 = vpop.permute.xlu0 %6210
      %6212 = vrot.lane.b32.xlu0 0.0, 2
      %v6213 = vpop.permute.xlu0 %6212
      %6245 = vrot.lane.b32.xlu0 %v5523, 45
      %v6246 = vpop.permute.xlu0 %6245
      %6247 = vrot.lane.b32.xlu0 %v5525, 45
      %v6248 = vpop.permute.xlu0 %6247
      %6249 = vrot.lane.b32.xlu0 %v5528, 45
      %v6250 = vpop.permute.xlu0 %6249
      %6251 = vrot.lane.b32.xlu0 %v5530, 45
      %v6252 = vpop.permute.xlu0 %6251
      %6253 = vrot.lane.b32.xlu0 %v5533, 45
      %v6254 = vpop.permute.xlu0 %6253
      %6255 = vrot.lane.b32.xlu0 %v5535, 45
      %v6256 = vpop.permute.xlu0 %6255
      %6257 = vrot.lane.b32.xlu0 %v5538, 45
      %v6258 = vpop.permute.xlu0 %6257
      %6259 = vrot.lane.b32.xlu0 %v5540, 45
      %v6260 = vpop.permute.xlu0 %6259
      %6261 = vrot.lane.b32.xlu0 %v5543, 45
      %v6262 = vpop.permute.xlu0 %6261
      %6263 = vrot.lane.b32.xlu0 %v5545, 45
      %v6264 = vpop.permute.xlu0 %6263
      %6265 = vrot.lane.b32.xlu0 %v5548, 45
      %v6266 = vpop.permute.xlu0 %6265
      %6267 = vrot.lane.b32.xlu0 %v5550, 45
      %v6268 = vpop.permute.xlu0 %6267
      %6269 = vrot.lane.b32.xlu0 %v5553, 45
      %v6270 = vpop.permute.xlu0 %6269
      %6271 = vrot.lane.b32.xlu0 %v5555, 45
      %v6272 = vpop.permute.xlu0 %6271
      %6273 = vrot.lane.b32.xlu0 %v5558, 45
      %v6274 = vpop.permute.xlu0 %6273
      %6275 = vrot.lane.b32.xlu0 %v5560, 45
      %v6276 = vpop.permute.xlu0 %6275
      %6277 = vrot.lane.b32.xlu0 %v5563, 45
      %v6278 = vpop.permute.xlu0 %6277
      %6279 = vrot.lane.b32.xlu0 %v5565, 45
      %v6280 = vpop.permute.xlu0 %6279
      %6281 = vrot.lane.b32.xlu0 %v5568, 45
      %v6282 = vpop.permute.xlu0 %6281
      %6283 = vrot.lane.b32.xlu0 %v5570, 45
      %v6284 = vpop.permute.xlu0 %6283
      %6285 = vrot.lane.b32.xlu0 %v5573, 45
      %v6286 = vpop.permute.xlu0 %6285
      %6287 = vrot.lane.b32.xlu0 %v5575, 45
      %v6288 = vpop.permute.xlu0 %6287
      %6289 = vrot.lane.b32.xlu0 %v5578, 45
      %v6290 = vpop.permute.xlu0 %6289
      %6291 = vrot.lane.b32.xlu0 %v5580, 45
      %v6292 = vpop.permute.xlu0 %6291
      %6293 = vrot.lane.b32.xlu0 %v5583, 45
      %v6294 = vpop.permute.xlu0 %6293
      %6295 = vrot.lane.b32.xlu0 %v5585, 45
      %v6296 = vpop.permute.xlu0 %6295
      %6297 = vrot.lane.b32.xlu0 %v5588, 45
      %v6298 = vpop.permute.xlu0 %6297
      %6299 = vrot.lane.b32.xlu0 %v5590, 45
      %v6300 = vpop.permute.xlu0 %6299
      %6301 = vrot.lane.b32.xlu0 %v5670, 45
      %v6302 = vpop.permute.xlu0 %6301
      %6303 = vrot.lane.b32.xlu0 %v5672, 45
      %v6304 = vpop.permute.xlu0 %6303
      %6305 = vrot.lane.b32.xlu0 %v2229, 45
      %v6306 = vpop.permute.xlu0 %6305
      %6338 = vrot.lane.b32.xlu0 %v5598, 88
      %v6339 = vpop.permute.xlu0 %6338
      %6340 = vrot.lane.b32.xlu0 %v5600, 88
      %v6341 = vpop.permute.xlu0 %6340
      %6342 = vrot.lane.b32.xlu0 %v5603, 88
      %v6343 = vpop.permute.xlu0 %6342
      %6344 = vrot.lane.b32.xlu0 %v5605, 88
      %v6345 = vpop.permute.xlu0 %6344
      %6346 = vrot.lane.b32.xlu0 %v5608, 88
      %v6347 = vpop.permute.xlu0 %6346
      %6348 = vrot.lane.b32.xlu0 %v5610, 88
      %v6349 = vpop.permute.xlu0 %6348
      %6350 = vrot.lane.b32.xlu0 %v5613, 88
      %v6351 = vpop.permute.xlu0 %6350
      %6352 = vrot.lane.b32.xlu0 %v5615, 88
      %v6353 = vpop.permute.xlu0 %6352
      %6354 = vrot.lane.b32.xlu0 %v5618, 88
      %v6355 = vpop.permute.xlu0 %6354
      %6356 = vrot.lane.b32.xlu0 %v5620, 88
      %v6357 = vpop.permute.xlu0 %6356
      %6358 = vrot.lane.b32.xlu0 %v5623, 88
      %v6359 = vpop.permute.xlu0 %6358
      %6360 = vrot.lane.b32.xlu0 %v5625, 88
      %v6361 = vpop.permute.xlu0 %6360
      %6362 = vrot.lane.b32.xlu0 %v5628, 88
      %v6363 = vpop.permute.xlu0 %6362
      %6364 = vrot.lane.b32.xlu0 %v5630, 88
      %v6365 = vpop.permute.xlu0 %6364
      %6366 = vrot.lane.b32.xlu0 %v5633, 88
      %v6367 = vpop.permute.xlu0 %6366
      %6368 = vrot.lane.b32.xlu0 %v5635, 88
      %v6369 = vpop.permute.xlu0 %6368
      %6370 = vrot.lane.b32.xlu0 %v5638, 88
      %v6371 = vpop.permute.xlu0 %6370
      %6372 = vrot.lane.b32.xlu0 %v5640, 88
      %v6373 = vpop.permute.xlu0 %6372
      %6374 = vrot.lane.b32.xlu0 %v5643, 88
      %v6375 = vpop.permute.xlu0 %6374
      %6376 = vrot.lane.b32.xlu0 %v5645, 88
      %v6377 = vpop.permute.xlu0 %6376
      %6378 = vrot.lane.b32.xlu0 %v5648, 88
      %v6379 = vpop.permute.xlu0 %6378
      %6380 = vrot.lane.b32.xlu0 %v5650, 88
      %v6381 = vpop.permute.xlu0 %6380
      %6382 = vrot.lane.b32.xlu0 %v5653, 88
      %v6383 = vpop.permute.xlu0 %6382
      %6384 = vrot.lane.b32.xlu0 %v5655, 88
      %v6385 = vpop.permute.xlu0 %6384
      %6386 = vrot.lane.b32.xlu0 %v5658, 88
      %v6387 = vpop.permute.xlu0 %6386
      %6388 = vrot.lane.b32.xlu0 %v5660, 88
      %v6389 = vpop.permute.xlu0 %6388
      %6390 = vrot.lane.b32.xlu0 %v5663, 88
      %v6391 = vpop.permute.xlu0 %6390
      %6392 = vrot.lane.b32.xlu0 %v5665, 88
      %v6393 = vpop.permute.xlu0 %6392
      %6394 = vrot.lane.b32.xlu0 %v5675, 88
      %v6395 = vpop.permute.xlu0 %6394
      %6396 = vrot.lane.b32.xlu0 %v5677, 88
      %v6397 = vpop.permute.xlu0 %6396
      %6398 = vrot.lane.b32.xlu0 %v2307, 88
      %v6399 = vpop.permute.xlu0 %6398
      %vm6431 = vcmask 351232
      %v6432 = vsel %vm6431, 0.0, %v5679
      %v6433 = vsel %vm6431, %v5454, %v5681
      %v6434 = vsel %vm6431, %v5361, %v5683
      %v6435 = vsel %vm6431, %v5455, %v5685
      %v6436 = vsel %vm6431, %v5364, %v5687
      %v6437 = vsel %vm6431, %v5456, %v5689
      %v6438 = vsel %vm6431, %v5367, %v5691
      %v6439 = vsel %vm6431, %v5457, %v5693
      %v6440 = vsel %vm6431, %v5370, %v5695
      %v6441 = vsel %vm6431, %v5458, %v5697
      %v6442 = vsel %vm6431, %v5373, %v5699
      %v6443 = vsel %vm6431, %v5459, %v5701
      %v6444 = vsel %vm6431, %v5376, %v5703
      %v6445 = vsel %vm6431, %v5460, %v5705
      %v6446 = vsel %vm6431, %v5379, %v5707
      %v6447 = vsel %vm6431, %v5461, %v5709
      %v6448 = vsel %vm6431, %v5382, %v5711
      %v6449 = vsel %vm6431, %v5462, %v5713
      %v6450 = vsel %vm6431, %v5385, %v5715
      %v6451 = vsel %vm6431, %v5463, %v5717
      %v6452 = vsel %vm6431, %v5388, %v5719
      %v6453 = vsel %vm6431, %v5464, %v5721
      %v6454 = vsel %vm6431, %v5391, %v5723
      %v6455 = vsel %vm6431, %v5465, %v5725
      %v6456 = vsel %vm6431, %v5394, %v5727
      %v6457 = vsel %vm6431, %v5466, %v5729
      %v6458 = vsel %vm6431, %v5397, %v5731
      %v6459 = vsel %vm6431, %v5467, %v5733
      %v6460 = vsel %vm6431, %v5400, %v5735
      %v6461 = vsel %vm6431, %v5468, %v5737
      %v6462 = vsel %vm6431, %v5403, %v5739
      %vm6463 = vcmask 703488
      %v6464 = vsel %vm6463, %v6432, %v5772
      %v6465 = vsel %vm6463, %v6433, %v5774
      %v6466 = vsel %vm6463, %v6434, %v5776
      %v6467 = vsel %vm6463, %v6435, %v5778
      %v6468 = vsel %vm6463, %v6436, %v5780
      %v6469 = vsel %vm6463, %v6437, %v5782
      %v6470 = vsel %vm6463, %v6438, %v5784
      %v6471 = vsel %vm6463, %v6439, %v5786
      %v6472 = vsel %vm6463, %v6440, %v5788
      %v6473 = vsel %vm6463, %v6441, %v5790
      %v6474 = vsel %vm6463, %v6442, %v5792
      %v6475 = vsel %vm6463, %v6443, %v5794
      %v6476 = vsel %vm6463, %v6444, %v5796
      %v6477 = vsel %vm6463, %v6445, %v5798
      %v6478 = vsel %vm6463, %v6446, %v5800
      %v6479 = vsel %vm6463, %v6447, %v5802
      %v6480 = vsel %vm6463, %v6448, %v5804
      %v6481 = vsel %vm6463, %v6449, %v5806
      %v6482 = vsel %vm6463, %v6450, %v5808
      %v6483 = vsel %vm6463, %v6451, %v5810
      %v6484 = vsel %vm6463, %v6452, %v5812
      %v6485 = vsel %vm6463, %v6453, %v5814
      %v6486 = vsel %vm6463, %v6454, %v5816
      %v6487 = vsel %vm6463, %v6455, %v5818
      %v6488 = vsel %vm6463, %v6456, %v5820
      %v6489 = vsel %vm6463, %v6457, %v5822
      %v6490 = vsel %vm6463, %v6458, %v5824
      %v6491 = vsel %vm6463, %v6459, %v5826
      %v6492 = vsel %vm6463, %v6460, %v5828
      %v6493 = vsel %vm6463, %v6461, %v5830
      %v6494 = vsel %vm6463, %v6462, %v5832
      %vm6495 = vcmask 7168
      %v6496 = vsel %vm6495, %v5772, %v5865
      %v6497 = vsel %vm6495, %v5772, %v5867
      %v6498 = vsel %vm6495, %v5774, %v5869
      %v6499 = vsel %vm6495, %v5776, %v5871
      %v6500 = vsel %vm6495, %v5778, %v5873
      %v6501 = vsel %vm6495, %v5780, %v5875
      %v6502 = vsel %vm6495, %v5782, %v5877
      %v6503 = vsel %vm6495, %v5784, %v5879
      %v6504 = vsel %vm6495, %v5786, %v5881
      %v6505 = vsel %vm6495, %v5788, %v5883
      %v6506 = vsel %vm6495, %v5790, %v5885
      %v6507 = vsel %vm6495, %v5792, %v5887
      %v6508 = vsel %vm6495, %v5794, %v5889
      %v6509 = vsel %vm6495, %v5796, %v5891
      %v6510 = vsel %vm6495, %v5798, %v5893
      %v6511 = vsel %vm6495, %v5800, %v5895
      %v6512 = vsel %vm6495, %v5802, %v5897
      %v6513 = vsel %vm6495, %v5804, %v5899
      %v6514 = vsel %vm6495, %v5806, %v5901
      %v6515 = vsel %vm6495, %v5808, %v5903
      %v6516 = vsel %vm6495, %v5810, %v5905
      %v6517 = vsel %vm6495, %v5812, %v5907
      %v6518 = vsel %vm6495, %v5814, %v5909
      %v6519 = vsel %vm6495, %v5816, %v5911
      %v6520 = vsel %vm6495, %v5818, %v5913
      %v6521 = vsel %vm6495, %v5820, %v5915
      %v6522 = vsel %vm6495, %v5822, %v5917
      %v6523 = vsel %vm6495, %v5824, %v5919
      %v6524 = vsel %vm6495, %v5826, %v5921
      %v6525 = vsel %vm6495, %v5828, %v5923
      %v6526 = vsel %vm6495, %v5830, %v5925
      %v6527 = vsel %vm6495, %v5832, %v5927
      %vm6528 = vcmask 359424
      %v6529 = vsel %vm6528, %v6496, %v5961
      %v6530 = vsel %vm6528, %v6497, %v5963
      %v6531 = vsel %vm6528, %v6498, %v5965
      %v6532 = vsel %vm6528, %v6499, %v5967
      %v6533 = vsel %vm6528, %v6500, %v5969
      %v6534 = vsel %vm6528, %v6501, %v5971
      %v6535 = vsel %vm6528, %v6502, %v5973
      %v6536 = vsel %vm6528, %v6503, %v5975
      %v6537 = vsel %vm6528, %v6504, %v5977
      %v6538 = vsel %vm6528, %v6505, %v5979
      %v6539 = vsel %vm6528, %v6506, %v5981
      %v6540 = vsel %vm6528, %v6507, %v5983
      %v6541 = vsel %vm6528, %v6508, %v5985
      %v6542 = vsel %vm6528, %v6509, %v5987
      %v6543 = vsel %vm6528, %v6510, %v5989
      %v6544 = vsel %vm6528, %v6511, %v5991
      %v6545 = vsel %vm6528, %v6512, %v5993
      %v6546 = vsel %vm6528, %v6513, %v5995
      %v6547 = vsel %vm6528, %v6514, %v5997
      %v6548 = vsel %vm6528, %v6515, %v5999
      %v6549 = vsel %vm6528, %v6516, %v6001
      %v6550 = vsel %vm6528, %v6517, %v6003
      %v6551 = vsel %vm6528, %v6518, %v6005
      %v6552 = vsel %vm6528, %v6519, %v6007
      %v6553 = vsel %vm6528, %v6520, %v6009
      %v6554 = vsel %vm6528, %v6521, %v6011
      %v6555 = vsel %vm6528, %v6522, %v6013
      %v6556 = vsel %vm6528, %v6523, %v6015
      %v6557 = vsel %vm6528, %v6524, %v6017
      %v6558 = vsel %vm6528, %v6525, %v6019
      %v6559 = vsel %vm6528, %v6526, %v6021
      %v6560 = vsel %vm6528, %v6527, %v6023
      %vm6561 = vcmask 711680
      %v6562 = vsel %vm6561, %v6529, %v6057
      %v6563 = vsel %vm6561, %v6530, %v6059
      %v6564 = vsel %vm6561, %v6531, %v6061
      %v6565 = vsel %vm6561, %v6532, %v6063
      %v6566 = vsel %vm6561, %v6533, %v6065
      %v6567 = vsel %vm6561, %v6534, %v6067
      %v6568 = vsel %vm6561, %v6535, %v6069
      %v6569 = vsel %vm6561, %v6536, %v6071
      %v6570 = vsel %vm6561, %v6537, %v6073
      %v6571 = vsel %vm6561, %v6538, %v6075
      %v6572 = vsel %vm6561, %v6539, %v6077
      %v6573 = vsel %vm6561, %v6540, %v6079
      %v6574 = vsel %vm6561, %v6541, %v6081
      %v6575 = vsel %vm6561, %v6542, %v6083
      %v6576 = vsel %vm6561, %v6543, %v6085
      %v6577 = vsel %vm6561, %v6544, %v6087
      %v6578 = vsel %vm6561, %v6545, %v6089
      %v6579 = vsel %vm6561, %v6546, %v6091
      %v6580 = vsel %vm6561, %v6547, %v6093
      %v6581 = vsel %vm6561, %v6548, %v6095
      %v6582 = vsel %vm6561, %v6549, %v6097
      %v6583 = vsel %vm6561, %v6550, %v6099
      %v6584 = vsel %vm6561, %v6551, %v6101
      %v6585 = vsel %vm6561, %v6552, %v6103
      %v6586 = vsel %vm6561, %v6553, %v6105
      %v6587 = vsel %vm6561, %v6554, %v6107
      %v6588 = vsel %vm6561, %v6555, %v6109
      %v6589 = vsel %vm6561, %v6556, %v6111
      %v6590 = vsel %vm6561, %v6557, %v6113
      %v6591 = vsel %vm6561, %v6558, %v6115
      %v6592 = vsel %vm6561, %v6559, %v6117
      %v6593 = vsel %vm6561, %v6560, %v6119
      %vm6594 = vcmask 15360
      %v6595 = vsel %vm6594, %v6057, %v6153
      %v6596 = vsel %vm6594, %v6059, %v6155
      %v6597 = vsel %vm6594, %v6061, %v6157
      %v6598 = vsel %vm6594, %v6063, %v6159
      %v6599 = vsel %vm6594, %v6065, %v6161
      %v6600 = vsel %vm6594, %v6067, %v6163
      %v6601 = vsel %vm6594, %v6069, %v6165
      %v6602 = vsel %vm6594, %v6071, %v6167
      %v6603 = vsel %vm6594, %v6073, %v6169
      %v6604 = vsel %vm6594, %v6075, %v6171
      %v6605 = vsel %vm6594, %v6077, %v6173
      %v6606 = vsel %vm6594, %v6079, %v6175
      %v6607 = vsel %vm6594, %v6081, %v6177
      %v6608 = vsel %vm6594, %v6083, %v6179
      %v6609 = vsel %vm6594, %v6085, %v6181
      %v6610 = vsel %vm6594, %v6087, %v6183
      %v6611 = vsel %vm6594, %v6089, %v6185
      %v6612 = vsel %vm6594, %v6091, %v6187
      %v6613 = vsel %vm6594, %v6093, %v6189
      %v6614 = vsel %vm6594, %v6095, %v6191
      %v6615 = vsel %vm6594, %v6097, %v6193
      %v6616 = vsel %vm6594, %v6099, %v6195
      %v6617 = vsel %vm6594, %v6101, %v6197
      %v6618 = vsel %vm6594, %v6103, %v6199
      %v6619 = vsel %vm6594, %v6105, %v6201
      %v6620 = vsel %vm6594, %v6107, %v6203
      %v6621 = vsel %vm6594, %v6109, %v6205
      %v6622 = vsel %vm6594, %v6111, %v6207
      %v6623 = vsel %vm6594, %v6113, %v6209
      %v6624 = vsel %vm6594, %v6115, %v6211
      %v6625 = vsel %vm6594, %v6117, %v6213
      %v6626 = vsel %vm6594, %v6119, %v6213
      %vm6627 = vcmask 367616
      %v6628 = vsel %vm6627, %v6595, %v6246
      %v6629 = vsel %vm6627, %v6596, %v6248
      %v6630 = vsel %vm6627, %v6597, %v6250
      %v6631 = vsel %vm6627, %v6598, %v6252
      %v6632 = vsel %vm6627, %v6599, %v6254
      %v6633 = vsel %vm6627, %v6600, %v6256
      %v6634 = vsel %vm6627, %v6601, %v6258
      %v6635 = vsel %vm6627, %v6602, %v6260
      %v6636 = vsel %vm6627, %v6603, %v6262
      %v6637 = vsel %vm6627, %v6604, %v6264
      %v6638 = vsel %vm6627, %v6605, %v6266
      %v6639 = vsel %vm6627, %v6606, %v6268
      %v6640 = vsel %vm6627, %v6607, %v6270
      %v6641 = vsel %vm6627, %v6608, %v6272
      %v6642 = vsel %vm6627, %v6609, %v6274
      %v6643 = vsel %vm6627, %v6610, %v6276
      %v6644 = vsel %vm6627, %v6611, %v6278
      %v6645 = vsel %vm6627, %v6612, %v6280
      %v6646 = vsel %vm6627, %v6613, %v6282
      %v6647 = vsel %vm6627, %v6614, %v6284
      %v6648 = vsel %vm6627, %v6615, %v6286
      %v6649 = vsel %vm6627, %v6616, %v6288
      %v6650 = vsel %vm6627, %v6617, %v6290
      %v6651 = vsel %vm6627, %v6618, %v6292
      %v6652 = vsel %vm6627, %v6619, %v6294
      %v6653 = vsel %vm6627, %v6620, %v6296
      %v6654 = vsel %vm6627, %v6621, %v6298
      %v6655 = vsel %vm6627, %v6622, %v6300
      %v6656 = vsel %vm6627, %v6623, %v6302
      %v6657 = vsel %vm6627, %v6624, %v6304
      %v6658 = vsel %vm6627, %v6625, %v6306
      %v6659 = vsel %vm6627, %v6626, %v6306
      %vm6660 = vcmask 719872
      %v6661 = vsel %vm6660, %v6628, %v6339
      %v6662 = vsel %vm6660, %v6629, %v6341
      %v6663 = vsel %vm6660, %v6630, %v6343
      %v6664 = vsel %vm6660, %v6631, %v6345
      %v6665 = vsel %vm6660, %v6632, %v6347
      %v6666 = vsel %vm6660, %v6633, %v6349
      %v6667 = vsel %vm6660, %v6634, %v6351
      %v6668 = vsel %vm6660, %v6635, %v6353
      %v6669 = vsel %vm6660, %v6636, %v6355
      %v6670 = vsel %vm6660, %v6637, %v6357
      %v6671 = vsel %vm6660, %v6638, %v6359
      %v6672 = vsel %vm6660, %v6639, %v6361
      %v6673 = vsel %vm6660, %v6640, %v6363
      %v6674 = vsel %vm6660, %v6641, %v6365
      %v6675 = vsel %vm6660, %v6642, %v6367
      %v6676 = vsel %vm6660, %v6643, %v6369
      %v6677 = vsel %vm6660, %v6644, %v6371
      %v6678 = vsel %vm6660, %v6645, %v6373
      %v6679 = vsel %vm6660, %v6646, %v6375
      %v6680 = vsel %vm6660, %v6647, %v6377
      %v6681 = vsel %vm6660, %v6648, %v6379
      %v6682 = vsel %vm6660, %v6649, %v6381
      %v6683 = vsel %vm6660, %v6650, %v6383
      %v6684 = vsel %vm6660, %v6651, %v6385
      %v6685 = vsel %vm6660, %v6652, %v6387
      %v6686 = vsel %vm6660, %v6653, %v6389
      %v6687 = vsel %vm6660, %v6654, %v6391
      %v6688 = vsel %vm6660, %v6655, %v6393
      %v6689 = vsel %vm6660, %v6656, %v6395
      %v6690 = vsel %vm6660, %v6657, %v6397
      %v6691 = vsel %vm6660, %v6658, %v6399
      %v6692 = vsel %vm6660, %v6659, %v6399
      %v6693 = vld [vmem:[%s6] sm:$0xff]
      %v6694 = vld [vmem:[%s6 + $0x8] sm:$0xff]
      %v6695 = vld [vmem:[%s6 + $0x10] sm:$0xff]
      %v6696 = vld [vmem:[%s6 + $0x18] sm:$0xff]
      %v6697 = vld [vmem:[%s6 + $0x20] sm:$0xff]
      %v6698 = vld [vmem:[%s6 + $0x28] sm:$0xff]
      %v6699 = vld [vmem:[%s6 + $0x30] sm:$0xff]
      %v6700 = vld [vmem:[%s6 + $0x38] sm:$0xff]
      %v6701 = vld [vmem:[%s6 + $0x40] sm:$0xff]
      %v6702 = vld [vmem:[%s6 + $0x48] sm:$0xff]
      %v6703 = vld [vmem:[%s6 + $0x50] sm:$0xff]
      %v6704 = vld [vmem:[%s6 + $0x58] sm:$0xff]
      %v6705 = vld [vmem:[%s6 + $0x60] sm:$0xff]
      %v6706 = vld [vmem:[%s6 + $0x68] sm:$0xff]
      %v6707 = vld [vmem:[%s6 + $0x70] sm:$0xff]
      %v6708 = vld [vmem:[%s6 + $0x78] sm:$0xff]
      %v6709 = vld [vmem:[%s6 + $0x80] sm:$0xff]
      %v6710 = vld [vmem:[%s6 + $0x88] sm:$0xff]
      %v6711 = vld [vmem:[%s6 + $0x90] sm:$0xff]
      %v6712 = vld [vmem:[%s6 + $0x98] sm:$0xff]
      %v6713 = vld [vmem:[%s6 + $0xa0] sm:$0xff]
      %v6714 = vld [vmem:[%s6 + $0xa8] sm:$0xff]
      %v6715 = vld [vmem:[%s6 + $0xb0] sm:$0xff]
      %v6716 = vld [vmem:[%s6 + $0xb8] sm:$0xff]
      %v6717 = vld [vmem:[%s6 + $0xc0] sm:$0xff]
      %v6718 = vld [vmem:[%s6 + $0xc8] sm:$0xff]
      %v6719 = vld [vmem:[%s6 + $0xd0] sm:$0xff]
      %v6720 = vld [vmem:[%s6 + $0xd8] sm:$0xff]
      %v6721 = vld [vmem:[%s6 + $0xe0] sm:$0xff]
      %v6722 = vld [vmem:[%s6 + $0xe8] sm:$0xff]
      %v6723 = vld [vmem:[%s6 + $0xf0] sm:$0xff]
      %v6724 = vld [vmem:[%s6 + $0xf8] sm:$0xff]
      %v6725 = vld [vmem:[%s6 + $0x100] sm:$0xff]
      %v6726 = vld [vmem:[%s6 + $0x108] sm:$0xff]
      %v6727 = vld [vmem:[%s6 + $0x110] sm:$0xff]
      %v6728 = vld [vmem:[%s6 + $0x118] sm:$0xff]
      %v6729 = vld [vmem:[%s6 + $0x120] sm:$0xff]
      %v6730 = vld [vmem:[%s6 + $0x128] sm:$0xff]
      %v6731 = vld [vmem:[%s6 + $0x130] sm:$0xff]
      %v6732 = vld [vmem:[%s6 + $0x138] sm:$0xff]
      %v6733 = vld [vmem:[%s6 + $0x140] sm:$0xff]
      %v6734 = vld [vmem:[%s6 + $0x148] sm:$0xff]
      %v6735 = vld [vmem:[%s6 + $0x150] sm:$0xff]
      %v6736 = vld [vmem:[%s6 + $0x158] sm:$0xff]
      %v6737 = vld [vmem:[%s6 + $0x160] sm:$0xff]
      %v6738 = vld [vmem:[%s6 + $0x168] sm:$0xff]
      %v6739 = vld [vmem:[%s6 + $0x170] sm:$0xff]
      %v6740 = vld [vmem:[%s6 + $0x178] sm:$0xff]
      %v6741 = vld [vmem:[%s6 + $0x180] sm:$0x7]
      %v6742 = vld [vmem:[%s7] sm:$0x1]
      %v6744 = vperm.slane %v6742, 0
      %vm6746 = vcmask 23552
      %v6747 = vsel %vm6746, %v6339, 0
      %v6749 = vsel %vm6746, %v6341, 0
      %v6751 = vsel %vm6746, %v6343, 0
      %v6753 = vsel %vm6746, %v6345, 0
      %v6755 = vsel %vm6746, %v6347, 0
      %v6757 = vsel %vm6746, %v6349, 0
      %v6759 = vsel %vm6746, %v6351, 0
      %v6761 = vsel %vm6746, %v6353, 0
      %v6763 = vsel %vm6746, %v6355, 0
      %v6765 = vsel %vm6746, %v6357, 0
      %v6767 = vsel %vm6746, %v6359, 0
      %v6769 = vsel %vm6746, %v6361, 0
      %v6771 = vsel %vm6746, %v6363, 0
      %v6773 = vsel %vm6746, %v6365, 0
      %v6775 = vsel %vm6746, %v6367, 0
      %v6777 = vsel %vm6746, %v6369, 0
      %v6779 = vsel %vm6746, %v6371, 0
      %v6781 = vsel %vm6746, %v6373, 0
      %v6783 = vsel %vm6746, %v6375, 0
      %v6785 = vsel %vm6746, %v6377, 0
      %v6787 = vsel %vm6746, %v6379, 0
      %v6789 = vsel %vm6746, %v6381, 0
      %v6791 = vsel %vm6746, %v6383, 0
      %v6793 = vsel %vm6746, %v6385, 0
      %v6795 = vsel %vm6746, %v6387, 0
      %v6797 = vsel %vm6746, %v6389, 0
      %v6799 = vsel %vm6746, %v6391, 0
      %v6801 = vsel %vm6746, %v6393, 0
      %v6803 = vsel %vm6746, %v6395, 0
      %v6805 = vsel %vm6746, %v6397, 0
      %v6807 = vsel %vm6746, %v6399, 0
      %v6810 = vsel %vm511, %v6741, 0
      %6812 = vmatpush.msra.mxu0 %v6708
      %6813 = vmatpush.msra.mxu0 %v6707
      %6814 = vmatpush.msra.mxu0 %v6706
      %6815 = vmatpush.msra.mxu0 %v6705
      %6816 = vmatpush.msra.mxu0 %v6704
      %6817 = vmatpush.msra.mxu0 %v6703
      %6818 = vmatpush.msra.mxu0 %v6702
      %6819 = vmatpush.msra.mxu0 %v6701
      %6820 = vmatpush.msra.mxu0 %v6700
      %6821 = vmatpush.msra.mxu0 %v6699
      %6822 = vmatpush.msra.mxu0 %v6698
      %6823 = vmatpush.msra.mxu0 %v6697
      %6824 = vmatpush.msra.mxu0 %v6696
      %6825 = vmatpush.msra.mxu0 %v6695
      %6826 = vmatpush.msra.mxu0 %v6694
      %6827 = vmatpush.msra.mxu0 %v6693
      %6828 = vmatmul.f32.gmra.mxu0 %v6464
      %v6829 = vpop.f32.mrf.mxu0
      %v6830 = vadd.f32 %v6744, %v6829
      %6831 = vmatmul.f32.gmra.mxu0 %v6464
      %v6832 = vpop.f32.mrf.mxu0
      %v6833 = vadd.f32 %v6744, %v6832
      %6834 = vmatmul.f32.gmra.mxu0 %v6465
      %v6835 = vpop.f32.mrf.mxu0
      %v6836 = vadd.f32 %v6744, %v6835
      %6837 = vmatmul.f32.gmra.mxu0 %v6466
      %v6838 = vpop.f32.mrf.mxu0
      %v6839 = vadd.f32 %v6744, %v6838
      %6840 = vmatmul.f32.gmra.mxu0 %v6467
      %v6841 = vpop.f32.mrf.mxu0
      %v6842 = vadd.f32 %v6744, %v6841
      %6843 = vmatmul.f32.gmra.mxu0 %v6468
      %v6844 = vpop.f32.mrf.mxu0
      %v6845 = vadd.f32 %v6744, %v6844
      %6846 = vmatmul.f32.gmra.mxu0 %v6469
      %v6847 = vpop.f32.mrf.mxu0
      %v6848 = vadd.f32 %v6744, %v6847
      %6849 = vmatmul.f32.gmra.mxu0 %v6470
      %v6850 = vpop.f32.mrf.mxu0
      %v6851 = vadd.f32 %v6744, %v6850
      %6852 = vmatmul.f32.gmra.mxu0 %v6471
      %v6853 = vpop.f32.mrf.mxu0
      %v6854 = vadd.f32 %v6744, %v6853
      %6855 = vmatmul.f32.gmra.mxu0 %v6472
      %v6856 = vpop.f32.mrf.mxu0
      %v6857 = vadd.f32 %v6744, %v6856
      %6858 = vmatmul.f32.gmra.mxu0 %v6473
      %v6859 = vpop.f32.mrf.mxu0
      %v6860 = vadd.f32 %v6744, %v6859
      %6861 = vmatmul.f32.gmra.mxu0 %v6474
      %v6862 = vpop.f32.mrf.mxu0
      %v6863 = vadd.f32 %v6744, %v6862
      %6864 = vmatmul.f32.gmra.mxu0 %v6475
      %v6865 = vpop.f32.mrf.mxu0
      %v6866 = vadd.f32 %v6744, %v6865
      %6867 = vmatmul.f32.gmra.mxu0 %v6476
      %v6868 = vpop.f32.mrf.mxu0
      %v6869 = vadd.f32 %v6744, %v6868
      %6870 = vmatmul.f32.gmra.mxu0 %v6477
      %v6871 = vpop.f32.mrf.mxu0
      %v6872 = vadd.f32 %v6744, %v6871
      %6873 = vmatmul.f32.gmra.mxu0 %v6478
      %v6874 = vpop.f32.mrf.mxu0
      %v6875 = vadd.f32 %v6744, %v6874
      %6876 = vmatmul.f32.gmra.mxu0 %v6479
      %v6877 = vpop.f32.mrf.mxu0
      %v6878 = vadd.f32 %v6744, %v6877
      %6879 = vmatmul.f32.gmra.mxu0 %v6480
      %v6880 = vpop.f32.mrf.mxu0
      %v6881 = vadd.f32 %v6744, %v6880
      %6882 = vmatmul.f32.gmra.mxu0 %v6481
      %v6883 = vpop.f32.mrf.mxu0
      %v6884 = vadd.f32 %v6744, %v6883
      %6885 = vmatmul.f32.gmra.mxu0 %v6482
      %v6886 = vpop.f32.mrf.mxu0
      %v6887 = vadd.f32 %v6744, %v6886
      %6888 = vmatmul.f32.gmra.mxu0 %v6483
      %v6889 = vpop.f32.mrf.mxu0
      %v6890 = vadd.f32 %v6744, %v6889
      %6891 = vmatmul.f32.gmra.mxu0 %v6484
      %v6892 = vpop.f32.mrf.mxu0
      %v6893 = vadd.f32 %v6744, %v6892
      %6894 = vmatmul.f32.gmra.mxu0 %v6485
      %v6895 = vpop.f32.mrf.mxu0
      %v6896 = vadd.f32 %v6744, %v6895
      %6897 = vmatmul.f32.gmra.mxu0 %v6486
      %v6898 = vpop.f32.mrf.mxu0
      %v6899 = vadd.f32 %v6744, %v6898
      %6900 = vmatmul.f32.gmra.mxu0 %v6487
      %v6901 = vpop.f32.mrf.mxu0
      %v6902 = vadd.f32 %v6744, %v6901
      %6903 = vmatmul.f32.gmra.mxu0 %v6488
      %v6904 = vpop.f32.mrf.mxu0
      %v6905 = vadd.f32 %v6744, %v6904
      %6906 = vmatmul.f32.gmra.mxu0 %v6489
      %v6907 = vpop.f32.mrf.mxu0
      %v6908 = vadd.f32 %v6744, %v6907
      %6909 = vmatmul.f32.gmra.mxu0 %v6490
      %v6910 = vpop.f32.mrf.mxu0
      %v6911 = vadd.f32 %v6744, %v6910
      %6912 = vmatmul.f32.gmra.mxu0 %v6491
      %v6913 = vpop.f32.mrf.mxu0
      %v6914 = vadd.f32 %v6744, %v6913
      %6915 = vmatmul.f32.gmra.mxu0 %v6492
      %v6916 = vpop.f32.mrf.mxu0
      %v6917 = vadd.f32 %v6744, %v6916
      %6918 = vmatmul.f32.gmra.mxu0 %v6493
      %v6919 = vpop.f32.mrf.mxu0
      %v6920 = vadd.f32 %v6744, %v6919
      %6921 = vmatmul.f32.gmra.mxu0 %v6494
      %v6922 = vpop.f32.mrf.mxu0
      %v6923 = vadd.f32 %v6744, %v6922
      %6924 = vdwg.mxu0
      %6925 = vmatpush.msra.mxu0 %v6724
      %6926 = vmatpush.msra.mxu0 %v6723
      %6927 = vmatpush.msra.mxu0 %v6722
      %6928 = vmatpush.msra.mxu0 %v6721
      %6929 = vmatpush.msra.mxu0 %v6720
      %6930 = vmatpush.msra.mxu0 %v6719
      %6931 = vmatpush.msra.mxu0 %v6718
      %6932 = vmatpush.msra.mxu0 %v6717
      %6933 = vmatpush.msra.mxu0 %v6716
      %6934 = vmatpush.msra.mxu0 %v6715
      %6935 = vmatpush.msra.mxu0 %v6714
      %6936 = vmatpush.msra.mxu0 %v6713
      %6937 = vmatpush.msra.mxu0 %v6712
      %6938 = vmatpush.msra.mxu0 %v6711
      %6939 = vmatpush.msra.mxu0 %v6710
      %6940 = vmatpush.msra.mxu0 %v6709
      %6941 = vmatmul.f32.gmra.mxu0 %v6562
      %v6942 = vpop.f32.mrf.mxu0
      %v6943 = vadd.f32 %v6830, %v6942
      %6944 = vmatmul.f32.gmra.mxu0 %v6563
      %v6945 = vpop.f32.mrf.mxu0
      %v6946 = vadd.f32 %v6833, %v6945
      %6947 = vmatmul.f32.gmra.mxu0 %v6564
      %v6948 = vpop.f32.mrf.mxu0
      %v6949 = vadd.f32 %v6836, %v6948
      %6950 = vmatmul.f32.gmra.mxu0 %v6565
      %v6951 = vpop.f32.mrf.mxu0
      %v6952 = vadd.f32 %v6839, %v6951
      %6953 = vmatmul.f32.gmra.mxu0 %v6566
      %v6954 = vpop.f32.mrf.mxu0
      %v6955 = vadd.f32 %v6842, %v6954
      %6956 = vmatmul.f32.gmra.mxu0 %v6567
      %v6957 = vpop.f32.mrf.mxu0
      %v6958 = vadd.f32 %v6845, %v6957
      %6959 = vmatmul.f32.gmra.mxu0 %v6568
      %v6960 = vpop.f32.mrf.mxu0
      %v6961 = vadd.f32 %v6848, %v6960
      %6962 = vmatmul.f32.gmra.mxu0 %v6569
      %v6963 = vpop.f32.mrf.mxu0
      %v6964 = vadd.f32 %v6851, %v6963
      %6965 = vmatmul.f32.gmra.mxu0 %v6570
      %v6966 = vpop.f32.mrf.mxu0
      %v6967 = vadd.f32 %v6854, %v6966
      %6968 = vmatmul.f32.gmra.mxu0 %v6571
      %v6969 = vpop.f32.mrf.mxu0
      %v6970 = vadd.f32 %v6857, %v6969
      %6971 = vmatmul.f32.gmra.mxu0 %v6572
      %v6972 = vpop.f32.mrf.mxu0
      %v6973 = vadd.f32 %v6860, %v6972
      %6974 = vmatmul.f32.gmra.mxu0 %v6573
      %v6975 = vpop.f32.mrf.mxu0
      %v6976 = vadd.f32 %v6863, %v6975
      %6977 = vmatmul.f32.gmra.mxu0 %v6574
      %v6978 = vpop.f32.mrf.mxu0
      %v6979 = vadd.f32 %v6866, %v6978
      %6980 = vmatmul.f32.gmra.mxu0 %v6575
      %v6981 = vpop.f32.mrf.mxu0
      %v6982 = vadd.f32 %v6869, %v6981
      %6983 = vmatmul.f32.gmra.mxu0 %v6576
      %v6984 = vpop.f32.mrf.mxu0
      %v6985 = vadd.f32 %v6872, %v6984
      %6986 = vmatmul.f32.gmra.mxu0 %v6577
      %v6987 = vpop.f32.mrf.mxu0
      %v6988 = vadd.f32 %v6875, %v6987
      %6989 = vmatmul.f32.gmra.mxu0 %v6578
      %v6990 = vpop.f32.mrf.mxu0
      %v6991 = vadd.f32 %v6878, %v6990
      %6992 = vmatmul.f32.gmra.mxu0 %v6579
      %v6993 = vpop.f32.mrf.mxu0
      %v6994 = vadd.f32 %v6881, %v6993
      %6995 = vmatmul.f32.gmra.mxu0 %v6580
      %v6996 = vpop.f32.mrf.mxu0
      %v6997 = vadd.f32 %v6884, %v6996
      %6998 = vmatmul.f32.gmra.mxu0 %v6581
      %v6999 = vpop.f32.mrf.mxu0
      %v7000 = vadd.f32 %v6887, %v6999
      %7001 = vmatmul.f32.gmra.mxu0 %v6582
      %v7002 = vpop.f32.mrf.mxu0
      %v7003 = vadd.f32 %v6890, %v7002
      %7004 = vmatmul.f32.gmra.mxu0 %v6583
      %v7005 = vpop.f32.mrf.mxu0
      %v7006 = vadd.f32 %v6893, %v7005
      %7007 = vmatmul.f32.gmra.mxu0 %v6584
      %v7008 = vpop.f32.mrf.mxu0
      %v7009 = vadd.f32 %v6896, %v7008
      %7010 = vmatmul.f32.gmra.mxu0 %v6585
      %v7011 = vpop.f32.mrf.mxu0
      %v7012 = vadd.f32 %v6899, %v7011
      %7013 = vmatmul.f32.gmra.mxu0 %v6586
      %v7014 = vpop.f32.mrf.mxu0
      %v7015 = vadd.f32 %v6902, %v7014
      %7016 = vmatmul.f32.gmra.mxu0 %v6587
      %v7017 = vpop.f32.mrf.mxu0
      %v7018 = vadd.f32 %v6905, %v7017
      %7019 = vmatmul.f32.gmra.mxu0 %v6588
      %v7020 = vpop.f32.mrf.mxu0
      %v7021 = vadd.f32 %v6908, %v7020
      %7022 = vmatmul.f32.gmra.mxu0 %v6589
      %v7023 = vpop.f32.mrf.mxu0
      %v7024 = vadd.f32 %v6911, %v7023
      %7025 = vmatmul.f32.gmra.mxu0 %v6590
      %v7026 = vpop.f32.mrf.mxu0
      %v7027 = vadd.f32 %v6914, %v7026
      %7028 = vmatmul.f32.gmra.mxu0 %v6591
      %v7029 = vpop.f32.mrf.mxu0
      %v7030 = vadd.f32 %v6917, %v7029
      %7031 = vmatmul.f32.gmra.mxu0 %v6592
      %v7032 = vpop.f32.mrf.mxu0
      %v7033 = vadd.f32 %v6920, %v7032
      %7034 = vmatmul.f32.gmra.mxu0 %v6593
      %v7035 = vpop.f32.mrf.mxu0
      %v7036 = vadd.f32 %v6923, %v7035
      %7037 = vdwg.mxu0
      %7038 = vmatpush.msra.mxu0 %v6740
      %7039 = vmatpush.msra.mxu0 %v6739
      %7040 = vmatpush.msra.mxu0 %v6738
      %7041 = vmatpush.msra.mxu0 %v6737
      %7042 = vmatpush.msra.mxu0 %v6736
      %7043 = vmatpush.msra.mxu0 %v6735
      %7044 = vmatpush.msra.mxu0 %v6734
      %7045 = vmatpush.msra.mxu0 %v6733
      %7046 = vmatpush.msra.mxu0 %v6732
      %7047 = vmatpush.msra.mxu0 %v6731
      %7048 = vmatpush.msra.mxu0 %v6730
      %7049 = vmatpush.msra.mxu0 %v6729
      %7050 = vmatpush.msra.mxu0 %v6728
      %7051 = vmatpush.msra.mxu0 %v6727
      %7052 = vmatpush.msra.mxu0 %v6726
      %7053 = vmatpush.msra.mxu0 %v6725
      %7054 = vmatmul.f32.gmra.mxu0 %v6661
      %v7055 = vpop.f32.mrf.mxu0
      %v7056 = vadd.f32 %v6943, %v7055
      %7057 = vmatmul.f32.gmra.mxu0 %v6662
      %v7058 = vpop.f32.mrf.mxu0
      %v7059 = vadd.f32 %v6946, %v7058
      %7060 = vmatmul.f32.gmra.mxu0 %v6663
      %v7061 = vpop.f32.mrf.mxu0
      %v7062 = vadd.f32 %v6949, %v7061
      %7063 = vmatmul.f32.gmra.mxu0 %v6664
      %v7064 = vpop.f32.mrf.mxu0
      %v7065 = vadd.f32 %v6952, %v7064
      %7066 = vmatmul.f32.gmra.mxu0 %v6665
      %v7067 = vpop.f32.mrf.mxu0
      %v7068 = vadd.f32 %v6955, %v7067
      %7069 = vmatmul.f32.gmra.mxu0 %v6666
      %v7070 = vpop.f32.mrf.mxu0
      %v7071 = vadd.f32 %v6958, %v7070
      %7072 = vmatmul.f32.gmra.mxu0 %v6667
      %v7073 = vpop.f32.mrf.mxu0
      %v7074 = vadd.f32 %v6961, %v7073
      %7075 = vmatmul.f32.gmra.mxu0 %v6668
      %v7076 = vpop.f32.mrf.mxu0
      %v7077 = vadd.f32 %v6964, %v7076
      %7078 = vmatmul.f32.gmra.mxu0 %v6669
      %v7079 = vpop.f32.mrf.mxu0
      %v7080 = vadd.f32 %v6967, %v7079
      %7081 = vmatmul.f32.gmra.mxu0 %v6670
      %v7082 = vpop.f32.mrf.mxu0
      %v7083 = vadd.f32 %v6970, %v7082
      %7084 = vmatmul.f32.gmra.mxu0 %v6671
      %v7085 = vpop.f32.mrf.mxu0
      %v7086 = vadd.f32 %v6973, %v7085
      %7087 = vmatmul.f32.gmra.mxu0 %v6672
      %v7088 = vpop.f32.mrf.mxu0
      %v7089 = vadd.f32 %v6976, %v7088
      %7090 = vmatmul.f32.gmra.mxu0 %v6673
      %v7091 = vpop.f32.mrf.mxu0
      %v7092 = vadd.f32 %v6979, %v7091
      %7093 = vmatmul.f32.gmra.mxu0 %v6674
      %v7094 = vpop.f32.mrf.mxu0
      %v7095 = vadd.f32 %v6982, %v7094
      %7096 = vmatmul.f32.gmra.mxu0 %v6675
      %v7097 = vpop.f32.mrf.mxu0
      %v7098 = vadd.f32 %v6985, %v7097
      %7099 = vmatmul.f32.gmra.mxu0 %v6676
      %v7100 = vpop.f32.mrf.mxu0
      %v7101 = vadd.f32 %v6988, %v7100
      %7102 = vmatmul.f32.gmra.mxu0 %v6677
      %v7103 = vpop.f32.mrf.mxu0
      %v7104 = vadd.f32 %v6991, %v7103
      %7105 = vmatmul.f32.gmra.mxu0 %v6678
      %v7106 = vpop.f32.mrf.mxu0
      %v7107 = vadd.f32 %v6994, %v7106
      %7108 = vmatmul.f32.gmra.mxu0 %v6679
      %v7109 = vpop.f32.mrf.mxu0
      %v7110 = vadd.f32 %v6997, %v7109
      %7111 = vmatmul.f32.gmra.mxu0 %v6680
      %v7112 = vpop.f32.mrf.mxu0
      %v7113 = vadd.f32 %v7000, %v7112
      %7114 = vmatmul.f32.gmra.mxu0 %v6681
      %v7115 = vpop.f32.mrf.mxu0
      %v7116 = vadd.f32 %v7003, %v7115
      %7117 = vmatmul.f32.gmra.mxu0 %v6682
      %v7118 = vpop.f32.mrf.mxu0
      %v7119 = vadd.f32 %v7006, %v7118
      %7120 = vmatmul.f32.gmra.mxu0 %v6683
      %v7121 = vpop.f32.mrf.mxu0
      %v7122 = vadd.f32 %v7009, %v7121
      %7123 = vmatmul.f32.gmra.mxu0 %v6684
      %v7124 = vpop.f32.mrf.mxu0
      %v7125 = vadd.f32 %v7012, %v7124
      %7126 = vmatmul.f32.gmra.mxu0 %v6685
      %v7127 = vpop.f32.mrf.mxu0
      %v7128 = vadd.f32 %v7015, %v7127
      %7129 = vmatmul.f32.gmra.mxu0 %v6686
      %v7130 = vpop.f32.mrf.mxu0
      %v7131 = vadd.f32 %v7018, %v7130
      %7132 = vmatmul.f32.gmra.mxu0 %v6687
      %v7133 = vpop.f32.mrf.mxu0
      %v7134 = vadd.f32 %v7021, %v7133
      %7135 = vmatmul.f32.gmra.mxu0 %v6688
      %v7136 = vpop.f32.mrf.mxu0
      %v7137 = vadd.f32 %v7024, %v7136
      %7138 = vmatmul.f32.gmra.mxu0 %v6689
      %v7139 = vpop.f32.mrf.mxu0
      %v7140 = vadd.f32 %v7027, %v7139
      %7141 = vmatmul.f32.gmra.mxu0 %v6690
      %v7142 = vpop.f32.mrf.mxu0
      %v7143 = vadd.f32 %v7030, %v7142
      %7144 = vmatmul.f32.gmra.mxu0 %v6691
      %v7145 = vpop.f32.mrf.mxu0
      %v7146 = vadd.f32 %v7033, %v7145
      %7147 = vmatmul.f32.gmra.mxu0 %v6692
      %v7148 = vpop.f32.mrf.mxu0
      %v7149 = vadd.f32 %v7036, %v7148
      %7150 = vdwg.mxu0
      %7151 = vmatpush.msra.mxu0 0.0
      %7152 = vmatpush.msra.mxu0 0.0
      %7153 = vmatpush.msra.mxu0 0.0
      %7154 = vmatpush.msra.mxu0 0.0
      %7155 = vmatpush.msra.mxu0 0.0
      %7156 = vmatpush.msra.mxu0 0.0
      %7157 = vmatpush.msra.mxu0 0.0
      %7158 = vmatpush.msra.mxu0 0.0
      %7159 = vmatpush.msra.mxu0 0.0
      %7160 = vmatpush.msra.mxu0 0.0
      %7161 = vmatpush.msra.mxu0 0.0
      %7162 = vmatpush.msra.mxu0 0.0
      %7163 = vmatpush.msra.mxu0 0.0
      %7164 = vmatpush.msra.mxu0 0.0
      %7165 = vmatpush.msra.mxu0 0.0
      %7166 = vmatpush.msra.mxu0 %v6810
      %7167 = vmatmul.f32.gmra.mxu0 %v6747
      %v7168 = vpop.f32.mrf.mxu0
      %v7169 = vadd.f32 %v7056, %v7168
      %7170 = vmatmul.f32.gmra.mxu0 %v6749
      %v7171 = vpop.f32.mrf.mxu0
      %v7172 = vadd.f32 %v7059, %v7171
      %7173 = vmatmul.f32.gmra.mxu0 %v6751
      %v7174 = vpop.f32.mrf.mxu0
      %v7175 = vadd.f32 %v7062, %v7174
      %7176 = vmatmul.f32.gmra.mxu0 %v6753
      %v7177 = vpop.f32.mrf.mxu0
      %v7178 = vadd.f32 %v7065, %v7177
      %7179 = vmatmul.f32.gmra.mxu0 %v6755
      %v7180 = vpop.f32.mrf.mxu0
      %v7181 = vadd.f32 %v7068, %v7180
      %7182 = vmatmul.f32.gmra.mxu0 %v6757
      %v7183 = vpop.f32.mrf.mxu0
      %v7184 = vadd.f32 %v7071, %v7183
      %7185 = vmatmul.f32.gmra.mxu0 %v6759
      %v7186 = vpop.f32.mrf.mxu0
      %v7187 = vadd.f32 %v7074, %v7186
      %7188 = vmatmul.f32.gmra.mxu0 %v6761
      %v7189 = vpop.f32.mrf.mxu0
      %v7190 = vadd.f32 %v7077, %v7189
      %7191 = vmatmul.f32.gmra.mxu0 %v6763
      %v7192 = vpop.f32.mrf.mxu0
      %v7193 = vadd.f32 %v7080, %v7192
      %7194 = vmatmul.f32.gmra.mxu0 %v6765
      %v7195 = vpop.f32.mrf.mxu0
      %v7196 = vadd.f32 %v7083, %v7195
      %7197 = vmatmul.f32.gmra.mxu0 %v6767
      %v7198 = vpop.f32.mrf.mxu0
      %v7199 = vadd.f32 %v7086, %v7198
      %7200 = vmatmul.f32.gmra.mxu0 %v6769
      %v7201 = vpop.f32.mrf.mxu0
      %v7202 = vadd.f32 %v7089, %v7201
      %7203 = vmatmul.f32.gmra.mxu0 %v6771
      %v7204 = vpop.f32.mrf.mxu0
      %v7205 = vadd.f32 %v7092, %v7204
      %7206 = vmatmul.f32.gmra.mxu0 %v6773
      %v7207 = vpop.f32.mrf.mxu0
      %v7208 = vadd.f32 %v7095, %v7207
      %7209 = vmatmul.f32.gmra.mxu0 %v6775
      %v7210 = vpop.f32.mrf.mxu0
      %v7211 = vadd.f32 %v7098, %v7210
      %7212 = vmatmul.f32.gmra.mxu0 %v6777
      %v7213 = vpop.f32.mrf.mxu0
      %v7214 = vadd.f32 %v7101, %v7213
      %7215 = vmatmul.f32.gmra.mxu0 %v6779
      %v7216 = vpop.f32.mrf.mxu0
      %v7217 = vadd.f32 %v7104, %v7216
      %7218 = vmatmul.f32.gmra.mxu0 %v6781
      %v7219 = vpop.f32.mrf.mxu0
      %v7220 = vadd.f32 %v7107, %v7219
      %7221 = vmatmul.f32.gmra.mxu0 %v6783
      %v7222 = vpop.f32.mrf.mxu0
      %v7223 = vadd.f32 %v7110, %v7222
      %7224 = vmatmul.f32.gmra.mxu0 %v6785
      %v7225 = vpop.f32.mrf.mxu0
      %v7226 = vadd.f32 %v7113, %v7225
      %7227 = vmatmul.f32.gmra.mxu0 %v6787
      %v7228 = vpop.f32.mrf.mxu0
      %v7229 = vadd.f32 %v7116, %v7228
      %7230 = vmatmul.f32.gmra.mxu0 %v6789
      %v7231 = vpop.f32.mrf.mxu0
      %v7232 = vadd.f32 %v7119, %v7231
      %7233 = vmatmul.f32.gmra.mxu0 %v6791
      %v7234 = vpop.f32.mrf.mxu0
      %v7235 = vadd.f32 %v7122, %v7234
      %7236 = vmatmul.f32.gmra.mxu0 %v6793
      %v7237 = vpop.f32.mrf.mxu0
      %v7238 = vadd.f32 %v7125, %v7237
      %7239 = vmatmul.f32.gmra.mxu0 %v6795
      %v7240 = vpop.f32.mrf.mxu0
      %v7241 = vadd.f32 %v7128, %v7240
      %7242 = vmatmul.f32.gmra.mxu0 %v6797
      %v7243 = vpop.f32.mrf.mxu0
      %v7244 = vadd.f32 %v7131, %v7243
      %7245 = vmatmul.f32.gmra.mxu0 %v6799
      %v7246 = vpop.f32.mrf.mxu0
      %v7247 = vadd.f32 %v7134, %v7246
      %7248 = vmatmul.f32.gmra.mxu0 %v6801
      %v7249 = vpop.f32.mrf.mxu0
      %v7250 = vadd.f32 %v7137, %v7249
      %7251 = vmatmul.f32.gmra.mxu0 %v6803
      %v7252 = vpop.f32.mrf.mxu0
      %v7253 = vadd.f32 %v7140, %v7252
      %7254 = vmatmul.f32.gmra.mxu0 %v6805
      %v7255 = vpop.f32.mrf.mxu0
      %v7256 = vadd.f32 %v7143, %v7255
      %7257 = vmatmul.f32.gmra.mxu0 %v6807
      %v7258 = vpop.f32.mrf.mxu0
      %v7259 = vadd.f32 %v7146, %v7258
      %7260 = vmatmul.f32.gmra.mxu0 %v6807
      %v7261 = vpop.f32.mrf.mxu0
      %v7262 = vadd.f32 %v7149, %v7261
      %7263 = vdwg.mxu0
      %v7264 = vmul.f32 %v7169, 0.5
      %v7265 = vmul.f32 %v7172, 0.5
      %v7266 = vmul.f32 %v7175, 0.5
      %v7267 = vmul.f32 %v7178, 0.5
      %v7268 = vmul.f32 %v7181, 0.5
      %v7269 = vmul.f32 %v7184, 0.5
      %v7270 = vmul.f32 %v7187, 0.5
      %v7271 = vmul.f32 %v7190, 0.5
      %v7272 = vmul.f32 %v7193, 0.5
      %v7273 = vmul.f32 %v7196, 0.5
      %v7274 = vmul.f32 %v7199, 0.5
      %v7275 = vmul.f32 %v7202, 0.5
      %v7276 = vmul.f32 %v7205, 0.5
      %v7277 = vmul.f32 %v7208, 0.5
      %v7278 = vmul.f32 %v7211, 0.5
      %v7279 = vmul.f32 %v7214, 0.5
      %v7280 = vmul.f32 %v7217, 0.5
      %v7281 = vmul.f32 %v7220, 0.5
      %v7282 = vmul.f32 %v7223, 0.5
      %v7283 = vmul.f32 %v7226, 0.5
      %v7284 = vmul.f32 %v7229, 0.5
      %v7285 = vmul.f32 %v7232, 0.5
      %v7286 = vmul.f32 %v7235, 0.5
      %v7287 = vmul.f32 %v7238, 0.5
      %v7288 = vmul.f32 %v7241, 0.5
      %v7289 = vmul.f32 %v7244, 0.5
      %v7290 = vmul.f32 %v7247, 0.5
      %v7291 = vmul.f32 %v7250, 0.5
      %v7292 = vmul.f32 %v7253, 0.5
      %v7293 = vmul.f32 %v7256, 0.5
      %v7294 = vmul.f32 %v7259, 0.5
      %v7295 = vmul.f32 %v7262, 0.5
      %v7296 = vmul.f32 %v7169, 0.70710677
      %v7297 = vmul.f32 %v7172, 0.70710677
      %v7298 = vmul.f32 %v7175, 0.70710677
      %v7299 = vmul.f32 %v7178, 0.70710677
      %v7300 = vmul.f32 %v7181, 0.70710677
      %v7301 = vmul.f32 %v7184, 0.70710677
      %v7302 = vmul.f32 %v7187, 0.70710677
      %v7303 = vmul.f32 %v7190, 0.70710677
      %v7304 = vmul.f32 %v7193, 0.70710677
      %v7305 = vmul.f32 %v7196, 0.70710677
      %v7306 = vmul.f32 %v7199, 0.70710677
      %v7307 = vmul.f32 %v7202, 0.70710677
      %v7308 = vmul.f32 %v7205, 0.70710677
      %v7309 = vmul.f32 %v7208, 0.70710677
      %v7310 = vmul.f32 %v7211, 0.70710677
      %v7311 = vmul.f32 %v7214, 0.70710677
      %v7312 = vmul.f32 %v7217, 0.70710677
      %v7313 = vmul.f32 %v7220, 0.70710677
      %v7314 = vmul.f32 %v7223, 0.70710677
      %v7315 = vmul.f32 %v7226, 0.70710677
      %v7316 = vmul.f32 %v7229, 0.70710677
      %v7317 = vmul.f32 %v7232, 0.70710677
      %v7318 = vmul.f32 %v7235, 0.70710677
      %v7319 = vmul.f32 %v7238, 0.70710677
      %v7320 = vmul.f32 %v7241, 0.70710677
      %v7321 = vmul.f32 %v7244, 0.70710677
      %v7322 = vmul.f32 %v7247, 0.70710677
      %v7323 = vmul.f32 %v7250, 0.70710677
      %v7324 = vmul.f32 %v7253, 0.70710677
      %v7325 = vmul.f32 %v7256, 0.70710677
      %v7326 = vmul.f32 %v7259, 0.70710677
      %v7327 = vmul.f32 %v7262, 0.70710677
      %v7328 = vmul.f32 %v7296, %v7296
      %v7329 = vmin.f32 16.0, %v7328
      %v7330 = vmul.f32 %v7329, 2.1237322e-06
      %v7331 = vadd.f32 %v7330, 0.00028619796
      %v7332 = vmul.f32 %v7329, %v7331
      %v7333 = vadd.f32 %v7332, 0.0036580483
      %v7334 = vmul.f32 %v7329, %v7333
      %v7335 = vadd.f32 %v7334, 0.05243302
      %v7336 = vmul.f32 %v7329, %v7335
      %v7337 = vadd.f32 %v7336, 0.18741608
      %v7338 = vmul.f32 %v7329, %v7337
      %v7339 = vadd.f32 %v7338, 1.1283791
      %v7340 = vmul.f32 %v7296, %v7339
      %v7341 = vmul.f32 %v7329, 3.8918573e-05
      %v7342 = vadd.f32 %v7341, 0.001143296
      %v7343 = vmul.f32 %v7329, %v7342
      %v7344 = vadd.f32 %v7343, 0.014752088
      %v7345 = vmul.f32 %v7329, %v7344
      %v7346 = vadd.f32 %v7345, 0.112945676
      %v7347 = vmul.f32 %v7329, %v7346
      %v7348 = vadd.f32 %v7347, 0.4994258
      %v7349 = vmul.f32 %v7329, %v7348
      %v7350 = vadd.f32 %v7349, 1.0
      %v7351 = vrcp.pop %v7350
      %v7352 = vmul.f32 %v7350, %v7351
      %v7353 = vsub.f32 1.0, %v7352
      %v7354 = vmul.f32 %v7351, %v7353
      %v7355 = vadd.f32 %v7351, %v7354
      %vm7356 = vweird.f32 %v7350
      %vm7357 = vweird.f32 %v7351
      %vm7358 = vmor %vm7356, %vm7357
      %v7359 = vsel %vm7358, %v7351, %v7355
      %v7360 = vand.u32 2147483647, %v7350
      %vm7361 = vcmp.eq.f32.partialorder %v7360, 8.507059e+37
      %v7362 = vand.u32 %v7350, 2147483648
      %v7363 = vor.u32 1.1754944e-38, %v7362
      %v7364 = vsel %vm7361, %v7363, %v7359
      %v7365 = vmul.f32 %v7340, %v7364
      %v7366 = vmin.f32 %v7365, 1.0
      %v7367 = vmax.f32 %v7366, -1.0
      %v7368 = vmul.f32 %v7297, %v7297
      %v7369 = vmin.f32 16.0, %v7368
      %v7370 = vmul.f32 %v7369, 2.1237322e-06
      %v7371 = vadd.f32 %v7370, 0.00028619796
      %v7372 = vmul.f32 %v7369, %v7371
      %v7373 = vadd.f32 %v7372, 0.0036580483
      %v7374 = vmul.f32 %v7369, %v7373
      %v7375 = vadd.f32 %v7374, 0.05243302
      %v7376 = vmul.f32 %v7369, %v7375
      %v7377 = vadd.f32 %v7376, 0.18741608
      %v7378 = vmul.f32 %v7369, %v7377
      %v7379 = vadd.f32 %v7378, 1.1283791
      %v7380 = vmul.f32 %v7297, %v7379
      %v7381 = vmul.f32 %v7369, 3.8918573e-05
      %v7382 = vadd.f32 %v7381, 0.001143296
      %v7383 = vmul.f32 %v7369, %v7382
      %v7384 = vadd.f32 %v7383, 0.014752088
      %v7385 = vmul.f32 %v7369, %v7384
      %v7386 = vadd.f32 %v7385, 0.112945676
      %v7387 = vmul.f32 %v7369, %v7386
      %v7388 = vadd.f32 %v7387, 0.4994258
      %v7389 = vmul.f32 %v7369, %v7388
      %v7390 = vadd.f32 %v7389, 1.0
      %v7391 = vrcp.pop %v7390
      %v7392 = vmul.f32 %v7390, %v7391
      %v7393 = vsub.f32 1.0, %v7392
      %v7394 = vmul.f32 %v7391, %v7393
      %v7395 = vadd.f32 %v7391, %v7394
      %vm7396 = vweird.f32 %v7390
      %vm7397 = vweird.f32 %v7391
      %vm7398 = vmor %vm7396, %vm7397
      %v7399 = vsel %vm7398, %v7391, %v7395
      %v7400 = vand.u32 2147483647, %v7390
      %vm7401 = vcmp.eq.f32.partialorder %v7400, 8.507059e+37
      %v7402 = vand.u32 %v7390, 2147483648
      %v7403 = vor.u32 1.1754944e-38, %v7402
      %v7404 = vsel %vm7401, %v7403, %v7399
      %v7405 = vmul.f32 %v7380, %v7404
      %v7406 = vmin.f32 %v7405, 1.0
      %v7407 = vmax.f32 %v7406, -1.0
      %v7408 = vmul.f32 %v7298, %v7298
      %v7409 = vmin.f32 16.0, %v7408
      %v7410 = vmul.f32 %v7409, 2.1237322e-06
      %v7411 = vadd.f32 %v7410, 0.00028619796
      %v7412 = vmul.f32 %v7409, %v7411
      %v7413 = vadd.f32 %v7412, 0.0036580483
      %v7414 = vmul.f32 %v7409, %v7413
      %v7415 = vadd.f32 %v7414, 0.05243302
      %v7416 = vmul.f32 %v7409, %v7415
      %v7417 = vadd.f32 %v7416, 0.18741608
      %v7418 = vmul.f32 %v7409, %v7417
      %v7419 = vadd.f32 %v7418, 1.1283791
      %v7420 = vmul.f32 %v7298, %v7419
      %v7421 = vmul.f32 %v7409, 3.8918573e-05
      %v7422 = vadd.f32 %v7421, 0.001143296
      %v7423 = vmul.f32 %v7409, %v7422
      %v7424 = vadd.f32 %v7423, 0.014752088
      %v7425 = vmul.f32 %v7409, %v7424
      %v7426 = vadd.f32 %v7425, 0.112945676
      %v7427 = vmul.f32 %v7409, %v7426
      %v7428 = vadd.f32 %v7427, 0.4994258
      %v7429 = vmul.f32 %v7409, %v7428
      %v7430 = vadd.f32 %v7429, 1.0
      %v7431 = vrcp.pop %v7430
      %v7432 = vmul.f32 %v7430, %v7431
      %v7433 = vsub.f32 1.0, %v7432
      %v7434 = vmul.f32 %v7431, %v7433
      %v7435 = vadd.f32 %v7431, %v7434
      %vm7436 = vweird.f32 %v7430
      %vm7437 = vweird.f32 %v7431
      %vm7438 = vmor %vm7436, %vm7437
      %v7439 = vsel %vm7438, %v7431, %v7435
      %v7440 = vand.u32 2147483647, %v7430
      %vm7441 = vcmp.eq.f32.partialorder %v7440, 8.507059e+37
      %v7442 = vand.u32 %v7430, 2147483648
      %v7443 = vor.u32 1.1754944e-38, %v7442
      %v7444 = vsel %vm7441, %v7443, %v7439
      %v7445 = vmul.f32 %v7420, %v7444
      %v7446 = vmin.f32 %v7445, 1.0
      %v7447 = vmax.f32 %v7446, -1.0
      %v7448 = vmul.f32 %v7299, %v7299
      %v7449 = vmin.f32 16.0, %v7448
      %v7450 = vmul.f32 %v7449, 2.1237322e-06
      %v7451 = vadd.f32 %v7450, 0.00028619796
      %v7452 = vmul.f32 %v7449, %v7451
      %v7453 = vadd.f32 %v7452, 0.0036580483
      %v7454 = vmul.f32 %v7449, %v7453
      %v7455 = vadd.f32 %v7454, 0.05243302
      %v7456 = vmul.f32 %v7449, %v7455
      %v7457 = vadd.f32 %v7456, 0.18741608
      %v7458 = vmul.f32 %v7449, %v7457
      %v7459 = vadd.f32 %v7458, 1.1283791
      %v7460 = vmul.f32 %v7299, %v7459
      %v7461 = vmul.f32 %v7449, 3.8918573e-05
      %v7462 = vadd.f32 %v7461, 0.001143296
      %v7463 = vmul.f32 %v7449, %v7462
      %v7464 = vadd.f32 %v7463, 0.014752088
      %v7465 = vmul.f32 %v7449, %v7464
      %v7466 = vadd.f32 %v7465, 0.112945676
      %v7467 = vmul.f32 %v7449, %v7466
      %v7468 = vadd.f32 %v7467, 0.4994258
      %v7469 = vmul.f32 %v7449, %v7468
      %v7470 = vadd.f32 %v7469, 1.0
      %v7471 = vrcp.pop %v7470
      %v7472 = vmul.f32 %v7470, %v7471
      %v7473 = vsub.f32 1.0, %v7472
      %v7474 = vmul.f32 %v7471, %v7473
      %v7475 = vadd.f32 %v7471, %v7474
      %vm7476 = vweird.f32 %v7470
      %vm7477 = vweird.f32 %v7471
      %vm7478 = vmor %vm7476, %vm7477
      %v7479 = vsel %vm7478, %v7471, %v7475
      %v7480 = vand.u32 2147483647, %v7470
      %vm7481 = vcmp.eq.f32.partialorder %v7480, 8.507059e+37
      %v7482 = vand.u32 %v7470, 2147483648
      %v7483 = vor.u32 1.1754944e-38, %v7482
      %v7484 = vsel %vm7481, %v7483, %v7479
      %v7485 = vmul.f32 %v7460, %v7484
      %v7486 = vmin.f32 %v7485, 1.0
      %v7487 = vmax.f32 %v7486, -1.0
      %v7488 = vmul.f32 %v7300, %v7300
      %v7489 = vmin.f32 16.0, %v7488
      %v7490 = vmul.f32 %v7489, 2.1237322e-06
      %v7491 = vadd.f32 %v7490, 0.00028619796
      %v7492 = vmul.f32 %v7489, %v7491
      %v7493 = vadd.f32 %v7492, 0.0036580483
      %v7494 = vmul.f32 %v7489, %v7493
      %v7495 = vadd.f32 %v7494, 0.05243302
      %v7496 = vmul.f32 %v7489, %v7495
      %v7497 = vadd.f32 %v7496, 0.18741608
      %v7498 = vmul.f32 %v7489, %v7497
      %v7499 = vadd.f32 %v7498, 1.1283791
      %v7500 = vmul.f32 %v7300, %v7499
      %v7501 = vmul.f32 %v7489, 3.8918573e-05
      %v7502 = vadd.f32 %v7501, 0.001143296
      %v7503 = vmul.f32 %v7489, %v7502
      %v7504 = vadd.f32 %v7503, 0.014752088
      %v7505 = vmul.f32 %v7489, %v7504
      %v7506 = vadd.f32 %v7505, 0.112945676
      %v7507 = vmul.f32 %v7489, %v7506
      %v7508 = vadd.f32 %v7507, 0.4994258
      %v7509 = vmul.f32 %v7489, %v7508
      %v7510 = vadd.f32 %v7509, 1.0
      %v7511 = vrcp.pop %v7510
      %v7512 = vmul.f32 %v7510, %v7511
      %v7513 = vsub.f32 1.0, %v7512
      %v7514 = vmul.f32 %v7511, %v7513
      %v7515 = vadd.f32 %v7511, %v7514
      %vm7516 = vweird.f32 %v7510
      %vm7517 = vweird.f32 %v7511
      %vm7518 = vmor %vm7516, %vm7517
      %v7519 = vsel %vm7518, %v7511, %v7515
      %v7520 = vand.u32 2147483647, %v7510
      %vm7521 = vcmp.eq.f32.partialorder %v7520, 8.507059e+37
      %v7522 = vand.u32 %v7510, 2147483648
      %v7523 = vor.u32 1.1754944e-38, %v7522
      %v7524 = vsel %vm7521, %v7523, %v7519
      %v7525 = vmul.f32 %v7500, %v7524
      %v7526 = vmin.f32 %v7525, 1.0
      %v7527 = vmax.f32 %v7526, -1.0
      %v7528 = vmul.f32 %v7301, %v7301
      %v7529 = vmin.f32 16.0, %v7528
      %v7530 = vmul.f32 %v7529, 2.1237322e-06
      %v7531 = vadd.f32 %v7530, 0.00028619796
      %v7532 = vmul.f32 %v7529, %v7531
      %v7533 = vadd.f32 %v7532, 0.0036580483
      %v7534 = vmul.f32 %v7529, %v7533
      %v7535 = vadd.f32 %v7534, 0.05243302
      %v7536 = vmul.f32 %v7529, %v7535
      %v7537 = vadd.f32 %v7536, 0.18741608
      %v7538 = vmul.f32 %v7529, %v7537
      %v7539 = vadd.f32 %v7538, 1.1283791
      %v7540 = vmul.f32 %v7301, %v7539
      %v7541 = vmul.f32 %v7529, 3.8918573e-05
      %v7542 = vadd.f32 %v7541, 0.001143296
      %v7543 = vmul.f32 %v7529, %v7542
      %v7544 = vadd.f32 %v7543, 0.014752088
      %v7545 = vmul.f32 %v7529, %v7544
      %v7546 = vadd.f32 %v7545, 0.112945676
      %v7547 = vmul.f32 %v7529, %v7546
      %v7548 = vadd.f32 %v7547, 0.4994258
      %v7549 = vmul.f32 %v7529, %v7548
      %v7550 = vadd.f32 %v7549, 1.0
      %v7551 = vrcp.pop %v7550
      %v7552 = vmul.f32 %v7550, %v7551
      %v7553 = vsub.f32 1.0, %v7552
      %v7554 = vmul.f32 %v7551, %v7553
      %v7555 = vadd.f32 %v7551, %v7554
      %vm7556 = vweird.f32 %v7550
      %vm7557 = vweird.f32 %v7551
      %vm7558 = vmor %vm7556, %vm7557
      %v7559 = vsel %vm7558, %v7551, %v7555
      %v7560 = vand.u32 2147483647, %v7550
      %vm7561 = vcmp.eq.f32.partialorder %v7560, 8.507059e+37
      %v7562 = vand.u32 %v7550, 2147483648
      %v7563 = vor.u32 1.1754944e-38, %v7562
      %v7564 = vsel %vm7561, %v7563, %v7559
      %v7565 = vmul.f32 %v7540, %v7564
      %v7566 = vmin.f32 %v7565, 1.0
      %v7567 = vmax.f32 %v7566, -1.0
      %v7568 = vmul.f32 %v7302, %v7302
      %v7569 = vmin.f32 16.0, %v7568
      %v7570 = vmul.f32 %v7569, 2.1237322e-06
      %v7571 = vadd.f32 %v7570, 0.00028619796
      %v7572 = vmul.f32 %v7569, %v7571
      %v7573 = vadd.f32 %v7572, 0.0036580483
      %v7574 = vmul.f32 %v7569, %v7573
      %v7575 = vadd.f32 %v7574, 0.05243302
      %v7576 = vmul.f32 %v7569, %v7575
      %v7577 = vadd.f32 %v7576, 0.18741608
      %v7578 = vmul.f32 %v7569, %v7577
      %v7579 = vadd.f32 %v7578, 1.1283791
      %v7580 = vmul.f32 %v7302, %v7579
      %v7581 = vmul.f32 %v7569, 3.8918573e-05
      %v7582 = vadd.f32 %v7581, 0.001143296
      %v7583 = vmul.f32 %v7569, %v7582
      %v7584 = vadd.f32 %v7583, 0.014752088
      %v7585 = vmul.f32 %v7569, %v7584
      %v7586 = vadd.f32 %v7585, 0.112945676
      %v7587 = vmul.f32 %v7569, %v7586
      %v7588 = vadd.f32 %v7587, 0.4994258
      %v7589 = vmul.f32 %v7569, %v7588
      %v7590 = vadd.f32 %v7589, 1.0
      %v7591 = vrcp.pop %v7590
      %v7592 = vmul.f32 %v7590, %v7591
      %v7593 = vsub.f32 1.0, %v7592
      %v7594 = vmul.f32 %v7591, %v7593
      %v7595 = vadd.f32 %v7591, %v7594
      %vm7596 = vweird.f32 %v7590
      %vm7597 = vweird.f32 %v7591
      %vm7598 = vmor %vm7596, %vm7597
      %v7599 = vsel %vm7598, %v7591, %v7595
      %v7600 = vand.u32 2147483647, %v7590
      %vm7601 = vcmp.eq.f32.partialorder %v7600, 8.507059e+37
      %v7602 = vand.u32 %v7590, 2147483648
      %v7603 = vor.u32 1.1754944e-38, %v7602
      %v7604 = vsel %vm7601, %v7603, %v7599
      %v7605 = vmul.f32 %v7580, %v7604
      %v7606 = vmin.f32 %v7605, 1.0
      %v7607 = vmax.f32 %v7606, -1.0
      %v7608 = vmul.f32 %v7303, %v7303
      %v7609 = vmin.f32 16.0, %v7608
      %v7610 = vmul.f32 %v7609, 2.1237322e-06
      %v7611 = vadd.f32 %v7610, 0.00028619796
      %v7612 = vmul.f32 %v7609, %v7611
      %v7613 = vadd.f32 %v7612, 0.0036580483
      %v7614 = vmul.f32 %v7609, %v7613
      %v7615 = vadd.f32 %v7614, 0.05243302
      %v7616 = vmul.f32 %v7609, %v7615
      %v7617 = vadd.f32 %v7616, 0.18741608
      %v7618 = vmul.f32 %v7609, %v7617
      %v7619 = vadd.f32 %v7618, 1.1283791
      %v7620 = vmul.f32 %v7303, %v7619
      %v7621 = vmul.f32 %v7609, 3.8918573e-05
      %v7622 = vadd.f32 %v7621, 0.001143296
      %v7623 = vmul.f32 %v7609, %v7622
      %v7624 = vadd.f32 %v7623, 0.014752088
      %v7625 = vmul.f32 %v7609, %v7624
      %v7626 = vadd.f32 %v7625, 0.112945676
      %v7627 = vmul.f32 %v7609, %v7626
      %v7628 = vadd.f32 %v7627, 0.4994258
      %v7629 = vmul.f32 %v7609, %v7628
      %v7630 = vadd.f32 %v7629, 1.0
      %v7631 = vrcp.pop %v7630
      %v7632 = vmul.f32 %v7630, %v7631
      %v7633 = vsub.f32 1.0, %v7632
      %v7634 = vmul.f32 %v7631, %v7633
      %v7635 = vadd.f32 %v7631, %v7634
      %vm7636 = vweird.f32 %v7630
      %vm7637 = vweird.f32 %v7631
      %vm7638 = vmor %vm7636, %vm7637
      %v7639 = vsel %vm7638, %v7631, %v7635
      %v7640 = vand.u32 2147483647, %v7630
      %vm7641 = vcmp.eq.f32.partialorder %v7640, 8.507059e+37
      %v7642 = vand.u32 %v7630, 2147483648
      %v7643 = vor.u32 1.1754944e-38, %v7642
      %v7644 = vsel %vm7641, %v7643, %v7639
      %v7645 = vmul.f32 %v7620, %v7644
      %v7646 = vmin.f32 %v7645, 1.0
      %v7647 = vmax.f32 %v7646, -1.0
      %v7648 = vmul.f32 %v7304, %v7304
      %v7649 = vmin.f32 16.0, %v7648
      %v7650 = vmul.f32 %v7649, 2.1237322e-06
      %v7651 = vadd.f32 %v7650, 0.00028619796
      %v7652 = vmul.f32 %v7649, %v7651
      %v7653 = vadd.f32 %v7652, 0.0036580483
      %v7654 = vmul.f32 %v7649, %v7653
      %v7655 = vadd.f32 %v7654, 0.05243302
      %v7656 = vmul.f32 %v7649, %v7655
      %v7657 = vadd.f32 %v7656, 0.18741608
      %v7658 = vmul.f32 %v7649, %v7657
      %v7659 = vadd.f32 %v7658, 1.1283791
      %v7660 = vmul.f32 %v7304, %v7659
      %v7661 = vmul.f32 %v7649, 3.8918573e-05
      %v7662 = vadd.f32 %v7661, 0.001143296
      %v7663 = vmul.f32 %v7649, %v7662
      %v7664 = vadd.f32 %v7663, 0.014752088
      %v7665 = vmul.f32 %v7649, %v7664
      %v7666 = vadd.f32 %v7665, 0.112945676
      %v7667 = vmul.f32 %v7649, %v7666
      %v7668 = vadd.f32 %v7667, 0.4994258
      %v7669 = vmul.f32 %v7649, %v7668
      %v7670 = vadd.f32 %v7669, 1.0
      %v7671 = vrcp.pop %v7670
      %v7672 = vmul.f32 %v7670, %v7671
      %v7673 = vsub.f32 1.0, %v7672
      %v7674 = vmul.f32 %v7671, %v7673
      %v7675 = vadd.f32 %v7671, %v7674
      %vm7676 = vweird.f32 %v7670
      %vm7677 = vweird.f32 %v7671
      %vm7678 = vmor %vm7676, %vm7677
      %v7679 = vsel %vm7678, %v7671, %v7675
      %v7680 = vand.u32 2147483647, %v7670
      %vm7681 = vcmp.eq.f32.partialorder %v7680, 8.507059e+37
      %v7682 = vand.u32 %v7670, 2147483648
      %v7683 = vor.u32 1.1754944e-38, %v7682
      %v7684 = vsel %vm7681, %v7683, %v7679
      %v7685 = vmul.f32 %v7660, %v7684
      %v7686 = vmin.f32 %v7685, 1.0
      %v7687 = vmax.f32 %v7686, -1.0
      %v7688 = vmul.f32 %v7305, %v7305
      %v7689 = vmin.f32 16.0, %v7688
      %v7690 = vmul.f32 %v7689, 2.1237322e-06
      %v7691 = vadd.f32 %v7690, 0.00028619796
      %v7692 = vmul.f32 %v7689, %v7691
      %v7693 = vadd.f32 %v7692, 0.0036580483
      %v7694 = vmul.f32 %v7689, %v7693
      %v7695 = vadd.f32 %v7694, 0.05243302
      %v7696 = vmul.f32 %v7689, %v7695
      %v7697 = vadd.f32 %v7696, 0.18741608
      %v7698 = vmul.f32 %v7689, %v7697
      %v7699 = vadd.f32 %v7698, 1.1283791
      %v7700 = vmul.f32 %v7305, %v7699
      %v7701 = vmul.f32 %v7689, 3.8918573e-05
      %v7702 = vadd.f32 %v7701, 0.001143296
      %v7703 = vmul.f32 %v7689, %v7702
      %v7704 = vadd.f32 %v7703, 0.014752088
      %v7705 = vmul.f32 %v7689, %v7704
      %v7706 = vadd.f32 %v7705, 0.112945676
      %v7707 = vmul.f32 %v7689, %v7706
      %v7708 = vadd.f32 %v7707, 0.4994258
      %v7709 = vmul.f32 %v7689, %v7708
      %v7710 = vadd.f32 %v7709, 1.0
      %v7711 = vrcp.pop %v7710
      %v7712 = vmul.f32 %v7710, %v7711
      %v7713 = vsub.f32 1.0, %v7712
      %v7714 = vmul.f32 %v7711, %v7713
      %v7715 = vadd.f32 %v7711, %v7714
      %vm7716 = vweird.f32 %v7710
      %vm7717 = vweird.f32 %v7711
      %vm7718 = vmor %vm7716, %vm7717
      %v7719 = vsel %vm7718, %v7711, %v7715
      %v7720 = vand.u32 2147483647, %v7710
      %vm7721 = vcmp.eq.f32.partialorder %v7720, 8.507059e+37
      %v7722 = vand.u32 %v7710, 2147483648
      %v7723 = vor.u32 1.1754944e-38, %v7722
      %v7724 = vsel %vm7721, %v7723, %v7719
      %v7725 = vmul.f32 %v7700, %v7724
      %v7726 = vmin.f32 %v7725, 1.0
      %v7727 = vmax.f32 %v7726, -1.0
      %v7728 = vmul.f32 %v7306, %v7306
      %v7729 = vmin.f32 16.0, %v7728
      %v7730 = vmul.f32 %v7729, 2.1237322e-06
      %v7731 = vadd.f32 %v7730, 0.00028619796
      %v7732 = vmul.f32 %v7729, %v7731
      %v7733 = vadd.f32 %v7732, 0.0036580483
      %v7734 = vmul.f32 %v7729, %v7733
      %v7735 = vadd.f32 %v7734, 0.05243302
      %v7736 = vmul.f32 %v7729, %v7735
      %v7737 = vadd.f32 %v7736, 0.18741608
      %v7738 = vmul.f32 %v7729, %v7737
      %v7739 = vadd.f32 %v7738, 1.1283791
      %v7740 = vmul.f32 %v7306, %v7739
      %v7741 = vmul.f32 %v7729, 3.8918573e-05
      %v7742 = vadd.f32 %v7741, 0.001143296
      %v7743 = vmul.f32 %v7729, %v7742
      %v7744 = vadd.f32 %v7743, 0.014752088
      %v7745 = vmul.f32 %v7729, %v7744
      %v7746 = vadd.f32 %v7745, 0.112945676
      %v7747 = vmul.f32 %v7729, %v7746
      %v7748 = vadd.f32 %v7747, 0.4994258
      %v7749 = vmul.f32 %v7729, %v7748
      %v7750 = vadd.f32 %v7749, 1.0
      %v7751 = vrcp.pop %v7750
      %v7752 = vmul.f32 %v7750, %v7751
      %v7753 = vsub.f32 1.0, %v7752
      %v7754 = vmul.f32 %v7751, %v7753
      %v7755 = vadd.f32 %v7751, %v7754
      %vm7756 = vweird.f32 %v7750
      %vm7757 = vweird.f32 %v7751
      %vm7758 = vmor %vm7756, %vm7757
      %v7759 = vsel %vm7758, %v7751, %v7755
      %v7760 = vand.u32 2147483647, %v7750
      %vm7761 = vcmp.eq.f32.partialorder %v7760, 8.507059e+37
      %v7762 = vand.u32 %v7750, 2147483648
      %v7763 = vor.u32 1.1754944e-38, %v7762
      %v7764 = vsel %vm7761, %v7763, %v7759
      %v7765 = vmul.f32 %v7740, %v7764
      %v7766 = vmin.f32 %v7765, 1.0
      %v7767 = vmax.f32 %v7766, -1.0
      %v7768 = vmul.f32 %v7307, %v7307
      %v7769 = vmin.f32 16.0, %v7768
      %v7770 = vmul.f32 %v7769, 2.1237322e-06
      %v7771 = vadd.f32 %v7770, 0.00028619796
      %v7772 = vmul.f32 %v7769, %v7771
      %v7773 = vadd.f32 %v7772, 0.0036580483
      %v7774 = vmul.f32 %v7769, %v7773
      %v7775 = vadd.f32 %v7774, 0.05243302
      %v7776 = vmul.f32 %v7769, %v7775
      %v7777 = vadd.f32 %v7776, 0.18741608
      %v7778 = vmul.f32 %v7769, %v7777
      %v7779 = vadd.f32 %v7778, 1.1283791
      %v7780 = vmul.f32 %v7307, %v7779
      %v7781 = vmul.f32 %v7769, 3.8918573e-05
      %v7782 = vadd.f32 %v7781, 0.001143296
      %v7783 = vmul.f32 %v7769, %v7782
      %v7784 = vadd.f32 %v7783, 0.014752088
      %v7785 = vmul.f32 %v7769, %v7784
      %v7786 = vadd.f32 %v7785, 0.112945676
      %v7787 = vmul.f32 %v7769, %v7786
      %v7788 = vadd.f32 %v7787, 0.4994258
      %v7789 = vmul.f32 %v7769, %v7788
      %v7790 = vadd.f32 %v7789, 1.0
      %v7791 = vrcp.pop %v7790
      %v7792 = vmul.f32 %v7790, %v7791
      %v7793 = vsub.f32 1.0, %v7792
      %v7794 = vmul.f32 %v7791, %v7793
      %v7795 = vadd.f32 %v7791, %v7794
      %vm7796 = vweird.f32 %v7790
      %vm7797 = vweird.f32 %v7791
      %vm7798 = vmor %vm7796, %vm7797
      %v7799 = vsel %vm7798, %v7791, %v7795
      %v7800 = vand.u32 2147483647, %v7790
      %vm7801 = vcmp.eq.f32.partialorder %v7800, 8.507059e+37
      %v7802 = vand.u32 %v7790, 2147483648
      %v7803 = vor.u32 1.1754944e-38, %v7802
      %v7804 = vsel %vm7801, %v7803, %v7799
      %v7805 = vmul.f32 %v7780, %v7804
      %v7806 = vmin.f32 %v7805, 1.0
      %v7807 = vmax.f32 %v7806, -1.0
      %v7808 = vmul.f32 %v7308, %v7308
      %v7809 = vmin.f32 16.0, %v7808
      %v7810 = vmul.f32 %v7809, 2.1237322e-06
      %v7811 = vadd.f32 %v7810, 0.00028619796
      %v7812 = vmul.f32 %v7809, %v7811
      %v7813 = vadd.f32 %v7812, 0.0036580483
      %v7814 = vmul.f32 %v7809, %v7813
      %v7815 = vadd.f32 %v7814, 0.05243302
      %v7816 = vmul.f32 %v7809, %v7815
      %v7817 = vadd.f32 %v7816, 0.18741608
      %v7818 = vmul.f32 %v7809, %v7817
      %v7819 = vadd.f32 %v7818, 1.1283791
      %v7820 = vmul.f32 %v7308, %v7819
      %v7821 = vmul.f32 %v7809, 3.8918573e-05
      %v7822 = vadd.f32 %v7821, 0.001143296
      %v7823 = vmul.f32 %v7809, %v7822
      %v7824 = vadd.f32 %v7823, 0.014752088
      %v7825 = vmul.f32 %v7809, %v7824
      %v7826 = vadd.f32 %v7825, 0.112945676
      %v7827 = vmul.f32 %v7809, %v7826
      %v7828 = vadd.f32 %v7827, 0.4994258
      %v7829 = vmul.f32 %v7809, %v7828
      %v7830 = vadd.f32 %v7829, 1.0
      %v7831 = vrcp.pop %v7830
      %v7832 = vmul.f32 %v7830, %v7831
      %v7833 = vsub.f32 1.0, %v7832
      %v7834 = vmul.f32 %v7831, %v7833
      %v7835 = vadd.f32 %v7831, %v7834
      %vm7836 = vweird.f32 %v7830
      %vm7837 = vweird.f32 %v7831
      %vm7838 = vmor %vm7836, %vm7837
      %v7839 = vsel %vm7838, %v7831, %v7835
      %v7840 = vand.u32 2147483647, %v7830
      %vm7841 = vcmp.eq.f32.partialorder %v7840, 8.507059e+37
      %v7842 = vand.u32 %v7830, 2147483648
      %v7843 = vor.u32 1.1754944e-38, %v7842
      %v7844 = vsel %vm7841, %v7843, %v7839
      %v7845 = vmul.f32 %v7820, %v7844
      %v7846 = vmin.f32 %v7845, 1.0
      %v7847 = vmax.f32 %v7846, -1.0
      %v7848 = vmul.f32 %v7309, %v7309
      %v7849 = vmin.f32 16.0, %v7848
      %v7850 = vmul.f32 %v7849, 2.1237322e-06
      %v7851 = vadd.f32 %v7850, 0.00028619796
      %v7852 = vmul.f32 %v7849, %v7851
      %v7853 = vadd.f32 %v7852, 0.0036580483
      %v7854 = vmul.f32 %v7849, %v7853
      %v7855 = vadd.f32 %v7854, 0.05243302
      %v7856 = vmul.f32 %v7849, %v7855
      %v7857 = vadd.f32 %v7856, 0.18741608
      %v7858 = vmul.f32 %v7849, %v7857
      %v7859 = vadd.f32 %v7858, 1.1283791
      %v7860 = vmul.f32 %v7309, %v7859
      %v7861 = vmul.f32 %v7849, 3.8918573e-05
      %v7862 = vadd.f32 %v7861, 0.001143296
      %v7863 = vmul.f32 %v7849, %v7862
      %v7864 = vadd.f32 %v7863, 0.014752088
      %v7865 = vmul.f32 %v7849, %v7864
      %v7866 = vadd.f32 %v7865, 0.112945676
      %v7867 = vmul.f32 %v7849, %v7866
      %v7868 = vadd.f32 %v7867, 0.4994258
      %v7869 = vmul.f32 %v7849, %v7868
      %v7870 = vadd.f32 %v7869, 1.0
      %v7871 = vrcp.pop %v7870
      %v7872 = vmul.f32 %v7870, %v7871
      %v7873 = vsub.f32 1.0, %v7872
      %v7874 = vmul.f32 %v7871, %v7873
      %v7875 = vadd.f32 %v7871, %v7874
      %vm7876 = vweird.f32 %v7870
      %vm7877 = vweird.f32 %v7871
      %vm7878 = vmor %vm7876, %vm7877
      %v7879 = vsel %vm7878, %v7871, %v7875
      %v7880 = vand.u32 2147483647, %v7870
      %vm7881 = vcmp.eq.f32.partialorder %v7880, 8.507059e+37
      %v7882 = vand.u32 %v7870, 2147483648
      %v7883 = vor.u32 1.1754944e-38, %v7882
      %v7884 = vsel %vm7881, %v7883, %v7879
      %v7885 = vmul.f32 %v7860, %v7884
      %v7886 = vmin.f32 %v7885, 1.0
      %v7887 = vmax.f32 %v7886, -1.0
      %v7888 = vmul.f32 %v7310, %v7310
      %v7889 = vmin.f32 16.0, %v7888
      %v7890 = vmul.f32 %v7889, 2.1237322e-06
      %v7891 = vadd.f32 %v7890, 0.00028619796
      %v7892 = vmul.f32 %v7889, %v7891
      %v7893 = vadd.f32 %v7892, 0.0036580483
      %v7894 = vmul.f32 %v7889, %v7893
      %v7895 = vadd.f32 %v7894, 0.05243302
      %v7896 = vmul.f32 %v7889, %v7895
      %v7897 = vadd.f32 %v7896, 0.18741608
      %v7898 = vmul.f32 %v7889, %v7897
      %v7899 = vadd.f32 %v7898, 1.1283791
      %v7900 = vmul.f32 %v7310, %v7899
      %v7901 = vmul.f32 %v7889, 3.8918573e-05
      %v7902 = vadd.f32 %v7901, 0.001143296
      %v7903 = vmul.f32 %v7889, %v7902
      %v7904 = vadd.f32 %v7903, 0.014752088
      %v7905 = vmul.f32 %v7889, %v7904
      %v7906 = vadd.f32 %v7905, 0.112945676
      %v7907 = vmul.f32 %v7889, %v7906
      %v7908 = vadd.f32 %v7907, 0.4994258
      %v7909 = vmul.f32 %v7889, %v7908
      %v7910 = vadd.f32 %v7909, 1.0
      %v7911 = vrcp.pop %v7910
      %v7912 = vmul.f32 %v7910, %v7911
      %v7913 = vsub.f32 1.0, %v7912
      %v7914 = vmul.f32 %v7911, %v7913
      %v7915 = vadd.f32 %v7911, %v7914
      %vm7916 = vweird.f32 %v7910
      %vm7917 = vweird.f32 %v7911
      %vm7918 = vmor %vm7916, %vm7917
      %v7919 = vsel %vm7918, %v7911, %v7915
      %v7920 = vand.u32 2147483647, %v7910
      %vm7921 = vcmp.eq.f32.partialorder %v7920, 8.507059e+37
      %v7922 = vand.u32 %v7910, 2147483648
      %v7923 = vor.u32 1.1754944e-38, %v7922
      %v7924 = vsel %vm7921, %v7923, %v7919
      %v7925 = vmul.f32 %v7900, %v7924
      %v7926 = vmin.f32 %v7925, 1.0
      %v7927 = vmax.f32 %v7926, -1.0
      %v7928 = vmul.f32 %v7311, %v7311
      %v7929 = vmin.f32 16.0, %v7928
      %v7930 = vmul.f32 %v7929, 2.1237322e-06
      %v7931 = vadd.f32 %v7930, 0.00028619796
      %v7932 = vmul.f32 %v7929, %v7931
      %v7933 = vadd.f32 %v7932, 0.0036580483
      %v7934 = vmul.f32 %v7929, %v7933
      %v7935 = vadd.f32 %v7934, 0.05243302
      %v7936 = vmul.f32 %v7929, %v7935
      %v7937 = vadd.f32 %v7936, 0.18741608
      %v7938 = vmul.f32 %v7929, %v7937
      %v7939 = vadd.f32 %v7938, 1.1283791
      %v7940 = vmul.f32 %v7311, %v7939
      %v7941 = vmul.f32 %v7929, 3.8918573e-05
      %v7942 = vadd.f32 %v7941, 0.001143296
      %v7943 = vmul.f32 %v7929, %v7942
      %v7944 = vadd.f32 %v7943, 0.014752088
      %v7945 = vmul.f32 %v7929, %v7944
      %v7946 = vadd.f32 %v7945, 0.112945676
      %v7947 = vmul.f32 %v7929, %v7946
      %v7948 = vadd.f32 %v7947, 0.4994258
      %v7949 = vmul.f32 %v7929, %v7948
      %v7950 = vadd.f32 %v7949, 1.0
      %v7951 = vrcp.pop %v7950
      %v7952 = vmul.f32 %v7950, %v7951
      %v7953 = vsub.f32 1.0, %v7952
      %v7954 = vmul.f32 %v7951, %v7953
      %v7955 = vadd.f32 %v7951, %v7954
      %vm7956 = vweird.f32 %v7950
      %vm7957 = vweird.f32 %v7951
      %vm7958 = vmor %vm7956, %vm7957
      %v7959 = vsel %vm7958, %v7951, %v7955
      %v7960 = vand.u32 2147483647, %v7950
      %vm7961 = vcmp.eq.f32.partialorder %v7960, 8.507059e+37
      %v7962 = vand.u32 %v7950, 2147483648
      %v7963 = vor.u32 1.1754944e-38, %v7962
      %v7964 = vsel %vm7961, %v7963, %v7959
      %v7965 = vmul.f32 %v7940, %v7964
      %v7966 = vmin.f32 %v7965, 1.0
      %v7967 = vmax.f32 %v7966, -1.0
      %v7968 = vmul.f32 %v7312, %v7312
      %v7969 = vmin.f32 16.0, %v7968
      %v7970 = vmul.f32 %v7969, 2.1237322e-06
      %v7971 = vadd.f32 %v7970, 0.00028619796
      %v7972 = vmul.f32 %v7969, %v7971
      %v7973 = vadd.f32 %v7972, 0.0036580483
      %v7974 = vmul.f32 %v7969, %v7973
      %v7975 = vadd.f32 %v7974, 0.05243302
      %v7976 = vmul.f32 %v7969, %v7975
      %v7977 = vadd.f32 %v7976, 0.18741608
      %v7978 = vmul.f32 %v7969, %v7977
      %v7979 = vadd.f32 %v7978, 1.1283791
      %v7980 = vmul.f32 %v7312, %v7979
      %v7981 = vmul.f32 %v7969, 3.8918573e-05
      %v7982 = vadd.f32 %v7981, 0.001143296
      %v7983 = vmul.f32 %v7969, %v7982
      %v7984 = vadd.f32 %v7983, 0.014752088
      %v7985 = vmul.f32 %v7969, %v7984
      %v7986 = vadd.f32 %v7985, 0.112945676
      %v7987 = vmul.f32 %v7969, %v7986
      %v7988 = vadd.f32 %v7987, 0.4994258
      %v7989 = vmul.f32 %v7969, %v7988
      %v7990 = vadd.f32 %v7989, 1.0
      %v7991 = vrcp.pop %v7990
      %v7992 = vmul.f32 %v7990, %v7991
      %v7993 = vsub.f32 1.0, %v7992
      %v7994 = vmul.f32 %v7991, %v7993
      %v7995 = vadd.f32 %v7991, %v7994
      %vm7996 = vweird.f32 %v7990
      %vm7997 = vweird.f32 %v7991
      %vm7998 = vmor %vm7996, %vm7997
      %v7999 = vsel %vm7998, %v7991, %v7995
      %v8000 = vand.u32 2147483647, %v7990
      %vm8001 = vcmp.eq.f32.partialorder %v8000, 8.507059e+37
      %v8002 = vand.u32 %v7990, 2147483648
      %v8003 = vor.u32 1.1754944e-38, %v8002
      %v8004 = vsel %vm8001, %v8003, %v7999
      %v8005 = vmul.f32 %v7980, %v8004
      %v8006 = vmin.f32 %v8005, 1.0
      %v8007 = vmax.f32 %v8006, -1.0
      %v8008 = vmul.f32 %v7313, %v7313
      %v8009 = vmin.f32 16.0, %v8008
      %v8010 = vmul.f32 %v8009, 2.1237322e-06
      %v8011 = vadd.f32 %v8010, 0.00028619796
      %v8012 = vmul.f32 %v8009, %v8011
      %v8013 = vadd.f32 %v8012, 0.0036580483
      %v8014 = vmul.f32 %v8009, %v8013
      %v8015 = vadd.f32 %v8014, 0.05243302
      %v8016 = vmul.f32 %v8009, %v8015
      %v8017 = vadd.f32 %v8016, 0.18741608
      %v8018 = vmul.f32 %v8009, %v8017
      %v8019 = vadd.f32 %v8018, 1.1283791
      %v8020 = vmul.f32 %v7313, %v8019
      %v8021 = vmul.f32 %v8009, 3.8918573e-05
      %v8022 = vadd.f32 %v8021, 0.001143296
      %v8023 = vmul.f32 %v8009, %v8022
      %v8024 = vadd.f32 %v8023, 0.014752088
      %v8025 = vmul.f32 %v8009, %v8024
      %v8026 = vadd.f32 %v8025, 0.112945676
      %v8027 = vmul.f32 %v8009, %v8026
      %v8028 = vadd.f32 %v8027, 0.4994258
      %v8029 = vmul.f32 %v8009, %v8028
      %v8030 = vadd.f32 %v8029, 1.0
      %v8031 = vrcp.pop %v8030
      %v8032 = vmul.f32 %v8030, %v8031
      %v8033 = vsub.f32 1.0, %v8032
      %v8034 = vmul.f32 %v8031, %v8033
      %v8035 = vadd.f32 %v8031, %v8034
      %vm8036 = vweird.f32 %v8030
      %vm8037 = vweird.f32 %v8031
      %vm8038 = vmor %vm8036, %vm8037
      %v8039 = vsel %vm8038, %v8031, %v8035
      %v8040 = vand.u32 2147483647, %v8030
      %vm8041 = vcmp.eq.f32.partialorder %v8040, 8.507059e+37
      %v8042 = vand.u32 %v8030, 2147483648
      %v8043 = vor.u32 1.1754944e-38, %v8042
      %v8044 = vsel %vm8041, %v8043, %v8039
      %v8045 = vmul.f32 %v8020, %v8044
      %v8046 = vmin.f32 %v8045, 1.0
      %v8047 = vmax.f32 %v8046, -1.0
      %v8048 = vmul.f32 %v7314, %v7314
      %v8049 = vmin.f32 16.0, %v8048
      %v8050 = vmul.f32 %v8049, 2.1237322e-06
      %v8051 = vadd.f32 %v8050, 0.00028619796
      %v8052 = vmul.f32 %v8049, %v8051
      %v8053 = vadd.f32 %v8052, 0.0036580483
      %v8054 = vmul.f32 %v8049, %v8053
      %v8055 = vadd.f32 %v8054, 0.05243302
      %v8056 = vmul.f32 %v8049, %v8055
      %v8057 = vadd.f32 %v8056, 0.18741608
      %v8058 = vmul.f32 %v8049, %v8057
      %v8059 = vadd.f32 %v8058, 1.1283791
      %v8060 = vmul.f32 %v7314, %v8059
      %v8061 = vmul.f32 %v8049, 3.8918573e-05
      %v8062 = vadd.f32 %v8061, 0.001143296
      %v8063 = vmul.f32 %v8049, %v8062
      %v8064 = vadd.f32 %v8063, 0.014752088
      %v8065 = vmul.f32 %v8049, %v8064
      %v8066 = vadd.f32 %v8065, 0.112945676
      %v8067 = vmul.f32 %v8049, %v8066
      %v8068 = vadd.f32 %v8067, 0.4994258
      %v8069 = vmul.f32 %v8049, %v8068
      %v8070 = vadd.f32 %v8069, 1.0
      %v8071 = vrcp.pop %v8070
      %v8072 = vmul.f32 %v8070, %v8071
      %v8073 = vsub.f32 1.0, %v8072
      %v8074 = vmul.f32 %v8071, %v8073
      %v8075 = vadd.f32 %v8071, %v8074
      %vm8076 = vweird.f32 %v8070
      %vm8077 = vweird.f32 %v8071
      %vm8078 = vmor %vm8076, %vm8077
      %v8079 = vsel %vm8078, %v8071, %v8075
      %v8080 = vand.u32 2147483647, %v8070
      %vm8081 = vcmp.eq.f32.partialorder %v8080, 8.507059e+37
      %v8082 = vand.u32 %v8070, 2147483648
      %v8083 = vor.u32 1.1754944e-38, %v8082
      %v8084 = vsel %vm8081, %v8083, %v8079
      %v8085 = vmul.f32 %v8060, %v8084
      %v8086 = vmin.f32 %v8085, 1.0
      %v8087 = vmax.f32 %v8086, -1.0
      %v8088 = vmul.f32 %v7315, %v7315
      %v8089 = vmin.f32 16.0, %v8088
      %v8090 = vmul.f32 %v8089, 2.1237322e-06
      %v8091 = vadd.f32 %v8090, 0.00028619796
      %v8092 = vmul.f32 %v8089, %v8091
      %v8093 = vadd.f32 %v8092, 0.0036580483
      %v8094 = vmul.f32 %v8089, %v8093
      %v8095 = vadd.f32 %v8094, 0.05243302
      %v8096 = vmul.f32 %v8089, %v8095
      %v8097 = vadd.f32 %v8096, 0.18741608
      %v8098 = vmul.f32 %v8089, %v8097
      %v8099 = vadd.f32 %v8098, 1.1283791
      %v8100 = vmul.f32 %v7315, %v8099
      %v8101 = vmul.f32 %v8089, 3.8918573e-05
      %v8102 = vadd.f32 %v8101, 0.001143296
      %v8103 = vmul.f32 %v8089, %v8102
      %v8104 = vadd.f32 %v8103, 0.014752088
      %v8105 = vmul.f32 %v8089, %v8104
      %v8106 = vadd.f32 %v8105, 0.112945676
      %v8107 = vmul.f32 %v8089, %v8106
      %v8108 = vadd.f32 %v8107, 0.4994258
      %v8109 = vmul.f32 %v8089, %v8108
      %v8110 = vadd.f32 %v8109, 1.0
      %v8111 = vrcp.pop %v8110
      %v8112 = vmul.f32 %v8110, %v8111
      %v8113 = vsub.f32 1.0, %v8112
      %v8114 = vmul.f32 %v8111, %v8113
      %v8115 = vadd.f32 %v8111, %v8114
      %vm8116 = vweird.f32 %v8110
      %vm8117 = vweird.f32 %v8111
      %vm8118 = vmor %vm8116, %vm8117
      %v8119 = vsel %vm8118, %v8111, %v8115
      %v8120 = vand.u32 2147483647, %v8110
      %vm8121 = vcmp.eq.f32.partialorder %v8120, 8.507059e+37
      %v8122 = vand.u32 %v8110, 2147483648
      %v8123 = vor.u32 1.1754944e-38, %v8122
      %v8124 = vsel %vm8121, %v8123, %v8119
      %v8125 = vmul.f32 %v8100, %v8124
      %v8126 = vmin.f32 %v8125, 1.0
      %v8127 = vmax.f32 %v8126, -1.0
      %v8128 = vmul.f32 %v7316, %v7316
      %v8129 = vmin.f32 16.0, %v8128
      %v8130 = vmul.f32 %v8129, 2.1237322e-06
      %v8131 = vadd.f32 %v8130, 0.00028619796
      %v8132 = vmul.f32 %v8129, %v8131
      %v8133 = vadd.f32 %v8132, 0.0036580483
      %v8134 = vmul.f32 %v8129, %v8133
      %v8135 = vadd.f32 %v8134, 0.05243302
      %v8136 = vmul.f32 %v8129, %v8135
      %v8137 = vadd.f32 %v8136, 0.18741608
      %v8138 = vmul.f32 %v8129, %v8137
      %v8139 = vadd.f32 %v8138, 1.1283791
      %v8140 = vmul.f32 %v7316, %v8139
      %v8141 = vmul.f32 %v8129, 3.8918573e-05
      %v8142 = vadd.f32 %v8141, 0.001143296
      %v8143 = vmul.f32 %v8129, %v8142
      %v8144 = vadd.f32 %v8143, 0.014752088
      %v8145 = vmul.f32 %v8129, %v8144
      %v8146 = vadd.f32 %v8145, 0.112945676
      %v8147 = vmul.f32 %v8129, %v8146
      %v8148 = vadd.f32 %v8147, 0.4994258
      %v8149 = vmul.f32 %v8129, %v8148
      %v8150 = vadd.f32 %v8149, 1.0
      %v8151 = vrcp.pop %v8150
      %v8152 = vmul.f32 %v8150, %v8151
      %v8153 = vsub.f32 1.0, %v8152
      %v8154 = vmul.f32 %v8151, %v8153
      %v8155 = vadd.f32 %v8151, %v8154
      %vm8156 = vweird.f32 %v8150
      %vm8157 = vweird.f32 %v8151
      %vm8158 = vmor %vm8156, %vm8157
      %v8159 = vsel %vm8158, %v8151, %v8155
      %v8160 = vand.u32 2147483647, %v8150
      %vm8161 = vcmp.eq.f32.partialorder %v8160, 8.507059e+37
      %v8162 = vand.u32 %v8150, 2147483648
      %v8163 = vor.u32 1.1754944e-38, %v8162
      %v8164 = vsel %vm8161, %v8163, %v8159
      %v8165 = vmul.f32 %v8140, %v8164
      %v8166 = vmin.f32 %v8165, 1.0
      %v8167 = vmax.f32 %v8166, -1.0
      %v8168 = vmul.f32 %v7317, %v7317
      %v8169 = vmin.f32 16.0, %v8168
      %v8170 = vmul.f32 %v8169, 2.1237322e-06
      %v8171 = vadd.f32 %v8170, 0.00028619796
      %v8172 = vmul.f32 %v8169, %v8171
      %v8173 = vadd.f32 %v8172, 0.0036580483
      %v8174 = vmul.f32 %v8169, %v8173
      %v8175 = vadd.f32 %v8174, 0.05243302
      %v8176 = vmul.f32 %v8169, %v8175
      %v8177 = vadd.f32 %v8176, 0.18741608
      %v8178 = vmul.f32 %v8169, %v8177
      %v8179 = vadd.f32 %v8178, 1.1283791
      %v8180 = vmul.f32 %v7317, %v8179
      %v8181 = vmul.f32 %v8169, 3.8918573e-05
      %v8182 = vadd.f32 %v8181, 0.001143296
      %v8183 = vmul.f32 %v8169, %v8182
      %v8184 = vadd.f32 %v8183, 0.014752088
      %v8185 = vmul.f32 %v8169, %v8184
      %v8186 = vadd.f32 %v8185, 0.112945676
      %v8187 = vmul.f32 %v8169, %v8186
      %v8188 = vadd.f32 %v8187, 0.4994258
      %v8189 = vmul.f32 %v8169, %v8188
      %v8190 = vadd.f32 %v8189, 1.0
      %v8191 = vrcp.pop %v8190
      %v8192 = vmul.f32 %v8190, %v8191
      %v8193 = vsub.f32 1.0, %v8192
      %v8194 = vmul.f32 %v8191, %v8193
      %v8195 = vadd.f32 %v8191, %v8194
      %vm8196 = vweird.f32 %v8190
      %vm8197 = vweird.f32 %v8191
      %vm8198 = vmor %vm8196, %vm8197
      %v8199 = vsel %vm8198, %v8191, %v8195
      %v8200 = vand.u32 2147483647, %v8190
      %vm8201 = vcmp.eq.f32.partialorder %v8200, 8.507059e+37
      %v8202 = vand.u32 %v8190, 2147483648
      %v8203 = vor.u32 1.1754944e-38, %v8202
      %v8204 = vsel %vm8201, %v8203, %v8199
      %v8205 = vmul.f32 %v8180, %v8204
      %v8206 = vmin.f32 %v8205, 1.0
      %v8207 = vmax.f32 %v8206, -1.0
      %v8208 = vmul.f32 %v7318, %v7318
      %v8209 = vmin.f32 16.0, %v8208
      %v8210 = vmul.f32 %v8209, 2.1237322e-06
      %v8211 = vadd.f32 %v8210, 0.00028619796
      %v8212 = vmul.f32 %v8209, %v8211
      %v8213 = vadd.f32 %v8212, 0.0036580483
      %v8214 = vmul.f32 %v8209, %v8213
      %v8215 = vadd.f32 %v8214, 0.05243302
      %v8216 = vmul.f32 %v8209, %v8215
      %v8217 = vadd.f32 %v8216, 0.18741608
      %v8218 = vmul.f32 %v8209, %v8217
      %v8219 = vadd.f32 %v8218, 1.1283791
      %v8220 = vmul.f32 %v7318, %v8219
      %v8221 = vmul.f32 %v8209, 3.8918573e-05
      %v8222 = vadd.f32 %v8221, 0.001143296
      %v8223 = vmul.f32 %v8209, %v8222
      %v8224 = vadd.f32 %v8223, 0.014752088
      %v8225 = vmul.f32 %v8209, %v8224
      %v8226 = vadd.f32 %v8225, 0.112945676
      %v8227 = vmul.f32 %v8209, %v8226
      %v8228 = vadd.f32 %v8227, 0.4994258
      %v8229 = vmul.f32 %v8209, %v8228
      %v8230 = vadd.f32 %v8229, 1.0
      %v8231 = vrcp.pop %v8230
      %v8232 = vmul.f32 %v8230, %v8231
      %v8233 = vsub.f32 1.0, %v8232
      %v8234 = vmul.f32 %v8231, %v8233
      %v8235 = vadd.f32 %v8231, %v8234
      %vm8236 = vweird.f32 %v8230
      %vm8237 = vweird.f32 %v8231
      %vm8238 = vmor %vm8236, %vm8237
      %v8239 = vsel %vm8238, %v8231, %v8235
      %v8240 = vand.u32 2147483647, %v8230
      %vm8241 = vcmp.eq.f32.partialorder %v8240, 8.507059e+37
      %v8242 = vand.u32 %v8230, 2147483648
      %v8243 = vor.u32 1.1754944e-38, %v8242
      %v8244 = vsel %vm8241, %v8243, %v8239
      %v8245 = vmul.f32 %v8220, %v8244
      %v8246 = vmin.f32 %v8245, 1.0
      %v8247 = vmax.f32 %v8246, -1.0
      %v8248 = vmul.f32 %v7319, %v7319
      %v8249 = vmin.f32 16.0, %v8248
      %v8250 = vmul.f32 %v8249, 2.1237322e-06
      %v8251 = vadd.f32 %v8250, 0.00028619796
      %v8252 = vmul.f32 %v8249, %v8251
      %v8253 = vadd.f32 %v8252, 0.0036580483
      %v8254 = vmul.f32 %v8249, %v8253
      %v8255 = vadd.f32 %v8254, 0.05243302
      %v8256 = vmul.f32 %v8249, %v8255
      %v8257 = vadd.f32 %v8256, 0.18741608
      %v8258 = vmul.f32 %v8249, %v8257
      %v8259 = vadd.f32 %v8258, 1.1283791
      %v8260 = vmul.f32 %v7319, %v8259
      %v8261 = vmul.f32 %v8249, 3.8918573e-05
      %v8262 = vadd.f32 %v8261, 0.001143296
      %v8263 = vmul.f32 %v8249, %v8262
      %v8264 = vadd.f32 %v8263, 0.014752088
      %v8265 = vmul.f32 %v8249, %v8264
      %v8266 = vadd.f32 %v8265, 0.112945676
      %v8267 = vmul.f32 %v8249, %v8266
      %v8268 = vadd.f32 %v8267, 0.4994258
      %v8269 = vmul.f32 %v8249, %v8268
      %v8270 = vadd.f32 %v8269, 1.0
      %v8271 = vrcp.pop %v8270
      %v8272 = vmul.f32 %v8270, %v8271
      %v8273 = vsub.f32 1.0, %v8272
      %v8274 = vmul.f32 %v8271, %v8273
      %v8275 = vadd.f32 %v8271, %v8274
      %vm8276 = vweird.f32 %v8270
      %vm8277 = vweird.f32 %v8271
      %vm8278 = vmor %vm8276, %vm8277
      %v8279 = vsel %vm8278, %v8271, %v8275
      %v8280 = vand.u32 2147483647, %v8270
      %vm8281 = vcmp.eq.f32.partialorder %v8280, 8.507059e+37
      %v8282 = vand.u32 %v8270, 2147483648
      %v8283 = vor.u32 1.1754944e-38, %v8282
      %v8284 = vsel %vm8281, %v8283, %v8279
      %v8285 = vmul.f32 %v8260, %v8284
      %v8286 = vmin.f32 %v8285, 1.0
      %v8287 = vmax.f32 %v8286, -1.0
      %v8288 = vmul.f32 %v7320, %v7320
      %v8289 = vmin.f32 16.0, %v8288
      %v8290 = vmul.f32 %v8289, 2.1237322e-06
      %v8291 = vadd.f32 %v8290, 0.00028619796
      %v8292 = vmul.f32 %v8289, %v8291
      %v8293 = vadd.f32 %v8292, 0.0036580483
      %v8294 = vmul.f32 %v8289, %v8293
      %v8295 = vadd.f32 %v8294, 0.05243302
      %v8296 = vmul.f32 %v8289, %v8295
      %v8297 = vadd.f32 %v8296, 0.18741608
      %v8298 = vmul.f32 %v8289, %v8297
      %v8299 = vadd.f32 %v8298, 1.1283791
      %v8300 = vmul.f32 %v7320, %v8299
      %v8301 = vmul.f32 %v8289, 3.8918573e-05
      %v8302 = vadd.f32 %v8301, 0.001143296
      %v8303 = vmul.f32 %v8289, %v8302
      %v8304 = vadd.f32 %v8303, 0.014752088
      %v8305 = vmul.f32 %v8289, %v8304
      %v8306 = vadd.f32 %v8305, 0.112945676
      %v8307 = vmul.f32 %v8289, %v8306
      %v8308 = vadd.f32 %v8307, 0.4994258
      %v8309 = vmul.f32 %v8289, %v8308
      %v8310 = vadd.f32 %v8309, 1.0
      %v8311 = vrcp.pop %v8310
      %v8312 = vmul.f32 %v8310, %v8311
      %v8313 = vsub.f32 1.0, %v8312
      %v8314 = vmul.f32 %v8311, %v8313
      %v8315 = vadd.f32 %v8311, %v8314
      %vm8316 = vweird.f32 %v8310
      %vm8317 = vweird.f32 %v8311
      %vm8318 = vmor %vm8316, %vm8317
      %v8319 = vsel %vm8318, %v8311, %v8315
      %v8320 = vand.u32 2147483647, %v8310
      %vm8321 = vcmp.eq.f32.partialorder %v8320, 8.507059e+37
      %v8322 = vand.u32 %v8310, 2147483648
      %v8323 = vor.u32 1.1754944e-38, %v8322
      %v8324 = vsel %vm8321, %v8323, %v8319
      %v8325 = vmul.f32 %v8300, %v8324
      %v8326 = vmin.f32 %v8325, 1.0
      %v8327 = vmax.f32 %v8326, -1.0
      %v8328 = vmul.f32 %v7321, %v7321
      %v8329 = vmin.f32 16.0, %v8328
      %v8330 = vmul.f32 %v8329, 2.1237322e-06
      %v8331 = vadd.f32 %v8330, 0.00028619796
      %v8332 = vmul.f32 %v8329, %v8331
      %v8333 = vadd.f32 %v8332, 0.0036580483
      %v8334 = vmul.f32 %v8329, %v8333
      %v8335 = vadd.f32 %v8334, 0.05243302
      %v8336 = vmul.f32 %v8329, %v8335
      %v8337 = vadd.f32 %v8336, 0.18741608
      %v8338 = vmul.f32 %v8329, %v8337
      %v8339 = vadd.f32 %v8338, 1.1283791
      %v8340 = vmul.f32 %v7321, %v8339
      %v8341 = vmul.f32 %v8329, 3.8918573e-05
      %v8342 = vadd.f32 %v8341, 0.001143296
      %v8343 = vmul.f32 %v8329, %v8342
      %v8344 = vadd.f32 %v8343, 0.014752088
      %v8345 = vmul.f32 %v8329, %v8344
      %v8346 = vadd.f32 %v8345, 0.112945676
      %v8347 = vmul.f32 %v8329, %v8346
      %v8348 = vadd.f32 %v8347, 0.4994258
      %v8349 = vmul.f32 %v8329, %v8348
      %v8350 = vadd.f32 %v8349, 1.0
      %v8351 = vrcp.pop %v8350
      %v8352 = vmul.f32 %v8350, %v8351
      %v8353 = vsub.f32 1.0, %v8352
      %v8354 = vmul.f32 %v8351, %v8353
      %v8355 = vadd.f32 %v8351, %v8354
      %vm8356 = vweird.f32 %v8350
      %vm8357 = vweird.f32 %v8351
      %vm8358 = vmor %vm8356, %vm8357
      %v8359 = vsel %vm8358, %v8351, %v8355
      %v8360 = vand.u32 2147483647, %v8350
      %vm8361 = vcmp.eq.f32.partialorder %v8360, 8.507059e+37
      %v8362 = vand.u32 %v8350, 2147483648
      %v8363 = vor.u32 1.1754944e-38, %v8362
      %v8364 = vsel %vm8361, %v8363, %v8359
      %v8365 = vmul.f32 %v8340, %v8364
      %v8366 = vmin.f32 %v8365, 1.0
      %v8367 = vmax.f32 %v8366, -1.0
      %v8368 = vmul.f32 %v7322, %v7322
      %v8369 = vmin.f32 16.0, %v8368
      %v8370 = vmul.f32 %v8369, 2.1237322e-06
      %v8371 = vadd.f32 %v8370, 0.00028619796
      %v8372 = vmul.f32 %v8369, %v8371
      %v8373 = vadd.f32 %v8372, 0.0036580483
      %v8374 = vmul.f32 %v8369, %v8373
      %v8375 = vadd.f32 %v8374, 0.05243302
      %v8376 = vmul.f32 %v8369, %v8375
      %v8377 = vadd.f32 %v8376, 0.18741608
      %v8378 = vmul.f32 %v8369, %v8377
      %v8379 = vadd.f32 %v8378, 1.1283791
      %v8380 = vmul.f32 %v7322, %v8379
      %v8381 = vmul.f32 %v8369, 3.8918573e-05
      %v8382 = vadd.f32 %v8381, 0.001143296
      %v8383 = vmul.f32 %v8369, %v8382
      %v8384 = vadd.f32 %v8383, 0.014752088
      %v8385 = vmul.f32 %v8369, %v8384
      %v8386 = vadd.f32 %v8385, 0.112945676
      %v8387 = vmul.f32 %v8369, %v8386
      %v8388 = vadd.f32 %v8387, 0.4994258
      %v8389 = vmul.f32 %v8369, %v8388
      %v8390 = vadd.f32 %v8389, 1.0
      %v8391 = vrcp.pop %v8390
      %v8392 = vmul.f32 %v8390, %v8391
      %v8393 = vsub.f32 1.0, %v8392
      %v8394 = vmul.f32 %v8391, %v8393
      %v8395 = vadd.f32 %v8391, %v8394
      %vm8396 = vweird.f32 %v8390
      %vm8397 = vweird.f32 %v8391
      %vm8398 = vmor %vm8396, %vm8397
      %v8399 = vsel %vm8398, %v8391, %v8395
      %v8400 = vand.u32 2147483647, %v8390
      %vm8401 = vcmp.eq.f32.partialorder %v8400, 8.507059e+37
      %v8402 = vand.u32 %v8390, 2147483648
      %v8403 = vor.u32 1.1754944e-38, %v8402
      %v8404 = vsel %vm8401, %v8403, %v8399
      %v8405 = vmul.f32 %v8380, %v8404
      %v8406 = vmin.f32 %v8405, 1.0
      %v8407 = vmax.f32 %v8406, -1.0
      %v8408 = vmul.f32 %v7323, %v7323
      %v8409 = vmin.f32 16.0, %v8408
      %v8410 = vmul.f32 %v8409, 2.1237322e-06
      %v8411 = vadd.f32 %v8410, 0.00028619796
      %v8412 = vmul.f32 %v8409, %v8411
      %v8413 = vadd.f32 %v8412, 0.0036580483
      %v8414 = vmul.f32 %v8409, %v8413
      %v8415 = vadd.f32 %v8414, 0.05243302
      %v8416 = vmul.f32 %v8409, %v8415
      %v8417 = vadd.f32 %v8416, 0.18741608
      %v8418 = vmul.f32 %v8409, %v8417
      %v8419 = vadd.f32 %v8418, 1.1283791
      %v8420 = vmul.f32 %v7323, %v8419
      %v8421 = vmul.f32 %v8409, 3.8918573e-05
      %v8422 = vadd.f32 %v8421, 0.001143296
      %v8423 = vmul.f32 %v8409, %v8422
      %v8424 = vadd.f32 %v8423, 0.014752088
      %v8425 = vmul.f32 %v8409, %v8424
      %v8426 = vadd.f32 %v8425, 0.112945676
      %v8427 = vmul.f32 %v8409, %v8426
      %v8428 = vadd.f32 %v8427, 0.4994258
      %v8429 = vmul.f32 %v8409, %v8428
      %v8430 = vadd.f32 %v8429, 1.0
      %v8431 = vrcp.pop %v8430
      %v8432 = vmul.f32 %v8430, %v8431
      %v8433 = vsub.f32 1.0, %v8432
      %v8434 = vmul.f32 %v8431, %v8433
      %v8435 = vadd.f32 %v8431, %v8434
      %vm8436 = vweird.f32 %v8430
      %vm8437 = vweird.f32 %v8431
      %vm8438 = vmor %vm8436, %vm8437
      %v8439 = vsel %vm8438, %v8431, %v8435
      %v8440 = vand.u32 2147483647, %v8430
      %vm8441 = vcmp.eq.f32.partialorder %v8440, 8.507059e+37
      %v8442 = vand.u32 %v8430, 2147483648
      %v8443 = vor.u32 1.1754944e-38, %v8442
      %v8444 = vsel %vm8441, %v8443, %v8439
      %v8445 = vmul.f32 %v8420, %v8444
      %v8446 = vmin.f32 %v8445, 1.0
      %v8447 = vmax.f32 %v8446, -1.0
      %v8448 = vmul.f32 %v7324, %v7324
      %v8449 = vmin.f32 16.0, %v8448
      %v8450 = vmul.f32 %v8449, 2.1237322e-06
      %v8451 = vadd.f32 %v8450, 0.00028619796
      %v8452 = vmul.f32 %v8449, %v8451
      %v8453 = vadd.f32 %v8452, 0.0036580483
      %v8454 = vmul.f32 %v8449, %v8453
      %v8455 = vadd.f32 %v8454, 0.05243302
      %v8456 = vmul.f32 %v8449, %v8455
      %v8457 = vadd.f32 %v8456, 0.18741608
      %v8458 = vmul.f32 %v8449, %v8457
      %v8459 = vadd.f32 %v8458, 1.1283791
      %v8460 = vmul.f32 %v7324, %v8459
      %v8461 = vmul.f32 %v8449, 3.8918573e-05
      %v8462 = vadd.f32 %v8461, 0.001143296
      %v8463 = vmul.f32 %v8449, %v8462
      %v8464 = vadd.f32 %v8463, 0.014752088
      %v8465 = vmul.f32 %v8449, %v8464
      %v8466 = vadd.f32 %v8465, 0.112945676
      %v8467 = vmul.f32 %v8449, %v8466
      %v8468 = vadd.f32 %v8467, 0.4994258
      %v8469 = vmul.f32 %v8449, %v8468
      %v8470 = vadd.f32 %v8469, 1.0
      %v8471 = vrcp.pop %v8470
      %v8472 = vmul.f32 %v8470, %v8471
      %v8473 = vsub.f32 1.0, %v8472
      %v8474 = vmul.f32 %v8471, %v8473
      %v8475 = vadd.f32 %v8471, %v8474
      %vm8476 = vweird.f32 %v8470
      %vm8477 = vweird.f32 %v8471
      %vm8478 = vmor %vm8476, %vm8477
      %v8479 = vsel %vm8478, %v8471, %v8475
      %v8480 = vand.u32 2147483647, %v8470
      %vm8481 = vcmp.eq.f32.partialorder %v8480, 8.507059e+37
      %v8482 = vand.u32 %v8470, 2147483648
      %v8483 = vor.u32 1.1754944e-38, %v8482
      %v8484 = vsel %vm8481, %v8483, %v8479
      %v8485 = vmul.f32 %v8460, %v8484
      %v8486 = vmin.f32 %v8485, 1.0
      %v8487 = vmax.f32 %v8486, -1.0
      %v8488 = vmul.f32 %v7325, %v7325
      %v8489 = vmin.f32 16.0, %v8488
      %v8490 = vmul.f32 %v8489, 2.1237322e-06
      %v8491 = vadd.f32 %v8490, 0.00028619796
      %v8492 = vmul.f32 %v8489, %v8491
      %v8493 = vadd.f32 %v8492, 0.0036580483
      %v8494 = vmul.f32 %v8489, %v8493
      %v8495 = vadd.f32 %v8494, 0.05243302
      %v8496 = vmul.f32 %v8489, %v8495
      %v8497 = vadd.f32 %v8496, 0.18741608
      %v8498 = vmul.f32 %v8489, %v8497
      %v8499 = vadd.f32 %v8498, 1.1283791
      %v8500 = vmul.f32 %v7325, %v8499
      %v8501 = vmul.f32 %v8489, 3.8918573e-05
      %v8502 = vadd.f32 %v8501, 0.001143296
      %v8503 = vmul.f32 %v8489, %v8502
      %v8504 = vadd.f32 %v8503, 0.014752088
      %v8505 = vmul.f32 %v8489, %v8504
      %v8506 = vadd.f32 %v8505, 0.112945676
      %v8507 = vmul.f32 %v8489, %v8506
      %v8508 = vadd.f32 %v8507, 0.4994258
      %v8509 = vmul.f32 %v8489, %v8508
      %v8510 = vadd.f32 %v8509, 1.0
      %v8511 = vrcp.pop %v8510
      %v8512 = vmul.f32 %v8510, %v8511
      %v8513 = vsub.f32 1.0, %v8512
      %v8514 = vmul.f32 %v8511, %v8513
      %v8515 = vadd.f32 %v8511, %v8514
      %vm8516 = vweird.f32 %v8510
      %vm8517 = vweird.f32 %v8511
      %vm8518 = vmor %vm8516, %vm8517
      %v8519 = vsel %vm8518, %v8511, %v8515
      %v8520 = vand.u32 2147483647, %v8510
      %vm8521 = vcmp.eq.f32.partialorder %v8520, 8.507059e+37
      %v8522 = vand.u32 %v8510, 2147483648
      %v8523 = vor.u32 1.1754944e-38, %v8522
      %v8524 = vsel %vm8521, %v8523, %v8519
      %v8525 = vmul.f32 %v8500, %v8524
      %v8526 = vmin.f32 %v8525, 1.0
      %v8527 = vmax.f32 %v8526, -1.0
      %v8528 = vmul.f32 %v7326, %v7326
      %v8529 = vmin.f32 16.0, %v8528
      %v8530 = vmul.f32 %v8529, 2.1237322e-06
      %v8531 = vadd.f32 %v8530, 0.00028619796
      %v8532 = vmul.f32 %v8529, %v8531
      %v8533 = vadd.f32 %v8532, 0.0036580483
      %v8534 = vmul.f32 %v8529, %v8533
      %v8535 = vadd.f32 %v8534, 0.05243302
      %v8536 = vmul.f32 %v8529, %v8535
      %v8537 = vadd.f32 %v8536, 0.18741608
      %v8538 = vmul.f32 %v8529, %v8537
      %v8539 = vadd.f32 %v8538, 1.1283791
      %v8540 = vmul.f32 %v7326, %v8539
      %v8541 = vmul.f32 %v8529, 3.8918573e-05
      %v8542 = vadd.f32 %v8541, 0.001143296
      %v8543 = vmul.f32 %v8529, %v8542
      %v8544 = vadd.f32 %v8543, 0.014752088
      %v8545 = vmul.f32 %v8529, %v8544
      %v8546 = vadd.f32 %v8545, 0.112945676
      %v8547 = vmul.f32 %v8529, %v8546
      %v8548 = vadd.f32 %v8547, 0.4994258
      %v8549 = vmul.f32 %v8529, %v8548
      %v8550 = vadd.f32 %v8549, 1.0
      %v8551 = vrcp.pop %v8550
      %v8552 = vmul.f32 %v8550, %v8551
      %v8553 = vsub.f32 1.0, %v8552
      %v8554 = vmul.f32 %v8551, %v8553
      %v8555 = vadd.f32 %v8551, %v8554
      %vm8556 = vweird.f32 %v8550
      %vm8557 = vweird.f32 %v8551
      %vm8558 = vmor %vm8556, %vm8557
      %v8559 = vsel %vm8558, %v8551, %v8555
      %v8560 = vand.u32 2147483647, %v8550
      %vm8561 = vcmp.eq.f32.partialorder %v8560, 8.507059e+37
      %v8562 = vand.u32 %v8550, 2147483648
      %v8563 = vor.u32 1.1754944e-38, %v8562
      %v8564 = vsel %vm8561, %v8563, %v8559
      %v8565 = vmul.f32 %v8540, %v8564
      %v8566 = vmin.f32 %v8565, 1.0
      %v8567 = vmax.f32 %v8566, -1.0
      %v8568 = vmul.f32 %v7327, %v7327
      %v8569 = vmin.f32 16.0, %v8568
      %v8570 = vmul.f32 %v8569, 2.1237322e-06
      %v8571 = vadd.f32 %v8570, 0.00028619796
      %v8572 = vmul.f32 %v8569, %v8571
      %v8573 = vadd.f32 %v8572, 0.0036580483
      %v8574 = vmul.f32 %v8569, %v8573
      %v8575 = vadd.f32 %v8574, 0.05243302
      %v8576 = vmul.f32 %v8569, %v8575
      %v8577 = vadd.f32 %v8576, 0.18741608
      %v8578 = vmul.f32 %v8569, %v8577
      %v8579 = vadd.f32 %v8578, 1.1283791
      %v8580 = vmul.f32 %v7327, %v8579
      %v8581 = vmul.f32 %v8569, 3.8918573e-05
      %v8582 = vadd.f32 %v8581, 0.001143296
      %v8583 = vmul.f32 %v8569, %v8582
      %v8584 = vadd.f32 %v8583, 0.014752088
      %v8585 = vmul.f32 %v8569, %v8584
      %v8586 = vadd.f32 %v8585, 0.112945676
      %v8587 = vmul.f32 %v8569, %v8586
      %v8588 = vadd.f32 %v8587, 0.4994258
      %v8589 = vmul.f32 %v8569, %v8588
      %v8590 = vadd.f32 %v8589, 1.0
      %v8591 = vrcp.pop %v8590
      %v8592 = vmul.f32 %v8590, %v8591
      %v8593 = vsub.f32 1.0, %v8592
      %v8594 = vmul.f32 %v8591, %v8593
      %v8595 = vadd.f32 %v8591, %v8594
      %vm8596 = vweird.f32 %v8590
      %vm8597 = vweird.f32 %v8591
      %vm8598 = vmor %vm8596, %vm8597
      %v8599 = vsel %vm8598, %v8591, %v8595
      %v8600 = vand.u32 2147483647, %v8590
      %vm8601 = vcmp.eq.f32.partialorder %v8600, 8.507059e+37
      %v8602 = vand.u32 %v8590, 2147483648
      %v8603 = vor.u32 1.1754944e-38, %v8602
      %v8604 = vsel %vm8601, %v8603, %v8599
      %v8605 = vmul.f32 %v8580, %v8604
      %v8606 = vmin.f32 %v8605, 1.0
      %v8607 = vmax.f32 %v8606, -1.0
      %v8608 = vadd.f32 %v7367, 1.0
      %v8609 = vadd.f32 %v7407, 1.0
      %v8610 = vadd.f32 %v7447, 1.0
      %v8611 = vadd.f32 %v7487, 1.0
      %v8612 = vadd.f32 %v7527, 1.0
      %v8613 = vadd.f32 %v7567, 1.0
      %v8614 = vadd.f32 %v7607, 1.0
      %v8615 = vadd.f32 %v7647, 1.0
      %v8616 = vadd.f32 %v7687, 1.0
      %v8617 = vadd.f32 %v7727, 1.0
      %v8618 = vadd.f32 %v7767, 1.0
      %v8619 = vadd.f32 %v7807, 1.0
      %v8620 = vadd.f32 %v7847, 1.0
      %v8621 = vadd.f32 %v7887, 1.0
      %v8622 = vadd.f32 %v7927, 1.0
      %v8623 = vadd.f32 %v7967, 1.0
      %v8624 = vadd.f32 %v8007, 1.0
      %v8625 = vadd.f32 %v8047, 1.0
      %v8626 = vadd.f32 %v8087, 1.0
      %v8627 = vadd.f32 %v8127, 1.0
      %v8628 = vadd.f32 %v8167, 1.0
      %v8629 = vadd.f32 %v8207, 1.0
      %v8630 = vadd.f32 %v8247, 1.0
      %v8631 = vadd.f32 %v8287, 1.0
      %v8632 = vadd.f32 %v8327, 1.0
      %v8633 = vadd.f32 %v8367, 1.0
      %v8634 = vadd.f32 %v8407, 1.0
      %v8635 = vadd.f32 %v8447, 1.0
      %v8636 = vadd.f32 %v8487, 1.0
      %v8637 = vadd.f32 %v8527, 1.0
      %v8638 = vadd.f32 %v8567, 1.0
      %v8639 = vadd.f32 %v8607, 1.0
      %v8640 = vmul.f32 %v7264, %v8608
      %v8641 = vmul.f32 %v7265, %v8609
      %v8642 = vmul.f32 %v7266, %v8610
      %v8643 = vmul.f32 %v7267, %v8611
      %v8644 = vmul.f32 %v7268, %v8612
      %v8645 = vmul.f32 %v7269, %v8613
      %v8646 = vmul.f32 %v7270, %v8614
      %v8647 = vmul.f32 %v7271, %v8615
      %v8648 = vmul.f32 %v7272, %v8616
      %v8649 = vmul.f32 %v7273, %v8617
      %v8650 = vmul.f32 %v7274, %v8618
      %v8651 = vmul.f32 %v7275, %v8619
      %v8652 = vmul.f32 %v7276, %v8620
      %v8653 = vmul.f32 %v7277, %v8621
      %v8654 = vmul.f32 %v7278, %v8622
      %v8655 = vmul.f32 %v7279, %v8623
      %v8656 = vmul.f32 %v7280, %v8624
      %v8657 = vmul.f32 %v7281, %v8625
      %v8658 = vmul.f32 %v7282, %v8626
      %v8659 = vmul.f32 %v7283, %v8627
      %v8660 = vmul.f32 %v7284, %v8628
      %v8661 = vmul.f32 %v7285, %v8629
      %v8662 = vmul.f32 %v7286, %v8630
      %v8663 = vmul.f32 %v7287, %v8631
      %v8664 = vmul.f32 %v7288, %v8632
      %v8665 = vmul.f32 %v7289, %v8633
      %v8666 = vmul.f32 %v7290, %v8634
      %v8667 = vmul.f32 %v7291, %v8635
      %v8668 = vmul.f32 %v7292, %v8636
      %v8669 = vmul.f32 %v7293, %v8637
      %v8670 = vmul.f32 %v7294, %v8638
      %v8671 = vmul.f32 %v7295, %v8639
      %v8672 = vld [vmem:[%s8] sm:$0x7]
      %v8673 = vld [vmem:[%s9] sm:$0x7]
      %8675 = vset.pattern.permute.xlu0 0
      %8676 = vperm.xlu0 %8675, %v8673
      %v8677 = vpop.permute.xlu0 %8676
      %v8680 = vsel %vm2991, %v8672, 0
      %v8683 = vsel %vm2991, %v8640, 0
      %v8686 = vsel %vm2991, %v8641, 0
      %v8689 = vsel %vm2991, %v8642, 0
      %v8692 = vsel %vm2991, %v8643, 0
      %v8695 = vsel %vm2991, %v8644, 0
      %v8698 = vsel %vm2991, %v8645, 0
      %v8701 = vsel %vm2991, %v8646, 0
      %v8704 = vsel %vm2991, %v8647, 0
      %v8707 = vsel %vm2991, %v8648, 0
      %v8710 = vsel %vm2991, %v8649, 0
      %v8713 = vsel %vm2991, %v8650, 0
      %v8716 = vsel %vm2991, %v8651, 0
      %v8719 = vsel %vm2991, %v8652, 0
      %v8722 = vsel %vm2991, %v8653, 0
      %v8725 = vsel %vm2991, %v8654, 0
      %v8728 = vsel %vm2991, %v8655, 0
      %v8731 = vsel %vm2991, %v8656, 0
      %v8734 = vsel %vm2991, %v8657, 0
      %v8737 = vsel %vm2991, %v8658, 0
      %v8740 = vsel %vm2991, %v8659, 0
      %v8743 = vsel %vm2991, %v8660, 0
      %v8746 = vsel %vm2991, %v8661, 0
      %v8749 = vsel %vm2991, %v8662, 0
      %v8752 = vsel %vm2991, %v8663, 0
      %v8755 = vsel %vm2991, %v8664, 0
      %v8758 = vsel %vm2991, %v8665, 0
      %v8761 = vsel %vm2991, %v8666, 0
      %v8764 = vsel %vm2991, %v8667, 0
      %v8767 = vsel %vm2991, %v8668, 0
      %v8770 = vsel %vm2991, %v8669, 0
      %v8773 = vsel %vm2991, %v8670, 0
      %v8776 = vsel %vm2991, %v8671, 0
      %8778 = vmatpush.xpose.msra.mxu0 %v8728
      %8779 = vmatpush.xpose.msra.mxu0 %v8725
      %8780 = vmatpush.xpose.msra.mxu0 %v8722
      %8781 = vmatpush.xpose.msra.mxu0 %v8719
      %8782 = vmatpush.xpose.msra.mxu0 %v8716
      %8783 = vmatpush.xpose.msra.mxu0 %v8713
      %8784 = vmatpush.xpose.msra.mxu0 %v8710
      %8785 = vmatpush.xpose.msra.mxu0 %v8707
      %8786 = vmatpush.xpose.msra.mxu0 %v8704
      %8787 = vmatpush.xpose.msra.mxu0 %v8701
      %8788 = vmatpush.xpose.msra.mxu0 %v8698
      %8789 = vmatpush.xpose.msra.mxu0 %v8695
      %8790 = vmatpush.xpose.msra.mxu0 %v8692
      %8791 = vmatpush.xpose.msra.mxu0 %v8689
      %8792 = vmatpush.xpose.msra.mxu0 %v8686
      %8793 = vmatpush.xpose.msra.mxu0 %v8683
      %8794 = vmatmul.f32.gmra.mxu0 %v8680
      %v8795 = vpop.f32.mrf.mxu0
      %v8796 = vadd.f32 %v8677, %v8795
      %8797 = vdwg.mxu0
      %8798 = vmatpush.xpose.msra.mxu0 %v8776
      %8799 = vmatpush.xpose.msra.mxu0 %v8773
      %8800 = vmatpush.xpose.msra.mxu0 %v8770
      %8801 = vmatpush.xpose.msra.mxu0 %v8767
      %8802 = vmatpush.xpose.msra.mxu0 %v8764
      %8803 = vmatpush.xpose.msra.mxu0 %v8761
      %8804 = vmatpush.xpose.msra.mxu0 %v8758
      %8805 = vmatpush.xpose.msra.mxu0 %v8755
      %8806 = vmatpush.xpose.msra.mxu0 %v8752
      %8807 = vmatpush.xpose.msra.mxu0 %v8749
      %8808 = vmatpush.xpose.msra.mxu0 %v8746
      %8809 = vmatpush.xpose.msra.mxu0 %v8743
      %8810 = vmatpush.xpose.msra.mxu0 %v8740
      %8811 = vmatpush.xpose.msra.mxu0 %v8737
      %8812 = vmatpush.xpose.msra.mxu0 %v8734
      %8813 = vmatpush.xpose.msra.mxu0 %v8731
      %8814 = vmatmul.f32.gmra.mxu0 %v8680
      %v8815 = vpop.f32.mrf.mxu0
      %v8816 = vadd.f32 %v8677, %v8815
      %8817 = vdwg.mxu0
      %v8818 = vtanh.pop %v8796
      %v8819 = vtanh.pop %v8816
      %v8822 = vrot.slane %v8819, 4
      %vm8823 = vcmask 1043456
      %v8824 = vsel %vm8823, %v8818, %v8822
      %8826 = vst [vmem:[%s373] sm:$0x77] %v8824
      %p8827 = scmp.lt.s32.totalorder %s21, 1
      %s8828 = scalar_select %p8827, %s21, 1
      %s8829 = smul.addr %s8828, 2
      %s8830 = smul.addr %s8829, 4
      %s8831 = scalar_lea.vmem %s10, %s8830
      // Predicated region
      $region61: #{tpu_custom_call.1} parent=59 // pred_check
        %p8832 = pneg %p259
      $region62: #{tpu_custom_call.1} parent=59 // pred_check_branch
        %8834 = sbr.rel (%p8832) target = $region64
      $region63: #{tpu_custom_call.1} parent=59 // pred_region
        _
      $region64: #{tpu_custom_call.1} parent=59 // pred_fallthru
        _
    $region60: #{tpu_custom_call.1} parent=5 // pred_fallthru
      _
    %p8835 = scmp.le.s32.totalorder 2, %s16
    // Predicated region
    $region65: #{tpu_custom_call.1} parent=5 // pred_check
      %p8836 = pneg %p8835
    $region66: #{tpu_custom_call.1} parent=5 // pred_check_branch
      %8838 = sbr.rel (%p8836) target = $region68
    $region67: #{tpu_custom_call.1} parent=5 // pred_region
      %s8839 = ssub.s32 %s16, 2
      // Predicated region
      $region69: #{tpu_custom_call.1} parent=67 // pred_check
        %p8840 = pneg %p265
      $region70: #{tpu_custom_call.1} parent=67 // pred_check_branch
        %8842 = sbr.rel (%p8840) target = $region72
      $region71: #{tpu_custom_call.1} parent=67 // pred_region
        %p8843 = scmp.lt.s32.totalorder %s22, 1
        %s8844 = scalar_select %p8843, %s22, 1
        %s8845 = smul.addr %s8844, 2
        %s8846 = smul.addr %s8845, 4
        %s8847 = scalar_lea.vmem %s10, %s8846
      $region72: #{tpu_custom_call.1} parent=67 // pred_fallthru
        _
    $region68: #{tpu_custom_call.1} parent=5 // pred_fallthru
      _
  $region6: #{tpu_custom_call.1} parent=0 // loop_footer
    %s20 = sadd.s32 1, %s16
  $region7: #{tpu_custom_call.1} parent=0 // loop_footer_branch
    %15 = sbr.rel target = $region3
  $region8: #{tpu_custom_call.1} parent=0 // loop_exit
    _

</llo_original>
